<compile_context>
chip_gen: v7x
topology: tpu7x:2x2x1
jax: 0.10.0
libtpu: 0.0.40
codegen_flags: <defaults>
</compile_context>

<pallas_src>
import functools

import jax
import jax.numpy as jnp
from jax import lax
from jax.experimental import pallas as pl
from jax.experimental.pallas import tpu as pltpu

_INV_SQRT2 = 0.7071067811865476
_EPS = 1e-6          # matches ChannelsFirstLayerNorm(eps=1e-6) in the module
_LANE = 128
_SUBLANE = 8


def _round_up(v, m):
    return (v + m - 1) // m * m


def _erf_poly(x):
    # Abramowitz & Stegun 7.1.26 rational approximation (|err| < 1.5e-7),
    # built only from mul/add/div/exp/where (all lower cleanly in Mosaic).
    a1, a2, a3, a4, a5 = (0.254829592, -0.284496736, 1.421413741,
                          -1.453152027, 1.061405429)
    ax = jnp.abs(x)
    t = 1.0 / (1.0 + 0.3275911 * ax)
    poly = ((((a5 * t + a4) * t + a3) * t + a2) * t + a1) * t
    y = 1.0 - poly * jnp.exp(-(ax * ax))
    return jnp.where(x >= 0, y, -y)


def _gelu(x):
    # Exact (erf-based) GELU, matching torch.nn.GELU()'s default, to ~1e-7.
    return 0.5 * x * (1.0 + _erf_poly(x * _INV_SQRT2))


def _gelu_ref(x):
    return 0.5 * x * (1.0 + lax.erf(x * _INV_SQRT2))


def _vmem_limit_bytes():
    # v5e/v6e: 128 MiB physical VMEM -> ~96 MiB budget; v7x: 64 MiB -> ~48 MiB.
    try:
        cap = int(pltpu.get_tpu_info().vmem_capacity_bytes)
    except Exception:
        cap = 64 * 1024 * 1024          # conservative fallback (fits v7x too)
    return max(32 * 1024 * 1024, min(cap * 3 // 4, 96 * 1024 * 1024))


def _ln_rows_masked(x, g, b, chan_mask, inv_c):
    # LayerNorm over the REAL channels of a lane-padded (rows, Cp) tile.
    # Padded channels of x are zero by construction, so the plain lane-sum
    # gives the true mean; chan_mask re-zeroes the padded lanes of (x - mu).
    mu = jnp.sum(x, axis=-1, keepdims=True) * inv_c
    xc = (x - mu) * chan_mask
    var = jnp.sum(xc * xc, axis=-1, keepdims=True) * inv_c
    return xc * lax.rsqrt(var + _EPS) * g + b


# ----------------------------------------------------------------------------
# Fused "all blocks" kernel: grid = (batch, depth); activation resident in the
# output VMEM block across the depth axis.
# ----------------------------------------------------------------------------
_STACKED_PARAM_ORDER = (
    "an_g", "an_b", "av_w", "av_b", "adw_w", "adw_b", "pr_w", "pr_b", "ls1",
    "mn_g", "mn_b", "f1_w", "f1_b", "pos_w", "pos_b", "f2_w", "f2_b", "ls2",
)


def _make_blocks_kernel(width, m, cp, ep, c_real, k_attn, moff_attn, moff_pos):
    p_attn = max(k_attn // 2, 1)
    inv_c = 1.0 / float(c_real)

    def dwconv(a, w_taps, bias, cmasks, pad_ref, k, moff):
        # Depthwise KxK "SAME" conv on the flattened (M=H*W, Cp) tile.
        # A zero VMEM halo absorbs vertical out-of-image taps; horizontally
        # wrapped taps are zeroed with ONE column-validity select per dx
        # applied to the dy-accumulated partial sum (k-1 selects total).
        p = k // 2
        pad_ref[moff:moff + m, :] = a          # aligned interior store
        acc = None
        # TODO(synk): derive the dx-shifted taps with pltpu.roll (XLU slot)
        # from one aligned per-dy slab read to cut scratch loads k*k -> k.
        for dx in range(k):
            ox = dx - p
            part = None
            for dy in range(k):
                off = (dy - p) * width + ox
                tap = pad_ref[moff + off:moff + off + m, :]
                t = dy * k + dx
                term = tap * w_taps[t:t + 1, :]
                part = term if part is None else part + term
            if ox != 0:
                part = jnp.where(cmasks[ox], part, 0.0)
            acc = part if acc is None else acc + part
        return acc + bias

    def kernel(x_ref,
               an_g, an_b, av_w, av_b, adw_w, adw_b, pr_w, pr_b, ls1,
               mn_g, mn_b, f1_w, f1_b, pos_w, pos_b, f2_w, f2_b, ls2,
               o_ref, attn_pad_ref, pos_pad_ref):
        d = pl.program_id(1)                  # block index (inner, arbitrary)

        @pl.when(d == 0)
        def _():
            # Load the image into the VMEM-resident accumulator and zero the
            # dwconv halos once per image (interior stores never touch them).
            o_ref[...] = x_ref[...]
            attn_pad_ref[0:moff_attn, :] = jnp.zeros((moff_attn, cp),
                                                     jnp.float32)
            attn_pad_ref[moff_attn + m:moff_attn + m + moff_attn, :] = (
                jnp.zeros((moff_attn, cp), jnp.float32))
            pos_pad_ref[0:moff_pos, :] = jnp.zeros((moff_pos, ep), jnp.float32)
            pos_pad_ref[moff_pos + m:moff_pos + m + moff_pos, :] = (
                jnp.zeros((moff_pos, ep), jnp.float32))

        # In-kernel index helpers (no (M,1) column-index input DMA).
        col = lax.broadcasted_iota(jnp.int32, (m, 1), 0) % width
        cmasks = {ox: ((col + ox) >= 0) & ((col + ox) < width)
                  for ox in range(-p_attn, p_attn + 1) if ox != 0}
        chan_mask = (lax.broadcasted_iota(jnp.int32, (1, cp), 1)
                     < c_real).astype(jnp.float32)

        x = o_ref[0].astype(jnp.float32)

        # --- SpatialAttention: proj(dwconv(gelu(a1(y))) * v(y)), y=norm(x) ---
        y = _ln_rows_masked(x, an_g[0], an_b[0], chan_mask, inv_c)
        av = jnp.dot(y, av_w[0], preferred_element_type=jnp.float32) + av_b[0]
        a = _gelu(av[:, :cp])                 # fused a1|v projection, split
        v = av[:, cp:]
        a = dwconv(a, adw_w[0], adw_b[0], cmasks, attn_pad_ref, k_attn,
                   moff_attn)
        o = (jnp.dot(a * v, pr_w[0], preferred_element_type=jnp.float32)
             + pr_b[0])
        # StochasticDepth(drop_path) is identity at inference / p=0.
        x = x + ls1[0] * o

        # --- MLP: fc2(h + gelu(pos(h))),  h = gelu(fc1(norm(x))) ------------
        y = _ln_rows_masked(x, mn_g[0], mn_b[0], chan_mask, inv_c)
        h = _gelu(jnp.dot(y, f1_w[0], preferred_element_type=jnp.float32)
                  + f1_b[0])
        h = h + _gelu(dwconv(h, pos_w[0], pos_b[0], cmasks, pos_pad_ref, 3,
                             moff_pos))
        o = jnp.dot(h, f2_w[0], preferred_element_type=jnp.float32) + f2_b[0]
        x = x + ls2[0] * o

        o_ref[0] = x.astype(o_ref.dtype)

    return kernel


def blocks_forward(x, stacked, width, c_real, k_attn, vmem_limit):
    n, m, cp = x.shape
    depth = stacked["an_g"].shape[0]
    ep = stacked["f1_w"].shape[2]
    p = k_attn // 2
    moff_attn = _round_up(max(p * width + p, 1), _SUBLANE)
    moff_pos = _round_up(width + 1, _SUBLANE)

    wargs = [stacked[name] for name in _STACKED_PARAM_ORDER]

    def act_map(i, d):
        return (i, 0, 0)

    def w_map(i, d):
        return (d, 0, 0)

    in_specs = [pl.BlockSpec((1, m, cp), act_map)]
    in_specs += [pl.BlockSpec((1,) + tuple(w.shape[1:]), w_map) for w in wargs]

    return pl.pallas_call(
        _make_blocks_kernel(width, m, cp, ep, c_real, k_attn, moff_attn,
                            moff_pos),
        out_shape=jax.ShapeDtypeStruct((n, m, cp), x.dtype),
        grid=(n, depth),
        in_specs=in_specs,
        out_specs=pl.BlockSpec((1, m, cp), act_map),
        scratch_shapes=[
            pltpu.VMEM((2 * moff_attn + m, cp), jnp.float32),
            pltpu.VMEM((2 * moff_pos + m, ep), jnp.float32),
        ],
        compiler_params=pltpu.CompilerParams(
            dimension_semantics=("parallel", "arbitrary"),
            vmem_limit_bytes=vmem_limit),
    )(x, *wargs)


# ----------------------------------------------------------------------------
# Fused downsample kernel: channels-first LayerNorm + 2x2 / stride-2 conv,
# computed as per-tap LN -> lane concat -> one (m2, 4*Cp) x (4*Cp, Cout) MXU
# matmul.
# ----------------------------------------------------------------------------
def _make_downsample_kernel(c_real, cp_in):
    inv_c = 1.0 / float(c_real)

    def kernel(p0, p1, p2, p3, g_ref, b_ref, w_ref, bias_ref, o_ref):
        chan_mask = (lax.broadcasted_iota(jnp.int32, (1, cp_in), 1)
                     < c_real).astype(jnp.float32)
        g = g_ref[...]
        b = b_ref[...]
        taps = [_ln_rows_masked(pr[0].astype(jnp.float32), g, b, chan_mask,
                                inv_c)
                for pr in (p0, p1, p2, p3)]
        y = jnp.concatenate(taps, axis=-1)               # (m2, 4*Cp_in)
        o = jnp.dot(y, w_ref[...], preferred_element_type=jnp.float32)
        o_ref[0] = (o + bias_ref[...]).astype(o_ref.dtype)

    return kernel


def downsample_forward(p_list, g, b, w, bias, c_real, vmem_limit):
    n, m2, cp_in = p_list[0].shape
    cp_out = w.shape[1]

    def act_map(i):
        return (i, 0, 0)

    def rep_spec(shape):
        nd = len(shape)
        return pl.BlockSpec(tuple(shape), lambda i, _nd=nd: (0,) * _nd)

    in_specs = ([pl.BlockSpec((1, m2, cp_in), act_map) for _ in p_list]
                + [rep_spec(g.shape), rep_spec(b.shape),
                   rep_spec(w.shape), rep_spec(bias.shape)])
    return pl.pallas_call(
        _make_downsample_kernel(c_real, cp_in),
        out_shape=jax.ShapeDtypeStruct((n, m2, cp_out), p_list[0].dtype),
        grid=(n,),
        in_specs=in_specs,
        out_specs=pl.BlockSpec((1, m2, cp_out), act_map),
        compiler_params=pltpu.CompilerParams(
            dimension_semantics=("parallel",),
            vmem_limit_bytes=vmem_limit),
    )(*p_list, g, b, w, bias)


# ----------------------------------------------------------------------------
# Parameter prep: zero-pad channel dims to lane multiples, fuse a1|v, stack
# per-block weights along a leading depth axis.
# ----------------------------------------------------------------------------
def _pad_last(a, target):
    pad = target - a.shape[-1]
    if pad == 0:
        return a
    return jnp.pad(a, [(0, 0)] * (a.ndim - 1) + [(0, pad)])


def _pad_mat(w, rows, cols):
    return jnp.pad(w, ((0, rows - w.shape[0]), (0, cols - w.shape[1])))


def _prepare_block_params(blocks, cp, ep):
    def stk(fn):
        return jnp.stack([fn(bp) for bp in blocks], axis=0)

    return {
        "an_g": stk(lambda p: _pad_last(p["an_g"], cp)),
        "an_b": stk(lambda p: _pad_last(p["an_b"], cp)),
        "av_w": stk(lambda p: jnp.concatenate(
            [_pad_mat(p["a1_w"], cp, cp), _pad_mat(p["v_w"], cp, cp)],
            axis=1)),
        "av_b": stk(lambda p: jnp.concatenate(
            [_pad_last(p["a1_b"], cp), _pad_last(p["v_b"], cp)], axis=1)),
        "adw_w": stk(lambda p: _pad_last(p["adw_w"], cp)),
        "adw_b": stk(lambda p: _pad_last(p["adw_b"], cp)),
        "pr_w": stk(lambda p: _pad_mat(p["pr_w"], cp, cp)),
        "pr_b": stk(lambda p: _pad_last(p["pr_b"], cp)),
        "ls1": stk(lambda p: _pad_last(p["ls1"], cp)),
        "mn_g": stk(lambda p: _pad_last(p["mn_g"], cp)),
        "mn_b": stk(lambda p: _pad_last(p["mn_b"], cp)),
        "f1_w": stk(lambda p: _pad_mat(p["f1_w"], cp, ep)),
        "f1_b": stk(lambda p: _pad_last(p["f1_b"], ep)),
        "pos_w": stk(lambda p: _pad_last(p["pos_w"], ep)),
        "pos_b": stk(lambda p: _pad_last(p["pos_b"], ep)),
        "f2_w": stk(lambda p: _pad_mat(p["f2_w"], ep, cp)),
        "f2_b": stk(lambda p: _pad_last(p["f2_b"], cp)),
        "ls2": stk(lambda p: _pad_last(p["ls2"], cp)),
    }


# ----------------------------------------------------------------------------
# Conv2FormerStage forward (Pallas-backed).  Accepts NCHW, returns NCHW.
# ----------------------------------------------------------------------------
@functools.partial(jax.jit, static_argnames=("downsample",))
def stage_forward(x_nchw, params, downsample):
    n, c_in, h, w = x_nchw.shape
    vmem_limit = _vmem_limit_bytes()
    blocks = params["blocks"]

    if downsample:
        ds = params["ds"]
        c = ds["w"].shape[1]
        h2, w2 = h // 2, w // 2
        cp_in = _round_up(c_in, _LANE)
        cp = _round_up(c, _LANE)
        xt = jnp.transpose(x_nchw, (0, 2, 3, 1))          # one NCHW->NHWC pass
        xp = xt.reshape(n, h2, 2, w2, 2, c_in)
        # TODO(synk): deinterleave the 2x2 taps with strided pl.ds reads of a
        # single (1,H,W,C) block inside the kernel to avoid these XLA copies.
        p_list = [_pad_last(xp[:, :, dy, :, dx, :].reshape(n, h2 * w2, c_in),
                            cp_in)
                  for dy in range(2) for dx in range(2)]
        w4 = ds["w"].reshape(4, c_in, c)
        w4 = jnp.pad(w4, ((0, 0), (0, cp_in - c_in), (0, cp - c)))
        w4 = w4.reshape(4 * cp_in, cp)
        x = downsample_forward(p_list, _pad_last(ds["g"], cp_in),
                               _pad_last(ds["b"], cp_in), w4,
                               _pad_last(ds["bias"], cp), c_in, vmem_limit)
        h, w = h2, w2
    else:
        c = c_in
        cp = _round_up(c, _LANE)
        x = _pad_last(
            jnp.transpose(x_nchw, (0, 2, 3, 1)).reshape(n, h * w, c), cp)

    if blocks:
        e = blocks[0]["f1_w"].shape[1]
        ep = _round_up(e, _LANE)
        k = int(round(blocks[0]["adw_w"].shape[0] ** 0.5))
        stacked = _prepare_block_params(blocks, cp, ep)
        # TODO(synk): row-band tiling of H*W (recomputed halo) for v7x VMEM.
        x = blocks_forward(x, stacked, w, c, k, vmem_limit)

    x = x[:, :, :c]
    return jnp.transpose(x.reshape(n, h, w, c), (0, 3, 1, 2))


# ----------------------------------------------------------------------------
# Deterministic synthetic parameter init (natural, unpadded layouts):
#   1x1 conv weights as (in, out); depthwise as (K*K, C); per-channel vectors
#   as (1, C); downsample 2x2 conv as (4*in, out), rows ordered (dy*2+dx)*in+c.
# ----------------------------------------------------------------------------
def init_stage_params(key, dim, out_dim, kernel_size, mlp_ratio, depth,
                      downsample):
    keys = iter(jax.random.split(key, 512))

    def nrm(shape, s=0.1):
        return s * jax.random.normal(next(keys), shape, jnp.float32)

    params = {}
    if downsample:
        params["ds"] = {
            "g": jnp.ones((1, dim), jnp.float32),
            "b": jnp.zeros((1, dim), jnp.float32),
            "w": nrm((4 * dim, out_dim)),
            "bias": nrm((1, out_dim)),
        }
    c = out_dim
    e = int(c * mlp_ratio)
    k = kernel_size[0]
    # NOTE: layer-scale is 1.0 here (module inits it to 1e-6) so the synthetic
    # correctness check exercises both branches; forward math is unchanged.
    blocks = []
    for _ in range(depth):
        blocks.append({
            "an_g": jnp.ones((1, c), jnp.float32),
            "an_b": jnp.zeros((1, c), jnp.float32),
            "a1_w": nrm((c, c)), "a1_b": nrm((1, c)),
            "adw_w": nrm((k * k, c)), "adw_b": nrm((1, c)),
            "v_w": nrm((c, c)), "v_b": nrm((1, c)),
            "pr_w": nrm((c, c)), "pr_b": nrm((1, c)),
            "ls1": jnp.ones((1, c), jnp.float32),
            "mn_g": jnp.ones((1, c), jnp.float32),
            "mn_b": jnp.zeros((1, c), jnp.float32),
            "f1_w": nrm((c, e)), "f1_b": nrm((1, e)),
            "pos_w": nrm((9, e)), "pos_b": nrm((1, e)),
            "f2_w": nrm((e, c)), "f2_b": nrm((1, c)),
            "ls2": jnp.ones((1, c), jnp.float32),
        })
    params["blocks"] = blocks
    return params


# ----------------------------------------------------------------------------
# Pure-JAX reference (independent path for correctness verification).
# ----------------------------------------------------------------------------
def _ref_ln(x, g, b):
    mu = jnp.mean(x, axis=-1, keepdims=True)
    xc = x - mu
    var = jnp.mean(xc * xc, axis=-1, keepdims=True)
    return xc * lax.rsqrt(var + _EPS) * g + b


def _ref_dwconv(x, w_flat, b):
    c = x.shape[-1]
    k = int(round(w_flat.shape[0] ** 0.5))
    w_hwio = w_flat.reshape(k, k, 1, c)
    y = lax.conv_general_dilated(
        x, w_hwio, window_strides=(1, 1), padding="SAME",
        dimension_numbers=("NHWC", "HWIO", "NHWC"), feature_group_count=c,
        precision=lax.Precision.HIGHEST)
    return y + b


def _ref_block(x, p):
    hp = lax.Precision.HIGHEST
    y = _ref_ln(x, p["an_g"], p["an_b"])
    a = _gelu_ref(jnp.matmul(y, p["a1_w"], precision=hp) + p["a1_b"])
    a = _ref_dwconv(a, p["adw_w"], p["adw_b"])
    v = jnp.matmul(y, p["v_w"], precision=hp) + p["v_b"]
    o = jnp.matmul(a * v, p["pr_w"], precision=hp) + p["pr_b"]
    x = x + p["ls1"] * o
    y = _ref_ln(x, p["mn_g"], p["mn_b"])
    hh = _gelu_ref(jnp.matmul(y, p["f1_w"], precision=hp) + p["f1_b"])
    hh = hh + _gelu_ref(_ref_dwconv(hh, p["pos_w"], p["pos_b"]))
    o = jnp.matmul(hh, p["f2_w"], precision=hp) + p["f2_b"]
    x = x + p["ls2"] * o
    return x


def ref_stage(x_nchw, params, downsample):
    x = jnp.transpose(x_nchw, (0, 2, 3, 1))
    if downsample:
        ds = params["ds"]
        c = x.shape[-1]
        y = _ref_ln(x, ds["g"], ds["b"])
        w_hwio = ds["w"].reshape(2, 2, c, -1)
        x = lax.conv_general_dilated(
            y, w_hwio, window_strides=(2, 2), padding="VALID",
            dimension_numbers=("NHWC", "HWIO", "NHWC"),
            precision=lax.Precision.HIGHEST) + ds["bias"]
    for bp in params["blocks"]:
        x = _ref_block(x, bp)
    return jnp.transpose(x, (0, 3, 1, 2))


# ----------------------------------------------------------------------------
if __name__ == "__main__":
    key = jax.random.PRNGKey(0)
    kx, kp = jax.random.split(key)

    # Stage config: dim=8 -> out_dim=16, 16x16 input (downsampled to 8x8),
    # kernel_size=(7,7), mlp_ratio=2.0, depth=2, drop_path=[0.0, 0.0] (eval).
    dim, out_dim = 8, 16
    kernel_size = (7, 7)
    mlp_ratio = 2.0
    depth = 2
    n, h, w = 2, 16, 16

    x = jax.random.normal(kx, (n, dim, h, w), jnp.float32)   # NCHW like torch
    params = init_stage_params(kp, dim, out_dim, kernel_size, mlp_ratio,
                               depth, True)

    out = jax.block_until_ready(stage_forward(x, params, downsample=True))
    assert out.shape == (n, out_dim, h // 2, w // 2), out.shape

    ref = jax.block_until_ready(ref_stage(x, params, downsample=True))
    err = float(jnp.max(jnp.abs(out - ref)))
    if err > 1e-2:
        raise SystemExit(f"mismatch vs reference: max abs err = {err}")

    print("KERNEL_OK")
</pallas_src>

<mosaic_0001>
module attributes {stable_mosaic.version = 11 : i64} {
  func.func @kernel(%arg0: i32, %arg1: memref<1x64x128xf32, #tpu.memory_space<vmem>>, %arg2: memref<1x64x128xf32, #tpu.memory_space<vmem>>, %arg3: memref<1x64x128xf32, #tpu.memory_space<vmem>>, %arg4: memref<1x64x128xf32, #tpu.memory_space<vmem>>, %arg5: memref<1x128xf32, #tpu.memory_space<vmem>>, %arg6: memref<1x128xf32, #tpu.memory_space<vmem>>, %arg7: memref<512x128xf32, #tpu.memory_space<vmem>>, %arg8: memref<1x128xf32, #tpu.memory_space<vmem>>, %arg9: memref<1x64x128xf32, #tpu.memory_space<vmem>>) attributes {dimension_semantics = [#tpu.dimension_semantics<parallel>], iteration_bounds = array<i64: 2>, scalar_prefetch = 0 : i64, scratch_operands = 0 : i64, tpu.core_type = #tpu.core_type<tc>, window_params = [{transform_indices = @transform_0, window_bounds = array<i64: 1, 64, 128>}, {transform_indices = @transform_1, window_bounds = array<i64: 1, 64, 128>}, {transform_indices = @transform_2, window_bounds = array<i64: 1, 64, 128>}, {transform_indices = @transform_3, window_bounds = array<i64: 1, 64, 128>}, {pipeline_mode = #tpu.pipeline_mode<synchronous>, transform_indices = @transform_4, window_bounds = array<i64: 1, 128>}, {pipeline_mode = #tpu.pipeline_mode<synchronous>, transform_indices = @transform_5, window_bounds = array<i64: 1, 128>}, {pipeline_mode = #tpu.pipeline_mode<synchronous>, transform_indices = @transform_6, window_bounds = array<i64: 512, 128>}, {pipeline_mode = #tpu.pipeline_mode<synchronous>, transform_indices = @transform_7, window_bounds = array<i64: 1, 128>}, {transform_indices = @transform_8, window_bounds = array<i64: 1, 64, 128>}]} {
    %0 = tpu.iota {dimensions = array<i32: 1>} : vector<1x128xi32>
    %c8_i32 = arith.constant 8 : i32
    %1 = vector.broadcast %c8_i32 : i32 to vector<1x128xi32>
    %2 = arith.cmpi slt, %0, %1 : vector<1x128xi32>
    %3 = arith.extui %2 : vector<1x128xi1> to vector<1x128xi32>
    %4 = arith.sitofp %3 : vector<1x128xi32> to vector<1x128xf32>
    %c0 = arith.constant 0 : index
    %c0_0 = arith.constant 0 : index
    %5 = vector.load %arg5[%c0, %c0_0] : memref<1x128xf32, #tpu.memory_space<vmem>>, vector<1x128xf32>
    %c0_1 = arith.constant 0 : index
    %c0_2 = arith.constant 0 : index
    %6 = vector.load %arg6[%c0_1, %c0_2] : memref<1x128xf32, #tpu.memory_space<vmem>>, vector<1x128xf32>
    %c0_3 = arith.constant 0 : index
    %c0_4 = arith.constant 0 : index
    %c0_5 = arith.constant 0 : index
    %7 = vector.load %arg1[%c0_3, %c0_4, %c0_5] : memref<1x64x128xf32, #tpu.memory_space<vmem>>, vector<1x64x128xf32>
    %8 = vector.shape_cast %7 : vector<1x64x128xf32> to vector<64x128xf32>
    %cst = arith.constant dense<0.000000e+00> : vector<64xf32>
    %9 = vector.multi_reduction <add>, %8, %cst [1] : vector<64x128xf32> to vector<64xf32>
    %10 = vector.shape_cast %9 : vector<64xf32> to vector<64x1xf32>
    %cst_6 = arith.constant 1.250000e-01 : f32
    %11 = vector.broadcast %cst_6 : f32 to vector<64x1xf32>
    %12 = arith.mulf %10, %11 : vector<64x1xf32>
    %13 = vector.broadcast %12 : vector<64x1xf32> to vector<64x128xf32>
    %14 = arith.subf %8, %13 : vector<64x128xf32>
    %15 = vector.broadcast %4 : vector<1x128xf32> to vector<64x128xf32>
    %16 = arith.mulf %14, %15 : vector<64x128xf32>
    %17 = arith.mulf %16, %16 : vector<64x128xf32>
    %cst_7 = arith.constant dense<0.000000e+00> : vector<64xf32>
    %18 = vector.multi_reduction <add>, %17, %cst_7 [1] : vector<64x128xf32> to vector<64xf32>
    %19 = vector.shape_cast %18 : vector<64xf32> to vector<64x1xf32>
    %cst_8 = arith.constant 1.250000e-01 : f32
    %20 = vector.broadcast %cst_8 : f32 to vector<64x1xf32>
    %21 = arith.mulf %19, %20 : vector<64x1xf32>
    %cst_9 = arith.constant 9.99999997E-7 : f32
    %22 = vector.broadcast %cst_9 : f32 to vector<64x1xf32>
    %23 = arith.addf %21, %22 : vector<64x1xf32>
    %24 = math.rsqrt %23 : vector<64x1xf32>
    %25 = vector.broadcast %24 : vector<64x1xf32> to vector<64x128xf32>
    %26 = arith.mulf %16, %25 : vector<64x128xf32>
    %27 = vector.broadcast %5 : vector<1x128xf32> to vector<64x128xf32>
    %28 = arith.mulf %26, %27 : vector<64x128xf32>
    %29 = vector.broadcast %6 : vector<1x128xf32> to vector<64x128xf32>
    %30 = arith.addf %28, %29 : vector<64x128xf32>
    %c0_10 = arith.constant 0 : index
    %c0_11 = arith.constant 0 : index
    %c0_12 = arith.constant 0 : index
    %31 = vector.load %arg2[%c0_10, %c0_11, %c0_12] : memref<1x64x128xf32, #tpu.memory_space<vmem>>, vector<1x64x128xf32>
    %32 = vector.shape_cast %31 : vector<1x64x128xf32> to vector<64x128xf32>
    %cst_13 = arith.constant dense<0.000000e+00> : vector<64xf32>
    %33 = vector.multi_reduction <add>, %32, %cst_13 [1] : vector<64x128xf32> to vector<64xf32>
    %34 = vector.shape_cast %33 : vector<64xf32> to vector<64x1xf32>
    %cst_14 = arith.constant 1.250000e-01 : f32
    %35 = vector.broadcast %cst_14 : f32 to vector<64x1xf32>
    %36 = arith.mulf %34, %35 : vector<64x1xf32>
    %37 = vector.broadcast %36 : vector<64x1xf32> to vector<64x128xf32>
    %38 = arith.subf %32, %37 : vector<64x128xf32>
    %39 = vector.broadcast %4 : vector<1x128xf32> to vector<64x128xf32>
    %40 = arith.mulf %38, %39 : vector<64x128xf32>
    %41 = arith.mulf %40, %40 : vector<64x128xf32>
    %cst_15 = arith.constant dense<0.000000e+00> : vector<64xf32>
    %42 = vector.multi_reduction <add>, %41, %cst_15 [1] : vector<64x128xf32> to vector<64xf32>
    %43 = vector.shape_cast %42 : vector<64xf32> to vector<64x1xf32>
    %cst_16 = arith.constant 1.250000e-01 : f32
    %44 = vector.broadcast %cst_16 : f32 to vector<64x1xf32>
    %45 = arith.mulf %43, %44 : vector<64x1xf32>
    %cst_17 = arith.constant 9.99999997E-7 : f32
    %46 = vector.broadcast %cst_17 : f32 to vector<64x1xf32>
    %47 = arith.addf %45, %46 : vector<64x1xf32>
    %48 = math.rsqrt %47 : vector<64x1xf32>
    %49 = vector.broadcast %48 : vector<64x1xf32> to vector<64x128xf32>
    %50 = arith.mulf %40, %49 : vector<64x128xf32>
    %51 = vector.broadcast %5 : vector<1x128xf32> to vector<64x128xf32>
    %52 = arith.mulf %50, %51 : vector<64x128xf32>
    %53 = vector.broadcast %6 : vector<1x128xf32> to vector<64x128xf32>
    %54 = arith.addf %52, %53 : vector<64x128xf32>
    %c0_18 = arith.constant 0 : index
    %c0_19 = arith.constant 0 : index
    %c0_20 = arith.constant 0 : index
    %55 = vector.load %arg3[%c0_18, %c0_19, %c0_20] : memref<1x64x128xf32, #tpu.memory_space<vmem>>, vector<1x64x128xf32>
    %56 = vector.shape_cast %55 : vector<1x64x128xf32> to vector<64x128xf32>
    %cst_21 = arith.constant dense<0.000000e+00> : vector<64xf32>
    %57 = vector.multi_reduction <add>, %56, %cst_21 [1] : vector<64x128xf32> to vector<64xf32>
    %58 = vector.shape_cast %57 : vector<64xf32> to vector<64x1xf32>
    %cst_22 = arith.constant 1.250000e-01 : f32
    %59 = vector.broadcast %cst_22 : f32 to vector<64x1xf32>
    %60 = arith.mulf %58, %59 : vector<64x1xf32>
    %61 = vector.broadcast %60 : vector<64x1xf32> to vector<64x128xf32>
    %62 = arith.subf %56, %61 : vector<64x128xf32>
    %63 = vector.broadcast %4 : vector<1x128xf32> to vector<64x128xf32>
    %64 = arith.mulf %62, %63 : vector<64x128xf32>
    %65 = arith.mulf %64, %64 : vector<64x128xf32>
    %cst_23 = arith.constant dense<0.000000e+00> : vector<64xf32>
    %66 = vector.multi_reduction <add>, %65, %cst_23 [1] : vector<64x128xf32> to vector<64xf32>
    %67 = vector.shape_cast %66 : vector<64xf32> to vector<64x1xf32>
    %cst_24 = arith.constant 1.250000e-01 : f32
    %68 = vector.broadcast %cst_24 : f32 to vector<64x1xf32>
    %69 = arith.mulf %67, %68 : vector<64x1xf32>
    %cst_25 = arith.constant 9.99999997E-7 : f32
    %70 = vector.broadcast %cst_25 : f32 to vector<64x1xf32>
    %71 = arith.addf %69, %70 : vector<64x1xf32>
    %72 = math.rsqrt %71 : vector<64x1xf32>
    %73 = vector.broadcast %72 : vector<64x1xf32> to vector<64x128xf32>
    %74 = arith.mulf %64, %73 : vector<64x128xf32>
    %75 = vector.broadcast %5 : vector<1x128xf32> to vector<64x128xf32>
    %76 = arith.mulf %74, %75 : vector<64x128xf32>
    %77 = vector.broadcast %6 : vector<1x128xf32> to vector<64x128xf32>
    %78 = arith.addf %76, %77 : vector<64x128xf32>
    %c0_26 = arith.constant 0 : index
    %c0_27 = arith.constant 0 : index
    %c0_28 = arith.constant 0 : index
    %79 = vector.load %arg4[%c0_26, %c0_27, %c0_28] : memref<1x64x128xf32, #tpu.memory_space<vmem>>, vector<1x64x128xf32>
    %80 = vector.shape_cast %79 : vector<1x64x128xf32> to vector<64x128xf32>
    %cst_29 = arith.constant dense<0.000000e+00> : vector<64xf32>
    %81 = vector.multi_reduction <add>, %80, %cst_29 [1] : vector<64x128xf32> to vector<64xf32>
    %82 = vector.shape_cast %81 : vector<64xf32> to vector<64x1xf32>
    %cst_30 = arith.constant 1.250000e-01 : f32
    %83 = vector.broadcast %cst_30 : f32 to vector<64x1xf32>
    %84 = arith.mulf %82, %83 : vector<64x1xf32>
    %85 = vector.broadcast %84 : vector<64x1xf32> to vector<64x128xf32>
    %86 = arith.subf %80, %85 : vector<64x128xf32>
    %87 = vector.broadcast %4 : vector<1x128xf32> to vector<64x128xf32>
    %88 = arith.mulf %86, %87 : vector<64x128xf32>
    %89 = arith.mulf %88, %88 : vector<64x128xf32>
    %cst_31 = arith.constant dense<0.000000e+00> : vector<64xf32>
    %90 = vector.multi_reduction <add>, %89, %cst_31 [1] : vector<64x128xf32> to vector<64xf32>
    %91 = vector.shape_cast %90 : vector<64xf32> to vector<64x1xf32>
    %cst_32 = arith.constant 1.250000e-01 : f32
    %92 = vector.broadcast %cst_32 : f32 to vector<64x1xf32>
    %93 = arith.mulf %91, %92 : vector<64x1xf32>
    %cst_33 = arith.constant 9.99999997E-7 : f32
    %94 = vector.broadcast %cst_33 : f32 to vector<64x1xf32>
    %95 = arith.addf %93, %94 : vector<64x1xf32>
    %96 = math.rsqrt %95 : vector<64x1xf32>
    %97 = vector.broadcast %96 : vector<64x1xf32> to vector<64x128xf32>
    %98 = arith.mulf %88, %97 : vector<64x128xf32>
    %99 = vector.broadcast %5 : vector<1x128xf32> to vector<64x128xf32>
    %100 = arith.mulf %98, %99 : vector<64x128xf32>
    %101 = vector.broadcast %6 : vector<1x128xf32> to vector<64x128xf32>
    %102 = arith.addf %100, %101 : vector<64x128xf32>
    %103 = tpu.concatenate %30, %54, %78, %102 in 1 : vector<64x128xf32>, vector<64x128xf32>, vector<64x128xf32>, vector<64x128xf32> -> vector<64x512xf32>
    %c0_34 = arith.constant 0 : index
    %c0_35 = arith.constant 0 : index
    %104 = vector.load %arg7[%c0_34, %c0_35] : memref<512x128xf32, #tpu.memory_space<vmem>>, vector<512x128xf32>
    %cst_36 = arith.constant dense<0.000000e+00> : vector<64x128xf32>
    %105 = tpu.matmul %103, %104, %cst_36 {dimension_numbers = #tpu.dot_dimension_numbers<[1], [0], [0], [1], [0, 0, 1, 1], [], []>} : vector<64x512xf32>, vector<512x128xf32>, vector<64x128xf32> -> vector<64x128xf32>
    %c0_37 = arith.constant 0 : index
    %c0_38 = arith.constant 0 : index
    %106 = vector.load %arg8[%c0_37, %c0_38] : memref<1x128xf32, #tpu.memory_space<vmem>>, vector<1x128xf32>
    %107 = vector.broadcast %106 : vector<1x128xf32> to vector<64x128xf32>
    %108 = arith.addf %105, %107 : vector<64x128xf32>
    %c0_39 = arith.constant 0 : index
    %c0_40 = arith.constant 0 : index
    %c0_41 = arith.constant 0 : index
    %109 = vector.load %arg9[%c0_39, %c0_40, %c0_41] : memref<1x64x128xf32, #tpu.memory_space<vmem>>, vector<1x64x128xf32>
    %110 = vector.shape_cast %109 : vector<1x64x128xf32> to vector<64x128xf32>
    %111 = vector.shape_cast %108 : vector<64x128xf32> to vector<1x64x128xf32>
    tpu.vector_store %arg9[%c0_39, %c0_40, %c0_41], %111 {strides = array<i32>} : memref<1x64x128xf32, #tpu.memory_space<vmem>>, vector<1x64x128xf32>,
    return
  }
  func.func @transform_0(%arg0: i32) -> (i32, i32, i32) {
    %c0_i32 = arith.constant 0 : i32
    %c0_i32_0 = arith.constant 0 : i32
    %c0_i32_1 = arith.constant 0 : i32
    return %arg0, %c0_i32, %c0_i32_0 : i32, i32, i32
  }
  func.func @transform_1(%arg0: i32) -> (i32, i32, i32) {
    %c0_i32 = arith.constant 0 : i32
    %c0_i32_0 = arith.constant 0 : i32
    %c0_i32_1 = arith.constant 0 : i32
    return %arg0, %c0_i32, %c0_i32_0 : i32, i32, i32
  }
  func.func @transform_2(%arg0: i32) -> (i32, i32, i32) {
    %c0_i32 = arith.constant 0 : i32
    %c0_i32_0 = arith.constant 0 : i32
    %c0_i32_1 = arith.constant 0 : i32
    return %arg0, %c0_i32, %c0_i32_0 : i32, i32, i32
  }
  func.func @transform_3(%arg0: i32) -> (i32, i32, i32) {
    %c0_i32 = arith.constant 0 : i32
    %c0_i32_0 = arith.constant 0 : i32
    %c0_i32_1 = arith.constant 0 : i32
    return %arg0, %c0_i32, %c0_i32_0 : i32, i32, i32
  }
  func.func @transform_4(%arg0: i32) -> (i32, i32) {
    %c0_i32 = arith.constant 0 : i32
    %c0_i32_0 = arith.constant 0 : i32
    %c0_i32_1 = arith.constant 0 : i32
    return %c0_i32, %c0_i32_0 : i32, i32
  }
  func.func @transform_5(%arg0: i32) -> (i32, i32) {
    %c0_i32 = arith.constant 0 : i32
    %c0_i32_0 = arith.constant 0 : i32
    %c0_i32_1 = arith.constant 0 : i32
    return %c0_i32, %c0_i32_0 : i32, i32
  }
  func.func @transform_6(%arg0: i32) -> (i32, i32) {
    %c0_i32 = arith.constant 0 : i32
    %c0_i32_0 = arith.constant 0 : i32
    %c0_i32_1 = arith.constant 0 : i32
    return %c0_i32, %c0_i32_0 : i32, i32
  }
  func.func @transform_7(%arg0: i32) -> (i32, i32) {
    %c0_i32 = arith.constant 0 : i32
    %c0_i32_0 = arith.constant 0 : i32
    %c0_i32_1 = arith.constant 0 : i32
    return %c0_i32, %c0_i32_0 : i32, i32
  }
  func.func @transform_8(%arg0: i32) -> (i32, i32, i32) {
    %c0_i32 = arith.constant 0 : i32
    %c0_i32_0 = arith.constant 0 : i32
    %c0_i32_1 = arith.constant 0 : i32
    return %arg0, %c0_i32, %c0_i32_0 : i32, i32, i32
  }
}

module attributes {stable_mosaic.version = 11 : i64} {
  func.func @kernel(%arg0: i32, %arg1: i32, %arg2: memref<1x64x128xf32, #tpu.memory_space<vmem>>, %arg3: memref<1x1x128xf32, #tpu.memory_space<vmem>>, %arg4: memref<1x1x128xf32, #tpu.memory_space<vmem>>, %arg5: memref<1x128x256xf32, #tpu.memory_space<vmem>>, %arg6: memref<1x1x256xf32, #tpu.memory_space<vmem>>, %arg7: memref<1x49x128xf32, #tpu.memory_space<vmem>>, %arg8: memref<1x1x128xf32, #tpu.memory_space<vmem>>, %arg9: memref<1x128x128xf32, #tpu.memory_space<vmem>>, %arg10: memref<1x1x128xf32, #tpu.memory_space<vmem>>, %arg11: memref<1x1x128xf32, #tpu.memory_space<vmem>>, %arg12: memref<1x1x128xf32, #tpu.memory_space<vmem>>, %arg13: memref<1x1x128xf32, #tpu.memory_space<vmem>>, %arg14: memref<1x128x128xf32, #tpu.memory_space<vmem>>, %arg15: memref<1x1x128xf32, #tpu.memory_space<vmem>>, %arg16: memref<1x9x128xf32, #tpu.memory_space<vmem>>, %arg17: memref<1x1x128xf32, #tpu.memory_space<vmem>>, %arg18: memref<1x128x128xf32, #tpu.memory_space<vmem>>, %arg19: memref<1x1x128xf32, #tpu.memory_space<vmem>>, %arg20: memref<1x1x128xf32, #tpu.memory_space<vmem>>, %arg21: memref<1x64x128xf32, #tpu.memory_space<vmem>>, %arg22: memref<128x128xf32, #tpu.memory_space<vmem>>, %arg23: memref<96x128xf32, #tpu.memory_space<vmem>>) attributes {dimension_semantics = [#tpu.dimension_semantics<parallel>, #tpu.dimension_semantics<arbitrary>], iteration_bounds = array<i64: 2, 2>, scalar_prefetch = 0 : i64, scratch_operands = 2 : i64, tpu.core_type = #tpu.core_type<tc>, window_params = [{transform_indices = @transform_0, window_bounds = array<i64: 1, 64, 128>}, {transform_indices = @transform_1, window_bounds = array<i64: 1, 1, 128>}, {transform_indices = @transform_2, window_bounds = array<i64: 1, 1, 128>}, {transform_indices = @transform_3, window_bounds = array<i64: 1, 128, 256>}, {transform_indices = @transform_4, window_bounds = array<i64: 1, 1, 256>}, {transform_indices = @transform_5, window_bounds = array<i64: 1, 49, 128>}, {transform_indices = @transform_6, window_bounds = array<i64: 1, 1, 128>}, {transform_indices = @transform_7, window_bounds = array<i64: 1, 128, 128>}, {transform_indices = @transform_8, window_bounds = array<i64: 1, 1, 128>}, {transform_indices = @transform_9, window_bounds = array<i64: 1, 1, 128>}, {transform_indices = @transform_10, window_bounds = array<i64: 1, 1, 128>}, {transform_indices = @transform_11, window_bounds = array<i64: 1, 1, 128>}, {transform_indices = @transform_12, window_bounds = array<i64: 1, 128, 128>}, {transform_indices = @transform_13, window_bounds = array<i64: 1, 1, 128>}, {transform_indices = @transform_14, window_bounds = array<i64: 1, 9, 128>}, {transform_indices = @transform_15, window_bounds = array<i64: 1, 1, 128>}, {transform_indices = @transform_16, window_bounds = array<i64: 1, 128, 128>}, {transform_indices = @transform_17, window_bounds = array<i64: 1, 1, 128>}, {transform_indices = @transform_18, window_bounds = array<i64: 1, 1, 128>}, {transform_indices = @transform_19, window_bounds = array<i64: 1, 64, 128>}]} {
    %c0_i32 = arith.constant 0 : i32
    %0 = arith.cmpi eq, %arg1, %c0_i32 : i32
    %1 = arith.extui %0 : i1 to i32
    %c0_i32_0 = arith.constant 0 : i32
    %2 = arith.cmpi ne, %1, %c0_i32_0 : i32
    scf.if %2 {
      %c0_220 = arith.constant 0 : index
      %c0_221 = arith.constant 0 : index
      %c0_222 = arith.constant 0 : index
      %632 = vector.load %arg2[%c0_220, %c0_221, %c0_222] : memref<1x64x128xf32, #tpu.memory_space<vmem>>, vector<1x64x128xf32>
      %c0_223 = arith.constant 0 : index
      %c0_224 = arith.constant 0 : index
      %c0_225 = arith.constant 0 : index
      %633 = vector.load %arg21[%c0_223, %c0_224, %c0_225] : memref<1x64x128xf32, #tpu.memory_space<vmem>>, vector<1x64x128xf32>
      tpu.vector_store %arg21[%c0_223, %c0_224, %c0_225], %632 {strides = array<i32>} : memref<1x64x128xf32, #tpu.memory_space<vmem>>, vector<1x64x128xf32>,
      %cst_226 = arith.constant 0.000000e+00 : f32
      %634 = vector.broadcast %cst_226 : f32 to vector<32x128xf32>
      %c0_227 = arith.constant 0 : index
      %c0_228 = arith.constant 0 : index
      %635 = vector.load %arg22[%c0_227, %c0_228] : memref<128x128xf32, #tpu.memory_space<vmem>>, vector<32x128xf32>
      tpu.vector_store %arg22[%c0_227, %c0_228], %634 {strides = array<i32>} : memref<128x128xf32, #tpu.memory_space<vmem>>, vector<32x128xf32>,
      %cst_229 = arith.constant 0.000000e+00 : f32
      %636 = vector.broadcast %cst_229 : f32 to vector<32x128xf32>
      %c96 = arith.constant 96 : index
      %c0_230 = arith.constant 0 : index
      %637 = vector.load %arg22[%c96, %c0_230] : memref<128x128xf32, #tpu.memory_space<vmem>>, vector<32x128xf32>
      tpu.vector_store %arg22[%c96, %c0_230], %636 {strides = array<i32>} : memref<128x128xf32, #tpu.memory_space<vmem>>, vector<32x128xf32>,
      %cst_231 = arith.constant 0.000000e+00 : f32
      %638 = vector.broadcast %cst_231 : f32 to vector<16x128xf32>
      %c0_232 = arith.constant 0 : index
      %c0_233 = arith.constant 0 : index
      %639 = vector.load %arg23[%c0_232, %c0_233] : memref<96x128xf32, #tpu.memory_space<vmem>>, vector<16x128xf32>
      tpu.vector_store %arg23[%c0_232, %c0_233], %638 {strides = array<i32>} : memref<96x128xf32, #tpu.memory_space<vmem>>, vector<16x128xf32>,
      %cst_234 = arith.constant 0.000000e+00 : f32
      %640 = vector.broadcast %cst_234 : f32 to vector<16x128xf32>
      %c80 = arith.constant 80 : index
      %c0_235 = arith.constant 0 : index
      %641 = vector.load %arg23[%c80, %c0_235] : memref<96x128xf32, #tpu.memory_space<vmem>>, vector<16x128xf32>
      tpu.vector_store %arg23[%c80, %c0_235], %640 {strides = array<i32>} : memref<96x128xf32, #tpu.memory_space<vmem>>, vector<16x128xf32>,
    } else {
    }
    %3 = tpu.iota {dimensions = array<i32: 0>} : vector<64x1xi32>
    %c8_i32 = arith.constant 8 : i32
    %c0_i32_1 = arith.constant 0 : i32
    %4 = arith.cmpi eq, %c8_i32, %c0_i32_1 : i32
    %c1_i32 = arith.constant 1 : i32
    %5 = arith.select %4, %c1_i32, %c8_i32 : i32
    %6 = vector.broadcast %5 : i32 to vector<64x1xi32>
    %7 = arith.remsi %3, %6 : vector<64x1xi32>
    %c0_i32_2 = arith.constant 0 : i32
    %8 = vector.broadcast %c0_i32_2 : i32 to vector<64x1xi32>
    %9 = arith.cmpi ne, %7, %8 : vector<64x1xi32>
    %c0_i32_3 = arith.constant 0 : i32
    %10 = vector.broadcast %c0_i32_3 : i32 to vector<64x1xi32>
    %11 = arith.cmpi slt, %7, %10 : vector<64x1xi32>
    %c0_i32_4 = arith.constant 0 : i32
    %12 = arith.cmpi slt, %5, %c0_i32_4 : i32
    %13 = vector.broadcast %12 : i1 to vector<64x1xi1>
    %14 = vector.broadcast %13 : vector<64x1xi1> to vector<64x1xi1>
    %15 = arith.xori %11, %14 : vector<64x1xi1>
    %16 = arith.andi %15, %9 : vector<64x1xi1>
    %17 = vector.broadcast %5 : i32 to vector<64x1xi32>
    %18 = arith.addi %7, %17 : vector<64x1xi32>
    %19 = arith.select %16, %18, %7 : vector<64x1xi1>, vector<64x1xi32>
    %c-3_i32 = arith.constant -3 : i32
    %20 = vector.broadcast %c-3_i32 : i32 to vector<64x1xi32>
    %21 = arith.addi %19, %20 : vector<64x1xi32>
    %c0_i32_5 = arith.constant 0 : i32
    %22 = vector.broadcast %c0_i32_5 : i32 to vector<64x1xi32>
    %23 = arith.cmpi sge, %21, %22 : vector<64x1xi32>
    %c-3_i32_6 = arith.constant -3 : i32
    %24 = vector.broadcast %c-3_i32_6 : i32 to vector<64x1xi32>
    %25 = arith.addi %19, %24 : vector<64x1xi32>
    %c8_i32_7 = arith.constant 8 : i32
    %26 = vector.broadcast %c8_i32_7 : i32 to vector<64x1xi32>
    %27 = arith.cmpi slt, %25, %26 : vector<64x1xi32>
    %28 = arith.andi %23, %27 : vector<64x1xi1>
    %c-2_i32 = arith.constant -2 : i32
    %29 = vector.broadcast %c-2_i32 : i32 to vector<64x1xi32>
    %30 = arith.addi %19, %29 : vector<64x1xi32>
    %c0_i32_8 = arith.constant 0 : i32
    %31 = vector.broadcast %c0_i32_8 : i32 to vector<64x1xi32>
    %32 = arith.cmpi sge, %30, %31 : vector<64x1xi32>
    %c-2_i32_9 = arith.constant -2 : i32
    %33 = vector.broadcast %c-2_i32_9 : i32 to vector<64x1xi32>
    %34 = arith.addi %19, %33 : vector<64x1xi32>
    %c8_i32_10 = arith.constant 8 : i32
    %35 = vector.broadcast %c8_i32_10 : i32 to vector<64x1xi32>
    %36 = arith.cmpi slt, %34, %35 : vector<64x1xi32>
    %37 = arith.andi %32, %36 : vector<64x1xi1>
    %c-1_i32 = arith.constant -1 : i32
    %38 = vector.broadcast %c-1_i32 : i32 to vector<64x1xi32>
    %39 = arith.addi %19, %38 : vector<64x1xi32>
    %c0_i32_11 = arith.constant 0 : i32
    %40 = vector.broadcast %c0_i32_11 : i32 to vector<64x1xi32>
    %41 = arith.cmpi sge, %39, %40 : vector<64x1xi32>
    %c-1_i32_12 = arith.constant -1 : i32
    %42 = vector.broadcast %c-1_i32_12 : i32 to vector<64x1xi32>
    %43 = arith.addi %19, %42 : vector<64x1xi32>
    %c8_i32_13 = arith.constant 8 : i32
    %44 = vector.broadcast %c8_i32_13 : i32 to vector<64x1xi32>
    %45 = arith.cmpi slt, %43, %44 : vector<64x1xi32>
    %46 = arith.andi %41, %45 : vector<64x1xi1>
    %c1_i32_14 = arith.constant 1 : i32
    %47 = vector.broadcast %c1_i32_14 : i32 to vector<64x1xi32>
    %48 = arith.addi %19, %47 : vector<64x1xi32>
    %c0_i32_15 = arith.constant 0 : i32
    %49 = vector.broadcast %c0_i32_15 : i32 to vector<64x1xi32>
    %50 = arith.cmpi sge, %48, %49 : vector<64x1xi32>
    %c1_i32_16 = arith.constant 1 : i32
    %51 = vector.broadcast %c1_i32_16 : i32 to vector<64x1xi32>
    %52 = arith.addi %19, %51 : vector<64x1xi32>
    %c8_i32_17 = arith.constant 8 : i32
    %53 = vector.broadcast %c8_i32_17 : i32 to vector<64x1xi32>
    %54 = arith.cmpi slt, %52, %53 : vector<64x1xi32>
    %55 = arith.andi %50, %54 : vector<64x1xi1>
    %c2_i32 = arith.constant 2 : i32
    %56 = vector.broadcast %c2_i32 : i32 to vector<64x1xi32>
    %57 = arith.addi %19, %56 : vector<64x1xi32>
    %c0_i32_18 = arith.constant 0 : i32
    %58 = vector.broadcast %c0_i32_18 : i32 to vector<64x1xi32>
    %59 = arith.cmpi sge, %57, %58 : vector<64x1xi32>
    %c2_i32_19 = arith.constant 2 : i32
    %60 = vector.broadcast %c2_i32_19 : i32 to vector<64x1xi32>
    %61 = arith.addi %19, %60 : vector<64x1xi32>
    %c8_i32_20 = arith.constant 8 : i32
    %62 = vector.broadcast %c8_i32_20 : i32 to vector<64x1xi32>
    %63 = arith.cmpi slt, %61, %62 : vector<64x1xi32>
    %64 = arith.andi %59, %63 : vector<64x1xi1>
    %c3_i32 = arith.constant 3 : i32
    %65 = vector.broadcast %c3_i32 : i32 to vector<64x1xi32>
    %66 = arith.addi %19, %65 : vector<64x1xi32>
    %c0_i32_21 = arith.constant 0 : i32
    %67 = vector.broadcast %c0_i32_21 : i32 to vector<64x1xi32>
    %68 = arith.cmpi sge, %66, %67 : vector<64x1xi32>
    %c3_i32_22 = arith.constant 3 : i32
    %69 = vector.broadcast %c3_i32_22 : i32 to vector<64x1xi32>
    %70 = arith.addi %19, %69 : vector<64x1xi32>
    %c8_i32_23 = arith.constant 8 : i32
    %71 = vector.broadcast %c8_i32_23 : i32 to vector<64x1xi32>
    %72 = arith.cmpi slt, %70, %71 : vector<64x1xi32>
    %73 = arith.andi %68, %72 : vector<64x1xi1>
    %74 = tpu.iota {dimensions = array<i32: 1>} : vector<1x128xi32>
    %c16_i32 = arith.constant 16 : i32
    %75 = vector.broadcast %c16_i32 : i32 to vector<1x128xi32>
    %76 = arith.cmpi slt, %74, %75 : vector<1x128xi32>
    %77 = arith.extui %76 : vector<1x128xi1> to vector<1x128xi32>
    %78 = arith.sitofp %77 : vector<1x128xi32> to vector<1x128xf32>
    %c0 = arith.constant 0 : index
    %c0_24 = arith.constant 0 : index
    %c0_25 = arith.constant 0 : index
    %79 = vector.load %arg21[%c0, %c0_24, %c0_25] : memref<1x64x128xf32, #tpu.memory_space<vmem>>, vector<1x64x128xf32>
    %80 = vector.shape_cast %79 : vector<1x64x128xf32> to vector<64x128xf32>
    %c0_26 = arith.constant 0 : index
    %c0_27 = arith.constant 0 : index
    %c0_28 = arith.constant 0 : index
    %81 = vector.load %arg3[%c0_26, %c0_27, %c0_28] : memref<1x1x128xf32, #tpu.memory_space<vmem>>, vector<1x1x128xf32>
    %82 = vector.shape_cast %81 : vector<1x1x128xf32> to vector<1x128xf32>
    %c0_29 = arith.constant 0 : index
    %c0_30 = arith.constant 0 : index
    %c0_31 = arith.constant 0 : index
    %83 = vector.load %arg4[%c0_29, %c0_30, %c0_31] : memref<1x1x128xf32, #tpu.memory_space<vmem>>, vector<1x1x128xf32>
    %84 = vector.shape_cast %83 : vector<1x1x128xf32> to vector<1x128xf32>
    %cst = arith.constant dense<0.000000e+00> : vector<64xf32>
    %85 = vector.multi_reduction <add>, %80, %cst [1] : vector<64x128xf32> to vector<64xf32>
    %86 = vector.shape_cast %85 : vector<64xf32> to vector<64x1xf32>
    %cst_32 = arith.constant 6.250000e-02 : f32
    %87 = vector.broadcast %cst_32 : f32 to vector<64x1xf32>
    %88 = arith.mulf %86, %87 : vector<64x1xf32>
    %89 = vector.broadcast %88 : vector<64x1xf32> to vector<64x128xf32>
    %90 = arith.subf %80, %89 : vector<64x128xf32>
    %91 = vector.broadcast %78 : vector<1x128xf32> to vector<64x128xf32>
    %92 = arith.mulf %90, %91 : vector<64x128xf32>
    %93 = arith.mulf %92, %92 : vector<64x128xf32>
    %cst_33 = arith.constant dense<0.000000e+00> : vector<64xf32>
    %94 = vector.multi_reduction <add>, %93, %cst_33 [1] : vector<64x128xf32> to vector<64xf32>
    %95 = vector.shape_cast %94 : vector<64xf32> to vector<64x1xf32>
    %cst_34 = arith.constant 6.250000e-02 : f32
    %96 = vector.broadcast %cst_34 : f32 to vector<64x1xf32>
    %97 = arith.mulf %95, %96 : vector<64x1xf32>
    %cst_35 = arith.constant 9.99999997E-7 : f32
    %98 = vector.broadcast %cst_35 : f32 to vector<64x1xf32>
    %99 = arith.addf %97, %98 : vector<64x1xf32>
    %100 = math.rsqrt %99 : vector<64x1xf32>
    %101 = vector.broadcast %100 : vector<64x1xf32> to vector<64x128xf32>
    %102 = arith.mulf %92, %101 : vector<64x128xf32>
    %103 = vector.broadcast %82 : vector<1x128xf32> to vector<64x128xf32>
    %104 = arith.mulf %102, %103 : vector<64x128xf32>
    %105 = vector.broadcast %84 : vector<1x128xf32> to vector<64x128xf32>
    %106 = arith.addf %104, %105 : vector<64x128xf32>
    %c0_36 = arith.constant 0 : index
    %c0_37 = arith.constant 0 : index
    %c0_38 = arith.constant 0 : index
    %107 = vector.load %arg5[%c0_36, %c0_37, %c0_38] : memref<1x128x256xf32, #tpu.memory_space<vmem>>, vector<1x128x256xf32>
    %108 = vector.shape_cast %107 : vector<1x128x256xf32> to vector<128x256xf32>
    %cst_39 = arith.constant dense<0.000000e+00> : vector<64x256xf32>
    %109 = tpu.matmul %106, %108, %cst_39 {dimension_numbers = #tpu.dot_dimension_numbers<[1], [0], [0], [1], [0, 0, 1, 1], [], []>} : vector<64x128xf32>, vector<128x256xf32>, vector<64x256xf32> -> vector<64x256xf32>
    %c0_40 = arith.constant 0 : index
    %c0_41 = arith.constant 0 : index
    %c0_42 = arith.constant 0 : index
    %110 = vector.load %arg6[%c0_40, %c0_41, %c0_42] : memref<1x1x256xf32, #tpu.memory_space<vmem>>, vector<1x1x256xf32>
    %111 = vector.shape_cast %110 : vector<1x1x256xf32> to vector<1x256xf32>
    %112 = vector.broadcast %111 : vector<1x256xf32> to vector<64x256xf32>
    %113 = arith.addf %109, %112 : vector<64x256xf32>
    %114 = vector.extract_strided_slice %113 {offsets = [0, 0], sizes = [64, 128], strides = [1, 1]} : vector<64x256xf32> to vector<64x128xf32>
    %cst_43 = arith.constant 5.000000e-01 : f32
    %115 = vector.broadcast %cst_43 : f32 to vector<64x128xf32>
    %116 = arith.mulf %115, %114 : vector<64x128xf32>
    %cst_44 = arith.constant 0.707106769 : f32
    %117 = vector.broadcast %cst_44 : f32 to vector<64x128xf32>
    %118 = arith.mulf %114, %117 : vector<64x128xf32>
    %119 = math.absf %118 : vector<64x128xf32>
    %cst_45 = arith.constant 0.327591091 : f32
    %120 = vector.broadcast %cst_45 : f32 to vector<64x128xf32>
    %121 = arith.mulf %120, %119 : vector<64x128xf32>
    %cst_46 = arith.constant 1.000000e+00 : f32
    %122 = vector.broadcast %cst_46 : f32 to vector<64x128xf32>
    %123 = arith.addf %122, %121 : vector<64x128xf32>
    %cst_47 = arith.constant 1.000000e+00 : f32
    %124 = vector.broadcast %cst_47 : f32 to vector<64x128xf32>
    %125 = arith.divf %124, %123 : vector<64x128xf32>
    %cst_48 = arith.constant 1.06140542 : f32
    %126 = vector.broadcast %cst_48 : f32 to vector<64x128xf32>
    %127 = arith.mulf %126, %125 : vector<64x128xf32>
    %cst_49 = arith.constant -1.45315206 : f32
    %128 = vector.broadcast %cst_49 : f32 to vector<64x128xf32>
    %129 = arith.addf %127, %128 : vector<64x128xf32>
    %130 = arith.mulf %129, %125 : vector<64x128xf32>
    %cst_50 = arith.constant 1.42141378 : f32
    %131 = vector.broadcast %cst_50 : f32 to vector<64x128xf32>
    %132 = arith.addf %130, %131 : vector<64x128xf32>
    %133 = arith.mulf %132, %125 : vector<64x128xf32>
    %cst_51 = arith.constant -0.284496725 : f32
    %134 = vector.broadcast %cst_51 : f32 to vector<64x128xf32>
    %135 = arith.addf %133, %134 : vector<64x128xf32>
    %136 = arith.mulf %135, %125 : vector<64x128xf32>
    %cst_52 = arith.constant 0.254829586 : f32
    %137 = vector.broadcast %cst_52 : f32 to vector<64x128xf32>
    %138 = arith.addf %136, %137 : vector<64x128xf32>
    %139 = arith.mulf %138, %125 : vector<64x128xf32>
    %140 = arith.mulf %119, %119 : vector<64x128xf32>
    %cst_53 = arith.constant 0.000000e+00 : f32
    %141 = vector.broadcast %cst_53 : f32 to vector<64x128xf32>
    %142 = arith.subf %141, %140 : vector<64x128xf32>
    %143 = math.exp %142 : vector<64x128xf32>
    %144 = arith.mulf %139, %143 : vector<64x128xf32>
    %cst_54 = arith.constant 1.000000e+00 : f32
    %145 = vector.broadcast %cst_54 : f32 to vector<64x128xf32>
    %146 = arith.subf %145, %144 : vector<64x128xf32>
    %cst_55 = arith.constant 0.000000e+00 : f32
    %147 = vector.broadcast %cst_55 : f32 to vector<64x128xf32>
    %148 = arith.cmpf oge, %118, %147 : vector<64x128xf32>
    %cst_56 = arith.constant 0.000000e+00 : f32
    %149 = vector.broadcast %cst_56 : f32 to vector<64x128xf32>
    %150 = arith.subf %149, %146 : vector<64x128xf32>
    %151 = arith.select %148, %146, %150 : vector<64x128xi1>, vector<64x128xf32>
    %cst_57 = arith.constant 1.000000e+00 : f32
    %152 = vector.broadcast %cst_57 : f32 to vector<64x128xf32>
    %153 = arith.addf %152, %151 : vector<64x128xf32>
    %154 = arith.mulf %116, %153 : vector<64x128xf32>
    %155 = vector.extract_strided_slice %113 {offsets = [0, 128], sizes = [64, 128], strides = [1, 1]} : vector<64x256xf32> to vector<64x128xf32>
    %c0_58 = arith.constant 0 : index
    %c0_59 = arith.constant 0 : index
    %c0_60 = arith.constant 0 : index
    %156 = vector.load %arg7[%c0_58, %c0_59, %c0_60] : memref<1x49x128xf32, #tpu.memory_space<vmem>>, vector<1x49x128xf32>
    %157 = vector.shape_cast %156 : vector<1x49x128xf32> to vector<49x128xf32>
    %c0_61 = arith.constant 0 : index
    %c0_62 = arith.constant 0 : index
    %c0_63 = arith.constant 0 : index
    %158 = vector.load %arg8[%c0_61, %c0_62, %c0_63] : memref<1x1x128xf32, #tpu.memory_space<vmem>>, vector<1x1x128xf32>
    %159 = vector.shape_cast %158 : vector<1x1x128xf32> to vector<1x128xf32>
    %c32 = arith.constant 32 : index
    %c0_64 = arith.constant 0 : index
    %160 = vector.load %arg22[%c32, %c0_64] : memref<128x128xf32, #tpu.memory_space<vmem>>, vector<64x128xf32>
    tpu.vector_store %arg22[%c32, %c0_64], %154 {strides = array<i32>} : memref<128x128xf32, #tpu.memory_space<vmem>>, vector<64x128xf32>,
    %c5 = arith.constant 5 : index
    %c0_65 = arith.constant 0 : index
    %161 = vector.load %arg22[%c5, %c0_65] : memref<128x128xf32, #tpu.memory_space<vmem>>, vector<64x128xf32>
    %162 = vector.extract_strided_slice %157 {offsets = [0, 0], sizes = [1, 128], strides = [1, 1]} : vector<49x128xf32> to vector<1x128xf32>
    %163 = vector.broadcast %162 : vector<1x128xf32> to vector<64x128xf32>
    %164 = arith.mulf %161, %163 : vector<64x128xf32>
    %c13 = arith.constant 13 : index
    %c0_66 = arith.constant 0 : index
    %165 = vector.load %arg22[%c13, %c0_66] : memref<128x128xf32, #tpu.memory_space<vmem>>, vector<64x128xf32>
    %166 = vector.extract_strided_slice %157 {offsets = [7, 0], sizes = [1, 128], strides = [1, 1]} : vector<49x128xf32> to vector<1x128xf32>
    %167 = vector.broadcast %166 : vector<1x128xf32> to vector<64x128xf32>
    %168 = arith.mulf %165, %167 : vector<64x128xf32>
    %169 = arith.addf %164, %168 : vector<64x128xf32>
    %c21 = arith.constant 21 : index
    %c0_67 = arith.constant 0 : index
    %170 = vector.load %arg22[%c21, %c0_67] : memref<128x128xf32, #tpu.memory_space<vmem>>, vector<64x128xf32>
    %171 = vector.extract_strided_slice %157 {offsets = [14, 0], sizes = [1, 128], strides = [1, 1]} : vector<49x128xf32> to vector<1x128xf32>
    %172 = vector.broadcast %171 : vector<1x128xf32> to vector<64x128xf32>
    %173 = arith.mulf %170, %172 : vector<64x128xf32>
    %174 = arith.addf %169, %173 : vector<64x128xf32>
    %c29 = arith.constant 29 : index
    %c0_68 = arith.constant 0 : index
    %175 = vector.load %arg22[%c29, %c0_68] : memref<128x128xf32, #tpu.memory_space<vmem>>, vector<64x128xf32>
    %176 = vector.extract_strided_slice %157 {offsets = [21, 0], sizes = [1, 128], strides = [1, 1]} : vector<49x128xf32> to vector<1x128xf32>
    %177 = vector.broadcast %176 : vector<1x128xf32> to vector<64x128xf32>
    %178 = arith.mulf %175, %177 : vector<64x128xf32>
    %179 = arith.addf %174, %178 : vector<64x128xf32>
    %c37 = arith.constant 37 : index
    %c0_69 = arith.constant 0 : index
    %180 = vector.load %arg22[%c37, %c0_69] : memref<128x128xf32, #tpu.memory_space<vmem>>, vector<64x128xf32>
    %181 = vector.extract_strided_slice %157 {offsets = [28, 0], sizes = [1, 128], strides = [1, 1]} : vector<49x128xf32> to vector<1x128xf32>
    %182 = vector.broadcast %181 : vector<1x128xf32> to vector<64x128xf32>
    %183 = arith.mulf %180, %182 : vector<64x128xf32>
    %184 = arith.addf %179, %183 : vector<64x128xf32>
    %c45 = arith.constant 45 : index
    %c0_70 = arith.constant 0 : index
    %185 = vector.load %arg22[%c45, %c0_70] : memref<128x128xf32, #tpu.memory_space<vmem>>, vector<64x128xf32>
    %186 = vector.extract_strided_slice %157 {offsets = [35, 0], sizes = [1, 128], strides = [1, 1]} : vector<49x128xf32> to vector<1x128xf32>
    %187 = vector.broadcast %186 : vector<1x128xf32> to vector<64x128xf32>
    %188 = arith.mulf %185, %187 : vector<64x128xf32>
    %189 = arith.addf %184, %188 : vector<64x128xf32>
    %c53 = arith.constant 53 : index
    %c0_71 = arith.constant 0 : index
    %190 = vector.load %arg22[%c53, %c0_71] : memref<128x128xf32, #tpu.memory_space<vmem>>, vector<64x128xf32>
    %191 = vector.extract_strided_slice %157 {offsets = [42, 0], sizes = [1, 128], strides = [1, 1]} : vector<49x128xf32> to vector<1x128xf32>
    %192 = vector.broadcast %191 : vector<1x128xf32> to vector<64x128xf32>
    %193 = arith.mulf %190, %192 : vector<64x128xf32>
    %194 = arith.addf %189, %193 : vector<64x128xf32>
    %cst_72 = arith.constant 0.000000e+00 : f32
    %195 = vector.shape_cast %28 : vector<64x1xi1> to vector<64x1xi1>
    %196 = vector.broadcast %195 : vector<64x1xi1> to vector<64x128xi1>
    %197 = vector.broadcast %cst_72 : f32 to vector<64x128xf32>
    %198 = arith.select %196, %194, %197 : vector<64x128xi1>, vector<64x128xf32>
    %c6 = arith.constant 6 : index
    %c0_73 = arith.constant 0 : index
    %199 = vector.load %arg22[%c6, %c0_73] : memref<128x128xf32, #tpu.memory_space<vmem>>, vector<64x128xf32>
    %200 = vector.extract_strided_slice %157 {offsets = [1, 0], sizes = [1, 128], strides = [1, 1]} : vector<49x128xf32> to vector<1x128xf32>
    %201 = vector.broadcast %200 : vector<1x128xf32> to vector<64x128xf32>
    %202 = arith.mulf %199, %201 : vector<64x128xf32>
    %c14 = arith.constant 14 : index
    %c0_74 = arith.constant 0 : index
    %203 = vector.load %arg22[%c14, %c0_74] : memref<128x128xf32, #tpu.memory_space<vmem>>, vector<64x128xf32>
    %204 = vector.extract_strided_slice %157 {offsets = [8, 0], sizes = [1, 128], strides = [1, 1]} : vector<49x128xf32> to vector<1x128xf32>
    %205 = vector.broadcast %204 : vector<1x128xf32> to vector<64x128xf32>
    %206 = arith.mulf %203, %205 : vector<64x128xf32>
    %207 = arith.addf %202, %206 : vector<64x128xf32>
    %c22 = arith.constant 22 : index
    %c0_75 = arith.constant 0 : index
    %208 = vector.load %arg22[%c22, %c0_75] : memref<128x128xf32, #tpu.memory_space<vmem>>, vector<64x128xf32>
    %209 = vector.extract_strided_slice %157 {offsets = [15, 0], sizes = [1, 128], strides = [1, 1]} : vector<49x128xf32> to vector<1x128xf32>
    %210 = vector.broadcast %209 : vector<1x128xf32> to vector<64x128xf32>
    %211 = arith.mulf %208, %210 : vector<64x128xf32>
    %212 = arith.addf %207, %211 : vector<64x128xf32>
    %c30 = arith.constant 30 : index
    %c0_76 = arith.constant 0 : index
    %213 = vector.load %arg22[%c30, %c0_76] : memref<128x128xf32, #tpu.memory_space<vmem>>, vector<64x128xf32>
    %214 = vector.extract_strided_slice %157 {offsets = [22, 0], sizes = [1, 128], strides = [1, 1]} : vector<49x128xf32> to vector<1x128xf32>
    %215 = vector.broadcast %214 : vector<1x128xf32> to vector<64x128xf32>
    %216 = arith.mulf %213, %215 : vector<64x128xf32>
    %217 = arith.addf %212, %216 : vector<64x128xf32>
    %c38 = arith.constant 38 : index
    %c0_77 = arith.constant 0 : index
    %218 = vector.load %arg22[%c38, %c0_77] : memref<128x128xf32, #tpu.memory_space<vmem>>, vector<64x128xf32>
    %219 = vector.extract_strided_slice %157 {offsets = [29, 0], sizes = [1, 128], strides = [1, 1]} : vector<49x128xf32> to vector<1x128xf32>
    %220 = vector.broadcast %219 : vector<1x128xf32> to vector<64x128xf32>
    %221 = arith.mulf %218, %220 : vector<64x128xf32>
    %222 = arith.addf %217, %221 : vector<64x128xf32>
    %c46 = arith.constant 46 : index
    %c0_78 = arith.constant 0 : index
    %223 = vector.load %arg22[%c46, %c0_78] : memref<128x128xf32, #tpu.memory_space<vmem>>, vector<64x128xf32>
    %224 = vector.extract_strided_slice %157 {offsets = [36, 0], sizes = [1, 128], strides = [1, 1]} : vector<49x128xf32> to vector<1x128xf32>
    %225 = vector.broadcast %224 : vector<1x128xf32> to vector<64x128xf32>
    %226 = arith.mulf %223, %225 : vector<64x128xf32>
    %227 = arith.addf %222, %226 : vector<64x128xf32>
    %c54 = arith.constant 54 : index
    %c0_79 = arith.constant 0 : index
    %228 = vector.load %arg22[%c54, %c0_79] : memref<128x128xf32, #tpu.memory_space<vmem>>, vector<64x128xf32>
    %229 = vector.extract_strided_slice %157 {offsets = [43, 0], sizes = [1, 128], strides = [1, 1]} : vector<49x128xf32> to vector<1x128xf32>
    %230 = vector.broadcast %229 : vector<1x128xf32> to vector<64x128xf32>
    %231 = arith.mulf %228, %230 : vector<64x128xf32>
    %232 = arith.addf %227, %231 : vector<64x128xf32>
    %cst_80 = arith.constant 0.000000e+00 : f32
    %233 = vector.shape_cast %37 : vector<64x1xi1> to vector<64x1xi1>
    %234 = vector.broadcast %233 : vector<64x1xi1> to vector<64x128xi1>
    %235 = vector.broadcast %cst_80 : f32 to vector<64x128xf32>
    %236 = arith.select %234, %232, %235 : vector<64x128xi1>, vector<64x128xf32>
    %237 = arith.addf %198, %236 : vector<64x128xf32>
    %c7 = arith.constant 7 : index
    %c0_81 = arith.constant 0 : index
    %238 = vector.load %arg22[%c7, %c0_81] : memref<128x128xf32, #tpu.memory_space<vmem>>, vector<64x128xf32>
    %239 = vector.extract_strided_slice %157 {offsets = [2, 0], sizes = [1, 128], strides = [1, 1]} : vector<49x128xf32> to vector<1x128xf32>
    %240 = vector.broadcast %239 : vector<1x128xf32> to vector<64x128xf32>
    %241 = arith.mulf %238, %240 : vector<64x128xf32>
    %c15 = arith.constant 15 : index
    %c0_82 = arith.constant 0 : index
    %242 = vector.load %arg22[%c15, %c0_82] : memref<128x128xf32, #tpu.memory_space<vmem>>, vector<64x128xf32>
    %243 = vector.extract_strided_slice %157 {offsets = [9, 0], sizes = [1, 128], strides = [1, 1]} : vector<49x128xf32> to vector<1x128xf32>
    %244 = vector.broadcast %243 : vector<1x128xf32> to vector<64x128xf32>
    %245 = arith.mulf %242, %244 : vector<64x128xf32>
    %246 = arith.addf %241, %245 : vector<64x128xf32>
    %c23 = arith.constant 23 : index
    %c0_83 = arith.constant 0 : index
    %247 = vector.load %arg22[%c23, %c0_83] : memref<128x128xf32, #tpu.memory_space<vmem>>, vector<64x128xf32>
    %248 = vector.extract_strided_slice %157 {offsets = [16, 0], sizes = [1, 128], strides = [1, 1]} : vector<49x128xf32> to vector<1x128xf32>
    %249 = vector.broadcast %248 : vector<1x128xf32> to vector<64x128xf32>
    %250 = arith.mulf %247, %249 : vector<64x128xf32>
    %251 = arith.addf %246, %250 : vector<64x128xf32>
    %c31 = arith.constant 31 : index
    %c0_84 = arith.constant 0 : index
    %252 = vector.load %arg22[%c31, %c0_84] : memref<128x128xf32, #tpu.memory_space<vmem>>, vector<64x128xf32>
    %253 = vector.extract_strided_slice %157 {offsets = [23, 0], sizes = [1, 128], strides = [1, 1]} : vector<49x128xf32> to vector<1x128xf32>
    %254 = vector.broadcast %253 : vector<1x128xf32> to vector<64x128xf32>
    %255 = arith.mulf %252, %254 : vector<64x128xf32>
    %256 = arith.addf %251, %255 : vector<64x128xf32>
    %c39 = arith.constant 39 : index
    %c0_85 = arith.constant 0 : index
    %257 = vector.load %arg22[%c39, %c0_85] : memref<128x128xf32, #tpu.memory_space<vmem>>, vector<64x128xf32>
    %258 = vector.extract_strided_slice %157 {offsets = [30, 0], sizes = [1, 128], strides = [1, 1]} : vector<49x128xf32> to vector<1x128xf32>
    %259 = vector.broadcast %258 : vector<1x128xf32> to vector<64x128xf32>
    %260 = arith.mulf %257, %259 : vector<64x128xf32>
    %261 = arith.addf %256, %260 : vector<64x128xf32>
    %c47 = arith.constant 47 : index
    %c0_86 = arith.constant 0 : index
    %262 = vector.load %arg22[%c47, %c0_86] : memref<128x128xf32, #tpu.memory_space<vmem>>, vector<64x128xf32>
    %263 = vector.extract_strided_slice %157 {offsets = [37, 0], sizes = [1, 128], strides = [1, 1]} : vector<49x128xf32> to vector<1x128xf32>
    %264 = vector.broadcast %263 : vector<1x128xf32> to vector<64x128xf32>
    %265 = arith.mulf %262, %264 : vector<64x128xf32>
    %266 = arith.addf %261, %265 : vector<64x128xf32>
    %c55 = arith.constant 55 : index
    %c0_87 = arith.constant 0 : index
    %267 = vector.load %arg22[%c55, %c0_87] : memref<128x128xf32, #tpu.memory_space<vmem>>, vector<64x128xf32>
    %268 = vector.extract_strided_slice %157 {offsets = [44, 0], sizes = [1, 128], strides = [1, 1]} : vector<49x128xf32> to vector<1x128xf32>
    %269 = vector.broadcast %268 : vector<1x128xf32> to vector<64x128xf32>
    %270 = arith.mulf %267, %269 : vector<64x128xf32>
    %271 = arith.addf %266, %270 : vector<64x128xf32>
    %cst_88 = arith.constant 0.000000e+00 : f32
    %272 = vector.shape_cast %46 : vector<64x1xi1> to vector<64x1xi1>
    %273 = vector.broadcast %272 : vector<64x1xi1> to vector<64x128xi1>
    %274 = vector.broadcast %cst_88 : f32 to vector<64x128xf32>
    %275 = arith.select %273, %271, %274 : vector<64x128xi1>, vector<64x128xf32>
    %276 = arith.addf %237, %275 : vector<64x128xf32>
    %c8 = arith.constant 8 : index
    %c0_89 = arith.constant 0 : index
    %277 = vector.load %arg22[%c8, %c0_89] : memref<128x128xf32, #tpu.memory_space<vmem>>, vector<64x128xf32>
    %278 = vector.extract_strided_slice %157 {offsets = [3, 0], sizes = [1, 128], strides = [1, 1]} : vector<49x128xf32> to vector<1x128xf32>
    %279 = vector.broadcast %278 : vector<1x128xf32> to vector<64x128xf32>
    %280 = arith.mulf %277, %279 : vector<64x128xf32>
    %c16 = arith.constant 16 : index
    %c0_90 = arith.constant 0 : index
    %281 = vector.load %arg22[%c16, %c0_90] : memref<128x128xf32, #tpu.memory_space<vmem>>, vector<64x128xf32>
    %282 = vector.extract_strided_slice %157 {offsets = [10, 0], sizes = [1, 128], strides = [1, 1]} : vector<49x128xf32> to vector<1x128xf32>
    %283 = vector.broadcast %282 : vector<1x128xf32> to vector<64x128xf32>
    %284 = arith.mulf %281, %283 : vector<64x128xf32>
    %285 = arith.addf %280, %284 : vector<64x128xf32>
    %c24 = arith.constant 24 : index
    %c0_91 = arith.constant 0 : index
    %286 = vector.load %arg22[%c24, %c0_91] : memref<128x128xf32, #tpu.memory_space<vmem>>, vector<64x128xf32>
    %287 = vector.extract_strided_slice %157 {offsets = [17, 0], sizes = [1, 128], strides = [1, 1]} : vector<49x128xf32> to vector<1x128xf32>
    %288 = vector.broadcast %287 : vector<1x128xf32> to vector<64x128xf32>
    %289 = arith.mulf %286, %288 : vector<64x128xf32>
    %290 = arith.addf %285, %289 : vector<64x128xf32>
    %c32_92 = arith.constant 32 : index
    %c0_93 = arith.constant 0 : index
    %291 = vector.load %arg22[%c32_92, %c0_93] : memref<128x128xf32, #tpu.memory_space<vmem>>, vector<64x128xf32>
    %292 = vector.extract_strided_slice %157 {offsets = [24, 0], sizes = [1, 128], strides = [1, 1]} : vector<49x128xf32> to vector<1x128xf32>
    %293 = vector.broadcast %292 : vector<1x128xf32> to vector<64x128xf32>
    %294 = arith.mulf %291, %293 : vector<64x128xf32>
    %295 = arith.addf %290, %294 : vector<64x128xf32>
    %c40 = arith.constant 40 : index
    %c0_94 = arith.constant 0 : index
    %296 = vector.load %arg22[%c40, %c0_94] : memref<128x128xf32, #tpu.memory_space<vmem>>, vector<64x128xf32>
    %297 = vector.extract_strided_slice %157 {offsets = [31, 0], sizes = [1, 128], strides = [1, 1]} : vector<49x128xf32> to vector<1x128xf32>
    %298 = vector.broadcast %297 : vector<1x128xf32> to vector<64x128xf32>
    %299 = arith.mulf %296, %298 : vector<64x128xf32>
    %300 = arith.addf %295, %299 : vector<64x128xf32>
    %c48 = arith.constant 48 : index
    %c0_95 = arith.constant 0 : index
    %301 = vector.load %arg22[%c48, %c0_95] : memref<128x128xf32, #tpu.memory_space<vmem>>, vector<64x128xf32>
    %302 = vector.extract_strided_slice %157 {offsets = [38, 0], sizes = [1, 128], strides = [1, 1]} : vector<49x128xf32> to vector<1x128xf32>
    %303 = vector.broadcast %302 : vector<1x128xf32> to vector<64x128xf32>
    %304 = arith.mulf %301, %303 : vector<64x128xf32>
    %305 = arith.addf %300, %304 : vector<64x128xf32>
    %c56 = arith.constant 56 : index
    %c0_96 = arith.constant 0 : index
    %306 = vector.load %arg22[%c56, %c0_96] : memref<128x128xf32, #tpu.memory_space<vmem>>, vector<64x128xf32>
    %307 = vector.extract_strided_slice %157 {offsets = [45, 0], sizes = [1, 128], strides = [1, 1]} : vector<49x128xf32> to vector<1x128xf32>
    %308 = vector.broadcast %307 : vector<1x128xf32> to vector<64x128xf32>
    %309 = arith.mulf %306, %308 : vector<64x128xf32>
    %310 = arith.addf %305, %309 : vector<64x128xf32>
    %311 = arith.addf %276, %310 : vector<64x128xf32>
    %c9 = arith.constant 9 : index
    %c0_97 = arith.constant 0 : index
    %312 = vector.load %arg22[%c9, %c0_97] : memref<128x128xf32, #tpu.memory_space<vmem>>, vector<64x128xf32>
    %313 = vector.extract_strided_slice %157 {offsets = [4, 0], sizes = [1, 128], strides = [1, 1]} : vector<49x128xf32> to vector<1x128xf32>
    %314 = vector.broadcast %313 : vector<1x128xf32> to vector<64x128xf32>
    %315 = arith.mulf %312, %314 : vector<64x128xf32>
    %c17 = arith.constant 17 : index
    %c0_98 = arith.constant 0 : index
    %316 = vector.load %arg22[%c17, %c0_98] : memref<128x128xf32, #tpu.memory_space<vmem>>, vector<64x128xf32>
    %317 = vector.extract_strided_slice %157 {offsets = [11, 0], sizes = [1, 128], strides = [1, 1]} : vector<49x128xf32> to vector<1x128xf32>
    %318 = vector.broadcast %317 : vector<1x128xf32> to vector<64x128xf32>
    %319 = arith.mulf %316, %318 : vector<64x128xf32>
    %320 = arith.addf %315, %319 : vector<64x128xf32>
    %c25 = arith.constant 25 : index
    %c0_99 = arith.constant 0 : index
    %321 = vector.load %arg22[%c25, %c0_99] : memref<128x128xf32, #tpu.memory_space<vmem>>, vector<64x128xf32>
    %322 = vector.extract_strided_slice %157 {offsets = [18, 0], sizes = [1, 128], strides = [1, 1]} : vector<49x128xf32> to vector<1x128xf32>
    %323 = vector.broadcast %322 : vector<1x128xf32> to vector<64x128xf32>
    %324 = arith.mulf %321, %323 : vector<64x128xf32>
    %325 = arith.addf %320, %324 : vector<64x128xf32>
    %c33 = arith.constant 33 : index
    %c0_100 = arith.constant 0 : index
    %326 = vector.load %arg22[%c33, %c0_100] : memref<128x128xf32, #tpu.memory_space<vmem>>, vector<64x128xf32>
    %327 = vector.extract_strided_slice %157 {offsets = [25, 0], sizes = [1, 128], strides = [1, 1]} : vector<49x128xf32> to vector<1x128xf32>
    %328 = vector.broadcast %327 : vector<1x128xf32> to vector<64x128xf32>
    %329 = arith.mulf %326, %328 : vector<64x128xf32>
    %330 = arith.addf %325, %329 : vector<64x128xf32>
    %c41 = arith.constant 41 : index
    %c0_101 = arith.constant 0 : index
    %331 = vector.load %arg22[%c41, %c0_101] : memref<128x128xf32, #tpu.memory_space<vmem>>, vector<64x128xf32>
    %332 = vector.extract_strided_slice %157 {offsets = [32, 0], sizes = [1, 128], strides = [1, 1]} : vector<49x128xf32> to vector<1x128xf32>
    %333 = vector.broadcast %332 : vector<1x128xf32> to vector<64x128xf32>
    %334 = arith.mulf %331, %333 : vector<64x128xf32>
    %335 = arith.addf %330, %334 : vector<64x128xf32>
    %c49 = arith.constant 49 : index
    %c0_102 = arith.constant 0 : index
    %336 = vector.load %arg22[%c49, %c0_102] : memref<128x128xf32, #tpu.memory_space<vmem>>, vector<64x128xf32>
    %337 = vector.extract_strided_slice %157 {offsets = [39, 0], sizes = [1, 128], strides = [1, 1]} : vector<49x128xf32> to vector<1x128xf32>
    %338 = vector.broadcast %337 : vector<1x128xf32> to vector<64x128xf32>
    %339 = arith.mulf %336, %338 : vector<64x128xf32>
    %340 = arith.addf %335, %339 : vector<64x128xf32>
    %c57 = arith.constant 57 : index
    %c0_103 = arith.constant 0 : index
    %341 = vector.load %arg22[%c57, %c0_103] : memref<128x128xf32, #tpu.memory_space<vmem>>, vector<64x128xf32>
    %342 = vector.extract_strided_slice %157 {offsets = [46, 0], sizes = [1, 128], strides = [1, 1]} : vector<49x128xf32> to vector<1x128xf32>
    %343 = vector.broadcast %342 : vector<1x128xf32> to vector<64x128xf32>
    %344 = arith.mulf %341, %343 : vector<64x128xf32>
    %345 = arith.addf %340, %344 : vector<64x128xf32>
    %cst_104 = arith.constant 0.000000e+00 : f32
    %346 = vector.shape_cast %55 : vector<64x1xi1> to vector<64x1xi1>
    %347 = vector.broadcast %346 : vector<64x1xi1> to vector<64x128xi1>
    %348 = vector.broadcast %cst_104 : f32 to vector<64x128xf32>
    %349 = arith.select %347, %345, %348 : vector<64x128xi1>, vector<64x128xf32>
    %350 = arith.addf %311, %349 : vector<64x128xf32>
    %c10 = arith.constant 10 : index
    %c0_105 = arith.constant 0 : index
    %351 = vector.load %arg22[%c10, %c0_105] : memref<128x128xf32, #tpu.memory_space<vmem>>, vector<64x128xf32>
    %352 = vector.extract_strided_slice %157 {offsets = [5, 0], sizes = [1, 128], strides = [1, 1]} : vector<49x128xf32> to vector<1x128xf32>
    %353 = vector.broadcast %352 : vector<1x128xf32> to vector<64x128xf32>
    %354 = arith.mulf %351, %353 : vector<64x128xf32>
    %c18 = arith.constant 18 : index
    %c0_106 = arith.constant 0 : index
    %355 = vector.load %arg22[%c18, %c0_106] : memref<128x128xf32, #tpu.memory_space<vmem>>, vector<64x128xf32>
    %356 = vector.extract_strided_slice %157 {offsets = [12, 0], sizes = [1, 128], strides = [1, 1]} : vector<49x128xf32> to vector<1x128xf32>
    %357 = vector.broadcast %356 : vector<1x128xf32> to vector<64x128xf32>
    %358 = arith.mulf %355, %357 : vector<64x128xf32>
    %359 = arith.addf %354, %358 : vector<64x128xf32>
    %c26 = arith.constant 26 : index
    %c0_107 = arith.constant 0 : index
    %360 = vector.load %arg22[%c26, %c0_107] : memref<128x128xf32, #tpu.memory_space<vmem>>, vector<64x128xf32>
    %361 = vector.extract_strided_slice %157 {offsets = [19, 0], sizes = [1, 128], strides = [1, 1]} : vector<49x128xf32> to vector<1x128xf32>
    %362 = vector.broadcast %361 : vector<1x128xf32> to vector<64x128xf32>
    %363 = arith.mulf %360, %362 : vector<64x128xf32>
    %364 = arith.addf %359, %363 : vector<64x128xf32>
    %c34 = arith.constant 34 : index
    %c0_108 = arith.constant 0 : index
    %365 = vector.load %arg22[%c34, %c0_108] : memref<128x128xf32, #tpu.memory_space<vmem>>, vector<64x128xf32>
    %366 = vector.extract_strided_slice %157 {offsets = [26, 0], sizes = [1, 128], strides = [1, 1]} : vector<49x128xf32> to vector<1x128xf32>
    %367 = vector.broadcast %366 : vector<1x128xf32> to vector<64x128xf32>
    %368 = arith.mulf %365, %367 : vector<64x128xf32>
    %369 = arith.addf %364, %368 : vector<64x128xf32>
    %c42 = arith.constant 42 : index
    %c0_109 = arith.constant 0 : index
    %370 = vector.load %arg22[%c42, %c0_109] : memref<128x128xf32, #tpu.memory_space<vmem>>, vector<64x128xf32>
    %371 = vector.extract_strided_slice %157 {offsets = [33, 0], sizes = [1, 128], strides = [1, 1]} : vector<49x128xf32> to vector<1x128xf32>
    %372 = vector.broadcast %371 : vector<1x128xf32> to vector<64x128xf32>
    %373 = arith.mulf %370, %372 : vector<64x128xf32>
    %374 = arith.addf %369, %373 : vector<64x128xf32>
    %c50 = arith.constant 50 : index
    %c0_110 = arith.constant 0 : index
    %375 = vector.load %arg22[%c50, %c0_110] : memref<128x128xf32, #tpu.memory_space<vmem>>, vector<64x128xf32>
    %376 = vector.extract_strided_slice %157 {offsets = [40, 0], sizes = [1, 128], strides = [1, 1]} : vector<49x128xf32> to vector<1x128xf32>
    %377 = vector.broadcast %376 : vector<1x128xf32> to vector<64x128xf32>
    %378 = arith.mulf %375, %377 : vector<64x128xf32>
    %379 = arith.addf %374, %378 : vector<64x128xf32>
    %c58 = arith.constant 58 : index
    %c0_111 = arith.constant 0 : index
    %380 = vector.load %arg22[%c58, %c0_111] : memref<128x128xf32, #tpu.memory_space<vmem>>, vector<64x128xf32>
    %381 = vector.extract_strided_slice %157 {offsets = [47, 0], sizes = [1, 128], strides = [1, 1]} : vector<49x128xf32> to vector<1x128xf32>
    %382 = vector.broadcast %381 : vector<1x128xf32> to vector<64x128xf32>
    %383 = arith.mulf %380, %382 : vector<64x128xf32>
    %384 = arith.addf %379, %383 : vector<64x128xf32>
    %cst_112 = arith.constant 0.000000e+00 : f32
    %385 = vector.shape_cast %64 : vector<64x1xi1> to vector<64x1xi1>
    %386 = vector.broadcast %385 : vector<64x1xi1> to vector<64x128xi1>
    %387 = vector.broadcast %cst_112 : f32 to vector<64x128xf32>
    %388 = arith.select %386, %384, %387 : vector<64x128xi1>, vector<64x128xf32>
    %389 = arith.addf %350, %388 : vector<64x128xf32>
    %c11 = arith.constant 11 : index
    %c0_113 = arith.constant 0 : index
    %390 = vector.load %arg22[%c11, %c0_113] : memref<128x128xf32, #tpu.memory_space<vmem>>, vector<64x128xf32>
    %391 = vector.extract_strided_slice %157 {offsets = [6, 0], sizes = [1, 128], strides = [1, 1]} : vector<49x128xf32> to vector<1x128xf32>
    %392 = vector.broadcast %391 : vector<1x128xf32> to vector<64x128xf32>
    %393 = arith.mulf %390, %392 : vector<64x128xf32>
    %c19 = arith.constant 19 : index
    %c0_114 = arith.constant 0 : index
    %394 = vector.load %arg22[%c19, %c0_114] : memref<128x128xf32, #tpu.memory_space<vmem>>, vector<64x128xf32>
    %395 = vector.extract_strided_slice %157 {offsets = [13, 0], sizes = [1, 128], strides = [1, 1]} : vector<49x128xf32> to vector<1x128xf32>
    %396 = vector.broadcast %395 : vector<1x128xf32> to vector<64x128xf32>
    %397 = arith.mulf %394, %396 : vector<64x128xf32>
    %398 = arith.addf %393, %397 : vector<64x128xf32>
    %c27 = arith.constant 27 : index
    %c0_115 = arith.constant 0 : index
    %399 = vector.load %arg22[%c27, %c0_115] : memref<128x128xf32, #tpu.memory_space<vmem>>, vector<64x128xf32>
    %400 = vector.extract_strided_slice %157 {offsets = [20, 0], sizes = [1, 128], strides = [1, 1]} : vector<49x128xf32> to vector<1x128xf32>
    %401 = vector.broadcast %400 : vector<1x128xf32> to vector<64x128xf32>
    %402 = arith.mulf %399, %401 : vector<64x128xf32>
    %403 = arith.addf %398, %402 : vector<64x128xf32>
    %c35 = arith.constant 35 : index
    %c0_116 = arith.constant 0 : index
    %404 = vector.load %arg22[%c35, %c0_116] : memref<128x128xf32, #tpu.memory_space<vmem>>, vector<64x128xf32>
    %405 = vector.extract_strided_slice %157 {offsets = [27, 0], sizes = [1, 128], strides = [1, 1]} : vector<49x128xf32> to vector<1x128xf32>
    %406 = vector.broadcast %405 : vector<1x128xf32> to vector<64x128xf32>
    %407 = arith.mulf %404, %406 : vector<64x128xf32>
    %408 = arith.addf %403, %407 : vector<64x128xf32>
    %c43 = arith.constant 43 : index
    %c0_117 = arith.constant 0 : index
    %409 = vector.load %arg22[%c43, %c0_117] : memref<128x128xf32, #tpu.memory_space<vmem>>, vector<64x128xf32>
    %410 = vector.extract_strided_slice %157 {offsets = [34, 0], sizes = [1, 128], strides = [1, 1]} : vector<49x128xf32> to vector<1x128xf32>
    %411 = vector.broadcast %410 : vector<1x128xf32> to vector<64x128xf32>
    %412 = arith.mulf %409, %411 : vector<64x128xf32>
    %413 = arith.addf %408, %412 : vector<64x128xf32>
    %c51 = arith.constant 51 : index
    %c0_118 = arith.constant 0 : index
    %414 = vector.load %arg22[%c51, %c0_118] : memref<128x128xf32, #tpu.memory_space<vmem>>, vector<64x128xf32>
    %415 = vector.extract_strided_slice %157 {offsets = [41, 0], sizes = [1, 128], strides = [1, 1]} : vector<49x128xf32> to vector<1x128xf32>
    %416 = vector.broadcast %415 : vector<1x128xf32> to vector<64x128xf32>
    %417 = arith.mulf %414, %416 : vector<64x128xf32>
    %418 = arith.addf %413, %417 : vector<64x128xf32>
    %c59 = arith.constant 59 : index
    %c0_119 = arith.constant 0 : index
    %419 = vector.load %arg22[%c59, %c0_119] : memref<128x128xf32, #tpu.memory_space<vmem>>, vector<64x128xf32>
    %420 = vector.extract_strided_slice %157 {offsets = [48, 0], sizes = [1, 128], strides = [1, 1]} : vector<49x128xf32> to vector<1x128xf32>
    %421 = vector.broadcast %420 : vector<1x128xf32> to vector<64x128xf32>
    %422 = arith.mulf %419, %421 : vector<64x128xf32>
    %423 = arith.addf %418, %422 : vector<64x128xf32>
    %cst_120 = arith.constant 0.000000e+00 : f32
    %424 = vector.shape_cast %73 : vector<64x1xi1> to vector<64x1xi1>
    %425 = vector.broadcast %424 : vector<64x1xi1> to vector<64x128xi1>
    %426 = vector.broadcast %cst_120 : f32 to vector<64x128xf32>
    %427 = arith.select %425, %423, %426 : vector<64x128xi1>, vector<64x128xf32>
    %428 = arith.addf %389, %427 : vector<64x128xf32>
    %429 = vector.broadcast %159 : vector<1x128xf32> to vector<64x128xf32>
    %430 = arith.addf %428, %429 : vector<64x128xf32>
    %431 = arith.mulf %430, %155 : vector<64x128xf32>
    %c0_121 = arith.constant 0 : index
    %c0_122 = arith.constant 0 : index
    %c0_123 = arith.constant 0 : index
    %432 = vector.load %arg9[%c0_121, %c0_122, %c0_123] : memref<1x128x128xf32, #tpu.memory_space<vmem>>, vector<1x128x128xf32>
    %433 = vector.shape_cast %432 : vector<1x128x128xf32> to vector<128x128xf32>
    %cst_124 = arith.constant dense<0.000000e+00> : vector<64x128xf32>
    %434 = tpu.matmul %431, %433, %cst_124 {dimension_numbers = #tpu.dot_dimension_numbers<[1], [0], [0], [1], [0, 0, 1, 1], [], []>} : vector<64x128xf32>, vector<128x128xf32>, vector<64x128xf32> -> vector<64x128xf32>
    %c0_125 = arith.constant 0 : index
    %c0_126 = arith.constant 0 : index
    %c0_127 = arith.constant 0 : index
    %435 = vector.load %arg10[%c0_125, %c0_126, %c0_127] : memref<1x1x128xf32, #tpu.memory_space<vmem>>, vector<1x1x128xf32>
    %436 = vector.shape_cast %435 : vector<1x1x128xf32> to vector<1x128xf32>
    %437 = vector.broadcast %436 : vector<1x128xf32> to vector<64x128xf32>
    %438 = arith.addf %434, %437 : vector<64x128xf32>
    %c0_128 = arith.constant 0 : index
    %c0_129 = arith.constant 0 : index
    %c0_130 = arith.constant 0 : index
    %439 = vector.load %arg11[%c0_128, %c0_129, %c0_130] : memref<1x1x128xf32, #tpu.memory_space<vmem>>, vector<1x1x128xf32>
    %440 = vector.shape_cast %439 : vector<1x1x128xf32> to vector<1x128xf32>
    %441 = vector.broadcast %440 : vector<1x128xf32> to vector<64x128xf32>
    %442 = arith.mulf %441, %438 : vector<64x128xf32>
    %443 = arith.addf %80, %442 : vector<64x128xf32>
    %c0_131 = arith.constant 0 : index
    %c0_132 = arith.constant 0 : index
    %c0_133 = arith.constant 0 : index
    %444 = vector.load %arg12[%c0_131, %c0_132, %c0_133] : memref<1x1x128xf32, #tpu.memory_space<vmem>>, vector<1x1x128xf32>
    %445 = vector.shape_cast %444 : vector<1x1x128xf32> to vector<1x128xf32>
    %c0_134 = arith.constant 0 : index
    %c0_135 = arith.constant 0 : index
    %c0_136 = arith.constant 0 : index
    %446 = vector.load %arg13[%c0_134, %c0_135, %c0_136] : memref<1x1x128xf32, #tpu.memory_space<vmem>>, vector<1x1x128xf32>
    %447 = vector.shape_cast %446 : vector<1x1x128xf32> to vector<1x128xf32>
    %cst_137 = arith.constant dense<0.000000e+00> : vector<64xf32>
    %448 = vector.multi_reduction <add>, %443, %cst_137 [1] : vector<64x128xf32> to vector<64xf32>
    %449 = vector.shape_cast %448 : vector<64xf32> to vector<64x1xf32>
    %cst_138 = arith.constant 6.250000e-02 : f32
    %450 = vector.broadcast %cst_138 : f32 to vector<64x1xf32>
    %451 = arith.mulf %449, %450 : vector<64x1xf32>
    %452 = vector.broadcast %451 : vector<64x1xf32> to vector<64x128xf32>
    %453 = arith.subf %443, %452 : vector<64x128xf32>
    %454 = vector.broadcast %78 : vector<1x128xf32> to vector<64x128xf32>
    %455 = arith.mulf %453, %454 : vector<64x128xf32>
    %456 = arith.mulf %455, %455 : vector<64x128xf32>
    %cst_139 = arith.constant dense<0.000000e+00> : vector<64xf32>
    %457 = vector.multi_reduction <add>, %456, %cst_139 [1] : vector<64x128xf32> to vector<64xf32>
    %458 = vector.shape_cast %457 : vector<64xf32> to vector<64x1xf32>
    %cst_140 = arith.constant 6.250000e-02 : f32
    %459 = vector.broadcast %cst_140 : f32 to vector<64x1xf32>
    %460 = arith.mulf %458, %459 : vector<64x1xf32>
    %cst_141 = arith.constant 9.99999997E-7 : f32
    %461 = vector.broadcast %cst_141 : f32 to vector<64x1xf32>
    %462 = arith.addf %460, %461 : vector<64x1xf32>
    %463 = math.rsqrt %462 : vector<64x1xf32>
    %464 = vector.broadcast %463 : vector<64x1xf32> to vector<64x128xf32>
    %465 = arith.mulf %455, %464 : vector<64x128xf32>
    %466 = vector.broadcast %445 : vector<1x128xf32> to vector<64x128xf32>
    %467 = arith.mulf %465, %466 : vector<64x128xf32>
    %468 = vector.broadcast %447 : vector<1x128xf32> to vector<64x128xf32>
    %469 = arith.addf %467, %468 : vector<64x128xf32>
    %c0_142 = arith.constant 0 : index
    %c0_143 = arith.constant 0 : index
    %c0_144 = arith.constant 0 : index
    %470 = vector.load %arg14[%c0_142, %c0_143, %c0_144] : memref<1x128x128xf32, #tpu.memory_space<vmem>>, vector<1x128x128xf32>
    %471 = vector.shape_cast %470 : vector<1x128x128xf32> to vector<128x128xf32>
    %cst_145 = arith.constant dense<0.000000e+00> : vector<64x128xf32>
    %472 = tpu.matmul %469, %471, %cst_145 {dimension_numbers = #tpu.dot_dimension_numbers<[1], [0], [0], [1], [0, 0, 1, 1], [], []>} : vector<64x128xf32>, vector<128x128xf32>, vector<64x128xf32> -> vector<64x128xf32>
    %c0_146 = arith.constant 0 : index
    %c0_147 = arith.constant 0 : index
    %c0_148 = arith.constant 0 : index
    %473 = vector.load %arg15[%c0_146, %c0_147, %c0_148] : memref<1x1x128xf32, #tpu.memory_space<vmem>>, vector<1x1x128xf32>
    %474 = vector.shape_cast %473 : vector<1x1x128xf32> to vector<1x128xf32>
    %475 = vector.broadcast %474 : vector<1x128xf32> to vector<64x128xf32>
    %476 = arith.addf %472, %475 : vector<64x128xf32>
    %cst_149 = arith.constant 5.000000e-01 : f32
    %477 = vector.broadcast %cst_149 : f32 to vector<64x128xf32>
    %478 = arith.mulf %477, %476 : vector<64x128xf32>
    %cst_150 = arith.constant 0.707106769 : f32
    %479 = vector.broadcast %cst_150 : f32 to vector<64x128xf32>
    %480 = arith.mulf %476, %479 : vector<64x128xf32>
    %481 = math.absf %480 : vector<64x128xf32>
    %cst_151 = arith.constant 0.327591091 : f32
    %482 = vector.broadcast %cst_151 : f32 to vector<64x128xf32>
    %483 = arith.mulf %482, %481 : vector<64x128xf32>
    %cst_152 = arith.constant 1.000000e+00 : f32
    %484 = vector.broadcast %cst_152 : f32 to vector<64x128xf32>
    %485 = arith.addf %484, %483 : vector<64x128xf32>
    %cst_153 = arith.constant 1.000000e+00 : f32
    %486 = vector.broadcast %cst_153 : f32 to vector<64x128xf32>
    %487 = arith.divf %486, %485 : vector<64x128xf32>
    %cst_154 = arith.constant 1.06140542 : f32
    %488 = vector.broadcast %cst_154 : f32 to vector<64x128xf32>
    %489 = arith.mulf %488, %487 : vector<64x128xf32>
    %cst_155 = arith.constant -1.45315206 : f32
    %490 = vector.broadcast %cst_155 : f32 to vector<64x128xf32>
    %491 = arith.addf %489, %490 : vector<64x128xf32>
    %492 = arith.mulf %491, %487 : vector<64x128xf32>
    %cst_156 = arith.constant 1.42141378 : f32
    %493 = vector.broadcast %cst_156 : f32 to vector<64x128xf32>
    %494 = arith.addf %492, %493 : vector<64x128xf32>
    %495 = arith.mulf %494, %487 : vector<64x128xf32>
    %cst_157 = arith.constant -0.284496725 : f32
    %496 = vector.broadcast %cst_157 : f32 to vector<64x128xf32>
    %497 = arith.addf %495, %496 : vector<64x128xf32>
    %498 = arith.mulf %497, %487 : vector<64x128xf32>
    %cst_158 = arith.constant 0.254829586 : f32
    %499 = vector.broadcast %cst_158 : f32 to vector<64x128xf32>
    %500 = arith.addf %498, %499 : vector<64x128xf32>
    %501 = arith.mulf %500, %487 : vector<64x128xf32>
    %502 = arith.mulf %481, %481 : vector<64x128xf32>
    %cst_159 = arith.constant 0.000000e+00 : f32
    %503 = vector.broadcast %cst_159 : f32 to vector<64x128xf32>
    %504 = arith.subf %503, %502 : vector<64x128xf32>
    %505 = math.exp %504 : vector<64x128xf32>
    %506 = arith.mulf %501, %505 : vector<64x128xf32>
    %cst_160 = arith.constant 1.000000e+00 : f32
    %507 = vector.broadcast %cst_160 : f32 to vector<64x128xf32>
    %508 = arith.subf %507, %506 : vector<64x128xf32>
    %cst_161 = arith.constant 0.000000e+00 : f32
    %509 = vector.broadcast %cst_161 : f32 to vector<64x128xf32>
    %510 = arith.cmpf oge, %480, %509 : vector<64x128xf32>
    %cst_162 = arith.constant 0.000000e+00 : f32
    %511 = vector.broadcast %cst_162 : f32 to vector<64x128xf32>
    %512 = arith.subf %511, %508 : vector<64x128xf32>
    %513 = arith.select %510, %508, %512 : vector<64x128xi1>, vector<64x128xf32>
    %cst_163 = arith.constant 1.000000e+00 : f32
    %514 = vector.broadcast %cst_163 : f32 to vector<64x128xf32>
    %515 = arith.addf %514, %513 : vector<64x128xf32>
    %516 = arith.mulf %478, %515 : vector<64x128xf32>
    %c0_164 = arith.constant 0 : index
    %c0_165 = arith.constant 0 : index
    %c0_166 = arith.constant 0 : index
    %517 = vector.load %arg16[%c0_164, %c0_165, %c0_166] : memref<1x9x128xf32, #tpu.memory_space<vmem>>, vector<1x9x128xf32>
    %518 = vector.shape_cast %517 : vector<1x9x128xf32> to vector<9x128xf32>
    %c0_167 = arith.constant 0 : index
    %c0_168 = arith.constant 0 : index
    %c0_169 = arith.constant 0 : index
    %519 = vector.load %arg17[%c0_167, %c0_168, %c0_169] : memref<1x1x128xf32, #tpu.memory_space<vmem>>, vector<1x1x128xf32>
    %520 = vector.shape_cast %519 : vector<1x1x128xf32> to vector<1x128xf32>
    %c16_170 = arith.constant 16 : index
    %c0_171 = arith.constant 0 : index
    %521 = vector.load %arg23[%c16_170, %c0_171] : memref<96x128xf32, #tpu.memory_space<vmem>>, vector<64x128xf32>
    tpu.vector_store %arg23[%c16_170, %c0_171], %516 {strides = array<i32>} : memref<96x128xf32, #tpu.memory_space<vmem>>, vector<64x128xf32>,
    %c7_172 = arith.constant 7 : index
    %c0_173 = arith.constant 0 : index
    %522 = vector.load %arg23[%c7_172, %c0_173] : memref<96x128xf32, #tpu.memory_space<vmem>>, vector<64x128xf32>
    %523 = vector.extract_strided_slice %518 {offsets = [0, 0], sizes = [1, 128], strides = [1, 1]} : vector<9x128xf32> to vector<1x128xf32>
    %524 = vector.broadcast %523 : vector<1x128xf32> to vector<64x128xf32>
    %525 = arith.mulf %522, %524 : vector<64x128xf32>
    %c15_174 = arith.constant 15 : index
    %c0_175 = arith.constant 0 : index
    %526 = vector.load %arg23[%c15_174, %c0_175] : memref<96x128xf32, #tpu.memory_space<vmem>>, vector<64x128xf32>
    %527 = vector.extract_strided_slice %518 {offsets = [3, 0], sizes = [1, 128], strides = [1, 1]} : vector<9x128xf32> to vector<1x128xf32>
    %528 = vector.broadcast %527 : vector<1x128xf32> to vector<64x128xf32>
    %529 = arith.mulf %526, %528 : vector<64x128xf32>
    %530 = arith.addf %525, %529 : vector<64x128xf32>
    %c23_176 = arith.constant 23 : index
    %c0_177 = arith.constant 0 : index
    %531 = vector.load %arg23[%c23_176, %c0_177] : memref<96x128xf32, #tpu.memory_space<vmem>>, vector<64x128xf32>
    %532 = vector.extract_strided_slice %518 {offsets = [6, 0], sizes = [1, 128], strides = [1, 1]} : vector<9x128xf32> to vector<1x128xf32>
    %533 = vector.broadcast %532 : vector<1x128xf32> to vector<64x128xf32>
    %534 = arith.mulf %531, %533 : vector<64x128xf32>
    %535 = arith.addf %530, %534 : vector<64x128xf32>
    %cst_178 = arith.constant 0.000000e+00 : f32
    %536 = vector.shape_cast %46 : vector<64x1xi1> to vector<64x1xi1>
    %537 = vector.broadcast %536 : vector<64x1xi1> to vector<64x128xi1>
    %538 = vector.broadcast %cst_178 : f32 to vector<64x128xf32>
    %539 = arith.select %537, %535, %538 : vector<64x128xi1>, vector<64x128xf32>
    %c8_179 = arith.constant 8 : index
    %c0_180 = arith.constant 0 : index
    %540 = vector.load %arg23[%c8_179, %c0_180] : memref<96x128xf32, #tpu.memory_space<vmem>>, vector<64x128xf32>
    %541 = vector.extract_strided_slice %518 {offsets = [1, 0], sizes = [1, 128], strides = [1, 1]} : vector<9x128xf32> to vector<1x128xf32>
    %542 = vector.broadcast %541 : vector<1x128xf32> to vector<64x128xf32>
    %543 = arith.mulf %540, %542 : vector<64x128xf32>
    %c16_181 = arith.constant 16 : index
    %c0_182 = arith.constant 0 : index
    %544 = vector.load %arg23[%c16_181, %c0_182] : memref<96x128xf32, #tpu.memory_space<vmem>>, vector<64x128xf32>
    %545 = vector.extract_strided_slice %518 {offsets = [4, 0], sizes = [1, 128], strides = [1, 1]} : vector<9x128xf32> to vector<1x128xf32>
    %546 = vector.broadcast %545 : vector<1x128xf32> to vector<64x128xf32>
    %547 = arith.mulf %544, %546 : vector<64x128xf32>
    %548 = arith.addf %543, %547 : vector<64x128xf32>
    %c24_183 = arith.constant 24 : index
    %c0_184 = arith.constant 0 : index
    %549 = vector.load %arg23[%c24_183, %c0_184] : memref<96x128xf32, #tpu.memory_space<vmem>>, vector<64x128xf32>
    %550 = vector.extract_strided_slice %518 {offsets = [7, 0], sizes = [1, 128], strides = [1, 1]} : vector<9x128xf32> to vector<1x128xf32>
    %551 = vector.broadcast %550 : vector<1x128xf32> to vector<64x128xf32>
    %552 = arith.mulf %549, %551 : vector<64x128xf32>
    %553 = arith.addf %548, %552 : vector<64x128xf32>
    %554 = arith.addf %539, %553 : vector<64x128xf32>
    %c9_185 = arith.constant 9 : index
    %c0_186 = arith.constant 0 : index
    %555 = vector.load %arg23[%c9_185, %c0_186] : memref<96x128xf32, #tpu.memory_space<vmem>>, vector<64x128xf32>
    %556 = vector.extract_strided_slice %518 {offsets = [2, 0], sizes = [1, 128], strides = [1, 1]} : vector<9x128xf32> to vector<1x128xf32>
    %557 = vector.broadcast %556 : vector<1x128xf32> to vector<64x128xf32>
    %558 = arith.mulf %555, %557 : vector<64x128xf32>
    %c17_187 = arith.constant 17 : index
    %c0_188 = arith.constant 0 : index
    %559 = vector.load %arg23[%c17_187, %c0_188] : memref<96x128xf32, #tpu.memory_space<vmem>>, vector<64x128xf32>
    %560 = vector.extract_strided_slice %518 {offsets = [5, 0], sizes = [1, 128], strides = [1, 1]} : vector<9x128xf32> to vector<1x128xf32>
    %561 = vector.broadcast %560 : vector<1x128xf32> to vector<64x128xf32>
    %562 = arith.mulf %559, %561 : vector<64x128xf32>
    %563 = arith.addf %558, %562 : vector<64x128xf32>
    %c25_189 = arith.constant 25 : index
    %c0_190 = arith.constant 0 : index
    %564 = vector.load %arg23[%c25_189, %c0_190] : memref<96x128xf32, #tpu.memory_space<vmem>>, vector<64x128xf32>
    %565 = vector.extract_strided_slice %518 {offsets = [8, 0], sizes = [1, 128], strides = [1, 1]} : vector<9x128xf32> to vector<1x128xf32>
    %566 = vector.broadcast %565 : vector<1x128xf32> to vector<64x128xf32>
    %567 = arith.mulf %564, %566 : vector<64x128xf32>
    %568 = arith.addf %563, %567 : vector<64x128xf32>
    %cst_191 = arith.constant 0.000000e+00 : f32
    %569 = vector.shape_cast %55 : vector<64x1xi1> to vector<64x1xi1>
    %570 = vector.broadcast %569 : vector<64x1xi1> to vector<64x128xi1>
    %571 = vector.broadcast %cst_191 : f32 to vector<64x128xf32>
    %572 = arith.select %570, %568, %571 : vector<64x128xi1>, vector<64x128xf32>
    %573 = arith.addf %554, %572 : vector<64x128xf32>
    %574 = vector.broadcast %520 : vector<1x128xf32> to vector<64x128xf32>
    %575 = arith.addf %573, %574 : vector<64x128xf32>
    %cst_192 = arith.constant 5.000000e-01 : f32
    %576 = vector.broadcast %cst_192 : f32 to vector<64x128xf32>
    %577 = arith.mulf %576, %575 : vector<64x128xf32>
    %cst_193 = arith.constant 0.707106769 : f32
    %578 = vector.broadcast %cst_193 : f32 to vector<64x128xf32>
    %579 = arith.mulf %575, %578 : vector<64x128xf32>
    %580 = math.absf %579 : vector<64x128xf32>
    %cst_194 = arith.constant 0.327591091 : f32
    %581 = vector.broadcast %cst_194 : f32 to vector<64x128xf32>
    %582 = arith.mulf %581, %580 : vector<64x128xf32>
    %cst_195 = arith.constant 1.000000e+00 : f32
    %583 = vector.broadcast %cst_195 : f32 to vector<64x128xf32>
    %584 = arith.addf %583, %582 : vector<64x128xf32>
    %cst_196 = arith.constant 1.000000e+00 : f32
    %585 = vector.broadcast %cst_196 : f32 to vector<64x128xf32>
    %586 = arith.divf %585, %584 : vector<64x128xf32>
    %cst_197 = arith.constant 1.06140542 : f32
    %587 = vector.broadcast %cst_197 : f32 to vector<64x128xf32>
    %588 = arith.mulf %587, %586 : vector<64x128xf32>
    %cst_198 = arith.constant -1.45315206 : f32
    %589 = vector.broadcast %cst_198 : f32 to vector<64x128xf32>
    %590 = arith.addf %588, %589 : vector<64x128xf32>
    %591 = arith.mulf %590, %586 : vector<64x128xf32>
    %cst_199 = arith.constant 1.42141378 : f32
    %592 = vector.broadcast %cst_199 : f32 to vector<64x128xf32>
    %593 = arith.addf %591, %592 : vector<64x128xf32>
    %594 = arith.mulf %593, %586 : vector<64x128xf32>
    %cst_200 = arith.constant -0.284496725 : f32
    %595 = vector.broadcast %cst_200 : f32 to vector<64x128xf32>
    %596 = arith.addf %594, %595 : vector<64x128xf32>
    %597 = arith.mulf %596, %586 : vector<64x128xf32>
    %cst_201 = arith.constant 0.254829586 : f32
    %598 = vector.broadcast %cst_201 : f32 to vector<64x128xf32>
    %599 = arith.addf %597, %598 : vector<64x128xf32>
    %600 = arith.mulf %599, %586 : vector<64x128xf32>
    %601 = arith.mulf %580, %580 : vector<64x128xf32>
    %cst_202 = arith.constant 0.000000e+00 : f32
    %602 = vector.broadcast %cst_202 : f32 to vector<64x128xf32>
    %603 = arith.subf %602, %601 : vector<64x128xf32>
    %604 = math.exp %603 : vector<64x128xf32>
    %605 = arith.mulf %600, %604 : vector<64x128xf32>
    %cst_203 = arith.constant 1.000000e+00 : f32
    %606 = vector.broadcast %cst_203 : f32 to vector<64x128xf32>
    %607 = arith.subf %606, %605 : vector<64x128xf32>
    %cst_204 = arith.constant 0.000000e+00 : f32
    %608 = vector.broadcast %cst_204 : f32 to vector<64x128xf32>
    %609 = arith.cmpf oge, %579, %608 : vector<64x128xf32>
    %cst_205 = arith.constant 0.000000e+00 : f32
    %610 = vector.broadcast %cst_205 : f32 to vector<64x128xf32>
    %611 = arith.subf %610, %607 : vector<64x128xf32>
    %612 = arith.select %609, %607, %611 : vector<64x128xi1>, vector<64x128xf32>
    %cst_206 = arith.constant 1.000000e+00 : f32
    %613 = vector.broadcast %cst_206 : f32 to vector<64x128xf32>
    %614 = arith.addf %613, %612 : vector<64x128xf32>
    %615 = arith.mulf %577, %614 : vector<64x128xf32>
    %616 = arith.addf %516, %615 : vector<64x128xf32>
    %c0_207 = arith.constant 0 : index
    %c0_208 = arith.constant 0 : index
    %c0_209 = arith.constant 0 : index
    %617 = vector.load %arg18[%c0_207, %c0_208, %c0_209] : memref<1x128x128xf32, #tpu.memory_space<vmem>>, vector<1x128x128xf32>
    %618 = vector.shape_cast %617 : vector<1x128x128xf32> to vector<128x128xf32>
    %cst_210 = arith.constant dense<0.000000e+00> : vector<64x128xf32>
    %619 = tpu.matmul %616, %618, %cst_210 {dimension_numbers = #tpu.dot_dimension_numbers<[1], [0], [0], [1], [0, 0, 1, 1], [], []>} : vector<64x128xf32>, vector<128x128xf32>, vector<64x128xf32> -> vector<64x128xf32>
    %c0_211 = arith.constant 0 : index
    %c0_212 = arith.constant 0 : index
    %c0_213 = arith.constant 0 : index
    %620 = vector.load %arg19[%c0_211, %c0_212, %c0_213] : memref<1x1x128xf32, #tpu.memory_space<vmem>>, vector<1x1x128xf32>
    %621 = vector.shape_cast %620 : vector<1x1x128xf32> to vector<1x128xf32>
    %622 = vector.broadcast %621 : vector<1x128xf32> to vector<64x128xf32>
    %623 = arith.addf %619, %622 : vector<64x128xf32>
    %c0_214 = arith.constant 0 : index
    %c0_215 = arith.constant 0 : index
    %c0_216 = arith.constant 0 : index
    %624 = vector.load %arg20[%c0_214, %c0_215, %c0_216] : memref<1x1x128xf32, #tpu.memory_space<vmem>>, vector<1x1x128xf32>
    %625 = vector.shape_cast %624 : vector<1x1x128xf32> to vector<1x128xf32>
    %626 = vector.broadcast %625 : vector<1x128xf32> to vector<64x128xf32>
    %627 = arith.mulf %626, %623 : vector<64x128xf32>
    %628 = arith.addf %443, %627 : vector<64x128xf32>
    %c0_217 = arith.constant 0 : index
    %c0_218 = arith.constant 0 : index
    %c0_219 = arith.constant 0 : index
    %629 = vector.load %arg21[%c0_217, %c0_218, %c0_219] : memref<1x64x128xf32, #tpu.memory_space<vmem>>, vector<1x64x128xf32>
    %630 = vector.shape_cast %629 : vector<1x64x128xf32> to vector<64x128xf32>
    %631 = vector.shape_cast %628 : vector<64x128xf32> to vector<1x64x128xf32>
    tpu.vector_store %arg21[%c0_217, %c0_218, %c0_219], %631 {strides = array<i32>} : memref<1x64x128xf32, #tpu.memory_space<vmem>>, vector<1x64x128xf32>,
    return
  }
  func.func @transform_0(%arg0: i32, %arg1: i32) -> (i32, i32, i32) {
    %c0_i32 = arith.constant 0 : i32
    %c0_i32_0 = arith.constant 0 : i32
    %c0_i32_1 = arith.constant 0 : i32
    return %arg0, %c0_i32, %c0_i32_0 : i32, i32, i32
  }
  func.func @transform_1(%arg0: i32, %arg1: i32) -> (i32, i32, i32) {
    %c0_i32 = arith.constant 0 : i32
    %c0_i32_0 = arith.constant 0 : i32
    %c0_i32_1 = arith.constant 0 : i32
    return %arg1, %c0_i32, %c0_i32_0 : i32, i32, i32
  }
  func.func @transform_2(%arg0: i32, %arg1: i32) -> (i32, i32, i32) {
    %c0_i32 = arith.constant 0 : i32
    %c0_i32_0 = arith.constant 0 : i32
    %c0_i32_1 = arith.constant 0 : i32
    return %arg1, %c0_i32, %c0_i32_0 : i32, i32, i32
  }
  func.func @transform_3(%arg0: i32, %arg1: i32) -> (i32, i32, i32) {
    %c0_i32 = arith.constant 0 : i32
    %c0_i32_0 = arith.constant 0 : i32
    %c0_i32_1 = arith.constant 0 : i32
    return %arg1, %c0_i32, %c0_i32_0 : i32, i32, i32
  }
  func.func @transform_4(%arg0: i32, %arg1: i32) -> (i32, i32, i32) {
    %c0_i32 = arith.constant 0 : i32
    %c0_i32_0 = arith.constant 0 : i32
    %c0_i32_1 = arith.constant 0 : i32
    return %arg1, %c0_i32, %c0_i32_0 : i32, i32, i32
  }
  func.func @transform_5(%arg0: i32, %arg1: i32) -> (i32, i32, i32) {
    %c0_i32 = arith.constant 0 : i32
    %c0_i32_0 = arith.constant 0 : i32
    %c0_i32_1 = arith.constant 0 : i32
    return %arg1, %c0_i32, %c0_i32_0 : i32, i32, i32
  }
  func.func @transform_6(%arg0: i32, %arg1: i32) -> (i32, i32, i32) {
    %c0_i32 = arith.constant 0 : i32
    %c0_i32_0 = arith.constant 0 : i32
    %c0_i32_1 = arith.constant 0 : i32
    return %arg1, %c0_i32, %c0_i32_0 : i32, i32, i32
  }
  func.func @transform_7(%arg0: i32, %arg1: i32) -> (i32, i32, i32) {
    %c0_i32 = arith.constant 0 : i32
    %c0_i32_0 = arith.constant 0 : i32
    %c0_i32_1 = arith.constant 0 : i32
    return %arg1, %c0_i32, %c0_i32_0 : i32, i32, i32
  }
  func.func @transform_8(%arg0: i32, %arg1: i32) -> (i32, i32, i32) {
    %c0_i32 = arith.constant 0 : i32
    %c0_i32_0 = arith.constant 0 : i32
    %c0_i32_1 = arith.constant 0 : i32
    return %arg1, %c0_i32, %c0_i32_0 : i32, i32, i32
  }
  func.func @transform_9(%arg0: i32, %arg1: i32) -> (i32, i32, i32) {
    %c0_i32 = arith.constant 0 : i32
    %c0_i32_0 = arith.constant 0 : i32
    %c0_i32_1 = arith.constant 0 : i32
    return %arg1, %c0_i32, %c0_i32_0 : i32, i32, i32
  }
  func.func @transform_10(%arg0: i32, %arg1: i32) -> (i32, i32, i32) {
    %c0_i32 = arith.constant 0 : i32
    %c0_i32_0 = arith.constant 0 : i32
    %c0_i32_1 = arith.constant 0 : i32
    return %arg1, %c0_i32, %c0_i32_0 : i32, i32, i32
  }
  func.func @transform_11(%arg0: i32, %arg1: i32) -> (i32, i32, i32) {
    %c0_i32 = arith.constant 0 : i32
    %c0_i32_0 = arith.constant 0 : i32
    %c0_i32_1 = arith.constant 0 : i32
    return %arg1, %c0_i32, %c0_i32_0 : i32, i32, i32
  }
  func.func @transform_12(%arg0: i32, %arg1: i32) -> (i32, i32, i32) {
    %c0_i32 = arith.constant 0 : i32
    %c0_i32_0 = arith.constant 0 : i32
    %c0_i32_1 = arith.constant 0 : i32
    return %arg1, %c0_i32, %c0_i32_0 : i32, i32, i32
  }
  func.func @transform_13(%arg0: i32, %arg1: i32) -> (i32, i32, i32) {
    %c0_i32 = arith.constant 0 : i32
    %c0_i32_0 = arith.constant 0 : i32
    %c0_i32_1 = arith.constant 0 : i32
    return %arg1, %c0_i32, %c0_i32_0 : i32, i32, i32
  }
  func.func @transform_14(%arg0: i32, %arg1: i32) -> (i32, i32, i32) {
    %c0_i32 = arith.constant 0 : i32
    %c0_i32_0 = arith.constant 0 : i32
    %c0_i32_1 = arith.constant 0 : i32
    return %arg1, %c0_i32, %c0_i32_0 : i32, i32, i32
  }
  func.func @transform_15(%arg0: i32, %arg1: i32) -> (i32, i32, i32) {
    %c0_i32 = arith.constant 0 : i32
    %c0_i32_0 = arith.constant 0 : i32
    %c0_i32_1 = arith.constant 0 : i32
    return %arg1, %c0_i32, %c0_i32_0 : i32, i32, i32
  }
  func.func @transform_16(%arg0: i32, %arg1: i32) -> (i32, i32, i32) {
    %c0_i32 = arith.constant 0 : i32
    %c0_i32_0 = arith.constant 0 : i32
    %c0_i32_1 = arith.constant 0 : i32
    return %arg1, %c0_i32, %c0_i32_0 : i32, i32, i32
  }
  func.func @transform_17(%arg0: i32, %arg1: i32) -> (i32, i32, i32) {
    %c0_i32 = arith.constant 0 : i32
    %c0_i32_0 = arith.constant 0 : i32
    %c0_i32_1 = arith.constant 0 : i32
    return %arg1, %c0_i32, %c0_i32_0 : i32, i32, i32
  }
  func.func @transform_18(%arg0: i32, %arg1: i32) -> (i32, i32, i32) {
    %c0_i32 = arith.constant 0 : i32
    %c0_i32_0 = arith.constant 0 : i32
    %c0_i32_1 = arith.constant 0 : i32
    return %arg1, %c0_i32, %c0_i32_0 : i32, i32, i32
  }
  func.func @transform_19(%arg0: i32, %arg1: i32) -> (i32, i32, i32) {
    %c0_i32 = arith.constant 0 : i32
    %c0_i32_0 = arith.constant 0 : i32
    %c0_i32_1 = arith.constant 0 : i32
    return %arg0, %c0_i32, %c0_i32_0 : i32, i32, i32
  }
}

</mosaic_0001>

<llo_original>
// kernel: stage_forward.2
$region0: #{stage_forward.2}
  #allocation0 [shape = 'u32[]', space=smem, size = 0x4, offset = 0x4, fixed_abs, tag = 'smem constant byte address 0x4 - core index']
  #allocation1 [shape = 'u32[144,128]{1,0:T(1,128)}', space=vmem, size = 0x12000, scoped, tag = 'internal scratch']
  %s0 = inlined_call_operand.vmem [shape: f32[2,64,128], index: 0, kind: input, shape index: {}]
  %s1 = inlined_call_operand.vmem [shape: f32[2,64,128], index: 1, kind: input, shape index: {}]
  %s2 = inlined_call_operand.vmem [shape: f32[2,64,128], index: 2, kind: input, shape index: {}]
  %s3 = inlined_call_operand.vmem [shape: f32[2,64,128], index: 3, kind: input, shape index: {}]
  %s4 = inlined_call_operand.vmem [shape: f32[1,128], index: 4, kind: input, shape index: {}]
  %s5 = inlined_call_operand.vmem [shape: f32[1,128], index: 5, kind: input, shape index: {}]
  %s6 = inlined_call_operand.vmem [shape: f32[512,128], index: 6, kind: input, shape index: {}]
  %s7 = inlined_call_operand.vmem [shape: f32[1,128], index: 7, kind: input, shape index: {}]
  %s8 = inlined_call_operand.vmem [shape: f32[2,64,128], index: 8, kind: output, shape index: {}]
  %s9 = sld [smem:[#allocation0]]
  $region65: #{stage_forward.2} parent=0
    _
  %s11 = ssub.s32 1, %s9
  %s12 = scalar_select 0, %s11, %s9
  loop: start=0, step=1, limit=4
  $region2: #{stage_forward.2} parent=0 // loop_pre_header
    _
  $region3: #{stage_forward.2} parent=0 // loop_header
    %s14 = sphi 0, %s18
    %p15 = scmp.ge.s32.totalorder %s14, 4
    %s24 = sphi 0, %s26
    %s27 = sphi 0, %s24
    %s28 = sphi 0, %s27
    %s44 = sphi 0, %s28
    %s50 = sphi 0, %s52
    %s53 = sphi 0, %s50
    %s54 = sphi 0, %s53
    %s70 = sphi 0, %s54
    %s76 = sphi 0, %s78
    %s79 = sphi 0, %s76
    %s80 = sphi 0, %s79
    %s96 = sphi 0, %s80
    %s102 = sphi 0, %s104
    %s105 = sphi 0, %s102
    %s106 = sphi 0, %s105
    %s122 = sphi 0, %s106
    %s126 = sphi 0, %s126
    %s128 = sphi 0, %s126
    %s129 = sphi 0, %s128
    %s143 = sphi 0, %s129
    %s147 = sphi 0, %s147
    %s149 = sphi 0, %s147
    %s150 = sphi 0, %s149
    %s164 = sphi 0, %s150
    %s168 = sphi 0, %s168
    %s170 = sphi 0, %s168
    %s171 = sphi 0, %s170
    %s185 = sphi 0, %s171
    %s189 = sphi 0, %s189
    %s191 = sphi 0, %s189
    %s192 = sphi 0, %s191
    %s206 = sphi 0, %s192
    %s212 = sphi 0, %s214
    %s215 = sphi 0, %s212
    %s216 = sphi 0, %s215
    %s232 = sphi 0, %s216
  $region4: #{stage_forward.2} parent=0 // loop_header_branch
    %17 = sbr.rel (%p15) target = $region8
  $region5: #{stage_forward.2} parent=0 // loop_body
    %s19 = ssub.s32 %s14, 1
    %s20 = ssub.s32 %s14, 2
    %s21 = sadd.s32 %s14, 1
    %s22 = ssub.s32 %s14, %s21
    %p23 = scmp.eq.s32.totalorder %s22, 0
    %s25 = sadd.s32 %s24, 1
    %s26 = scalar_select %p23, %s24, %s25
    %p29 = pneg %p23
    %p30 = scmp.eq.s32.totalorder %s14, 1
    %p31 = por %p29, %p30
    %p32 = scmp.ne.s32.totalorder %s24, %s27
    %p33 = scmp.eq.s32.totalorder %s14, 0
    %p34 = por %p32, %p33
    %p35 = scmp.ne.s32.totalorder %s24, %s27
    %p36 = scmp.eq.s32.totalorder %s19, 1
    %p37 = por %p35, %p36
    %p38 = scmp.ne.s32.totalorder %s27, %s28
    %p39 = scmp.eq.s32.totalorder %s19, 0
    %p40 = por %p38, %p39
    %p41 = scmp.ne.s32.totalorder %s27, %s28
    %p42 = scmp.eq.s32.totalorder %s20, 1
    %p43 = por %p41, %p42
    %p45 = scmp.ne.s32.totalorder %s28, %s44
    %p46 = scmp.eq.s32.totalorder %s20, 0
    %p47 = por %p45, %p46
    %s48 = ssub.s32 %s14, %s21
    %p49 = scmp.eq.s32.totalorder %s48, 0
    %s51 = sadd.s32 %s50, 1
    %s52 = scalar_select %p49, %s50, %s51
    %p55 = pneg %p49
    %p56 = scmp.eq.s32.totalorder %s14, 1
    %p57 = por %p55, %p56
    %p58 = scmp.ne.s32.totalorder %s50, %s53
    %p59 = scmp.eq.s32.totalorder %s14, 0
    %p60 = por %p58, %p59
    %p61 = scmp.ne.s32.totalorder %s50, %s53
    %p62 = scmp.eq.s32.totalorder %s19, 1
    %p63 = por %p61, %p62
    %p64 = scmp.ne.s32.totalorder %s53, %s54
    %p65 = scmp.eq.s32.totalorder %s19, 0
    %p66 = por %p64, %p65
    %p67 = scmp.ne.s32.totalorder %s53, %s54
    %p68 = scmp.eq.s32.totalorder %s20, 1
    %p69 = por %p67, %p68
    %p71 = scmp.ne.s32.totalorder %s54, %s70
    %p72 = scmp.eq.s32.totalorder %s20, 0
    %p73 = por %p71, %p72
    %s74 = ssub.s32 %s14, %s21
    %p75 = scmp.eq.s32.totalorder %s74, 0
    %s77 = sadd.s32 %s76, 1
    %s78 = scalar_select %p75, %s76, %s77
    %p81 = pneg %p75
    %p82 = scmp.eq.s32.totalorder %s14, 1
    %p83 = por %p81, %p82
    %p84 = scmp.ne.s32.totalorder %s76, %s79
    %p85 = scmp.eq.s32.totalorder %s14, 0
    %p86 = por %p84, %p85
    %p87 = scmp.ne.s32.totalorder %s76, %s79
    %p88 = scmp.eq.s32.totalorder %s19, 1
    %p89 = por %p87, %p88
    %p90 = scmp.ne.s32.totalorder %s79, %s80
    %p91 = scmp.eq.s32.totalorder %s19, 0
    %p92 = por %p90, %p91
    %p93 = scmp.ne.s32.totalorder %s79, %s80
    %p94 = scmp.eq.s32.totalorder %s20, 1
    %p95 = por %p93, %p94
    %p97 = scmp.ne.s32.totalorder %s80, %s96
    %p98 = scmp.eq.s32.totalorder %s20, 0
    %p99 = por %p97, %p98
    %s100 = ssub.s32 %s14, %s21
    %p101 = scmp.eq.s32.totalorder %s100, 0
    %s103 = sadd.s32 %s102, 1
    %s104 = scalar_select %p101, %s102, %s103
    %p107 = pneg %p101
    %p108 = scmp.eq.s32.totalorder %s14, 1
    %p109 = por %p107, %p108
    %p110 = scmp.ne.s32.totalorder %s102, %s105
    %p111 = scmp.eq.s32.totalorder %s14, 0
    %p112 = por %p110, %p111
    %p113 = scmp.ne.s32.totalorder %s102, %s105
    %p114 = scmp.eq.s32.totalorder %s19, 1
    %p115 = por %p113, %p114
    %p116 = scmp.ne.s32.totalorder %s105, %s106
    %p117 = scmp.eq.s32.totalorder %s19, 0
    %p118 = por %p116, %p117
    %p119 = scmp.ne.s32.totalorder %s105, %s106
    %p120 = scmp.eq.s32.totalorder %s20, 1
    %p121 = por %p119, %p120
    %p123 = scmp.ne.s32.totalorder %s106, %s122
    %p124 = scmp.eq.s32.totalorder %s20, 0
    %p125 = por %p123, %p124
    %s127 = sadd.s32 %s126, 1
    %p130 = scmp.eq.s32.totalorder %s14, 1
    %p131 = scmp.ne.s32.totalorder %s126, %s128
    %p132 = scmp.eq.s32.totalorder %s14, 0
    %p133 = por %p131, %p132
    %p134 = scmp.ne.s32.totalorder %s126, %s128
    %p135 = scmp.eq.s32.totalorder %s19, 1
    %p136 = por %p134, %p135
    %p137 = scmp.ne.s32.totalorder %s128, %s129
    %p138 = scmp.eq.s32.totalorder %s19, 0
    %p139 = por %p137, %p138
    %p140 = scmp.ne.s32.totalorder %s128, %s129
    %p141 = scmp.eq.s32.totalorder %s20, 1
    %p142 = por %p140, %p141
    %p144 = scmp.ne.s32.totalorder %s129, %s143
    %p145 = scmp.eq.s32.totalorder %s20, 0
    %p146 = por %p144, %p145
    %s148 = sadd.s32 %s147, 1
    %p151 = scmp.eq.s32.totalorder %s14, 1
    %p152 = scmp.ne.s32.totalorder %s147, %s149
    %p153 = scmp.eq.s32.totalorder %s14, 0
    %p154 = por %p152, %p153
    %p155 = scmp.ne.s32.totalorder %s147, %s149
    %p156 = scmp.eq.s32.totalorder %s19, 1
    %p157 = por %p155, %p156
    %p158 = scmp.ne.s32.totalorder %s149, %s150
    %p159 = scmp.eq.s32.totalorder %s19, 0
    %p160 = por %p158, %p159
    %p161 = scmp.ne.s32.totalorder %s149, %s150
    %p162 = scmp.eq.s32.totalorder %s20, 1
    %p163 = por %p161, %p162
    %p165 = scmp.ne.s32.totalorder %s150, %s164
    %p166 = scmp.eq.s32.totalorder %s20, 0
    %p167 = por %p165, %p166
    %s169 = sadd.s32 %s168, 1
    %p172 = scmp.eq.s32.totalorder %s14, 1
    %p173 = scmp.ne.s32.totalorder %s168, %s170
    %p174 = scmp.eq.s32.totalorder %s14, 0
    %p175 = por %p173, %p174
    %p176 = scmp.ne.s32.totalorder %s168, %s170
    %p177 = scmp.eq.s32.totalorder %s19, 1
    %p178 = por %p176, %p177
    %p179 = scmp.ne.s32.totalorder %s170, %s171
    %p180 = scmp.eq.s32.totalorder %s19, 0
    %p181 = por %p179, %p180
    %p182 = scmp.ne.s32.totalorder %s170, %s171
    %p183 = scmp.eq.s32.totalorder %s20, 1
    %p184 = por %p182, %p183
    %p186 = scmp.ne.s32.totalorder %s171, %s185
    %p187 = scmp.eq.s32.totalorder %s20, 0
    %p188 = por %p186, %p187
    %s190 = sadd.s32 %s189, 1
    %p193 = scmp.eq.s32.totalorder %s14, 1
    %p194 = scmp.ne.s32.totalorder %s189, %s191
    %p195 = scmp.eq.s32.totalorder %s14, 0
    %p196 = por %p194, %p195
    %p197 = scmp.ne.s32.totalorder %s189, %s191
    %p198 = scmp.eq.s32.totalorder %s19, 1
    %p199 = por %p197, %p198
    %p200 = scmp.ne.s32.totalorder %s191, %s192
    %p201 = scmp.eq.s32.totalorder %s19, 0
    %p202 = por %p200, %p201
    %p203 = scmp.ne.s32.totalorder %s191, %s192
    %p204 = scmp.eq.s32.totalorder %s20, 1
    %p205 = por %p203, %p204
    %p207 = scmp.ne.s32.totalorder %s192, %s206
    %p208 = scmp.eq.s32.totalorder %s20, 0
    %p209 = por %p207, %p208
    %s210 = ssub.s32 %s14, %s21
    %p211 = scmp.eq.s32.totalorder %s210, 0
    %s213 = sadd.s32 %s212, 1
    %s214 = scalar_select %p211, %s212, %s213
    %p217 = pneg %p211
    %p218 = scmp.eq.s32.totalorder %s14, 1
    %p219 = por %p217, %p218
    %p220 = scmp.ne.s32.totalorder %s212, %s215
    %p221 = scmp.eq.s32.totalorder %s14, 0
    %p222 = por %p220, %p221
    %p223 = scmp.ne.s32.totalorder %s212, %s215
    %p224 = scmp.eq.s32.totalorder %s19, 1
    %p225 = por %p223, %p224
    %p226 = scmp.ne.s32.totalorder %s215, %s216
    %p227 = scmp.eq.s32.totalorder %s19, 0
    %p228 = por %p226, %p227
    %p229 = scmp.ne.s32.totalorder %s215, %s216
    %p230 = scmp.eq.s32.totalorder %s20, 1
    %p231 = por %p229, %p230
    %p233 = scmp.ne.s32.totalorder %s216, %s232
    %p234 = scmp.eq.s32.totalorder %s20, 0
    %p235 = por %p233, %p234
    %p236 = scmp.le.s32.totalorder 1, %s14
    %p237 = scmp.lt.s32.totalorder %s14, 3
    %p238 = pnand %p236, %p237
    %p239 = pneg %p238
    // Predicated region
    $region9: #{stage_forward.2} parent=5 // pred_check
      _
    $region10: #{stage_forward.2} parent=5 // pred_check_branch
      %241 = sbr.rel (%p238) target = $region12
    $region11: #{stage_forward.2} parent=5 // pred_region
      %s242 = ssub.s32 %s14, 1
      // Predicated region
      $region13: #{stage_forward.2} parent=11 // pred_check
        %p243 = pneg %p139
      $region14: #{stage_forward.2} parent=11 // pred_check_branch
        %245 = sbr.rel (%p243) target = $region16
      $region15: #{stage_forward.2} parent=11 // pred_region
        _
      $region16: #{stage_forward.2} parent=11 // pred_fallthru
        _
      // Predicated region
      $region17: #{stage_forward.2} parent=11 // pred_check
        %p246 = pneg %p160
      $region18: #{stage_forward.2} parent=11 // pred_check_branch
        %248 = sbr.rel (%p246) target = $region20
      $region19: #{stage_forward.2} parent=11 // pred_region
        _
      $region20: #{stage_forward.2} parent=11 // pred_fallthru
        _
      // Predicated region
      $region21: #{stage_forward.2} parent=11 // pred_check
        %p249 = pneg %p181
      $region22: #{stage_forward.2} parent=11 // pred_check_branch
        %251 = sbr.rel (%p249) target = $region24
      $region23: #{stage_forward.2} parent=11 // pred_region
        _
      $region24: #{stage_forward.2} parent=11 // pred_fallthru
        _
      // Predicated region
      $region25: #{stage_forward.2} parent=11 // pred_check
        %p252 = pneg %p202
      $region26: #{stage_forward.2} parent=11 // pred_check_branch
        %254 = sbr.rel (%p252) target = $region28
      $region27: #{stage_forward.2} parent=11 // pred_region
        _
      $region28: #{stage_forward.2} parent=11 // pred_fallthru
        _
    $region12: #{stage_forward.2} parent=5 // pred_fallthru
      _
    %p255 = scmp.lt.s32.totalorder %s14, 2
    // Predicated region
    $region29: #{stage_forward.2} parent=5 // pred_check
      %p256 = pneg %p255
    $region30: #{stage_forward.2} parent=5 // pred_check_branch
      %258 = sbr.rel (%p256) target = $region32
    $region31: #{stage_forward.2} parent=5 // pred_region
      // Predicated region
      $region33: #{stage_forward.2} parent=31 // pred_check
        %p259 = pneg %p34
      $region34: #{stage_forward.2} parent=31 // pred_check_branch
        %261 = sbr.rel (%p259) target = $region36
      $region35: #{stage_forward.2} parent=31 // pred_region
        %p262 = scmp.lt.s32.totalorder %s14, 1
        %s263 = scalar_select %p262, %s14, 1
        %s264 = smul.addr %s263, 8
        %s265 = smul.addr %s264, 8
        %s266 = scalar_lea.vmem %s0, %s265
      $region36: #{stage_forward.2} parent=31 // pred_fallthru
        _
      // Predicated region
      $region37: #{stage_forward.2} parent=31 // pred_check
        %p267 = pneg %p60
      $region38: #{stage_forward.2} parent=31 // pred_check_branch
        %269 = sbr.rel (%p267) target = $region40
      $region39: #{stage_forward.2} parent=31 // pred_region
        %p270 = scmp.lt.s32.totalorder %s14, 1
        %s271 = scalar_select %p270, %s14, 1
        %s272 = smul.addr %s271, 8
        %s273 = smul.addr %s272, 8
        %s274 = scalar_lea.vmem %s1, %s273
      $region40: #{stage_forward.2} parent=31 // pred_fallthru
        _
      // Predicated region
      $region41: #{stage_forward.2} parent=31 // pred_check
        %p275 = pneg %p86
      $region42: #{stage_forward.2} parent=31 // pred_check_branch
        %277 = sbr.rel (%p275) target = $region44
      $region43: #{stage_forward.2} parent=31 // pred_region
        %p278 = scmp.lt.s32.totalorder %s14, 1
        %s279 = scalar_select %p278, %s14, 1
        %s280 = smul.addr %s279, 8
        %s281 = smul.addr %s280, 8
        %s282 = scalar_lea.vmem %s2, %s281
      $region44: #{stage_forward.2} parent=31 // pred_fallthru
        _
      // Predicated region
      $region45: #{stage_forward.2} parent=31 // pred_check
        %p283 = pneg %p112
      $region46: #{stage_forward.2} parent=31 // pred_check_branch
        %285 = sbr.rel (%p283) target = $region48
      $region47: #{stage_forward.2} parent=31 // pred_region
        %p286 = scmp.lt.s32.totalorder %s14, 1
        %s287 = scalar_select %p286, %s14, 1
        %s288 = smul.addr %s287, 8
        %s289 = smul.addr %s288, 8
        %s290 = scalar_lea.vmem %s3, %s289
      $region48: #{stage_forward.2} parent=31 // pred_fallthru
        _
    $region32: #{stage_forward.2} parent=5 // pred_fallthru
      _
    %p291 = scmp.le.s32.totalorder 1, %s14
    %p292 = scmp.lt.s32.totalorder %s14, 3
    %p293 = pnand %p291, %p292
    %p294 = pneg %p293
    // Predicated region
    $region49: #{stage_forward.2} parent=5 // pred_check
      _
    $region50: #{stage_forward.2} parent=5 // pred_check_branch
      %296 = sbr.rel (%p293) target = $region52
    $region51: #{stage_forward.2} parent=5 // pred_region
      %s297 = ssub.s32 %s14, 1
      %p298 = scmp.lt.s32.totalorder %s19, 1
      %s299 = scalar_select %p298, %s19, 1
      %s300 = smul.addr %s299, 8
      %s301 = smul.addr %s300, 8
      %s302 = scalar_lea.vmem %s0, %s301
      %p303 = pneg %p40
      %p304 = pneg %p37
      %p305 = scmp.lt.s32.totalorder %s19, 1
      %s306 = scalar_select %p305, %s19, 1
      %s307 = smul.addr %s306, 8
      %s308 = smul.addr %s307, 8
      %s309 = scalar_lea.vmem %s1, %s308
      %p310 = pneg %p66
      %p311 = pneg %p63
      %p312 = scmp.lt.s32.totalorder %s19, 1
      %s313 = scalar_select %p312, %s19, 1
      %s314 = smul.addr %s313, 8
      %s315 = smul.addr %s314, 8
      %s316 = scalar_lea.vmem %s2, %s315
      %p317 = pneg %p92
      %p318 = pneg %p89
      %p319 = scmp.lt.s32.totalorder %s19, 1
      %s320 = scalar_select %p319, %s19, 1
      %s321 = smul.addr %s320, 8
      %s322 = smul.addr %s321, 8
      %s323 = scalar_lea.vmem %s3, %s322
      %p324 = pneg %p118
      %p325 = pneg %p115
      %p326 = pneg %p139
      %p327 = pneg %p136
      %p328 = pneg %p160
      %p329 = pneg %p157
      %p330 = pneg %p181
      %p331 = pneg %p178
      %p332 = pneg %p202
      %p333 = pneg %p199
      %p334 = pneg %p228
      %p335 = pneg %p225
      %p336 = scmp.lt.s32.totalorder %s19, 1
      %s337 = scalar_select %p336, %s19, 1
      %s338 = smul.addr %s337, 8
      %s339 = smul.addr %s338, 8
      %s340 = scalar_lea.vmem %s8, %s339
      %p341 = scmp.lt.s32.totalorder %s19, 1
      %s342 = scalar_select %p341, %s19, 1
      %s343 = smul.addr %s342, 8
      %s344 = smul.addr %s343, 8
      %s345 = scalar_lea.vmem %s0, %s344
      %p346 = scmp.lt.s32.totalorder %s19, 1
      %s347 = scalar_select %p346, %s19, 1
      %s348 = smul.addr %s347, 8
      %s349 = smul.addr %s348, 8
      %s350 = scalar_lea.vmem %s1, %s349
      %p351 = scmp.lt.s32.totalorder %s19, 1
      %s352 = scalar_select %p351, %s19, 1
      %s353 = smul.addr %s352, 8
      %s354 = smul.addr %s353, 8
      %s355 = scalar_lea.vmem %s2, %s354
      %p356 = scmp.lt.s32.totalorder %s19, 1
      %s357 = scalar_select %p356, %s19, 1
      %s358 = smul.addr %s357, 8
      %s359 = smul.addr %s358, 8
      %s360 = scalar_lea.vmem %s3, %s359
      %p361 = scmp.lt.s32.totalorder %s19, 1
      %s362 = scalar_select %p361, %s19, 1
      %s363 = smul.addr %s362, 8
      %s364 = smul.addr %s363, 8
      %s365 = scalar_lea.vmem %s8, %s364
      %v366 = vlaneseq
      %v367 = vand.u32 %v366, 127
      %vm368 = vcmp.lt.s32.totalorder %v367, 8
      %v369 = vsel %vm368, 1, 0
      %v370 = vcvt.s32.f32 %v369
      %v371 = vld [vmem:[%s4] sm:$0x1]
      %v372 = vld [vmem:[%s5] sm:$0x1]
      %v373 = vld [vmem:[%s345] sm:$0xff]
      %v374 = vld [vmem:[%s345 + $0x8] sm:$0xff]
      %v375 = vld [vmem:[%s345 + $0x10] sm:$0xff]
      %v376 = vld [vmem:[%s345 + $0x18] sm:$0xff]
      %v377 = vld [vmem:[%s345 + $0x20] sm:$0xff]
      %v378 = vld [vmem:[%s345 + $0x28] sm:$0xff]
      %v379 = vld [vmem:[%s345 + $0x30] sm:$0xff]
      %v380 = vld [vmem:[%s345 + $0x38] sm:$0xff]
      %381 = vadd.xlane.f32.xlu0 %v373
      %v382 = vpop.xlane.xlu0 %381
      %383 = vadd.xlane.f32.xlu0 %v374
      %v384 = vpop.xlane.xlu0 %383
      %385 = vadd.xlane.f32.xlu0 %v375
      %v386 = vpop.xlane.xlu0 %385
      %387 = vadd.xlane.f32.xlu0 %v376
      %v388 = vpop.xlane.xlu0 %387
      %389 = vadd.xlane.f32.xlu0 %v377
      %v390 = vpop.xlane.xlu0 %389
      %391 = vadd.xlane.f32.xlu0 %v378
      %v392 = vpop.xlane.xlu0 %391
      %393 = vadd.xlane.f32.xlu0 %v379
      %v394 = vpop.xlane.xlu0 %393
      %395 = vadd.xlane.f32.xlu0 %v380
      %v396 = vpop.xlane.xlu0 %395
      %v397 = vmul.f32 %v382, 0.125
      %v398 = vmul.f32 %v384, 0.125
      %v399 = vmul.f32 %v386, 0.125
      %v400 = vmul.f32 %v388, 0.125
      %v401 = vmul.f32 %v390, 0.125
      %v402 = vmul.f32 %v392, 0.125
      %v403 = vmul.f32 %v394, 0.125
      %v404 = vmul.f32 %v396, 0.125
      %v405 = vsub.f32 %v373, %v397
      %v406 = vsub.f32 %v374, %v398
      %v407 = vsub.f32 %v375, %v399
      %v408 = vsub.f32 %v376, %v400
      %v409 = vsub.f32 %v377, %v401
      %v410 = vsub.f32 %v378, %v402
      %v411 = vsub.f32 %v379, %v403
      %v412 = vsub.f32 %v380, %v404
      %v413 = vmul.f32 %v405, %v370
      %v414 = vmul.f32 %v406, %v370
      %v415 = vmul.f32 %v407, %v370
      %v416 = vmul.f32 %v408, %v370
      %v417 = vmul.f32 %v409, %v370
      %v418 = vmul.f32 %v410, %v370
      %v419 = vmul.f32 %v411, %v370
      %v420 = vmul.f32 %v412, %v370
      %v421 = vmul.f32 %v413, %v413
      %v422 = vmul.f32 %v414, %v414
      %v423 = vmul.f32 %v415, %v415
      %v424 = vmul.f32 %v416, %v416
      %v425 = vmul.f32 %v417, %v417
      %v426 = vmul.f32 %v418, %v418
      %v427 = vmul.f32 %v419, %v419
      %v428 = vmul.f32 %v420, %v420
      %429 = vadd.xlane.f32.xlu0 %v421
      %v430 = vpop.xlane.xlu0 %429
      %431 = vadd.xlane.f32.xlu0 %v422
      %v432 = vpop.xlane.xlu0 %431
      %433 = vadd.xlane.f32.xlu0 %v423
      %v434 = vpop.xlane.xlu0 %433
      %435 = vadd.xlane.f32.xlu0 %v424
      %v436 = vpop.xlane.xlu0 %435
      %437 = vadd.xlane.f32.xlu0 %v425
      %v438 = vpop.xlane.xlu0 %437
      %439 = vadd.xlane.f32.xlu0 %v426
      %v440 = vpop.xlane.xlu0 %439
      %441 = vadd.xlane.f32.xlu0 %v427
      %v442 = vpop.xlane.xlu0 %441
      %443 = vadd.xlane.f32.xlu0 %v428
      %v444 = vpop.xlane.xlu0 %443
      %v445 = vmul.f32 %v430, 0.125
      %v446 = vmul.f32 %v432, 0.125
      %v447 = vmul.f32 %v434, 0.125
      %v448 = vmul.f32 %v436, 0.125
      %v449 = vmul.f32 %v438, 0.125
      %v450 = vmul.f32 %v440, 0.125
      %v451 = vmul.f32 %v442, 0.125
      %v452 = vmul.f32 %v444, 0.125
      %v453 = vadd.f32 %v445, 1e-06
      %v454 = vadd.f32 %v446, 1e-06
      %v455 = vadd.f32 %v447, 1e-06
      %v456 = vadd.f32 %v448, 1e-06
      %v457 = vadd.f32 %v449, 1e-06
      %v458 = vadd.f32 %v450, 1e-06
      %v459 = vadd.f32 %v451, 1e-06
      %v460 = vadd.f32 %v452, 1e-06
      %v461 = vrsqrt.pop %v453
      %v462 = vrsqrt.pop %v454
      %v463 = vrsqrt.pop %v455
      %v464 = vrsqrt.pop %v456
      %v465 = vrsqrt.pop %v457
      %v466 = vrsqrt.pop %v458
      %v467 = vrsqrt.pop %v459
      %v468 = vrsqrt.pop %v460
      %v469 = vmul.f32 %v413, %v461
      %v470 = vmul.f32 %v414, %v462
      %v471 = vmul.f32 %v415, %v463
      %v472 = vmul.f32 %v416, %v464
      %v473 = vmul.f32 %v417, %v465
      %v474 = vmul.f32 %v418, %v466
      %v475 = vmul.f32 %v419, %v467
      %v476 = vmul.f32 %v420, %v468
      %v478 = vlaneseq
      %v479 = vshrl.u32 %v478, 7
      %v480 = vsub.s32 0, %v479
      %v481 = vrot.slane %v371, %v480
      %v483 = vmul.f32 %v469, %v481
      %v484 = vmul.f32 %v470, %v481
      %v485 = vmul.f32 %v471, %v481
      %v486 = vmul.f32 %v472, %v481
      %v487 = vmul.f32 %v473, %v481
      %v488 = vmul.f32 %v474, %v481
      %v489 = vmul.f32 %v475, %v481
      %v490 = vmul.f32 %v476, %v481
      %v492 = vlaneseq
      %v493 = vshrl.u32 %v492, 7
      %v494 = vsub.s32 0, %v493
      %v495 = vrot.slane %v372, %v494
      %v497 = vadd.f32 %v483, %v495
      %v498 = vadd.f32 %v484, %v495
      %v499 = vadd.f32 %v485, %v495
      %v500 = vadd.f32 %v486, %v495
      %v501 = vadd.f32 %v487, %v495
      %v502 = vadd.f32 %v488, %v495
      %v503 = vadd.f32 %v489, %v495
      %v504 = vadd.f32 %v490, %v495
      %v505 = vld [vmem:[%s350] sm:$0xff]
      %v506 = vld [vmem:[%s350 + $0x8] sm:$0xff]
      %v507 = vld [vmem:[%s350 + $0x10] sm:$0xff]
      %v508 = vld [vmem:[%s350 + $0x18] sm:$0xff]
      %v509 = vld [vmem:[%s350 + $0x20] sm:$0xff]
      %v510 = vld [vmem:[%s350 + $0x28] sm:$0xff]
      %v511 = vld [vmem:[%s350 + $0x30] sm:$0xff]
      %v512 = vld [vmem:[%s350 + $0x38] sm:$0xff]
      %513 = vadd.xlane.f32.xlu0 %v505
      %v514 = vpop.xlane.xlu0 %513
      %515 = vadd.xlane.f32.xlu0 %v506
      %v516 = vpop.xlane.xlu0 %515
      %517 = vadd.xlane.f32.xlu0 %v507
      %v518 = vpop.xlane.xlu0 %517
      %519 = vadd.xlane.f32.xlu0 %v508
      %v520 = vpop.xlane.xlu0 %519
      %521 = vadd.xlane.f32.xlu0 %v509
      %v522 = vpop.xlane.xlu0 %521
      %523 = vadd.xlane.f32.xlu0 %v510
      %v524 = vpop.xlane.xlu0 %523
      %525 = vadd.xlane.f32.xlu0 %v511
      %v526 = vpop.xlane.xlu0 %525
      %527 = vadd.xlane.f32.xlu0 %v512
      %v528 = vpop.xlane.xlu0 %527
      %v529 = vmul.f32 %v514, 0.125
      %v530 = vmul.f32 %v516, 0.125
      %v531 = vmul.f32 %v518, 0.125
      %v532 = vmul.f32 %v520, 0.125
      %v533 = vmul.f32 %v522, 0.125
      %v534 = vmul.f32 %v524, 0.125
      %v535 = vmul.f32 %v526, 0.125
      %v536 = vmul.f32 %v528, 0.125
      %v537 = vsub.f32 %v505, %v529
      %v538 = vsub.f32 %v506, %v530
      %v539 = vsub.f32 %v507, %v531
      %v540 = vsub.f32 %v508, %v532
      %v541 = vsub.f32 %v509, %v533
      %v542 = vsub.f32 %v510, %v534
      %v543 = vsub.f32 %v511, %v535
      %v544 = vsub.f32 %v512, %v536
      %v545 = vmul.f32 %v537, %v370
      %v546 = vmul.f32 %v538, %v370
      %v547 = vmul.f32 %v539, %v370
      %v548 = vmul.f32 %v540, %v370
      %v549 = vmul.f32 %v541, %v370
      %v550 = vmul.f32 %v542, %v370
      %v551 = vmul.f32 %v543, %v370
      %v552 = vmul.f32 %v544, %v370
      %v553 = vmul.f32 %v545, %v545
      %v554 = vmul.f32 %v546, %v546
      %v555 = vmul.f32 %v547, %v547
      %v556 = vmul.f32 %v548, %v548
      %v557 = vmul.f32 %v549, %v549
      %v558 = vmul.f32 %v550, %v550
      %v559 = vmul.f32 %v551, %v551
      %v560 = vmul.f32 %v552, %v552
      %561 = vadd.xlane.f32.xlu0 %v553
      %v562 = vpop.xlane.xlu0 %561
      %563 = vadd.xlane.f32.xlu0 %v554
      %v564 = vpop.xlane.xlu0 %563
      %565 = vadd.xlane.f32.xlu0 %v555
      %v566 = vpop.xlane.xlu0 %565
      %567 = vadd.xlane.f32.xlu0 %v556
      %v568 = vpop.xlane.xlu0 %567
      %569 = vadd.xlane.f32.xlu0 %v557
      %v570 = vpop.xlane.xlu0 %569
      %571 = vadd.xlane.f32.xlu0 %v558
      %v572 = vpop.xlane.xlu0 %571
      %573 = vadd.xlane.f32.xlu0 %v559
      %v574 = vpop.xlane.xlu0 %573
      %575 = vadd.xlane.f32.xlu0 %v560
      %v576 = vpop.xlane.xlu0 %575
      %v577 = vmul.f32 %v562, 0.125
      %v578 = vmul.f32 %v564, 0.125
      %v579 = vmul.f32 %v566, 0.125
      %v580 = vmul.f32 %v568, 0.125
      %v581 = vmul.f32 %v570, 0.125
      %v582 = vmul.f32 %v572, 0.125
      %v583 = vmul.f32 %v574, 0.125
      %v584 = vmul.f32 %v576, 0.125
      %v585 = vadd.f32 %v577, 1e-06
      %v586 = vadd.f32 %v578, 1e-06
      %v587 = vadd.f32 %v579, 1e-06
      %v588 = vadd.f32 %v580, 1e-06
      %v589 = vadd.f32 %v581, 1e-06
      %v590 = vadd.f32 %v582, 1e-06
      %v591 = vadd.f32 %v583, 1e-06
      %v592 = vadd.f32 %v584, 1e-06
      %v593 = vrsqrt.pop %v585
      %v594 = vrsqrt.pop %v586
      %v595 = vrsqrt.pop %v587
      %v596 = vrsqrt.pop %v588
      %v597 = vrsqrt.pop %v589
      %v598 = vrsqrt.pop %v590
      %v599 = vrsqrt.pop %v591
      %v600 = vrsqrt.pop %v592
      %v601 = vmul.f32 %v545, %v593
      %v602 = vmul.f32 %v546, %v594
      %v603 = vmul.f32 %v547, %v595
      %v604 = vmul.f32 %v548, %v596
      %v605 = vmul.f32 %v549, %v597
      %v606 = vmul.f32 %v550, %v598
      %v607 = vmul.f32 %v551, %v599
      %v608 = vmul.f32 %v552, %v600
      %v609 = vmul.f32 %v601, %v481
      %v610 = vmul.f32 %v602, %v481
      %v611 = vmul.f32 %v603, %v481
      %v612 = vmul.f32 %v604, %v481
      %v613 = vmul.f32 %v605, %v481
      %v614 = vmul.f32 %v606, %v481
      %v615 = vmul.f32 %v607, %v481
      %v616 = vmul.f32 %v608, %v481
      %v617 = vadd.f32 %v609, %v495
      %v618 = vadd.f32 %v610, %v495
      %v619 = vadd.f32 %v611, %v495
      %v620 = vadd.f32 %v612, %v495
      %v621 = vadd.f32 %v613, %v495
      %v622 = vadd.f32 %v614, %v495
      %v623 = vadd.f32 %v615, %v495
      %v624 = vadd.f32 %v616, %v495
      %v625 = vld [vmem:[%s355] sm:$0xff]
      %v626 = vld [vmem:[%s355 + $0x8] sm:$0xff]
      %v627 = vld [vmem:[%s355 + $0x10] sm:$0xff]
      %v628 = vld [vmem:[%s355 + $0x18] sm:$0xff]
      %v629 = vld [vmem:[%s355 + $0x20] sm:$0xff]
      %v630 = vld [vmem:[%s355 + $0x28] sm:$0xff]
      %v631 = vld [vmem:[%s355 + $0x30] sm:$0xff]
      %v632 = vld [vmem:[%s355 + $0x38] sm:$0xff]
      %633 = vadd.xlane.f32.xlu0 %v625
      %v634 = vpop.xlane.xlu0 %633
      %635 = vadd.xlane.f32.xlu0 %v626
      %v636 = vpop.xlane.xlu0 %635
      %637 = vadd.xlane.f32.xlu0 %v627
      %v638 = vpop.xlane.xlu0 %637
      %639 = vadd.xlane.f32.xlu0 %v628
      %v640 = vpop.xlane.xlu0 %639
      %641 = vadd.xlane.f32.xlu0 %v629
      %v642 = vpop.xlane.xlu0 %641
      %643 = vadd.xlane.f32.xlu0 %v630
      %v644 = vpop.xlane.xlu0 %643
      %645 = vadd.xlane.f32.xlu0 %v631
      %v646 = vpop.xlane.xlu0 %645
      %647 = vadd.xlane.f32.xlu0 %v632
      %v648 = vpop.xlane.xlu0 %647
      %v649 = vmul.f32 %v634, 0.125
      %v650 = vmul.f32 %v636, 0.125
      %v651 = vmul.f32 %v638, 0.125
      %v652 = vmul.f32 %v640, 0.125
      %v653 = vmul.f32 %v642, 0.125
      %v654 = vmul.f32 %v644, 0.125
      %v655 = vmul.f32 %v646, 0.125
      %v656 = vmul.f32 %v648, 0.125
      %v657 = vsub.f32 %v625, %v649
      %v658 = vsub.f32 %v626, %v650
      %v659 = vsub.f32 %v627, %v651
      %v660 = vsub.f32 %v628, %v652
      %v661 = vsub.f32 %v629, %v653
      %v662 = vsub.f32 %v630, %v654
      %v663 = vsub.f32 %v631, %v655
      %v664 = vsub.f32 %v632, %v656
      %v665 = vmul.f32 %v657, %v370
      %v666 = vmul.f32 %v658, %v370
      %v667 = vmul.f32 %v659, %v370
      %v668 = vmul.f32 %v660, %v370
      %v669 = vmul.f32 %v661, %v370
      %v670 = vmul.f32 %v662, %v370
      %v671 = vmul.f32 %v663, %v370
      %v672 = vmul.f32 %v664, %v370
      %v673 = vmul.f32 %v665, %v665
      %v674 = vmul.f32 %v666, %v666
      %v675 = vmul.f32 %v667, %v667
      %v676 = vmul.f32 %v668, %v668
      %v677 = vmul.f32 %v669, %v669
      %v678 = vmul.f32 %v670, %v670
      %v679 = vmul.f32 %v671, %v671
      %v680 = vmul.f32 %v672, %v672
      %681 = vadd.xlane.f32.xlu0 %v673
      %v682 = vpop.xlane.xlu0 %681
      %683 = vadd.xlane.f32.xlu0 %v674
      %v684 = vpop.xlane.xlu0 %683
      %685 = vadd.xlane.f32.xlu0 %v675
      %v686 = vpop.xlane.xlu0 %685
      %687 = vadd.xlane.f32.xlu0 %v676
      %v688 = vpop.xlane.xlu0 %687
      %689 = vadd.xlane.f32.xlu0 %v677
      %v690 = vpop.xlane.xlu0 %689
      %691 = vadd.xlane.f32.xlu0 %v678
      %v692 = vpop.xlane.xlu0 %691
      %693 = vadd.xlane.f32.xlu0 %v679
      %v694 = vpop.xlane.xlu0 %693
      %695 = vadd.xlane.f32.xlu0 %v680
      %v696 = vpop.xlane.xlu0 %695
      %v697 = vmul.f32 %v682, 0.125
      %v698 = vmul.f32 %v684, 0.125
      %v699 = vmul.f32 %v686, 0.125
      %v700 = vmul.f32 %v688, 0.125
      %v701 = vmul.f32 %v690, 0.125
      %v702 = vmul.f32 %v692, 0.125
      %v703 = vmul.f32 %v694, 0.125
      %v704 = vmul.f32 %v696, 0.125
      %v705 = vadd.f32 %v697, 1e-06
      %v706 = vadd.f32 %v698, 1e-06
      %v707 = vadd.f32 %v699, 1e-06
      %v708 = vadd.f32 %v700, 1e-06
      %v709 = vadd.f32 %v701, 1e-06
      %v710 = vadd.f32 %v702, 1e-06
      %v711 = vadd.f32 %v703, 1e-06
      %v712 = vadd.f32 %v704, 1e-06
      %v713 = vrsqrt.pop %v705
      %v714 = vrsqrt.pop %v706
      %v715 = vrsqrt.pop %v707
      %v716 = vrsqrt.pop %v708
      %v717 = vrsqrt.pop %v709
      %v718 = vrsqrt.pop %v710
      %v719 = vrsqrt.pop %v711
      %v720 = vrsqrt.pop %v712
      %v721 = vmul.f32 %v665, %v713
      %v722 = vmul.f32 %v666, %v714
      %v723 = vmul.f32 %v667, %v715
      %v724 = vmul.f32 %v668, %v716
      %v725 = vmul.f32 %v669, %v717
      %v726 = vmul.f32 %v670, %v718
      %v727 = vmul.f32 %v671, %v719
      %v728 = vmul.f32 %v672, %v720
      %v729 = vmul.f32 %v721, %v481
      %v730 = vmul.f32 %v722, %v481
      %v731 = vmul.f32 %v723, %v481
      %v732 = vmul.f32 %v724, %v481
      %v733 = vmul.f32 %v725, %v481
      %v734 = vmul.f32 %v726, %v481
      %v735 = vmul.f32 %v727, %v481
      %v736 = vmul.f32 %v728, %v481
      %v737 = vadd.f32 %v729, %v495
      %v738 = vadd.f32 %v730, %v495
      %v739 = vadd.f32 %v731, %v495
      %v740 = vadd.f32 %v732, %v495
      %v741 = vadd.f32 %v733, %v495
      %v742 = vadd.f32 %v734, %v495
      %v743 = vadd.f32 %v735, %v495
      %v744 = vadd.f32 %v736, %v495
      %v745 = vld [vmem:[%s360] sm:$0xff]
      %v746 = vld [vmem:[%s360 + $0x8] sm:$0xff]
      %v747 = vld [vmem:[%s360 + $0x10] sm:$0xff]
      %v748 = vld [vmem:[%s360 + $0x18] sm:$0xff]
      %v749 = vld [vmem:[%s360 + $0x20] sm:$0xff]
      %v750 = vld [vmem:[%s360 + $0x28] sm:$0xff]
      %v751 = vld [vmem:[%s360 + $0x30] sm:$0xff]
      %v752 = vld [vmem:[%s360 + $0x38] sm:$0xff]
      %753 = vadd.xlane.f32.xlu0 %v745
      %v754 = vpop.xlane.xlu0 %753
      %755 = vadd.xlane.f32.xlu0 %v746
      %v756 = vpop.xlane.xlu0 %755
      %757 = vadd.xlane.f32.xlu0 %v747
      %v758 = vpop.xlane.xlu0 %757
      %759 = vadd.xlane.f32.xlu0 %v748
      %v760 = vpop.xlane.xlu0 %759
      %761 = vadd.xlane.f32.xlu0 %v749
      %v762 = vpop.xlane.xlu0 %761
      %763 = vadd.xlane.f32.xlu0 %v750
      %v764 = vpop.xlane.xlu0 %763
      %765 = vadd.xlane.f32.xlu0 %v751
      %v766 = vpop.xlane.xlu0 %765
      %767 = vadd.xlane.f32.xlu0 %v752
      %v768 = vpop.xlane.xlu0 %767
      %v769 = vmul.f32 %v754, 0.125
      %v770 = vmul.f32 %v756, 0.125
      %v771 = vmul.f32 %v758, 0.125
      %v772 = vmul.f32 %v760, 0.125
      %v773 = vmul.f32 %v762, 0.125
      %v774 = vmul.f32 %v764, 0.125
      %v775 = vmul.f32 %v766, 0.125
      %v776 = vmul.f32 %v768, 0.125
      %v777 = vsub.f32 %v745, %v769
      %v778 = vsub.f32 %v746, %v770
      %v779 = vsub.f32 %v747, %v771
      %v780 = vsub.f32 %v748, %v772
      %v781 = vsub.f32 %v749, %v773
      %v782 = vsub.f32 %v750, %v774
      %v783 = vsub.f32 %v751, %v775
      %v784 = vsub.f32 %v752, %v776
      %v785 = vmul.f32 %v777, %v370
      %v786 = vmul.f32 %v778, %v370
      %v787 = vmul.f32 %v779, %v370
      %v788 = vmul.f32 %v780, %v370
      %v789 = vmul.f32 %v781, %v370
      %v790 = vmul.f32 %v782, %v370
      %v791 = vmul.f32 %v783, %v370
      %v792 = vmul.f32 %v784, %v370
      %v793 = vmul.f32 %v785, %v785
      %v794 = vmul.f32 %v786, %v786
      %v795 = vmul.f32 %v787, %v787
      %v796 = vmul.f32 %v788, %v788
      %v797 = vmul.f32 %v789, %v789
      %v798 = vmul.f32 %v790, %v790
      %v799 = vmul.f32 %v791, %v791
      %v800 = vmul.f32 %v792, %v792
      %801 = vadd.xlane.f32.xlu0 %v793
      %v802 = vpop.xlane.xlu0 %801
      %803 = vadd.xlane.f32.xlu0 %v794
      %v804 = vpop.xlane.xlu0 %803
      %805 = vadd.xlane.f32.xlu0 %v795
      %v806 = vpop.xlane.xlu0 %805
      %807 = vadd.xlane.f32.xlu0 %v796
      %v808 = vpop.xlane.xlu0 %807
      %809 = vadd.xlane.f32.xlu0 %v797
      %v810 = vpop.xlane.xlu0 %809
      %811 = vadd.xlane.f32.xlu0 %v798
      %v812 = vpop.xlane.xlu0 %811
      %813 = vadd.xlane.f32.xlu0 %v799
      %v814 = vpop.xlane.xlu0 %813
      %815 = vadd.xlane.f32.xlu0 %v800
      %v816 = vpop.xlane.xlu0 %815
      %v817 = vmul.f32 %v802, 0.125
      %v818 = vmul.f32 %v804, 0.125
      %v819 = vmul.f32 %v806, 0.125
      %v820 = vmul.f32 %v808, 0.125
      %v821 = vmul.f32 %v810, 0.125
      %v822 = vmul.f32 %v812, 0.125
      %v823 = vmul.f32 %v814, 0.125
      %v824 = vmul.f32 %v816, 0.125
      %v825 = vadd.f32 %v817, 1e-06
      %v826 = vadd.f32 %v818, 1e-06
      %v827 = vadd.f32 %v819, 1e-06
      %v828 = vadd.f32 %v820, 1e-06
      %v829 = vadd.f32 %v821, 1e-06
      %v830 = vadd.f32 %v822, 1e-06
      %v831 = vadd.f32 %v823, 1e-06
      %v832 = vadd.f32 %v824, 1e-06
      %v833 = vrsqrt.pop %v825
      %v834 = vrsqrt.pop %v826
      %v835 = vrsqrt.pop %v827
      %v836 = vrsqrt.pop %v828
      %v837 = vrsqrt.pop %v829
      %v838 = vrsqrt.pop %v830
      %v839 = vrsqrt.pop %v831
      %v840 = vrsqrt.pop %v832
      %v841 = vmul.f32 %v785, %v833
      %v842 = vmul.f32 %v786, %v834
      %v843 = vmul.f32 %v787, %v835
      %v844 = vmul.f32 %v788, %v836
      %v845 = vmul.f32 %v789, %v837
      %v846 = vmul.f32 %v790, %v838
      %v847 = vmul.f32 %v791, %v839
      %v848 = vmul.f32 %v792, %v840
      %v849 = vmul.f32 %v841, %v481
      %v850 = vmul.f32 %v842, %v481
      %v851 = vmul.f32 %v843, %v481
      %v852 = vmul.f32 %v844, %v481
      %v853 = vmul.f32 %v845, %v481
      %v854 = vmul.f32 %v846, %v481
      %v855 = vmul.f32 %v847, %v481
      %v856 = vmul.f32 %v848, %v481
      %v857 = vadd.f32 %v849, %v495
      %v858 = vadd.f32 %v850, %v495
      %v859 = vadd.f32 %v851, %v495
      %v860 = vadd.f32 %v852, %v495
      %v861 = vadd.f32 %v853, %v495
      %v862 = vadd.f32 %v854, %v495
      %v863 = vadd.f32 %v855, %v495
      %v864 = vadd.f32 %v856, %v495
      %v865 = vld [vmem:[%s6] sm:$0xff]
      %v866 = vld [vmem:[%s6 + $0x8] sm:$0xff]
      %v867 = vld [vmem:[%s6 + $0x10] sm:$0xff]
      %v868 = vld [vmem:[%s6 + $0x18] sm:$0xff]
      %v869 = vld [vmem:[%s6 + $0x20] sm:$0xff]
      %v870 = vld [vmem:[%s6 + $0x28] sm:$0xff]
      %v871 = vld [vmem:[%s6 + $0x30] sm:$0xff]
      %v872 = vld [vmem:[%s6 + $0x38] sm:$0xff]
      %v873 = vld [vmem:[%s6 + $0x40] sm:$0xff]
      %v874 = vld [vmem:[%s6 + $0x48] sm:$0xff]
      %v875 = vld [vmem:[%s6 + $0x50] sm:$0xff]
      %v876 = vld [vmem:[%s6 + $0x58] sm:$0xff]
      %v877 = vld [vmem:[%s6 + $0x60] sm:$0xff]
      %v878 = vld [vmem:[%s6 + $0x68] sm:$0xff]
      %v879 = vld [vmem:[%s6 + $0x70] sm:$0xff]
      %v880 = vld [vmem:[%s6 + $0x78] sm:$0xff]
      %v881 = vld [vmem:[%s6 + $0x80] sm:$0xff]
      %v882 = vld [vmem:[%s6 + $0x88] sm:$0xff]
      %v883 = vld [vmem:[%s6 + $0x90] sm:$0xff]
      %v884 = vld [vmem:[%s6 + $0x98] sm:$0xff]
      %v885 = vld [vmem:[%s6 + $0xa0] sm:$0xff]
      %v886 = vld [vmem:[%s6 + $0xa8] sm:$0xff]
      %v887 = vld [vmem:[%s6 + $0xb0] sm:$0xff]
      %v888 = vld [vmem:[%s6 + $0xb8] sm:$0xff]
      %v889 = vld [vmem:[%s6 + $0xc0] sm:$0xff]
      %v890 = vld [vmem:[%s6 + $0xc8] sm:$0xff]
      %v891 = vld [vmem:[%s6 + $0xd0] sm:$0xff]
      %v892 = vld [vmem:[%s6 + $0xd8] sm:$0xff]
      %v893 = vld [vmem:[%s6 + $0xe0] sm:$0xff]
      %v894 = vld [vmem:[%s6 + $0xe8] sm:$0xff]
      %v895 = vld [vmem:[%s6 + $0xf0] sm:$0xff]
      %v896 = vld [vmem:[%s6 + $0xf8] sm:$0xff]
      %v897 = vld [vmem:[%s6 + $0x100] sm:$0xff]
      %v898 = vld [vmem:[%s6 + $0x108] sm:$0xff]
      %v899 = vld [vmem:[%s6 + $0x110] sm:$0xff]
      %v900 = vld [vmem:[%s6 + $0x118] sm:$0xff]
      %v901 = vld [vmem:[%s6 + $0x120] sm:$0xff]
      %v902 = vld [vmem:[%s6 + $0x128] sm:$0xff]
      %v903 = vld [vmem:[%s6 + $0x130] sm:$0xff]
      %v904 = vld [vmem:[%s6 + $0x138] sm:$0xff]
      %v905 = vld [vmem:[%s6 + $0x140] sm:$0xff]
      %v906 = vld [vmem:[%s6 + $0x148] sm:$0xff]
      %v907 = vld [vmem:[%s6 + $0x150] sm:$0xff]
      %v908 = vld [vmem:[%s6 + $0x158] sm:$0xff]
      %v909 = vld [vmem:[%s6 + $0x160] sm:$0xff]
      %v910 = vld [vmem:[%s6 + $0x168] sm:$0xff]
      %v911 = vld [vmem:[%s6 + $0x170] sm:$0xff]
      %v912 = vld [vmem:[%s6 + $0x178] sm:$0xff]
      %v913 = vld [vmem:[%s6 + $0x180] sm:$0xff]
      %v914 = vld [vmem:[%s6 + $0x188] sm:$0xff]
      %v915 = vld [vmem:[%s6 + $0x190] sm:$0xff]
      %v916 = vld [vmem:[%s6 + $0x198] sm:$0xff]
      %v917 = vld [vmem:[%s6 + $0x1a0] sm:$0xff]
      %v918 = vld [vmem:[%s6 + $0x1a8] sm:$0xff]
      %v919 = vld [vmem:[%s6 + $0x1b0] sm:$0xff]
      %v920 = vld [vmem:[%s6 + $0x1b8] sm:$0xff]
      %v921 = vld [vmem:[%s6 + $0x1c0] sm:$0xff]
      %v922 = vld [vmem:[%s6 + $0x1c8] sm:$0xff]
      %v923 = vld [vmem:[%s6 + $0x1d0] sm:$0xff]
      %v924 = vld [vmem:[%s6 + $0x1d8] sm:$0xff]
      %v925 = vld [vmem:[%s6 + $0x1e0] sm:$0xff]
      %v926 = vld [vmem:[%s6 + $0x1e8] sm:$0xff]
      %v927 = vld [vmem:[%s6 + $0x1f0] sm:$0xff]
      %v928 = vld [vmem:[%s6 + $0x1f8] sm:$0xff]
      %v929 = vld [vmem:[%s7] sm:$0x1]
      %v931 = vlaneseq
      %v932 = vshrl.u32 %v931, 7
      %v933 = vsub.s32 0, %v932
      %v934 = vrot.slane %v929, %v933
      %936 = vmatprep.subr.mxu0 0.0
      %937 = vmatpush1.msra.mxu0 %v865
      %938 = vmatprep.subr.mxu0 0.0
      %939 = vmatpush1.msra.mxu0 %v866
      %940 = vmatprep.subr.mxu0 0.0
      %941 = vmatpush1.msra.mxu0 %v867
      %942 = vmatprep.subr.mxu0 0.0
      %943 = vmatpush1.msra.mxu0 %v868
      %944 = vmatprep.subr.mxu0 0.0
      %945 = vmatpush1.msra.mxu0 %v869
      %946 = vmatprep.subr.mxu0 0.0
      %947 = vmatpush1.msra.mxu0 %v870
      %948 = vmatprep.subr.mxu0 0.0
      %949 = vmatpush1.msra.mxu0 %v871
      %950 = vmatprep.subr.mxu0 0.0
      %951 = vmatpush1.msra.mxu0 %v872
      %952 = vmatprep.subr.mxu0 0.0
      %953 = vmatpush1.msra.mxu0 %v873
      %954 = vmatprep.subr.mxu0 0.0
      %955 = vmatpush1.msra.mxu0 %v874
      %956 = vmatprep.subr.mxu0 0.0
      %957 = vmatpush1.msra.mxu0 %v875
      %958 = vmatprep.subr.mxu0 0.0
      %959 = vmatpush1.msra.mxu0 %v876
      %960 = vmatprep.subr.mxu0 0.0
      %961 = vmatpush1.msra.mxu0 %v877
      %962 = vmatprep.subr.mxu0 0.0
      %963 = vmatpush1.msra.mxu0 %v878
      %964 = vmatprep.subr.mxu0 0.0
      %965 = vmatpush1.msra.mxu0 %v879
      %966 = vmatprep.subr.mxu0 0.0
      %967 = vmatpush1.msra.mxu0 %v880
      %968 = vmatprep.subr.mxu0 0.0
      %969 = vmatpush1.msra.mxu0 %v881
      %970 = vmatprep.subr.mxu0 0.0
      %971 = vmatpush1.msra.mxu0 %v882
      %972 = vmatprep.subr.mxu0 0.0
      %973 = vmatpush1.msra.mxu0 %v883
      %974 = vmatprep.subr.mxu0 0.0
      %975 = vmatpush1.msra.mxu0 %v884
      %976 = vmatprep.subr.mxu0 0.0
      %977 = vmatpush1.msra.mxu0 %v885
      %978 = vmatprep.subr.mxu0 0.0
      %979 = vmatpush1.msra.mxu0 %v886
      %980 = vmatprep.subr.mxu0 0.0
      %981 = vmatpush1.msra.mxu0 %v887
      %982 = vmatprep.subr.mxu0 0.0
      %983 = vmatpush1.msra.mxu0 %v888
      %984 = vmatprep.subr.mxu0 0.0
      %985 = vmatpush1.msra.mxu0 %v889
      %986 = vmatprep.subr.mxu0 0.0
      %987 = vmatpush1.msra.mxu0 %v890
      %988 = vmatprep.subr.mxu0 0.0
      %989 = vmatpush1.msra.mxu0 %v891
      %990 = vmatprep.subr.mxu0 0.0
      %991 = vmatpush1.msra.mxu0 %v892
      %992 = vmatprep.subr.mxu0 0.0
      %993 = vmatpush1.msra.mxu0 %v893
      %994 = vmatprep.subr.mxu0 0.0
      %995 = vmatpush1.msra.mxu0 %v894
      %996 = vmatprep.subr.mxu0 0.0
      %997 = vmatpush1.msra.mxu0 %v895
      %998 = vmatprep.subr.mxu0 0.0
      %999 = vmatpush1.msra.mxu0 %v896
      %1000 = vmatprep.mubr.f32.mxu0 %v617
      %1001 = vmatmul.mubr.f32.gmra.mrb[0].mxu0 %v497
      %v1002 = vpop.f32.mrb[0].mxu0
      %v1003 = vadd.f32 %v934, %v1002
      %v1004 = vpop.f32.mrb[0].mxu0
      %1005 = vmatprep.mubr.f32.mxu0 %v618
      %1006 = vmatmul.mubr.f32.gmra.mrb[0].mxu0 %v498
      %v1007 = vpop.f32.mrb[0].mxu0
      %v1008 = vadd.f32 %v934, %v1007
      %v1009 = vpop.f32.mrb[0].mxu0
      %1010 = vmatprep.mubr.f32.mxu0 %v619
      %1011 = vmatmul.mubr.f32.gmra.mrb[0].mxu0 %v499
      %v1012 = vpop.f32.mrb[0].mxu0
      %v1013 = vadd.f32 %v934, %v1012
      %v1014 = vpop.f32.mrb[0].mxu0
      %1015 = vmatprep.mubr.f32.mxu0 %v620
      %1016 = vmatmul.mubr.f32.gmra.mrb[0].mxu0 %v500
      %v1017 = vpop.f32.mrb[0].mxu0
      %v1018 = vadd.f32 %v934, %v1017
      %v1019 = vpop.f32.mrb[0].mxu0
      %1020 = vmatprep.mubr.f32.mxu0 %v621
      %1021 = vmatmul.mubr.f32.gmra.mrb[0].mxu0 %v501
      %v1022 = vpop.f32.mrb[0].mxu0
      %v1023 = vadd.f32 %v934, %v1022
      %v1024 = vpop.f32.mrb[0].mxu0
      %1025 = vmatprep.mubr.f32.mxu0 %v622
      %1026 = vmatmul.mubr.f32.gmra.mrb[0].mxu0 %v502
      %v1027 = vpop.f32.mrb[0].mxu0
      %v1028 = vadd.f32 %v934, %v1027
      %v1029 = vpop.f32.mrb[0].mxu0
      %1030 = vmatprep.mubr.f32.mxu0 %v623
      %1031 = vmatmul.mubr.f32.gmra.mrb[0].mxu0 %v503
      %v1032 = vpop.f32.mrb[0].mxu0
      %v1033 = vadd.f32 %v934, %v1032
      %v1034 = vpop.f32.mrb[0].mxu0
      %1035 = vmatprep.mubr.f32.mxu0 %v624
      %1036 = vmatmul.mubr.f32.gmra.mrb[0].mxu0 %v504
      %v1037 = vpop.f32.mrb[0].mxu0
      %v1038 = vadd.f32 %v934, %v1037
      %v1039 = vpop.f32.mrb[0].mxu0
      %1040 = vdwg.mxu0
      %1041 = vmatprep.subr.mxu0 0.0
      %1042 = vmatpush1.msra.mxu0 %v897
      %1043 = vmatprep.subr.mxu0 0.0
      %1044 = vmatpush1.msra.mxu0 %v898
      %1045 = vmatprep.subr.mxu0 0.0
      %1046 = vmatpush1.msra.mxu0 %v899
      %1047 = vmatprep.subr.mxu0 0.0
      %1048 = vmatpush1.msra.mxu0 %v900
      %1049 = vmatprep.subr.mxu0 0.0
      %1050 = vmatpush1.msra.mxu0 %v901
      %1051 = vmatprep.subr.mxu0 0.0
      %1052 = vmatpush1.msra.mxu0 %v902
      %1053 = vmatprep.subr.mxu0 0.0
      %1054 = vmatpush1.msra.mxu0 %v903
      %1055 = vmatprep.subr.mxu0 0.0
      %1056 = vmatpush1.msra.mxu0 %v904
      %1057 = vmatprep.subr.mxu0 0.0
      %1058 = vmatpush1.msra.mxu0 %v905
      %1059 = vmatprep.subr.mxu0 0.0
      %1060 = vmatpush1.msra.mxu0 %v906
      %1061 = vmatprep.subr.mxu0 0.0
      %1062 = vmatpush1.msra.mxu0 %v907
      %1063 = vmatprep.subr.mxu0 0.0
      %1064 = vmatpush1.msra.mxu0 %v908
      %1065 = vmatprep.subr.mxu0 0.0
      %1066 = vmatpush1.msra.mxu0 %v909
      %1067 = vmatprep.subr.mxu0 0.0
      %1068 = vmatpush1.msra.mxu0 %v910
      %1069 = vmatprep.subr.mxu0 0.0
      %1070 = vmatpush1.msra.mxu0 %v911
      %1071 = vmatprep.subr.mxu0 0.0
      %1072 = vmatpush1.msra.mxu0 %v912
      %1073 = vmatprep.subr.mxu0 0.0
      %1074 = vmatpush1.msra.mxu0 %v913
      %1075 = vmatprep.subr.mxu0 0.0
      %1076 = vmatpush1.msra.mxu0 %v914
      %1077 = vmatprep.subr.mxu0 0.0
      %1078 = vmatpush1.msra.mxu0 %v915
      %1079 = vmatprep.subr.mxu0 0.0
      %1080 = vmatpush1.msra.mxu0 %v916
      %1081 = vmatprep.subr.mxu0 0.0
      %1082 = vmatpush1.msra.mxu0 %v917
      %1083 = vmatprep.subr.mxu0 0.0
      %1084 = vmatpush1.msra.mxu0 %v918
      %1085 = vmatprep.subr.mxu0 0.0
      %1086 = vmatpush1.msra.mxu0 %v919
      %1087 = vmatprep.subr.mxu0 0.0
      %1088 = vmatpush1.msra.mxu0 %v920
      %1089 = vmatprep.subr.mxu0 0.0
      %1090 = vmatpush1.msra.mxu0 %v921
      %1091 = vmatprep.subr.mxu0 0.0
      %1092 = vmatpush1.msra.mxu0 %v922
      %1093 = vmatprep.subr.mxu0 0.0
      %1094 = vmatpush1.msra.mxu0 %v923
      %1095 = vmatprep.subr.mxu0 0.0
      %1096 = vmatpush1.msra.mxu0 %v924
      %1097 = vmatprep.subr.mxu0 0.0
      %1098 = vmatpush1.msra.mxu0 %v925
      %1099 = vmatprep.subr.mxu0 0.0
      %1100 = vmatpush1.msra.mxu0 %v926
      %1101 = vmatprep.subr.mxu0 0.0
      %1102 = vmatpush1.msra.mxu0 %v927
      %1103 = vmatprep.subr.mxu0 0.0
      %1104 = vmatpush1.msra.mxu0 %v928
      %1105 = vmatprep.mubr.f32.mxu0 %v857
      %1106 = vmatmul.mubr.f32.gmra.mrb[0].mxu0 %v737
      %v1107 = vpop.f32.mrb[0].mxu0
      %v1108 = vadd.f32 %v1003, %v1107
      %v1109 = vpop.f32.mrb[0].mxu0
      %1110 = vmatprep.mubr.f32.mxu0 %v858
      %1111 = vmatmul.mubr.f32.gmra.mrb[0].mxu0 %v738
      %v1112 = vpop.f32.mrb[0].mxu0
      %v1113 = vadd.f32 %v1008, %v1112
      %v1114 = vpop.f32.mrb[0].mxu0
      %1115 = vmatprep.mubr.f32.mxu0 %v859
      %1116 = vmatmul.mubr.f32.gmra.mrb[0].mxu0 %v739
      %v1117 = vpop.f32.mrb[0].mxu0
      %v1118 = vadd.f32 %v1013, %v1117
      %v1119 = vpop.f32.mrb[0].mxu0
      %1120 = vmatprep.mubr.f32.mxu0 %v860
      %1121 = vmatmul.mubr.f32.gmra.mrb[0].mxu0 %v740
      %v1122 = vpop.f32.mrb[0].mxu0
      %v1123 = vadd.f32 %v1018, %v1122
      %v1124 = vpop.f32.mrb[0].mxu0
      %1125 = vmatprep.mubr.f32.mxu0 %v861
      %1126 = vmatmul.mubr.f32.gmra.mrb[0].mxu0 %v741
      %v1127 = vpop.f32.mrb[0].mxu0
      %v1128 = vadd.f32 %v1023, %v1127
      %v1129 = vpop.f32.mrb[0].mxu0
      %1130 = vmatprep.mubr.f32.mxu0 %v862
      %1131 = vmatmul.mubr.f32.gmra.mrb[0].mxu0 %v742
      %v1132 = vpop.f32.mrb[0].mxu0
      %v1133 = vadd.f32 %v1028, %v1132
      %v1134 = vpop.f32.mrb[0].mxu0
      %1135 = vmatprep.mubr.f32.mxu0 %v863
      %1136 = vmatmul.mubr.f32.gmra.mrb[0].mxu0 %v743
      %v1137 = vpop.f32.mrb[0].mxu0
      %v1138 = vadd.f32 %v1033, %v1137
      %v1139 = vpop.f32.mrb[0].mxu0
      %1140 = vmatprep.mubr.f32.mxu0 %v864
      %1141 = vmatmul.mubr.f32.gmra.mrb[0].mxu0 %v744
      %v1142 = vpop.f32.mrb[0].mxu0
      %v1143 = vadd.f32 %v1038, %v1142
      %v1144 = vpop.f32.mrb[0].mxu0
      %1145 = vdwg.mxu0
      %1146 = vst [vmem:[%s365] sm:$0xff] %v1108
      %1147 = vst [vmem:[%s365 + $0x8] sm:$0xff] %v1113
      %1148 = vst [vmem:[%s365 + $0x10] sm:$0xff] %v1118
      %1149 = vst [vmem:[%s365 + $0x18] sm:$0xff] %v1123
      %1150 = vst [vmem:[%s365 + $0x20] sm:$0xff] %v1128
      %1151 = vst [vmem:[%s365 + $0x28] sm:$0xff] %v1133
      %1152 = vst [vmem:[%s365 + $0x30] sm:$0xff] %v1138
      %1153 = vst [vmem:[%s365 + $0x38] sm:$0xff] %v1143
      %p1154 = scmp.lt.s32.totalorder %s19, 1
      %s1155 = scalar_select %p1154, %s19, 1
      %s1156 = smul.addr %s1155, 8
      %s1157 = smul.addr %s1156, 8
      %s1158 = scalar_lea.vmem %s8, %s1157
      // Predicated region
      $region53: #{stage_forward.2} parent=51 // pred_check
        %p1159 = pneg %p225
      $region54: #{stage_forward.2} parent=51 // pred_check_branch
        %1161 = sbr.rel (%p1159) target = $region56
      $region55: #{stage_forward.2} parent=51 // pred_region
        _
      $region56: #{stage_forward.2} parent=51 // pred_fallthru
        _
    $region52: #{stage_forward.2} parent=5 // pred_fallthru
      _
    %p1162 = scmp.le.s32.totalorder 2, %s14
    // Predicated region
    $region57: #{stage_forward.2} parent=5 // pred_check
      %p1163 = pneg %p1162
    $region58: #{stage_forward.2} parent=5 // pred_check_branch
      %1165 = sbr.rel (%p1163) target = $region60
    $region59: #{stage_forward.2} parent=5 // pred_region
      %s1166 = ssub.s32 %s14, 2
      // Predicated region
      $region61: #{stage_forward.2} parent=59 // pred_check
        %p1167 = pneg %p231
      $region62: #{stage_forward.2} parent=59 // pred_check_branch
        %1169 = sbr.rel (%p1167) target = $region64
      $region63: #{stage_forward.2} parent=59 // pred_region
        %p1170 = scmp.lt.s32.totalorder %s20, 1
        %s1171 = scalar_select %p1170, %s20, 1
        %s1172 = smul.addr %s1171, 8
        %s1173 = smul.addr %s1172, 8
        %s1174 = scalar_lea.vmem %s8, %s1173
      $region64: #{stage_forward.2} parent=59 // pred_fallthru
        _
    $region60: #{stage_forward.2} parent=5 // pred_fallthru
      _
  $region6: #{stage_forward.2} parent=0 // loop_footer
    %s18 = sadd.s32 1, %s14
  $region7: #{stage_forward.2} parent=0 // loop_footer_branch
    %13 = sbr.rel target = $region3
  $region8: #{stage_forward.2} parent=0 // loop_exit
    _

// kernel: stage_forward.3
$region0: #{stage_forward.3}
  #allocation0 [shape = 'u32[]', space=smem, size = 0x4, offset = 0x4, fixed_abs, tag = 'smem constant byte address 0x4 - core index']
  #allocation1 [shape = 'u32[144,128]{1,0:T(1,128)}', space=vmem, size = 0x12000, scoped, tag = 'internal scratch']
  #allocation2 [shape = 'f32[128,128]{1,0:T(8,128)}', space=vmem, size = 0x10000, scoped, tag = 'scratch operand']
  #allocation3 [shape = 'f32[96,128]{1,0:T(8,128)}', space=vmem, size = 0xc000, scoped, tag = 'scratch operand']
  %s0 = inlined_call_operand.vmem [shape: f32[2,64,128], index: 0, kind: input, shape index: {}]
  %s1 = inlined_call_operand.vmem [shape: f32[2,1,128], index: 1, kind: input, shape index: {}]
  %s2 = inlined_call_operand.vmem [shape: f32[2,1,128], index: 2, kind: input, shape index: {}]
  %s3 = inlined_call_operand.vmem [shape: f32[2,128,256], index: 3, kind: input, shape index: {}]
  %s4 = inlined_call_operand.vmem [shape: f32[2,1,256], index: 4, kind: input, shape index: {}]
  %s5 = inlined_call_operand.vmem [shape: f32[2,49,128], index: 5, kind: input, shape index: {}]
  %s6 = inlined_call_operand.vmem [shape: f32[2,1,128], index: 6, kind: input, shape index: {}]
  %s7 = inlined_call_operand.vmem [shape: f32[2,128,128], index: 7, kind: input, shape index: {}]
  %s8 = inlined_call_operand.vmem [shape: f32[2,1,128], index: 8, kind: input, shape index: {}]
  %s9 = inlined_call_operand.vmem [shape: f32[2,1,128], index: 9, kind: input, shape index: {}]
  %s10 = inlined_call_operand.vmem [shape: f32[2,1,128], index: 10, kind: input, shape index: {}]
  %s11 = inlined_call_operand.vmem [shape: f32[2,1,128], index: 11, kind: input, shape index: {}]
  %s12 = inlined_call_operand.vmem [shape: f32[2,128,128], index: 12, kind: input, shape index: {}]
  %s13 = inlined_call_operand.vmem [shape: f32[2,1,128], index: 13, kind: input, shape index: {}]
  %s14 = inlined_call_operand.vmem [shape: f32[2,9,128], index: 14, kind: input, shape index: {}]
  %s15 = inlined_call_operand.vmem [shape: f32[2,1,128], index: 15, kind: input, shape index: {}]
  %s16 = inlined_call_operand.vmem [shape: f32[2,128,128], index: 16, kind: input, shape index: {}]
  %s17 = inlined_call_operand.vmem [shape: f32[2,1,128], index: 17, kind: input, shape index: {}]
  %s18 = inlined_call_operand.vmem [shape: f32[2,1,128], index: 18, kind: input, shape index: {}]
  %s19 = inlined_call_operand.vmem [shape: f32[2,64,128], index: 19, kind: output, shape index: {}]
  %s20 = sld [smem:[#allocation0]]
  $region113: #{stage_forward.3} parent=0
    _
  %s22 = ssub.s32 1, %s20
  %s23 = scalar_select 0, %s22, %s20
  loop: start=0, step=1, limit=6
  $region2: #{stage_forward.3} parent=0 // loop_pre_header
    _
  $region3: #{stage_forward.3} parent=0 // loop_header
    %s25 = sphi 0, %s29
    %p26 = scmp.ge.s32.totalorder %s25, 6
    %s32 = sphi 0, %s44
    %s33 = sphi 0, %s40
    %s34 = sphi 0, %s32
    %s35 = sphi 0, %s33
    %s36 = sphi 0, %s34
    %s37 = sphi 0, %s35
    %s47 = sphi 0, %s49
    %s50 = sphi 0, %s47
    %s51 = sphi 0, %s50
    %s67 = sphi 0, %s51
    %s73 = sphi 0, %s75
    %s76 = sphi 0, %s73
    %s77 = sphi 0, %s76
    %s93 = sphi 0, %s77
    %s99 = sphi 0, %s101
    %s102 = sphi 0, %s99
    %s103 = sphi 0, %s102
    %s119 = sphi 0, %s103
    %s125 = sphi 0, %s127
    %s128 = sphi 0, %s125
    %s129 = sphi 0, %s128
    %s145 = sphi 0, %s129
    %s151 = sphi 0, %s153
    %s154 = sphi 0, %s151
    %s155 = sphi 0, %s154
    %s171 = sphi 0, %s155
    %s177 = sphi 0, %s179
    %s180 = sphi 0, %s177
    %s181 = sphi 0, %s180
    %s197 = sphi 0, %s181
    %s203 = sphi 0, %s205
    %s206 = sphi 0, %s203
    %s207 = sphi 0, %s206
    %s223 = sphi 0, %s207
    %s229 = sphi 0, %s231
    %s232 = sphi 0, %s229
    %s233 = sphi 0, %s232
    %s249 = sphi 0, %s233
    %s255 = sphi 0, %s257
    %s258 = sphi 0, %s255
    %s259 = sphi 0, %s258
    %s275 = sphi 0, %s259
    %s281 = sphi 0, %s283
    %s284 = sphi 0, %s281
    %s285 = sphi 0, %s284
    %s301 = sphi 0, %s285
    %s307 = sphi 0, %s309
    %s310 = sphi 0, %s307
    %s311 = sphi 0, %s310
    %s327 = sphi 0, %s311
    %s333 = sphi 0, %s335
    %s336 = sphi 0, %s333
    %s337 = sphi 0, %s336
    %s353 = sphi 0, %s337
    %s359 = sphi 0, %s361
    %s362 = sphi 0, %s359
    %s363 = sphi 0, %s362
    %s379 = sphi 0, %s363
    %s385 = sphi 0, %s387
    %s388 = sphi 0, %s385
    %s389 = sphi 0, %s388
    %s405 = sphi 0, %s389
    %s411 = sphi 0, %s413
    %s414 = sphi 0, %s411
    %s415 = sphi 0, %s414
    %s431 = sphi 0, %s415
    %s437 = sphi 0, %s439
    %s440 = sphi 0, %s437
    %s441 = sphi 0, %s440
    %s457 = sphi 0, %s441
    %s463 = sphi 0, %s465
    %s466 = sphi 0, %s463
    %s467 = sphi 0, %s466
    %s483 = sphi 0, %s467
    %s489 = sphi 0, %s491
    %s492 = sphi 0, %s489
    %s493 = sphi 0, %s492
    %s509 = sphi 0, %s493
    %s515 = sphi 0, %s517
    %s518 = sphi 0, %s515
    %s519 = sphi 0, %s518
    %s535 = sphi 0, %s519
    %s541 = sphi 0, %s543
    %s544 = sphi 0, %s541
    %s545 = sphi 0, %s544
    %s561 = sphi 0, %s545
  $region4: #{stage_forward.3} parent=0 // loop_header_branch
    %28 = sbr.rel (%p26) target = $region8
  $region5: #{stage_forward.3} parent=0 // loop_body
    %s30 = ssub.s32 %s25, 1
    %s31 = ssub.s32 %s25, 2
    %s38 = sadd.s32 1, %s33
    %p39 = scmp.ge.s32.totalorder %s38, 2
    %s40 = scalar_select %p39, 0, %s38
    %s41 = sadd.s32 1, %s32
    %s42 = scalar_select %p39, %s41, %s32
    %p43 = scmp.ge.s32.totalorder %s42, 2
    %s44 = scalar_select %p43, 0, %s42
    %s45 = ssub.s32 %s32, %s44
    %p46 = scmp.eq.s32.totalorder %s45, 0
    %s48 = sadd.s32 %s47, 1
    %s49 = scalar_select %p46, %s47, %s48
    %p52 = pneg %p46
    %p53 = scmp.eq.s32.totalorder %s25, 3
    %p54 = por %p52, %p53
    %p55 = scmp.ne.s32.totalorder %s47, %s50
    %p56 = scmp.eq.s32.totalorder %s25, 0
    %p57 = por %p55, %p56
    %p58 = scmp.ne.s32.totalorder %s47, %s50
    %p59 = scmp.eq.s32.totalorder %s30, 3
    %p60 = por %p58, %p59
    %p61 = scmp.ne.s32.totalorder %s50, %s51
    %p62 = scmp.eq.s32.totalorder %s30, 0
    %p63 = por %p61, %p62
    %p64 = scmp.ne.s32.totalorder %s50, %s51
    %p65 = scmp.eq.s32.totalorder %s31, 3
    %p66 = por %p64, %p65
    %p68 = scmp.ne.s32.totalorder %s51, %s67
    %p69 = scmp.eq.s32.totalorder %s31, 0
    %p70 = por %p68, %p69
    %s71 = ssub.s32 %s33, %s40
    %p72 = scmp.eq.s32.totalorder %s71, 0
    %s74 = sadd.s32 %s73, 1
    %s75 = scalar_select %p72, %s73, %s74
    %p78 = pneg %p72
    %p79 = scmp.eq.s32.totalorder %s25, 3
    %p80 = por %p78, %p79
    %p81 = scmp.ne.s32.totalorder %s73, %s76
    %p82 = scmp.eq.s32.totalorder %s25, 0
    %p83 = por %p81, %p82
    %p84 = scmp.ne.s32.totalorder %s73, %s76
    %p85 = scmp.eq.s32.totalorder %s30, 3
    %p86 = por %p84, %p85
    %p87 = scmp.ne.s32.totalorder %s76, %s77
    %p88 = scmp.eq.s32.totalorder %s30, 0
    %p89 = por %p87, %p88
    %p90 = scmp.ne.s32.totalorder %s76, %s77
    %p91 = scmp.eq.s32.totalorder %s31, 3
    %p92 = por %p90, %p91
    %p94 = scmp.ne.s32.totalorder %s77, %s93
    %p95 = scmp.eq.s32.totalorder %s31, 0
    %p96 = por %p94, %p95
    %s97 = ssub.s32 %s33, %s40
    %p98 = scmp.eq.s32.totalorder %s97, 0
    %s100 = sadd.s32 %s99, 1
    %s101 = scalar_select %p98, %s99, %s100
    %p104 = pneg %p98
    %p105 = scmp.eq.s32.totalorder %s25, 3
    %p106 = por %p104, %p105
    %p107 = scmp.ne.s32.totalorder %s99, %s102
    %p108 = scmp.eq.s32.totalorder %s25, 0
    %p109 = por %p107, %p108
    %p110 = scmp.ne.s32.totalorder %s99, %s102
    %p111 = scmp.eq.s32.totalorder %s30, 3
    %p112 = por %p110, %p111
    %p113 = scmp.ne.s32.totalorder %s102, %s103
    %p114 = scmp.eq.s32.totalorder %s30, 0
    %p115 = por %p113, %p114
    %p116 = scmp.ne.s32.totalorder %s102, %s103
    %p117 = scmp.eq.s32.totalorder %s31, 3
    %p118 = por %p116, %p117
    %p120 = scmp.ne.s32.totalorder %s103, %s119
    %p121 = scmp.eq.s32.totalorder %s31, 0
    %p122 = por %p120, %p121
    %s123 = ssub.s32 %s33, %s40
    %p124 = scmp.eq.s32.totalorder %s123, 0
    %s126 = sadd.s32 %s125, 1
    %s127 = scalar_select %p124, %s125, %s126
    %p130 = pneg %p124
    %p131 = scmp.eq.s32.totalorder %s25, 3
    %p132 = por %p130, %p131
    %p133 = scmp.ne.s32.totalorder %s125, %s128
    %p134 = scmp.eq.s32.totalorder %s25, 0
    %p135 = por %p133, %p134
    %p136 = scmp.ne.s32.totalorder %s125, %s128
    %p137 = scmp.eq.s32.totalorder %s30, 3
    %p138 = por %p136, %p137
    %p139 = scmp.ne.s32.totalorder %s128, %s129
    %p140 = scmp.eq.s32.totalorder %s30, 0
    %p141 = por %p139, %p140
    %p142 = scmp.ne.s32.totalorder %s128, %s129
    %p143 = scmp.eq.s32.totalorder %s31, 3
    %p144 = por %p142, %p143
    %p146 = scmp.ne.s32.totalorder %s129, %s145
    %p147 = scmp.eq.s32.totalorder %s31, 0
    %p148 = por %p146, %p147
    %s149 = ssub.s32 %s33, %s40
    %p150 = scmp.eq.s32.totalorder %s149, 0
    %s152 = sadd.s32 %s151, 1
    %s153 = scalar_select %p150, %s151, %s152
    %p156 = pneg %p150
    %p157 = scmp.eq.s32.totalorder %s25, 3
    %p158 = por %p156, %p157
    %p159 = scmp.ne.s32.totalorder %s151, %s154
    %p160 = scmp.eq.s32.totalorder %s25, 0
    %p161 = por %p159, %p160
    %p162 = scmp.ne.s32.totalorder %s151, %s154
    %p163 = scmp.eq.s32.totalorder %s30, 3
    %p164 = por %p162, %p163
    %p165 = scmp.ne.s32.totalorder %s154, %s155
    %p166 = scmp.eq.s32.totalorder %s30, 0
    %p167 = por %p165, %p166
    %p168 = scmp.ne.s32.totalorder %s154, %s155
    %p169 = scmp.eq.s32.totalorder %s31, 3
    %p170 = por %p168, %p169
    %p172 = scmp.ne.s32.totalorder %s155, %s171
    %p173 = scmp.eq.s32.totalorder %s31, 0
    %p174 = por %p172, %p173
    %s175 = ssub.s32 %s33, %s40
    %p176 = scmp.eq.s32.totalorder %s175, 0
    %s178 = sadd.s32 %s177, 1
    %s179 = scalar_select %p176, %s177, %s178
    %p182 = pneg %p176
    %p183 = scmp.eq.s32.totalorder %s25, 3
    %p184 = por %p182, %p183
    %p185 = scmp.ne.s32.totalorder %s177, %s180
    %p186 = scmp.eq.s32.totalorder %s25, 0
    %p187 = por %p185, %p186
    %p188 = scmp.ne.s32.totalorder %s177, %s180
    %p189 = scmp.eq.s32.totalorder %s30, 3
    %p190 = por %p188, %p189
    %p191 = scmp.ne.s32.totalorder %s180, %s181
    %p192 = scmp.eq.s32.totalorder %s30, 0
    %p193 = por %p191, %p192
    %p194 = scmp.ne.s32.totalorder %s180, %s181
    %p195 = scmp.eq.s32.totalorder %s31, 3
    %p196 = por %p194, %p195
    %p198 = scmp.ne.s32.totalorder %s181, %s197
    %p199 = scmp.eq.s32.totalorder %s31, 0
    %p200 = por %p198, %p199
    %s201 = ssub.s32 %s33, %s40
    %p202 = scmp.eq.s32.totalorder %s201, 0
    %s204 = sadd.s32 %s203, 1
    %s205 = scalar_select %p202, %s203, %s204
    %p208 = pneg %p202
    %p209 = scmp.eq.s32.totalorder %s25, 3
    %p210 = por %p208, %p209
    %p211 = scmp.ne.s32.totalorder %s203, %s206
    %p212 = scmp.eq.s32.totalorder %s25, 0
    %p213 = por %p211, %p212
    %p214 = scmp.ne.s32.totalorder %s203, %s206
    %p215 = scmp.eq.s32.totalorder %s30, 3
    %p216 = por %p214, %p215
    %p217 = scmp.ne.s32.totalorder %s206, %s207
    %p218 = scmp.eq.s32.totalorder %s30, 0
    %p219 = por %p217, %p218
    %p220 = scmp.ne.s32.totalorder %s206, %s207
    %p221 = scmp.eq.s32.totalorder %s31, 3
    %p222 = por %p220, %p221
    %p224 = scmp.ne.s32.totalorder %s207, %s223
    %p225 = scmp.eq.s32.totalorder %s31, 0
    %p226 = por %p224, %p225
    %s227 = ssub.s32 %s33, %s40
    %p228 = scmp.eq.s32.totalorder %s227, 0
    %s230 = sadd.s32 %s229, 1
    %s231 = scalar_select %p228, %s229, %s230
    %p234 = pneg %p228
    %p235 = scmp.eq.s32.totalorder %s25, 3
    %p236 = por %p234, %p235
    %p237 = scmp.ne.s32.totalorder %s229, %s232
    %p238 = scmp.eq.s32.totalorder %s25, 0
    %p239 = por %p237, %p238
    %p240 = scmp.ne.s32.totalorder %s229, %s232
    %p241 = scmp.eq.s32.totalorder %s30, 3
    %p242 = por %p240, %p241
    %p243 = scmp.ne.s32.totalorder %s232, %s233
    %p244 = scmp.eq.s32.totalorder %s30, 0
    %p245 = por %p243, %p244
    %p246 = scmp.ne.s32.totalorder %s232, %s233
    %p247 = scmp.eq.s32.totalorder %s31, 3
    %p248 = por %p246, %p247
    %p250 = scmp.ne.s32.totalorder %s233, %s249
    %p251 = scmp.eq.s32.totalorder %s31, 0
    %p252 = por %p250, %p251
    %s253 = ssub.s32 %s33, %s40
    %p254 = scmp.eq.s32.totalorder %s253, 0
    %s256 = sadd.s32 %s255, 1
    %s257 = scalar_select %p254, %s255, %s256
    %p260 = pneg %p254
    %p261 = scmp.eq.s32.totalorder %s25, 3
    %p262 = por %p260, %p261
    %p263 = scmp.ne.s32.totalorder %s255, %s258
    %p264 = scmp.eq.s32.totalorder %s25, 0
    %p265 = por %p263, %p264
    %p266 = scmp.ne.s32.totalorder %s255, %s258
    %p267 = scmp.eq.s32.totalorder %s30, 3
    %p268 = por %p266, %p267
    %p269 = scmp.ne.s32.totalorder %s258, %s259
    %p270 = scmp.eq.s32.totalorder %s30, 0
    %p271 = por %p269, %p270
    %p272 = scmp.ne.s32.totalorder %s258, %s259
    %p273 = scmp.eq.s32.totalorder %s31, 3
    %p274 = por %p272, %p273
    %p276 = scmp.ne.s32.totalorder %s259, %s275
    %p277 = scmp.eq.s32.totalorder %s31, 0
    %p278 = por %p276, %p277
    %s279 = ssub.s32 %s33, %s40
    %p280 = scmp.eq.s32.totalorder %s279, 0
    %s282 = sadd.s32 %s281, 1
    %s283 = scalar_select %p280, %s281, %s282
    %p286 = pneg %p280
    %p287 = scmp.eq.s32.totalorder %s25, 3
    %p288 = por %p286, %p287
    %p289 = scmp.ne.s32.totalorder %s281, %s284
    %p290 = scmp.eq.s32.totalorder %s25, 0
    %p291 = por %p289, %p290
    %p292 = scmp.ne.s32.totalorder %s281, %s284
    %p293 = scmp.eq.s32.totalorder %s30, 3
    %p294 = por %p292, %p293
    %p295 = scmp.ne.s32.totalorder %s284, %s285
    %p296 = scmp.eq.s32.totalorder %s30, 0
    %p297 = por %p295, %p296
    %p298 = scmp.ne.s32.totalorder %s284, %s285
    %p299 = scmp.eq.s32.totalorder %s31, 3
    %p300 = por %p298, %p299
    %p302 = scmp.ne.s32.totalorder %s285, %s301
    %p303 = scmp.eq.s32.totalorder %s31, 0
    %p304 = por %p302, %p303
    %s305 = ssub.s32 %s33, %s40
    %p306 = scmp.eq.s32.totalorder %s305, 0
    %s308 = sadd.s32 %s307, 1
    %s309 = scalar_select %p306, %s307, %s308
    %p312 = pneg %p306
    %p313 = scmp.eq.s32.totalorder %s25, 3
    %p314 = por %p312, %p313
    %p315 = scmp.ne.s32.totalorder %s307, %s310
    %p316 = scmp.eq.s32.totalorder %s25, 0
    %p317 = por %p315, %p316
    %p318 = scmp.ne.s32.totalorder %s307, %s310
    %p319 = scmp.eq.s32.totalorder %s30, 3
    %p320 = por %p318, %p319
    %p321 = scmp.ne.s32.totalorder %s310, %s311
    %p322 = scmp.eq.s32.totalorder %s30, 0
    %p323 = por %p321, %p322
    %p324 = scmp.ne.s32.totalorder %s310, %s311
    %p325 = scmp.eq.s32.totalorder %s31, 3
    %p326 = por %p324, %p325
    %p328 = scmp.ne.s32.totalorder %s311, %s327
    %p329 = scmp.eq.s32.totalorder %s31, 0
    %p330 = por %p328, %p329
    %s331 = ssub.s32 %s33, %s40
    %p332 = scmp.eq.s32.totalorder %s331, 0
    %s334 = sadd.s32 %s333, 1
    %s335 = scalar_select %p332, %s333, %s334
    %p338 = pneg %p332
    %p339 = scmp.eq.s32.totalorder %s25, 3
    %p340 = por %p338, %p339
    %p341 = scmp.ne.s32.totalorder %s333, %s336
    %p342 = scmp.eq.s32.totalorder %s25, 0
    %p343 = por %p341, %p342
    %p344 = scmp.ne.s32.totalorder %s333, %s336
    %p345 = scmp.eq.s32.totalorder %s30, 3
    %p346 = por %p344, %p345
    %p347 = scmp.ne.s32.totalorder %s336, %s337
    %p348 = scmp.eq.s32.totalorder %s30, 0
    %p349 = por %p347, %p348
    %p350 = scmp.ne.s32.totalorder %s336, %s337
    %p351 = scmp.eq.s32.totalorder %s31, 3
    %p352 = por %p350, %p351
    %p354 = scmp.ne.s32.totalorder %s337, %s353
    %p355 = scmp.eq.s32.totalorder %s31, 0
    %p356 = por %p354, %p355
    %s357 = ssub.s32 %s33, %s40
    %p358 = scmp.eq.s32.totalorder %s357, 0
    %s360 = sadd.s32 %s359, 1
    %s361 = scalar_select %p358, %s359, %s360
    %p364 = pneg %p358
    %p365 = scmp.eq.s32.totalorder %s25, 3
    %p366 = por %p364, %p365
    %p367 = scmp.ne.s32.totalorder %s359, %s362
    %p368 = scmp.eq.s32.totalorder %s25, 0
    %p369 = por %p367, %p368
    %p370 = scmp.ne.s32.totalorder %s359, %s362
    %p371 = scmp.eq.s32.totalorder %s30, 3
    %p372 = por %p370, %p371
    %p373 = scmp.ne.s32.totalorder %s362, %s363
    %p374 = scmp.eq.s32.totalorder %s30, 0
    %p375 = por %p373, %p374
    %p376 = scmp.ne.s32.totalorder %s362, %s363
    %p377 = scmp.eq.s32.totalorder %s31, 3
    %p378 = por %p376, %p377
    %p380 = scmp.ne.s32.totalorder %s363, %s379
    %p381 = scmp.eq.s32.totalorder %s31, 0
    %p382 = por %p380, %p381
    %s383 = ssub.s32 %s33, %s40
    %p384 = scmp.eq.s32.totalorder %s383, 0
    %s386 = sadd.s32 %s385, 1
    %s387 = scalar_select %p384, %s385, %s386
    %p390 = pneg %p384
    %p391 = scmp.eq.s32.totalorder %s25, 3
    %p392 = por %p390, %p391
    %p393 = scmp.ne.s32.totalorder %s385, %s388
    %p394 = scmp.eq.s32.totalorder %s25, 0
    %p395 = por %p393, %p394
    %p396 = scmp.ne.s32.totalorder %s385, %s388
    %p397 = scmp.eq.s32.totalorder %s30, 3
    %p398 = por %p396, %p397
    %p399 = scmp.ne.s32.totalorder %s388, %s389
    %p400 = scmp.eq.s32.totalorder %s30, 0
    %p401 = por %p399, %p400
    %p402 = scmp.ne.s32.totalorder %s388, %s389
    %p403 = scmp.eq.s32.totalorder %s31, 3
    %p404 = por %p402, %p403
    %p406 = scmp.ne.s32.totalorder %s389, %s405
    %p407 = scmp.eq.s32.totalorder %s31, 0
    %p408 = por %p406, %p407
    %s409 = ssub.s32 %s33, %s40
    %p410 = scmp.eq.s32.totalorder %s409, 0
    %s412 = sadd.s32 %s411, 1
    %s413 = scalar_select %p410, %s411, %s412
    %p416 = pneg %p410
    %p417 = scmp.eq.s32.totalorder %s25, 3
    %p418 = por %p416, %p417
    %p419 = scmp.ne.s32.totalorder %s411, %s414
    %p420 = scmp.eq.s32.totalorder %s25, 0
    %p421 = por %p419, %p420
    %p422 = scmp.ne.s32.totalorder %s411, %s414
    %p423 = scmp.eq.s32.totalorder %s30, 3
    %p424 = por %p422, %p423
    %p425 = scmp.ne.s32.totalorder %s414, %s415
    %p426 = scmp.eq.s32.totalorder %s30, 0
    %p427 = por %p425, %p426
    %p428 = scmp.ne.s32.totalorder %s414, %s415
    %p429 = scmp.eq.s32.totalorder %s31, 3
    %p430 = por %p428, %p429
    %p432 = scmp.ne.s32.totalorder %s415, %s431
    %p433 = scmp.eq.s32.totalorder %s31, 0
    %p434 = por %p432, %p433
    %s435 = ssub.s32 %s33, %s40
    %p436 = scmp.eq.s32.totalorder %s435, 0
    %s438 = sadd.s32 %s437, 1
    %s439 = scalar_select %p436, %s437, %s438
    %p442 = pneg %p436
    %p443 = scmp.eq.s32.totalorder %s25, 3
    %p444 = por %p442, %p443
    %p445 = scmp.ne.s32.totalorder %s437, %s440
    %p446 = scmp.eq.s32.totalorder %s25, 0
    %p447 = por %p445, %p446
    %p448 = scmp.ne.s32.totalorder %s437, %s440
    %p449 = scmp.eq.s32.totalorder %s30, 3
    %p450 = por %p448, %p449
    %p451 = scmp.ne.s32.totalorder %s440, %s441
    %p452 = scmp.eq.s32.totalorder %s30, 0
    %p453 = por %p451, %p452
    %p454 = scmp.ne.s32.totalorder %s440, %s441
    %p455 = scmp.eq.s32.totalorder %s31, 3
    %p456 = por %p454, %p455
    %p458 = scmp.ne.s32.totalorder %s441, %s457
    %p459 = scmp.eq.s32.totalorder %s31, 0
    %p460 = por %p458, %p459
    %s461 = ssub.s32 %s33, %s40
    %p462 = scmp.eq.s32.totalorder %s461, 0
    %s464 = sadd.s32 %s463, 1
    %s465 = scalar_select %p462, %s463, %s464
    %p468 = pneg %p462
    %p469 = scmp.eq.s32.totalorder %s25, 3
    %p470 = por %p468, %p469
    %p471 = scmp.ne.s32.totalorder %s463, %s466
    %p472 = scmp.eq.s32.totalorder %s25, 0
    %p473 = por %p471, %p472
    %p474 = scmp.ne.s32.totalorder %s463, %s466
    %p475 = scmp.eq.s32.totalorder %s30, 3
    %p476 = por %p474, %p475
    %p477 = scmp.ne.s32.totalorder %s466, %s467
    %p478 = scmp.eq.s32.totalorder %s30, 0
    %p479 = por %p477, %p478
    %p480 = scmp.ne.s32.totalorder %s466, %s467
    %p481 = scmp.eq.s32.totalorder %s31, 3
    %p482 = por %p480, %p481
    %p484 = scmp.ne.s32.totalorder %s467, %s483
    %p485 = scmp.eq.s32.totalorder %s31, 0
    %p486 = por %p484, %p485
    %s487 = ssub.s32 %s33, %s40
    %p488 = scmp.eq.s32.totalorder %s487, 0
    %s490 = sadd.s32 %s489, 1
    %s491 = scalar_select %p488, %s489, %s490
    %p494 = pneg %p488
    %p495 = scmp.eq.s32.totalorder %s25, 3
    %p496 = por %p494, %p495
    %p497 = scmp.ne.s32.totalorder %s489, %s492
    %p498 = scmp.eq.s32.totalorder %s25, 0
    %p499 = por %p497, %p498
    %p500 = scmp.ne.s32.totalorder %s489, %s492
    %p501 = scmp.eq.s32.totalorder %s30, 3
    %p502 = por %p500, %p501
    %p503 = scmp.ne.s32.totalorder %s492, %s493
    %p504 = scmp.eq.s32.totalorder %s30, 0
    %p505 = por %p503, %p504
    %p506 = scmp.ne.s32.totalorder %s492, %s493
    %p507 = scmp.eq.s32.totalorder %s31, 3
    %p508 = por %p506, %p507
    %p510 = scmp.ne.s32.totalorder %s493, %s509
    %p511 = scmp.eq.s32.totalorder %s31, 0
    %p512 = por %p510, %p511
    %s513 = ssub.s32 %s33, %s40
    %p514 = scmp.eq.s32.totalorder %s513, 0
    %s516 = sadd.s32 %s515, 1
    %s517 = scalar_select %p514, %s515, %s516
    %p520 = pneg %p514
    %p521 = scmp.eq.s32.totalorder %s25, 3
    %p522 = por %p520, %p521
    %p523 = scmp.ne.s32.totalorder %s515, %s518
    %p524 = scmp.eq.s32.totalorder %s25, 0
    %p525 = por %p523, %p524
    %p526 = scmp.ne.s32.totalorder %s515, %s518
    %p527 = scmp.eq.s32.totalorder %s30, 3
    %p528 = por %p526, %p527
    %p529 = scmp.ne.s32.totalorder %s518, %s519
    %p530 = scmp.eq.s32.totalorder %s30, 0
    %p531 = por %p529, %p530
    %p532 = scmp.ne.s32.totalorder %s518, %s519
    %p533 = scmp.eq.s32.totalorder %s31, 3
    %p534 = por %p532, %p533
    %p536 = scmp.ne.s32.totalorder %s519, %s535
    %p537 = scmp.eq.s32.totalorder %s31, 0
    %p538 = por %p536, %p537
    %s539 = ssub.s32 %s32, %s44
    %p540 = scmp.eq.s32.totalorder %s539, 0
    %s542 = sadd.s32 %s541, 1
    %s543 = scalar_select %p540, %s541, %s542
    %p546 = pneg %p540
    %p547 = scmp.eq.s32.totalorder %s25, 3
    %p548 = por %p546, %p547
    %p549 = scmp.ne.s32.totalorder %s541, %s544
    %p550 = scmp.eq.s32.totalorder %s25, 0
    %p551 = por %p549, %p550
    %p552 = scmp.ne.s32.totalorder %s541, %s544
    %p553 = scmp.eq.s32.totalorder %s30, 3
    %p554 = por %p552, %p553
    %p555 = scmp.ne.s32.totalorder %s544, %s545
    %p556 = scmp.eq.s32.totalorder %s30, 0
    %p557 = por %p555, %p556
    %p558 = scmp.ne.s32.totalorder %s544, %s545
    %p559 = scmp.eq.s32.totalorder %s31, 3
    %p560 = por %p558, %p559
    %p562 = scmp.ne.s32.totalorder %s545, %s561
    %p563 = scmp.eq.s32.totalorder %s31, 0
    %p564 = por %p562, %p563
    %p565 = scmp.le.s32.totalorder 1, %s25
    %p566 = scmp.lt.s32.totalorder %s25, 5
    %p567 = pnand %p565, %p566
    %p568 = pneg %p567
    // Predicated region
    $region9: #{stage_forward.3} parent=5 // pred_check
      _
    $region10: #{stage_forward.3} parent=5 // pred_check_branch
      %570 = sbr.rel (%p567) target = $region12
    $region11: #{stage_forward.3} parent=5 // pred_region
      %s571 = ssub.s32 %s25, 1
    $region12: #{stage_forward.3} parent=5 // pred_fallthru
      _
    %p572 = scmp.lt.s32.totalorder %s25, 4
    // Predicated region
    $region13: #{stage_forward.3} parent=5 // pred_check
      %p573 = pneg %p572
    $region14: #{stage_forward.3} parent=5 // pred_check_branch
      %575 = sbr.rel (%p573) target = $region16
    $region15: #{stage_forward.3} parent=5 // pred_region
      // Predicated region
      $region17: #{stage_forward.3} parent=15 // pred_check
        %p576 = pneg %p57
      $region18: #{stage_forward.3} parent=15 // pred_check_branch
        %578 = sbr.rel (%p576) target = $region20
      $region19: #{stage_forward.3} parent=15 // pred_region
        %p579 = scmp.lt.s32.totalorder %s32, 1
        %s580 = scalar_select %p579, %s32, 1
        %s581 = smul.addr %s580, 8
        %s582 = smul.addr %s581, 8
        %s583 = scalar_lea.vmem %s0, %s582
      $region20: #{stage_forward.3} parent=15 // pred_fallthru
        _
      // Predicated region
      $region21: #{stage_forward.3} parent=15 // pred_check
        %p584 = pneg %p83
      $region22: #{stage_forward.3} parent=15 // pred_check_branch
        %586 = sbr.rel (%p584) target = $region24
      $region23: #{stage_forward.3} parent=15 // pred_region
        %p587 = scmp.lt.s32.totalorder %s33, 1
        %s588 = scalar_select %p587, %s33, 1
        %s589 = scalar_lea.vmem %s1, %s588
      $region24: #{stage_forward.3} parent=15 // pred_fallthru
        _
      // Predicated region
      $region25: #{stage_forward.3} parent=15 // pred_check
        %p590 = pneg %p109
      $region26: #{stage_forward.3} parent=15 // pred_check_branch
        %592 = sbr.rel (%p590) target = $region28
      $region27: #{stage_forward.3} parent=15 // pred_region
        %p593 = scmp.lt.s32.totalorder %s33, 1
        %s594 = scalar_select %p593, %s33, 1
        %s595 = scalar_lea.vmem %s2, %s594
      $region28: #{stage_forward.3} parent=15 // pred_fallthru
        _
      // Predicated region
      $region29: #{stage_forward.3} parent=15 // pred_check
        %p596 = pneg %p135
      $region30: #{stage_forward.3} parent=15 // pred_check_branch
        %598 = sbr.rel (%p596) target = $region32
      $region31: #{stage_forward.3} parent=15 // pred_region
        %p599 = scmp.lt.s32.totalorder %s33, 1
        %s600 = scalar_select %p599, %s33, 1
        %s601 = smul.addr %s600, 32
        %s602 = smul.addr %s601, 8
        %s603 = scalar_lea.vmem %s3, %s602
      $region32: #{stage_forward.3} parent=15 // pred_fallthru
        _
      // Predicated region
      $region33: #{stage_forward.3} parent=15 // pred_check
        %p604 = pneg %p161
      $region34: #{stage_forward.3} parent=15 // pred_check_branch
        %606 = sbr.rel (%p604) target = $region36
      $region35: #{stage_forward.3} parent=15 // pred_region
        %p607 = scmp.lt.s32.totalorder %s33, 1
        %s608 = scalar_select %p607, %s33, 1
        %s609 = smul.addr %s608, 2
        %s610 = scalar_lea.vmem %s4, %s609
      $region36: #{stage_forward.3} parent=15 // pred_fallthru
        _
      // Predicated region
      $region37: #{stage_forward.3} parent=15 // pred_check
        %p611 = pneg %p187
      $region38: #{stage_forward.3} parent=15 // pred_check_branch
        %613 = sbr.rel (%p611) target = $region40
      $region39: #{stage_forward.3} parent=15 // pred_region
        %p614 = scmp.lt.s32.totalorder %s33, 1
        %s615 = scalar_select %p614, %s33, 1
        %s616 = smul.addr %s615, 7
        %s617 = smul.addr %s616, 8
        %s618 = scalar_lea.vmem %s5, %s617
      $region40: #{stage_forward.3} parent=15 // pred_fallthru
        _
      // Predicated region
      $region41: #{stage_forward.3} parent=15 // pred_check
        %p619 = pneg %p213
      $region42: #{stage_forward.3} parent=15 // pred_check_branch
        %621 = sbr.rel (%p619) target = $region44
      $region43: #{stage_forward.3} parent=15 // pred_region
        %p622 = scmp.lt.s32.totalorder %s33, 1
        %s623 = scalar_select %p622, %s33, 1
        %s624 = scalar_lea.vmem %s6, %s623
      $region44: #{stage_forward.3} parent=15 // pred_fallthru
        _
      // Predicated region
      $region45: #{stage_forward.3} parent=15 // pred_check
        %p625 = pneg %p239
      $region46: #{stage_forward.3} parent=15 // pred_check_branch
        %627 = sbr.rel (%p625) target = $region48
      $region47: #{stage_forward.3} parent=15 // pred_region
        %p628 = scmp.lt.s32.totalorder %s33, 1
        %s629 = scalar_select %p628, %s33, 1
        %s630 = smul.addr %s629, 16
        %s631 = smul.addr %s630, 8
        %s632 = scalar_lea.vmem %s7, %s631
      $region48: #{stage_forward.3} parent=15 // pred_fallthru
        _
      // Predicated region
      $region49: #{stage_forward.3} parent=15 // pred_check
        %p633 = pneg %p265
      $region50: #{stage_forward.3} parent=15 // pred_check_branch
        %635 = sbr.rel (%p633) target = $region52
      $region51: #{stage_forward.3} parent=15 // pred_region
        %p636 = scmp.lt.s32.totalorder %s33, 1
        %s637 = scalar_select %p636, %s33, 1
        %s638 = scalar_lea.vmem %s8, %s637
      $region52: #{stage_forward.3} parent=15 // pred_fallthru
        _
      // Predicated region
      $region53: #{stage_forward.3} parent=15 // pred_check
        %p639 = pneg %p291
      $region54: #{stage_forward.3} parent=15 // pred_check_branch
        %641 = sbr.rel (%p639) target = $region56
      $region55: #{stage_forward.3} parent=15 // pred_region
        %p642 = scmp.lt.s32.totalorder %s33, 1
        %s643 = scalar_select %p642, %s33, 1
        %s644 = scalar_lea.vmem %s9, %s643
      $region56: #{stage_forward.3} parent=15 // pred_fallthru
        _
      // Predicated region
      $region57: #{stage_forward.3} parent=15 // pred_check
        %p645 = pneg %p317
      $region58: #{stage_forward.3} parent=15 // pred_check_branch
        %647 = sbr.rel (%p645) target = $region60
      $region59: #{stage_forward.3} parent=15 // pred_region
        %p648 = scmp.lt.s32.totalorder %s33, 1
        %s649 = scalar_select %p648, %s33, 1
        %s650 = scalar_lea.vmem %s10, %s649
      $region60: #{stage_forward.3} parent=15 // pred_fallthru
        _
      // Predicated region
      $region61: #{stage_forward.3} parent=15 // pred_check
        %p651 = pneg %p343
      $region62: #{stage_forward.3} parent=15 // pred_check_branch
        %653 = sbr.rel (%p651) target = $region64
      $region63: #{stage_forward.3} parent=15 // pred_region
        %p654 = scmp.lt.s32.totalorder %s33, 1
        %s655 = scalar_select %p654, %s33, 1
        %s656 = scalar_lea.vmem %s11, %s655
      $region64: #{stage_forward.3} parent=15 // pred_fallthru
        _
      // Predicated region
      $region65: #{stage_forward.3} parent=15 // pred_check
        %p657 = pneg %p369
      $region66: #{stage_forward.3} parent=15 // pred_check_branch
        %659 = sbr.rel (%p657) target = $region68
      $region67: #{stage_forward.3} parent=15 // pred_region
        %p660 = scmp.lt.s32.totalorder %s33, 1
        %s661 = scalar_select %p660, %s33, 1
        %s662 = smul.addr %s661, 16
        %s663 = smul.addr %s662, 8
        %s664 = scalar_lea.vmem %s12, %s663
      $region68: #{stage_forward.3} parent=15 // pred_fallthru
        _
      // Predicated region
      $region69: #{stage_forward.3} parent=15 // pred_check
        %p665 = pneg %p395
      $region70: #{stage_forward.3} parent=15 // pred_check_branch
        %667 = sbr.rel (%p665) target = $region72
      $region71: #{stage_forward.3} parent=15 // pred_region
        %p668 = scmp.lt.s32.totalorder %s33, 1
        %s669 = scalar_select %p668, %s33, 1
        %s670 = scalar_lea.vmem %s13, %s669
      $region72: #{stage_forward.3} parent=15 // pred_fallthru
        _
      // Predicated region
      $region73: #{stage_forward.3} parent=15 // pred_check
        %p671 = pneg %p421
      $region74: #{stage_forward.3} parent=15 // pred_check_branch
        %673 = sbr.rel (%p671) target = $region76
      $region75: #{stage_forward.3} parent=15 // pred_region
        %p674 = scmp.lt.s32.totalorder %s33, 1
        %s675 = scalar_select %p674, %s33, 1
        %s676 = smul.addr %s675, 2
        %s677 = smul.addr %s676, 8
        %s678 = scalar_lea.vmem %s14, %s677
      $region76: #{stage_forward.3} parent=15 // pred_fallthru
        _
      // Predicated region
      $region77: #{stage_forward.3} parent=15 // pred_check
        %p679 = pneg %p447
      $region78: #{stage_forward.3} parent=15 // pred_check_branch
        %681 = sbr.rel (%p679) target = $region80
      $region79: #{stage_forward.3} parent=15 // pred_region
        %p682 = scmp.lt.s32.totalorder %s33, 1
        %s683 = scalar_select %p682, %s33, 1
        %s684 = scalar_lea.vmem %s15, %s683
      $region80: #{stage_forward.3} parent=15 // pred_fallthru
        _
      // Predicated region
      $region81: #{stage_forward.3} parent=15 // pred_check
        %p685 = pneg %p473
      $region82: #{stage_forward.3} parent=15 // pred_check_branch
        %687 = sbr.rel (%p685) target = $region84
      $region83: #{stage_forward.3} parent=15 // pred_region
        %p688 = scmp.lt.s32.totalorder %s33, 1
        %s689 = scalar_select %p688, %s33, 1
        %s690 = smul.addr %s689, 16
        %s691 = smul.addr %s690, 8
        %s692 = scalar_lea.vmem %s16, %s691
      $region84: #{stage_forward.3} parent=15 // pred_fallthru
        _
      // Predicated region
      $region85: #{stage_forward.3} parent=15 // pred_check
        %p693 = pneg %p499
      $region86: #{stage_forward.3} parent=15 // pred_check_branch
        %695 = sbr.rel (%p693) target = $region88
      $region87: #{stage_forward.3} parent=15 // pred_region
        %p696 = scmp.lt.s32.totalorder %s33, 1
        %s697 = scalar_select %p696, %s33, 1
        %s698 = scalar_lea.vmem %s17, %s697
      $region88: #{stage_forward.3} parent=15 // pred_fallthru
        _
      // Predicated region
      $region89: #{stage_forward.3} parent=15 // pred_check
        %p699 = pneg %p525
      $region90: #{stage_forward.3} parent=15 // pred_check_branch
        %701 = sbr.rel (%p699) target = $region92
      $region91: #{stage_forward.3} parent=15 // pred_region
        %p702 = scmp.lt.s32.totalorder %s33, 1
        %s703 = scalar_select %p702, %s33, 1
        %s704 = scalar_lea.vmem %s18, %s703
      $region92: #{stage_forward.3} parent=15 // pred_fallthru
        _
    $region16: #{stage_forward.3} parent=5 // pred_fallthru
      _
    %p705 = scmp.le.s32.totalorder 1, %s25
    %p706 = scmp.lt.s32.totalorder %s25, 5
    %p707 = pnand %p705, %p706
    %p708 = pneg %p707
    // Predicated region
    $region93: #{stage_forward.3} parent=5 // pred_check
      _
    $region94: #{stage_forward.3} parent=5 // pred_check_branch
      %710 = sbr.rel (%p707) target = $region96
    $region95: #{stage_forward.3} parent=5 // pred_region
      %s711 = ssub.s32 %s25, 1
      %p712 = scmp.lt.s32.totalorder %s34, 1
      %s713 = scalar_select %p712, %s34, 1
      %s714 = smul.addr %s713, 8
      %s715 = smul.addr %s714, 8
      %s716 = scalar_lea.vmem %s0, %s715
      %p717 = pneg %p63
      %p718 = pneg %p60
      %p719 = scmp.lt.s32.totalorder %s35, 1
      %s720 = scalar_select %p719, %s35, 1
      %s721 = scalar_lea.vmem %s1, %s720
      %p722 = pneg %p89
      %p723 = pneg %p86
      %p724 = scmp.lt.s32.totalorder %s35, 1
      %s725 = scalar_select %p724, %s35, 1
      %s726 = scalar_lea.vmem %s2, %s725
      %p727 = pneg %p115
      %p728 = pneg %p112
      %p729 = scmp.lt.s32.totalorder %s35, 1
      %s730 = scalar_select %p729, %s35, 1
      %s731 = smul.addr %s730, 32
      %s732 = smul.addr %s731, 8
      %s733 = scalar_lea.vmem %s3, %s732
      %p734 = pneg %p141
      %p735 = pneg %p138
      %p736 = scmp.lt.s32.totalorder %s35, 1
      %s737 = scalar_select %p736, %s35, 1
      %s738 = smul.addr %s737, 2
      %s739 = scalar_lea.vmem %s4, %s738
      %p740 = pneg %p167
      %p741 = pneg %p164
      %p742 = scmp.lt.s32.totalorder %s35, 1
      %s743 = scalar_select %p742, %s35, 1
      %s744 = smul.addr %s743, 7
      %s745 = smul.addr %s744, 8
      %s746 = scalar_lea.vmem %s5, %s745
      %p747 = pneg %p193
      %p748 = pneg %p190
      %p749 = scmp.lt.s32.totalorder %s35, 1
      %s750 = scalar_select %p749, %s35, 1
      %s751 = scalar_lea.vmem %s6, %s750
      %p752 = pneg %p219
      %p753 = pneg %p216
      %p754 = scmp.lt.s32.totalorder %s35, 1
      %s755 = scalar_select %p754, %s35, 1
      %s756 = smul.addr %s755, 16
      %s757 = smul.addr %s756, 8
      %s758 = scalar_lea.vmem %s7, %s757
      %p759 = pneg %p245
      %p760 = pneg %p242
      %p761 = scmp.lt.s32.totalorder %s35, 1
      %s762 = scalar_select %p761, %s35, 1
      %s763 = scalar_lea.vmem %s8, %s762
      %p764 = pneg %p271
      %p765 = pneg %p268
      %p766 = scmp.lt.s32.totalorder %s35, 1
      %s767 = scalar_select %p766, %s35, 1
      %s768 = scalar_lea.vmem %s9, %s767
      %p769 = pneg %p297
      %p770 = pneg %p294
      %p771 = scmp.lt.s32.totalorder %s35, 1
      %s772 = scalar_select %p771, %s35, 1
      %s773 = scalar_lea.vmem %s10, %s772
      %p774 = pneg %p323
      %p775 = pneg %p320
      %p776 = scmp.lt.s32.totalorder %s35, 1
      %s777 = scalar_select %p776, %s35, 1
      %s778 = scalar_lea.vmem %s11, %s777
      %p779 = pneg %p349
      %p780 = pneg %p346
      %p781 = scmp.lt.s32.totalorder %s35, 1
      %s782 = scalar_select %p781, %s35, 1
      %s783 = smul.addr %s782, 16
      %s784 = smul.addr %s783, 8
      %s785 = scalar_lea.vmem %s12, %s784
      %p786 = pneg %p375
      %p787 = pneg %p372
      %p788 = scmp.lt.s32.totalorder %s35, 1
      %s789 = scalar_select %p788, %s35, 1
      %s790 = scalar_lea.vmem %s13, %s789
      %p791 = pneg %p401
      %p792 = pneg %p398
      %p793 = scmp.lt.s32.totalorder %s35, 1
      %s794 = scalar_select %p793, %s35, 1
      %s795 = smul.addr %s794, 2
      %s796 = smul.addr %s795, 8
      %s797 = scalar_lea.vmem %s14, %s796
      %p798 = pneg %p427
      %p799 = pneg %p424
      %p800 = scmp.lt.s32.totalorder %s35, 1
      %s801 = scalar_select %p800, %s35, 1
      %s802 = scalar_lea.vmem %s15, %s801
      %p803 = pneg %p453
      %p804 = pneg %p450
      %p805 = scmp.lt.s32.totalorder %s35, 1
      %s806 = scalar_select %p805, %s35, 1
      %s807 = smul.addr %s806, 16
      %s808 = smul.addr %s807, 8
      %s809 = scalar_lea.vmem %s16, %s808
      %p810 = pneg %p479
      %p811 = pneg %p476
      %p812 = scmp.lt.s32.totalorder %s35, 1
      %s813 = scalar_select %p812, %s35, 1
      %s814 = scalar_lea.vmem %s17, %s813
      %p815 = pneg %p505
      %p816 = pneg %p502
      %p817 = scmp.lt.s32.totalorder %s35, 1
      %s818 = scalar_select %p817, %s35, 1
      %s819 = scalar_lea.vmem %s18, %s818
      %p820 = pneg %p531
      %p821 = pneg %p528
      %p822 = pneg %p557
      %p823 = pneg %p554
      %p824 = scmp.lt.s32.totalorder %s34, 1
      %s825 = scalar_select %p824, %s34, 1
      %s826 = smul.addr %s825, 8
      %s827 = smul.addr %s826, 8
      %s828 = scalar_lea.vmem %s19, %s827
      %p829 = scmp.lt.s32.totalorder %s34, 1
      %s830 = scalar_select %p829, %s34, 1
      %s831 = smul.addr %s830, 8
      %s832 = smul.addr %s831, 8
      %s833 = scalar_lea.vmem %s0, %s832
      %p834 = scmp.lt.s32.totalorder %s35, 1
      %s835 = scalar_select %p834, %s35, 1
      %s836 = scalar_lea.vmem %s1, %s835
      %p837 = scmp.lt.s32.totalorder %s35, 1
      %s838 = scalar_select %p837, %s35, 1
      %s839 = scalar_lea.vmem %s2, %s838
      %p840 = scmp.lt.s32.totalorder %s35, 1
      %s841 = scalar_select %p840, %s35, 1
      %s842 = smul.addr %s841, 32
      %s843 = smul.addr %s842, 8
      %s844 = scalar_lea.vmem %s3, %s843
      %p845 = scmp.lt.s32.totalorder %s35, 1
      %s846 = scalar_select %p845, %s35, 1
      %s847 = smul.addr %s846, 2
      %s848 = scalar_lea.vmem %s4, %s847
      %p849 = scmp.lt.s32.totalorder %s35, 1
      %s850 = scalar_select %p849, %s35, 1
      %s851 = smul.addr %s850, 7
      %s852 = smul.addr %s851, 8
      %s853 = scalar_lea.vmem %s5, %s852
      %p854 = scmp.lt.s32.totalorder %s35, 1
      %s855 = scalar_select %p854, %s35, 1
      %s856 = scalar_lea.vmem %s6, %s855
      %p857 = scmp.lt.s32.totalorder %s35, 1
      %s858 = scalar_select %p857, %s35, 1
      %s859 = smul.addr %s858, 16
      %s860 = smul.addr %s859, 8
      %s861 = scalar_lea.vmem %s7, %s860
      %p862 = scmp.lt.s32.totalorder %s35, 1
      %s863 = scalar_select %p862, %s35, 1
      %s864 = scalar_lea.vmem %s8, %s863
      %p865 = scmp.lt.s32.totalorder %s35, 1
      %s866 = scalar_select %p865, %s35, 1
      %s867 = scalar_lea.vmem %s9, %s866
      %p868 = scmp.lt.s32.totalorder %s35, 1
      %s869 = scalar_select %p868, %s35, 1
      %s870 = scalar_lea.vmem %s10, %s869
      %p871 = scmp.lt.s32.totalorder %s35, 1
      %s872 = scalar_select %p871, %s35, 1
      %s873 = scalar_lea.vmem %s11, %s872
      %p874 = scmp.lt.s32.totalorder %s35, 1
      %s875 = scalar_select %p874, %s35, 1
      %s876 = smul.addr %s875, 16
      %s877 = smul.addr %s876, 8
      %s878 = scalar_lea.vmem %s12, %s877
      %p879 = scmp.lt.s32.totalorder %s35, 1
      %s880 = scalar_select %p879, %s35, 1
      %s881 = scalar_lea.vmem %s13, %s880
      %p882 = scmp.lt.s32.totalorder %s35, 1
      %s883 = scalar_select %p882, %s35, 1
      %s884 = smul.addr %s883, 2
      %s885 = smul.addr %s884, 8
      %s886 = scalar_lea.vmem %s14, %s885
      %p887 = scmp.lt.s32.totalorder %s35, 1
      %s888 = scalar_select %p887, %s35, 1
      %s889 = scalar_lea.vmem %s15, %s888
      %p890 = scmp.lt.s32.totalorder %s35, 1
      %s891 = scalar_select %p890, %s35, 1
      %s892 = smul.addr %s891, 16
      %s893 = smul.addr %s892, 8
      %s894 = scalar_lea.vmem %s16, %s893
      %p895 = scmp.lt.s32.totalorder %s35, 1
      %s896 = scalar_select %p895, %s35, 1
      %s897 = scalar_lea.vmem %s17, %s896
      %p898 = scmp.lt.s32.totalorder %s35, 1
      %s899 = scalar_select %p898, %s35, 1
      %s900 = scalar_lea.vmem %s18, %s899
      %p901 = scmp.lt.s32.totalorder %s34, 1
      %s902 = scalar_select %p901, %s34, 1
      %s903 = smul.addr %s902, 8
      %s904 = smul.addr %s903, 8
      %s905 = scalar_lea.vmem %s19, %s904
      %p906 = scmp.eq.s32.totalorder %s35, 0
      // Predicated region
      $region97: #{stage_forward.3} parent=95 // pred_check
        %p907 = pneg %p906
      $region98: #{stage_forward.3} parent=95 // pred_check_branch
        %909 = sbr.rel (%p907) target = $region100
      $region99: #{stage_forward.3} parent=95 // pred_region
        %v910 = vld [vmem:[%s833] sm:$0xff]
        %v911 = vld [vmem:[%s833 + $0x8] sm:$0xff]
        %v912 = vld [vmem:[%s833 + $0x10] sm:$0xff]
        %v913 = vld [vmem:[%s833 + $0x18] sm:$0xff]
        %v914 = vld [vmem:[%s833 + $0x20] sm:$0xff]
        %v915 = vld [vmem:[%s833 + $0x28] sm:$0xff]
        %v916 = vld [vmem:[%s833 + $0x30] sm:$0xff]
        %v917 = vld [vmem:[%s833 + $0x38] sm:$0xff]
        %918 = vst [vmem:[%s905] sm:$0xff] %v910
        %919 = vst [vmem:[%s905 + $0x8] sm:$0xff] %v911
        %920 = vst [vmem:[%s905 + $0x10] sm:$0xff] %v912
        %921 = vst [vmem:[%s905 + $0x18] sm:$0xff] %v913
        %922 = vst [vmem:[%s905 + $0x20] sm:$0xff] %v914
        %923 = vst [vmem:[%s905 + $0x28] sm:$0xff] %v915
        %924 = vst [vmem:[%s905 + $0x30] sm:$0xff] %v916
        %925 = vst [vmem:[%s905 + $0x38] sm:$0xff] %v917
        %926 = vst [vmem:[#allocation2] sm:$0xff] 0.0
        %927 = vst [vmem:[#allocation2 + $0x8] sm:$0xff] 0.0
        %928 = vst [vmem:[#allocation2 + $0x10] sm:$0xff] 0.0
        %929 = vst [vmem:[#allocation2 + $0x18] sm:$0xff] 0.0
        %930 = vst [vmem:[#allocation2 + $0x60] sm:$0xff] 0.0
        %931 = vst [vmem:[#allocation2 + $0x68] sm:$0xff] 0.0
        %932 = vst [vmem:[#allocation2 + $0x70] sm:$0xff] 0.0
        %933 = vst [vmem:[#allocation2 + $0x78] sm:$0xff] 0.0
        %934 = vst [vmem:[#allocation3] sm:$0xff] 0.0
        %935 = vst [vmem:[#allocation3 + $0x8] sm:$0xff] 0.0
        %936 = vst [vmem:[#allocation3 + $0x50] sm:$0xff] 0.0
        %937 = vst [vmem:[#allocation3 + $0x58] sm:$0xff] 0.0
      $region100: #{stage_forward.3} parent=95 // pred_fallthru
        _
      %v938 = vlaneseq
      %v939 = vshrl.u32 %v938, 7
      %v940 = vadd.s32 %v939, 8
      %v941 = vadd.s32 %v939, 16
      %v942 = vadd.s32 %v939, 24
      %v943 = vadd.s32 %v939, 32
      %v944 = vadd.s32 %v939, 40
      %v945 = vadd.s32 %v939, 48
      %v946 = vadd.s32 %v939, 56
      %vm947 = vcmp.lt.s32.totalorder %v939, 0
      %v948 = vsub.s32 0, %v939
      %v949 = vsel %vm947, %v948, %v939
      %v950 = vshrl.u32 %v949, 3
      %v951 = vand.u32 %v949, 7
      %v952 = vsub.s32 0, %v951
      %v953 = vsel %vm947, %v952, %v951
      %vm954 = vcmp.lt.s32.totalorder %v940, 0
      %v955 = vsub.s32 0, %v940
      %v956 = vsel %vm954, %v955, %v940
      %v957 = vshrl.u32 %v956, 3
      %v958 = vand.u32 %v956, 7
      %v959 = vsub.s32 0, %v958
      %v960 = vsel %vm954, %v959, %v958
      %vm961 = vcmp.lt.s32.totalorder %v941, 0
      %v962 = vsub.s32 0, %v941
      %v963 = vsel %vm961, %v962, %v941
      %v964 = vshrl.u32 %v963, 3
      %v965 = vand.u32 %v963, 7
      %v966 = vsub.s32 0, %v965
      %v967 = vsel %vm961, %v966, %v965
      %vm968 = vcmp.lt.s32.totalorder %v942, 0
      %v969 = vsub.s32 0, %v942
      %v970 = vsel %vm968, %v969, %v942
      %v971 = vshrl.u32 %v970, 3
      %v972 = vand.u32 %v970, 7
      %v973 = vsub.s32 0, %v972
      %v974 = vsel %vm968, %v973, %v972
      %vm975 = vcmp.lt.s32.totalorder %v943, 0
      %v976 = vsub.s32 0, %v943
      %v977 = vsel %vm975, %v976, %v943
      %v978 = vshrl.u32 %v977, 3
      %v979 = vand.u32 %v977, 7
      %v980 = vsub.s32 0, %v979
      %v981 = vsel %vm975, %v980, %v979
      %vm982 = vcmp.lt.s32.totalorder %v944, 0
      %v983 = vsub.s32 0, %v944
      %v984 = vsel %vm982, %v983, %v944
      %v985 = vshrl.u32 %v984, 3
      %v986 = vand.u32 %v984, 7
      %v987 = vsub.s32 0, %v986
      %v988 = vsel %vm982, %v987, %v986
      %vm989 = vcmp.lt.s32.totalorder %v945, 0
      %v990 = vsub.s32 0, %v945
      %v991 = vsel %vm989, %v990, %v945
      %v992 = vshrl.u32 %v991, 3
      %v993 = vand.u32 %v991, 7
      %v994 = vsub.s32 0, %v993
      %v995 = vsel %vm989, %v994, %v993
      %vm996 = vcmp.lt.s32.totalorder %v946, 0
      %v997 = vsub.s32 0, %v946
      %v998 = vsel %vm996, %v997, %v946
      %v999 = vshrl.u32 %v998, 3
      %v1000 = vand.u32 %v998, 7
      %v1001 = vsub.s32 0, %v1000
      %v1002 = vsel %vm996, %v1001, %v1000
      %vm1003 = vcmp.ne.s32.totalorder %v953, 0
      %vm1004 = vcmp.ne.s32.totalorder %v960, 0
      %vm1005 = vcmp.ne.s32.totalorder %v967, 0
      %vm1006 = vcmp.ne.s32.totalorder %v974, 0
      %vm1007 = vcmp.ne.s32.totalorder %v981, 0
      %vm1008 = vcmp.ne.s32.totalorder %v988, 0
      %vm1009 = vcmp.ne.s32.totalorder %v995, 0
      %vm1010 = vcmp.ne.s32.totalorder %v1002, 0
      %vm1011 = vcmp.lt.s32.totalorder %v953, 0
      %vm1012 = vcmp.lt.s32.totalorder %v960, 0
      %vm1013 = vcmp.lt.s32.totalorder %v967, 0
      %vm1014 = vcmp.lt.s32.totalorder %v974, 0
      %vm1015 = vcmp.lt.s32.totalorder %v981, 0
      %vm1016 = vcmp.lt.s32.totalorder %v988, 0
      %vm1017 = vcmp.lt.s32.totalorder %v995, 0
      %vm1018 = vcmp.lt.s32.totalorder %v1002, 0
      %vm1019 = vmand %vm1011, %vm1003
      %vm1020 = vmand %vm1012, %vm1004
      %vm1021 = vmand %vm1013, %vm1005
      %vm1022 = vmand %vm1014, %vm1006
      %vm1023 = vmand %vm1015, %vm1007
      %vm1024 = vmand %vm1016, %vm1008
      %vm1025 = vmand %vm1017, %vm1009
      %vm1026 = vmand %vm1018, %vm1010
      %v1027 = vadd.s32 %v953, 8
      %v1028 = vadd.s32 %v960, 8
      %v1029 = vadd.s32 %v967, 8
      %v1030 = vadd.s32 %v974, 8
      %v1031 = vadd.s32 %v981, 8
      %v1032 = vadd.s32 %v988, 8
      %v1033 = vadd.s32 %v995, 8
      %v1034 = vadd.s32 %v1002, 8
      %v1035 = vsel %vm1019, %v1027, %v953
      %v1036 = vsel %vm1020, %v1028, %v960
      %v1037 = vsel %vm1021, %v1029, %v967
      %v1038 = vsel %vm1022, %v1030, %v974
      %v1039 = vsel %vm1023, %v1031, %v981
      %v1040 = vsel %vm1024, %v1032, %v988
      %v1041 = vsel %vm1025, %v1033, %v995
      %v1042 = vsel %vm1026, %v1034, %v1002
      %v1043 = vadd.s32 %v1035, 4294967293
      %v1044 = vadd.s32 %v1036, 4294967293
      %v1045 = vadd.s32 %v1037, 4294967293
      %v1046 = vadd.s32 %v1038, 4294967293
      %v1047 = vadd.s32 %v1039, 4294967293
      %v1048 = vadd.s32 %v1040, 4294967293
      %v1049 = vadd.s32 %v1041, 4294967293
      %v1050 = vadd.s32 %v1042, 4294967293
      %vm1051 = vcmp.ge.s32.totalorder %v1043, 0
      %vm1052 = vcmp.ge.s32.totalorder %v1044, 0
      %vm1053 = vcmp.ge.s32.totalorder %v1045, 0
      %vm1054 = vcmp.ge.s32.totalorder %v1046, 0
      %vm1055 = vcmp.ge.s32.totalorder %v1047, 0
      %vm1056 = vcmp.ge.s32.totalorder %v1048, 0
      %vm1057 = vcmp.ge.s32.totalorder %v1049, 0
      %vm1058 = vcmp.ge.s32.totalorder %v1050, 0
      %vm1059 = vcmp.lt.s32.totalorder %v1043, 8
      %vm1060 = vcmp.lt.s32.totalorder %v1044, 8
      %vm1061 = vcmp.lt.s32.totalorder %v1045, 8
      %vm1062 = vcmp.lt.s32.totalorder %v1046, 8
      %vm1063 = vcmp.lt.s32.totalorder %v1047, 8
      %vm1064 = vcmp.lt.s32.totalorder %v1048, 8
      %vm1065 = vcmp.lt.s32.totalorder %v1049, 8
      %vm1066 = vcmp.lt.s32.totalorder %v1050, 8
      %vm1067 = vmand %vm1051, %vm1059
      %vm1068 = vmand %vm1052, %vm1060
      %vm1069 = vmand %vm1053, %vm1061
      %vm1070 = vmand %vm1054, %vm1062
      %vm1071 = vmand %vm1055, %vm1063
      %vm1072 = vmand %vm1056, %vm1064
      %vm1073 = vmand %vm1057, %vm1065
      %vm1074 = vmand %vm1058, %vm1066
      %v1075 = vadd.s32 %v1035, 4294967294
      %v1076 = vadd.s32 %v1036, 4294967294
      %v1077 = vadd.s32 %v1037, 4294967294
      %v1078 = vadd.s32 %v1038, 4294967294
      %v1079 = vadd.s32 %v1039, 4294967294
      %v1080 = vadd.s32 %v1040, 4294967294
      %v1081 = vadd.s32 %v1041, 4294967294
      %v1082 = vadd.s32 %v1042, 4294967294
      %vm1083 = vcmp.ge.s32.totalorder %v1075, 0
      %vm1084 = vcmp.ge.s32.totalorder %v1076, 0
      %vm1085 = vcmp.ge.s32.totalorder %v1077, 0
      %vm1086 = vcmp.ge.s32.totalorder %v1078, 0
      %vm1087 = vcmp.ge.s32.totalorder %v1079, 0
      %vm1088 = vcmp.ge.s32.totalorder %v1080, 0
      %vm1089 = vcmp.ge.s32.totalorder %v1081, 0
      %vm1090 = vcmp.ge.s32.totalorder %v1082, 0
      %vm1091 = vcmp.lt.s32.totalorder %v1075, 8
      %vm1092 = vcmp.lt.s32.totalorder %v1076, 8
      %vm1093 = vcmp.lt.s32.totalorder %v1077, 8
      %vm1094 = vcmp.lt.s32.totalorder %v1078, 8
      %vm1095 = vcmp.lt.s32.totalorder %v1079, 8
      %vm1096 = vcmp.lt.s32.totalorder %v1080, 8
      %vm1097 = vcmp.lt.s32.totalorder %v1081, 8
      %vm1098 = vcmp.lt.s32.totalorder %v1082, 8
      %vm1099 = vmand %vm1083, %vm1091
      %vm1100 = vmand %vm1084, %vm1092
      %vm1101 = vmand %vm1085, %vm1093
      %vm1102 = vmand %vm1086, %vm1094
      %vm1103 = vmand %vm1087, %vm1095
      %vm1104 = vmand %vm1088, %vm1096
      %vm1105 = vmand %vm1089, %vm1097
      %vm1106 = vmand %vm1090, %vm1098
      %v1107 = vadd.s32 %v1035, 4294967295
      %v1108 = vadd.s32 %v1036, 4294967295
      %v1109 = vadd.s32 %v1037, 4294967295
      %v1110 = vadd.s32 %v1038, 4294967295
      %v1111 = vadd.s32 %v1039, 4294967295
      %v1112 = vadd.s32 %v1040, 4294967295
      %v1113 = vadd.s32 %v1041, 4294967295
      %v1114 = vadd.s32 %v1042, 4294967295
      %vm1115 = vcmp.ge.s32.totalorder %v1107, 0
      %vm1116 = vcmp.ge.s32.totalorder %v1108, 0
      %vm1117 = vcmp.ge.s32.totalorder %v1109, 0
      %vm1118 = vcmp.ge.s32.totalorder %v1110, 0
      %vm1119 = vcmp.ge.s32.totalorder %v1111, 0
      %vm1120 = vcmp.ge.s32.totalorder %v1112, 0
      %vm1121 = vcmp.ge.s32.totalorder %v1113, 0
      %vm1122 = vcmp.ge.s32.totalorder %v1114, 0
      %vm1123 = vcmp.lt.s32.totalorder %v1107, 8
      %vm1124 = vcmp.lt.s32.totalorder %v1108, 8
      %vm1125 = vcmp.lt.s32.totalorder %v1109, 8
      %vm1126 = vcmp.lt.s32.totalorder %v1110, 8
      %vm1127 = vcmp.lt.s32.totalorder %v1111, 8
      %vm1128 = vcmp.lt.s32.totalorder %v1112, 8
      %vm1129 = vcmp.lt.s32.totalorder %v1113, 8
      %vm1130 = vcmp.lt.s32.totalorder %v1114, 8
      %vm1131 = vmand %vm1115, %vm1123
      %vm1132 = vmand %vm1116, %vm1124
      %vm1133 = vmand %vm1117, %vm1125
      %vm1134 = vmand %vm1118, %vm1126
      %vm1135 = vmand %vm1119, %vm1127
      %vm1136 = vmand %vm1120, %vm1128
      %vm1137 = vmand %vm1121, %vm1129
      %vm1138 = vmand %vm1122, %vm1130
      %v1139 = vadd.s32 %v1035, 1
      %v1140 = vadd.s32 %v1036, 1
      %v1141 = vadd.s32 %v1037, 1
      %v1142 = vadd.s32 %v1038, 1
      %v1143 = vadd.s32 %v1039, 1
      %v1144 = vadd.s32 %v1040, 1
      %v1145 = vadd.s32 %v1041, 1
      %v1146 = vadd.s32 %v1042, 1
      %vm1147 = vcmp.ge.s32.totalorder %v1139, 0
      %vm1148 = vcmp.ge.s32.totalorder %v1140, 0
      %vm1149 = vcmp.ge.s32.totalorder %v1141, 0
      %vm1150 = vcmp.ge.s32.totalorder %v1142, 0
      %vm1151 = vcmp.ge.s32.totalorder %v1143, 0
      %vm1152 = vcmp.ge.s32.totalorder %v1144, 0
      %vm1153 = vcmp.ge.s32.totalorder %v1145, 0
      %vm1154 = vcmp.ge.s32.totalorder %v1146, 0
      %vm1155 = vcmp.lt.s32.totalorder %v1139, 8
      %vm1156 = vcmp.lt.s32.totalorder %v1140, 8
      %vm1157 = vcmp.lt.s32.totalorder %v1141, 8
      %vm1158 = vcmp.lt.s32.totalorder %v1142, 8
      %vm1159 = vcmp.lt.s32.totalorder %v1143, 8
      %vm1160 = vcmp.lt.s32.totalorder %v1144, 8
      %vm1161 = vcmp.lt.s32.totalorder %v1145, 8
      %vm1162 = vcmp.lt.s32.totalorder %v1146, 8
      %vm1163 = vmand %vm1147, %vm1155
      %vm1164 = vmand %vm1148, %vm1156
      %vm1165 = vmand %vm1149, %vm1157
      %vm1166 = vmand %vm1150, %vm1158
      %vm1167 = vmand %vm1151, %vm1159
      %vm1168 = vmand %vm1152, %vm1160
      %vm1169 = vmand %vm1153, %vm1161
      %vm1170 = vmand %vm1154, %vm1162
      %v1171 = vadd.s32 %v1035, 2
      %v1172 = vadd.s32 %v1036, 2
      %v1173 = vadd.s32 %v1037, 2
      %v1174 = vadd.s32 %v1038, 2
      %v1175 = vadd.s32 %v1039, 2
      %v1176 = vadd.s32 %v1040, 2
      %v1177 = vadd.s32 %v1041, 2
      %v1178 = vadd.s32 %v1042, 2
      %vm1179 = vcmp.ge.s32.totalorder %v1171, 0
      %vm1180 = vcmp.ge.s32.totalorder %v1172, 0
      %vm1181 = vcmp.ge.s32.totalorder %v1173, 0
      %vm1182 = vcmp.ge.s32.totalorder %v1174, 0
      %vm1183 = vcmp.ge.s32.totalorder %v1175, 0
      %vm1184 = vcmp.ge.s32.totalorder %v1176, 0
      %vm1185 = vcmp.ge.s32.totalorder %v1177, 0
      %vm1186 = vcmp.ge.s32.totalorder %v1178, 0
      %vm1187 = vcmp.lt.s32.totalorder %v1171, 8
      %vm1188 = vcmp.lt.s32.totalorder %v1172, 8
      %vm1189 = vcmp.lt.s32.totalorder %v1173, 8
      %vm1190 = vcmp.lt.s32.totalorder %v1174, 8
      %vm1191 = vcmp.lt.s32.totalorder %v1175, 8
      %vm1192 = vcmp.lt.s32.totalorder %v1176, 8
      %vm1193 = vcmp.lt.s32.totalorder %v1177, 8
      %vm1194 = vcmp.lt.s32.totalorder %v1178, 8
      %vm1195 = vmand %vm1179, %vm1187
      %vm1196 = vmand %vm1180, %vm1188
      %vm1197 = vmand %vm1181, %vm1189
      %vm1198 = vmand %vm1182, %vm1190
      %vm1199 = vmand %vm1183, %vm1191
      %vm1200 = vmand %vm1184, %vm1192
      %vm1201 = vmand %vm1185, %vm1193
      %vm1202 = vmand %vm1186, %vm1194
      %v1203 = vadd.s32 %v1035, 3
      %v1204 = vadd.s32 %v1036, 3
      %v1205 = vadd.s32 %v1037, 3
      %v1206 = vadd.s32 %v1038, 3
      %v1207 = vadd.s32 %v1039, 3
      %v1208 = vadd.s32 %v1040, 3
      %v1209 = vadd.s32 %v1041, 3
      %v1210 = vadd.s32 %v1042, 3
      %vm1211 = vcmp.ge.s32.totalorder %v1203, 0
      %vm1212 = vcmp.ge.s32.totalorder %v1204, 0
      %vm1213 = vcmp.ge.s32.totalorder %v1205, 0
      %vm1214 = vcmp.ge.s32.totalorder %v1206, 0
      %vm1215 = vcmp.ge.s32.totalorder %v1207, 0
      %vm1216 = vcmp.ge.s32.totalorder %v1208, 0
      %vm1217 = vcmp.ge.s32.totalorder %v1209, 0
      %vm1218 = vcmp.ge.s32.totalorder %v1210, 0
      %vm1219 = vcmp.lt.s32.totalorder %v1203, 8
      %vm1220 = vcmp.lt.s32.totalorder %v1204, 8
      %vm1221 = vcmp.lt.s32.totalorder %v1205, 8
      %vm1222 = vcmp.lt.s32.totalorder %v1206, 8
      %vm1223 = vcmp.lt.s32.totalorder %v1207, 8
      %vm1224 = vcmp.lt.s32.totalorder %v1208, 8
      %vm1225 = vcmp.lt.s32.totalorder %v1209, 8
      %vm1226 = vcmp.lt.s32.totalorder %v1210, 8
      %vm1227 = vmand %vm1211, %vm1219
      %vm1228 = vmand %vm1212, %vm1220
      %vm1229 = vmand %vm1213, %vm1221
      %vm1230 = vmand %vm1214, %vm1222
      %vm1231 = vmand %vm1215, %vm1223
      %vm1232 = vmand %vm1216, %vm1224
      %vm1233 = vmand %vm1217, %vm1225
      %vm1234 = vmand %vm1218, %vm1226
      %v1235 = vlaneseq
      %v1236 = vand.u32 %v1235, 127
      %vm1237 = vcmp.lt.s32.totalorder %v1236, 16
      %v1238 = vsel %vm1237, 1, 0
      %v1239 = vcvt.s32.f32 %v1238
      %v1240 = vld [vmem:[%s905] sm:$0xff]
      %v1241 = vld [vmem:[%s905 + $0x8] sm:$0xff]
      %v1242 = vld [vmem:[%s905 + $0x10] sm:$0xff]
      %v1243 = vld [vmem:[%s905 + $0x18] sm:$0xff]
      %v1244 = vld [vmem:[%s905 + $0x20] sm:$0xff]
      %v1245 = vld [vmem:[%s905 + $0x28] sm:$0xff]
      %v1246 = vld [vmem:[%s905 + $0x30] sm:$0xff]
      %v1247 = vld [vmem:[%s905 + $0x38] sm:$0xff]
      %v1248 = vld [vmem:[%s836] sm:$0x1]
      %v1249 = vld [vmem:[%s839] sm:$0x1]
      %1250 = vadd.xlane.f32.xlu0 %v1240
      %v1251 = vpop.xlane.xlu0 %1250
      %1252 = vadd.xlane.f32.xlu0 %v1241
      %v1253 = vpop.xlane.xlu0 %1252
      %1254 = vadd.xlane.f32.xlu0 %v1242
      %v1255 = vpop.xlane.xlu0 %1254
      %1256 = vadd.xlane.f32.xlu0 %v1243
      %v1257 = vpop.xlane.xlu0 %1256
      %1258 = vadd.xlane.f32.xlu0 %v1244
      %v1259 = vpop.xlane.xlu0 %1258
      %1260 = vadd.xlane.f32.xlu0 %v1245
      %v1261 = vpop.xlane.xlu0 %1260
      %1262 = vadd.xlane.f32.xlu0 %v1246
      %v1263 = vpop.xlane.xlu0 %1262
      %1264 = vadd.xlane.f32.xlu0 %v1247
      %v1265 = vpop.xlane.xlu0 %1264
      %v1266 = vmul.f32 %v1251, 0.0625
      %v1267 = vmul.f32 %v1253, 0.0625
      %v1268 = vmul.f32 %v1255, 0.0625
      %v1269 = vmul.f32 %v1257, 0.0625
      %v1270 = vmul.f32 %v1259, 0.0625
      %v1271 = vmul.f32 %v1261, 0.0625
      %v1272 = vmul.f32 %v1263, 0.0625
      %v1273 = vmul.f32 %v1265, 0.0625
      %v1274 = vsub.f32 %v1240, %v1266
      %v1275 = vsub.f32 %v1241, %v1267
      %v1276 = vsub.f32 %v1242, %v1268
      %v1277 = vsub.f32 %v1243, %v1269
      %v1278 = vsub.f32 %v1244, %v1270
      %v1279 = vsub.f32 %v1245, %v1271
      %v1280 = vsub.f32 %v1246, %v1272
      %v1281 = vsub.f32 %v1247, %v1273
      %v1282 = vmul.f32 %v1274, %v1239
      %v1283 = vmul.f32 %v1275, %v1239
      %v1284 = vmul.f32 %v1276, %v1239
      %v1285 = vmul.f32 %v1277, %v1239
      %v1286 = vmul.f32 %v1278, %v1239
      %v1287 = vmul.f32 %v1279, %v1239
      %v1288 = vmul.f32 %v1280, %v1239
      %v1289 = vmul.f32 %v1281, %v1239
      %v1290 = vmul.f32 %v1282, %v1282
      %v1291 = vmul.f32 %v1283, %v1283
      %v1292 = vmul.f32 %v1284, %v1284
      %v1293 = vmul.f32 %v1285, %v1285
      %v1294 = vmul.f32 %v1286, %v1286
      %v1295 = vmul.f32 %v1287, %v1287
      %v1296 = vmul.f32 %v1288, %v1288
      %v1297 = vmul.f32 %v1289, %v1289
      %1298 = vadd.xlane.f32.xlu0 %v1290
      %v1299 = vpop.xlane.xlu0 %1298
      %1300 = vadd.xlane.f32.xlu0 %v1291
      %v1301 = vpop.xlane.xlu0 %1300
      %1302 = vadd.xlane.f32.xlu0 %v1292
      %v1303 = vpop.xlane.xlu0 %1302
      %1304 = vadd.xlane.f32.xlu0 %v1293
      %v1305 = vpop.xlane.xlu0 %1304
      %1306 = vadd.xlane.f32.xlu0 %v1294
      %v1307 = vpop.xlane.xlu0 %1306
      %1308 = vadd.xlane.f32.xlu0 %v1295
      %v1309 = vpop.xlane.xlu0 %1308
      %1310 = vadd.xlane.f32.xlu0 %v1296
      %v1311 = vpop.xlane.xlu0 %1310
      %1312 = vadd.xlane.f32.xlu0 %v1297
      %v1313 = vpop.xlane.xlu0 %1312
      %v1314 = vmul.f32 %v1299, 0.0625
      %v1315 = vmul.f32 %v1301, 0.0625
      %v1316 = vmul.f32 %v1303, 0.0625
      %v1317 = vmul.f32 %v1305, 0.0625
      %v1318 = vmul.f32 %v1307, 0.0625
      %v1319 = vmul.f32 %v1309, 0.0625
      %v1320 = vmul.f32 %v1311, 0.0625
      %v1321 = vmul.f32 %v1313, 0.0625
      %v1322 = vadd.f32 %v1314, 1e-06
      %v1323 = vadd.f32 %v1315, 1e-06
      %v1324 = vadd.f32 %v1316, 1e-06
      %v1325 = vadd.f32 %v1317, 1e-06
      %v1326 = vadd.f32 %v1318, 1e-06
      %v1327 = vadd.f32 %v1319, 1e-06
      %v1328 = vadd.f32 %v1320, 1e-06
      %v1329 = vadd.f32 %v1321, 1e-06
      %v1330 = vrsqrt.pop %v1322
      %v1331 = vrsqrt.pop %v1323
      %v1332 = vrsqrt.pop %v1324
      %v1333 = vrsqrt.pop %v1325
      %v1334 = vrsqrt.pop %v1326
      %v1335 = vrsqrt.pop %v1327
      %v1336 = vrsqrt.pop %v1328
      %v1337 = vrsqrt.pop %v1329
      %v1338 = vmul.f32 %v1282, %v1330
      %v1339 = vmul.f32 %v1283, %v1331
      %v1340 = vmul.f32 %v1284, %v1332
      %v1341 = vmul.f32 %v1285, %v1333
      %v1342 = vmul.f32 %v1286, %v1334
      %v1343 = vmul.f32 %v1287, %v1335
      %v1344 = vmul.f32 %v1288, %v1336
      %v1345 = vmul.f32 %v1289, %v1337
      %v1347 = vlaneseq
      %v1348 = vshrl.u32 %v1347, 7
      %v1349 = vsub.s32 0, %v1348
      %v1350 = vrot.slane %v1248, %v1349
      %v1352 = vmul.f32 %v1338, %v1350
      %v1353 = vmul.f32 %v1339, %v1350
      %v1354 = vmul.f32 %v1340, %v1350
      %v1355 = vmul.f32 %v1341, %v1350
      %v1356 = vmul.f32 %v1342, %v1350
      %v1357 = vmul.f32 %v1343, %v1350
      %v1358 = vmul.f32 %v1344, %v1350
      %v1359 = vmul.f32 %v1345, %v1350
      %v1361 = vlaneseq
      %v1362 = vshrl.u32 %v1361, 7
      %v1363 = vsub.s32 0, %v1362
      %v1364 = vrot.slane %v1249, %v1363
      %v1366 = vadd.f32 %v1352, %v1364
      %v1367 = vadd.f32 %v1353, %v1364
      %v1368 = vadd.f32 %v1354, %v1364
      %v1369 = vadd.f32 %v1355, %v1364
      %v1370 = vadd.f32 %v1356, %v1364
      %v1371 = vadd.f32 %v1357, %v1364
      %v1372 = vadd.f32 %v1358, %v1364
      %v1373 = vadd.f32 %v1359, %v1364
      %v1374 = vld [vmem:[%s844] sm:$0xff]
      %v1375 = vld [vmem:[%s844 + $0x8] sm:$0xff]
      %v1376 = vld [vmem:[%s844 + $0x10] sm:$0xff]
      %v1377 = vld [vmem:[%s844 + $0x18] sm:$0xff]
      %v1378 = vld [vmem:[%s844 + $0x20] sm:$0xff]
      %v1379 = vld [vmem:[%s844 + $0x28] sm:$0xff]
      %v1380 = vld [vmem:[%s844 + $0x30] sm:$0xff]
      %v1381 = vld [vmem:[%s844 + $0x38] sm:$0xff]
      %v1382 = vld [vmem:[%s844 + $0x40] sm:$0xff]
      %v1383 = vld [vmem:[%s844 + $0x48] sm:$0xff]
      %v1384 = vld [vmem:[%s844 + $0x50] sm:$0xff]
      %v1385 = vld [vmem:[%s844 + $0x58] sm:$0xff]
      %v1386 = vld [vmem:[%s844 + $0x60] sm:$0xff]
      %v1387 = vld [vmem:[%s844 + $0x68] sm:$0xff]
      %v1388 = vld [vmem:[%s844 + $0x70] sm:$0xff]
      %v1389 = vld [vmem:[%s844 + $0x78] sm:$0xff]
      %v1390 = vld [vmem:[%s844 + $0x80] sm:$0xff]
      %v1391 = vld [vmem:[%s844 + $0x88] sm:$0xff]
      %v1392 = vld [vmem:[%s844 + $0x90] sm:$0xff]
      %v1393 = vld [vmem:[%s844 + $0x98] sm:$0xff]
      %v1394 = vld [vmem:[%s844 + $0xa0] sm:$0xff]
      %v1395 = vld [vmem:[%s844 + $0xa8] sm:$0xff]
      %v1396 = vld [vmem:[%s844 + $0xb0] sm:$0xff]
      %v1397 = vld [vmem:[%s844 + $0xb8] sm:$0xff]
      %v1398 = vld [vmem:[%s844 + $0xc0] sm:$0xff]
      %v1399 = vld [vmem:[%s844 + $0xc8] sm:$0xff]
      %v1400 = vld [vmem:[%s844 + $0xd0] sm:$0xff]
      %v1401 = vld [vmem:[%s844 + $0xd8] sm:$0xff]
      %v1402 = vld [vmem:[%s844 + $0xe0] sm:$0xff]
      %v1403 = vld [vmem:[%s844 + $0xe8] sm:$0xff]
      %v1404 = vld [vmem:[%s844 + $0xf0] sm:$0xff]
      %v1405 = vld [vmem:[%s844 + $0xf8] sm:$0xff]
      %v1406 = vld [vmem:[%s848] sm:$0x3]
      %v1408 = vlaneseq
      %v1409 = vshrl.u32 %v1408, 7
      %v1410 = vsub.s32 0, %v1409
      %v1411 = vrot.slane %v1406, %v1410
      %v1412 = vlaneseq
      %v1413 = vshrl.u32 %v1412, 7
      %v1414 = vsub.s32 1, %v1413
      %v1415 = vrot.slane %v1406, %v1414
      %1418 = vmatprep.subr.mxu0 %v1375
      %1419 = vmatpush1.msra.mxu0 %v1374
      %1420 = vmatprep.subr.mxu0 %v1377
      %1421 = vmatpush1.msra.mxu0 %v1376
      %1422 = vmatprep.subr.mxu0 %v1379
      %1423 = vmatpush1.msra.mxu0 %v1378
      %1424 = vmatprep.subr.mxu0 %v1381
      %1425 = vmatpush1.msra.mxu0 %v1380
      %1426 = vmatprep.subr.mxu0 %v1383
      %1427 = vmatpush1.msra.mxu0 %v1382
      %1428 = vmatprep.subr.mxu0 %v1385
      %1429 = vmatpush1.msra.mxu0 %v1384
      %1430 = vmatprep.subr.mxu0 %v1387
      %1431 = vmatpush1.msra.mxu0 %v1386
      %1432 = vmatprep.subr.mxu0 %v1389
      %1433 = vmatpush1.msra.mxu0 %v1388
      %1434 = vmatprep.subr.mxu0 %v1391
      %1435 = vmatpush1.msra.mxu0 %v1390
      %1436 = vmatprep.subr.mxu0 %v1393
      %1437 = vmatpush1.msra.mxu0 %v1392
      %1438 = vmatprep.subr.mxu0 %v1395
      %1439 = vmatpush1.msra.mxu0 %v1394
      %1440 = vmatprep.subr.mxu0 %v1397
      %1441 = vmatpush1.msra.mxu0 %v1396
      %1442 = vmatprep.subr.mxu0 %v1399
      %1443 = vmatpush1.msra.mxu0 %v1398
      %1444 = vmatprep.subr.mxu0 %v1401
      %1445 = vmatpush1.msra.mxu0 %v1400
      %1446 = vmatprep.subr.mxu0 %v1403
      %1447 = vmatpush1.msra.mxu0 %v1402
      %1448 = vmatprep.subr.mxu0 %v1405
      %1449 = vmatpush1.msra.mxu0 %v1404
      %1450 = vmatprep.subr.mxu0 0.0
      %1451 = vmatpush1.msra.mxu0 0.0
      %1452 = vmatprep.subr.mxu0 0.0
      %1453 = vmatpush1.msra.mxu0 0.0
      %1454 = vmatprep.subr.mxu0 0.0
      %1455 = vmatpush1.msra.mxu0 0.0
      %1456 = vmatprep.subr.mxu0 0.0
      %1457 = vmatpush1.msra.mxu0 0.0
      %1458 = vmatprep.subr.mxu0 0.0
      %1459 = vmatpush1.msra.mxu0 0.0
      %1460 = vmatprep.subr.mxu0 0.0
      %1461 = vmatpush1.msra.mxu0 0.0
      %1462 = vmatprep.subr.mxu0 0.0
      %1463 = vmatpush1.msra.mxu0 0.0
      %1464 = vmatprep.subr.mxu0 0.0
      %1465 = vmatpush1.msra.mxu0 0.0
      %1466 = vmatprep.subr.mxu0 0.0
      %1467 = vmatpush1.msra.mxu0 0.0
      %1468 = vmatprep.subr.mxu0 0.0
      %1469 = vmatpush1.msra.mxu0 0.0
      %1470 = vmatprep.subr.mxu0 0.0
      %1471 = vmatpush1.msra.mxu0 0.0
      %1472 = vmatprep.subr.mxu0 0.0
      %1473 = vmatpush1.msra.mxu0 0.0
      %1474 = vmatprep.subr.mxu0 0.0
      %1475 = vmatpush1.msra.mxu0 0.0
      %1476 = vmatprep.subr.mxu0 0.0
      %1477 = vmatpush1.msra.mxu0 0.0
      %1478 = vmatprep.subr.mxu0 0.0
      %1479 = vmatpush1.msra.mxu0 0.0
      %1480 = vmatprep.subr.mxu0 0.0
      %1481 = vmatpush1.msra.mxu0 0.0
      %1482 = vmatprep.mubr.f32.mxu0 0.0
      %1483 = vmatmul.mubr.f32.gmra.mrb[0].mxu0 %v1366
      %v1484 = vpop.f32.mrb[0].mxu0
      %v1485 = vadd.f32 %v1411, %v1484
      %v1486 = vpop.f32.mrb[0].mxu0
      %v1487 = vadd.f32 %v1415, %v1486
      %1488 = vmatprep.mubr.f32.mxu0 0.0
      %1489 = vmatmul.mubr.f32.gmra.mrb[0].mxu0 %v1367
      %v1490 = vpop.f32.mrb[0].mxu0
      %v1491 = vadd.f32 %v1411, %v1490
      %v1492 = vpop.f32.mrb[0].mxu0
      %v1493 = vadd.f32 %v1415, %v1492
      %1494 = vmatprep.mubr.f32.mxu0 0.0
      %1495 = vmatmul.mubr.f32.gmra.mrb[0].mxu0 %v1368
      %v1496 = vpop.f32.mrb[0].mxu0
      %v1497 = vadd.f32 %v1411, %v1496
      %v1498 = vpop.f32.mrb[0].mxu0
      %v1499 = vadd.f32 %v1415, %v1498
      %1500 = vmatprep.mubr.f32.mxu0 0.0
      %1501 = vmatmul.mubr.f32.gmra.mrb[0].mxu0 %v1369
      %v1502 = vpop.f32.mrb[0].mxu0
      %v1503 = vadd.f32 %v1411, %v1502
      %v1504 = vpop.f32.mrb[0].mxu0
      %v1505 = vadd.f32 %v1415, %v1504
      %1506 = vmatprep.mubr.f32.mxu0 0.0
      %1507 = vmatmul.mubr.f32.gmra.mrb[0].mxu0 %v1370
      %v1508 = vpop.f32.mrb[0].mxu0
      %v1509 = vadd.f32 %v1411, %v1508
      %v1510 = vpop.f32.mrb[0].mxu0
      %v1511 = vadd.f32 %v1415, %v1510
      %1512 = vmatprep.mubr.f32.mxu0 0.0
      %1513 = vmatmul.mubr.f32.gmra.mrb[0].mxu0 %v1371
      %v1514 = vpop.f32.mrb[0].mxu0
      %v1515 = vadd.f32 %v1411, %v1514
      %v1516 = vpop.f32.mrb[0].mxu0
      %v1517 = vadd.f32 %v1415, %v1516
      %1518 = vmatprep.mubr.f32.mxu0 0.0
      %1519 = vmatmul.mubr.f32.gmra.mrb[0].mxu0 %v1372
      %v1520 = vpop.f32.mrb[0].mxu0
      %v1521 = vadd.f32 %v1411, %v1520
      %v1522 = vpop.f32.mrb[0].mxu0
      %v1523 = vadd.f32 %v1415, %v1522
      %1524 = vmatprep.mubr.f32.mxu0 0.0
      %1525 = vmatmul.mubr.f32.gmra.mrb[0].mxu0 %v1373
      %v1526 = vpop.f32.mrb[0].mxu0
      %v1527 = vadd.f32 %v1411, %v1526
      %v1528 = vpop.f32.mrb[0].mxu0
      %v1529 = vadd.f32 %v1415, %v1528
      %1530 = vdwg.mxu0
      %v1531 = vmul.f32 %v1485, 0.5
      %v1532 = vmul.f32 %v1491, 0.5
      %v1533 = vmul.f32 %v1497, 0.5
      %v1534 = vmul.f32 %v1503, 0.5
      %v1535 = vmul.f32 %v1509, 0.5
      %v1536 = vmul.f32 %v1515, 0.5
      %v1537 = vmul.f32 %v1521, 0.5
      %v1538 = vmul.f32 %v1527, 0.5
      %v1539 = vmul.f32 %v1485, 0.70710677
      %v1540 = vmul.f32 %v1491, 0.70710677
      %v1541 = vmul.f32 %v1497, 0.70710677
      %v1542 = vmul.f32 %v1503, 0.70710677
      %v1543 = vmul.f32 %v1509, 0.70710677
      %v1544 = vmul.f32 %v1515, 0.70710677
      %v1545 = vmul.f32 %v1521, 0.70710677
      %v1546 = vmul.f32 %v1527, 0.70710677
      %v1547 = vand.u32 2147483647, %v1539
      %v1548 = vand.u32 2147483647, %v1540
      %v1549 = vand.u32 2147483647, %v1541
      %v1550 = vand.u32 2147483647, %v1542
      %v1551 = vand.u32 2147483647, %v1543
      %v1552 = vand.u32 2147483647, %v1544
      %v1553 = vand.u32 2147483647, %v1545
      %v1554 = vand.u32 2147483647, %v1546
      %v1555 = vmul.f32 %v1547, 0.3275911
      %v1556 = vmul.f32 %v1548, 0.3275911
      %v1557 = vmul.f32 %v1549, 0.3275911
      %v1558 = vmul.f32 %v1550, 0.3275911
      %v1559 = vmul.f32 %v1551, 0.3275911
      %v1560 = vmul.f32 %v1552, 0.3275911
      %v1561 = vmul.f32 %v1553, 0.3275911
      %v1562 = vmul.f32 %v1554, 0.3275911
      %v1563 = vadd.f32 %v1555, 1.0
      %v1564 = vadd.f32 %v1556, 1.0
      %v1565 = vadd.f32 %v1557, 1.0
      %v1566 = vadd.f32 %v1558, 1.0
      %v1567 = vadd.f32 %v1559, 1.0
      %v1568 = vadd.f32 %v1560, 1.0
      %v1569 = vadd.f32 %v1561, 1.0
      %v1570 = vadd.f32 %v1562, 1.0
      %v1571 = vrcp.pop %v1563
      %v1572 = vmul.f32 1.0, %v1571
      %v1573 = vrcp.pop %v1564
      %v1574 = vmul.f32 1.0, %v1573
      %v1575 = vrcp.pop %v1565
      %v1576 = vmul.f32 1.0, %v1575
      %v1577 = vrcp.pop %v1566
      %v1578 = vmul.f32 1.0, %v1577
      %v1579 = vrcp.pop %v1567
      %v1580 = vmul.f32 1.0, %v1579
      %v1581 = vrcp.pop %v1568
      %v1582 = vmul.f32 1.0, %v1581
      %v1583 = vrcp.pop %v1569
      %v1584 = vmul.f32 1.0, %v1583
      %v1585 = vrcp.pop %v1570
      %v1586 = vmul.f32 1.0, %v1585
      %v1587 = vmul.f32 %v1572, 1.0614054
      %v1588 = vmul.f32 %v1574, 1.0614054
      %v1589 = vmul.f32 %v1576, 1.0614054
      %v1590 = vmul.f32 %v1578, 1.0614054
      %v1591 = vmul.f32 %v1580, 1.0614054
      %v1592 = vmul.f32 %v1582, 1.0614054
      %v1593 = vmul.f32 %v1584, 1.0614054
      %v1594 = vmul.f32 %v1586, 1.0614054
      %v1595 = vadd.f32 %v1587, -1.4531521
      %v1596 = vadd.f32 %v1588, -1.4531521
      %v1597 = vadd.f32 %v1589, -1.4531521
      %v1598 = vadd.f32 %v1590, -1.4531521
      %v1599 = vadd.f32 %v1591, -1.4531521
      %v1600 = vadd.f32 %v1592, -1.4531521
      %v1601 = vadd.f32 %v1593, -1.4531521
      %v1602 = vadd.f32 %v1594, -1.4531521
      %v1603 = vmul.f32 %v1595, %v1572
      %v1604 = vmul.f32 %v1596, %v1574
      %v1605 = vmul.f32 %v1597, %v1576
      %v1606 = vmul.f32 %v1598, %v1578
      %v1607 = vmul.f32 %v1599, %v1580
      %v1608 = vmul.f32 %v1600, %v1582
      %v1609 = vmul.f32 %v1601, %v1584
      %v1610 = vmul.f32 %v1602, %v1586
      %v1611 = vadd.f32 %v1603, 1.4214138
      %v1612 = vadd.f32 %v1604, 1.4214138
      %v1613 = vadd.f32 %v1605, 1.4214138
      %v1614 = vadd.f32 %v1606, 1.4214138
      %v1615 = vadd.f32 %v1607, 1.4214138
      %v1616 = vadd.f32 %v1608, 1.4214138
      %v1617 = vadd.f32 %v1609, 1.4214138
      %v1618 = vadd.f32 %v1610, 1.4214138
      %v1619 = vmul.f32 %v1611, %v1572
      %v1620 = vmul.f32 %v1612, %v1574
      %v1621 = vmul.f32 %v1613, %v1576
      %v1622 = vmul.f32 %v1614, %v1578
      %v1623 = vmul.f32 %v1615, %v1580
      %v1624 = vmul.f32 %v1616, %v1582
      %v1625 = vmul.f32 %v1617, %v1584
      %v1626 = vmul.f32 %v1618, %v1586
      %v1627 = vadd.f32 %v1619, -0.28449672
      %v1628 = vadd.f32 %v1620, -0.28449672
      %v1629 = vadd.f32 %v1621, -0.28449672
      %v1630 = vadd.f32 %v1622, -0.28449672
      %v1631 = vadd.f32 %v1623, -0.28449672
      %v1632 = vadd.f32 %v1624, -0.28449672
      %v1633 = vadd.f32 %v1625, -0.28449672
      %v1634 = vadd.f32 %v1626, -0.28449672
      %v1635 = vmul.f32 %v1627, %v1572
      %v1636 = vmul.f32 %v1628, %v1574
      %v1637 = vmul.f32 %v1629, %v1576
      %v1638 = vmul.f32 %v1630, %v1578
      %v1639 = vmul.f32 %v1631, %v1580
      %v1640 = vmul.f32 %v1632, %v1582
      %v1641 = vmul.f32 %v1633, %v1584
      %v1642 = vmul.f32 %v1634, %v1586
      %v1643 = vadd.f32 %v1635, 0.2548296
      %v1644 = vadd.f32 %v1636, 0.2548296
      %v1645 = vadd.f32 %v1637, 0.2548296
      %v1646 = vadd.f32 %v1638, 0.2548296
      %v1647 = vadd.f32 %v1639, 0.2548296
      %v1648 = vadd.f32 %v1640, 0.2548296
      %v1649 = vadd.f32 %v1641, 0.2548296
      %v1650 = vadd.f32 %v1642, 0.2548296
      %v1651 = vmul.f32 %v1643, %v1572
      %v1652 = vmul.f32 %v1644, %v1574
      %v1653 = vmul.f32 %v1645, %v1576
      %v1654 = vmul.f32 %v1646, %v1578
      %v1655 = vmul.f32 %v1647, %v1580
      %v1656 = vmul.f32 %v1648, %v1582
      %v1657 = vmul.f32 %v1649, %v1584
      %v1658 = vmul.f32 %v1650, %v1586
      %v1659 = vmul.f32 %v1547, %v1547
      %v1660 = vmul.f32 %v1548, %v1548
      %v1661 = vmul.f32 %v1549, %v1549
      %v1662 = vmul.f32 %v1550, %v1550
      %v1663 = vmul.f32 %v1551, %v1551
      %v1664 = vmul.f32 %v1552, %v1552
      %v1665 = vmul.f32 %v1553, %v1553
      %v1666 = vmul.f32 %v1554, %v1554
      %v1667 = vsub.f32 0.0, %v1659
      %v1668 = vsub.f32 0.0, %v1660
      %v1669 = vsub.f32 0.0, %v1661
      %v1670 = vsub.f32 0.0, %v1662
      %v1671 = vsub.f32 0.0, %v1663
      %v1672 = vsub.f32 0.0, %v1664
      %v1673 = vsub.f32 0.0, %v1665
      %v1674 = vsub.f32 0.0, %v1666
      %v1675 = vmul.f32 %v1667, 1.442695
      %v1676 = vpow.pop %v1675
      %v1677 = vmul.f32 %v1668, 1.442695
      %v1678 = vpow.pop %v1677
      %v1679 = vmul.f32 %v1669, 1.442695
      %v1680 = vpow.pop %v1679
      %v1681 = vmul.f32 %v1670, 1.442695
      %v1682 = vpow.pop %v1681
      %v1683 = vmul.f32 %v1671, 1.442695
      %v1684 = vpow.pop %v1683
      %v1685 = vmul.f32 %v1672, 1.442695
      %v1686 = vpow.pop %v1685
      %v1687 = vmul.f32 %v1673, 1.442695
      %v1688 = vpow.pop %v1687
      %v1689 = vmul.f32 %v1674, 1.442695
      %v1690 = vpow.pop %v1689
      %v1691 = vmul.f32 %v1651, %v1676
      %v1692 = vmul.f32 %v1652, %v1678
      %v1693 = vmul.f32 %v1653, %v1680
      %v1694 = vmul.f32 %v1654, %v1682
      %v1695 = vmul.f32 %v1655, %v1684
      %v1696 = vmul.f32 %v1656, %v1686
      %v1697 = vmul.f32 %v1657, %v1688
      %v1698 = vmul.f32 %v1658, %v1690
      %v1699 = vsub.f32 1.0, %v1691
      %v1700 = vsub.f32 1.0, %v1692
      %v1701 = vsub.f32 1.0, %v1693
      %v1702 = vsub.f32 1.0, %v1694
      %v1703 = vsub.f32 1.0, %v1695
      %v1704 = vsub.f32 1.0, %v1696
      %v1705 = vsub.f32 1.0, %v1697
      %v1706 = vsub.f32 1.0, %v1698
      %vm1707 = vcmp.ge.f32.partialorder %v1539, 0.0
      %vm1708 = vcmp.ge.f32.partialorder %v1540, 0.0
      %vm1709 = vcmp.ge.f32.partialorder %v1541, 0.0
      %vm1710 = vcmp.ge.f32.partialorder %v1542, 0.0
      %vm1711 = vcmp.ge.f32.partialorder %v1543, 0.0
      %vm1712 = vcmp.ge.f32.partialorder %v1544, 0.0
      %vm1713 = vcmp.ge.f32.partialorder %v1545, 0.0
      %vm1714 = vcmp.ge.f32.partialorder %v1546, 0.0
      %v1715 = vsub.f32 0.0, %v1699
      %v1716 = vsub.f32 0.0, %v1700
      %v1717 = vsub.f32 0.0, %v1701
      %v1718 = vsub.f32 0.0, %v1702
      %v1719 = vsub.f32 0.0, %v1703
      %v1720 = vsub.f32 0.0, %v1704
      %v1721 = vsub.f32 0.0, %v1705
      %v1722 = vsub.f32 0.0, %v1706
      %v1723 = vsel %vm1707, %v1699, %v1715
      %v1724 = vsel %vm1708, %v1700, %v1716
      %v1725 = vsel %vm1709, %v1701, %v1717
      %v1726 = vsel %vm1710, %v1702, %v1718
      %v1727 = vsel %vm1711, %v1703, %v1719
      %v1728 = vsel %vm1712, %v1704, %v1720
      %v1729 = vsel %vm1713, %v1705, %v1721
      %v1730 = vsel %vm1714, %v1706, %v1722
      %v1731 = vadd.f32 %v1723, 1.0
      %v1732 = vadd.f32 %v1724, 1.0
      %v1733 = vadd.f32 %v1725, 1.0
      %v1734 = vadd.f32 %v1726, 1.0
      %v1735 = vadd.f32 %v1727, 1.0
      %v1736 = vadd.f32 %v1728, 1.0
      %v1737 = vadd.f32 %v1729, 1.0
      %v1738 = vadd.f32 %v1730, 1.0
      %v1739 = vmul.f32 %v1531, %v1731
      %v1740 = vmul.f32 %v1532, %v1732
      %v1741 = vmul.f32 %v1533, %v1733
      %v1742 = vmul.f32 %v1534, %v1734
      %v1743 = vmul.f32 %v1535, %v1735
      %v1744 = vmul.f32 %v1536, %v1736
      %v1745 = vmul.f32 %v1537, %v1737
      %v1746 = vmul.f32 %v1538, %v1738
      %v1747 = vld [vmem:[%s853] sm:$0xff]
      %v1748 = vld [vmem:[%s853 + $0x8] sm:$0xff]
      %v1749 = vld [vmem:[%s853 + $0x10] sm:$0xff]
      %v1750 = vld [vmem:[%s853 + $0x18] sm:$0xff]
      %v1751 = vld [vmem:[%s853 + $0x20] sm:$0xff]
      %v1752 = vld [vmem:[%s853 + $0x28] sm:$0xff]
      %v1753 = vld [vmem:[%s853 + $0x30] sm:$0x1]
      %v1754 = vld [vmem:[%s856] sm:$0x1]
      %1755 = vst [vmem:[#allocation2 + $0x20] sm:$0xff] %v1739
      %1756 = vst [vmem:[#allocation2 + $0x28] sm:$0xff] %v1740
      %1757 = vst [vmem:[#allocation2 + $0x30] sm:$0xff] %v1741
      %1758 = vst [vmem:[#allocation2 + $0x38] sm:$0xff] %v1742
      %1759 = vst [vmem:[#allocation2 + $0x40] sm:$0xff] %v1743
      %1760 = vst [vmem:[#allocation2 + $0x48] sm:$0xff] %v1744
      %1761 = vst [vmem:[#allocation2 + $0x50] sm:$0xff] %v1745
      %1762 = vst [vmem:[#allocation2 + $0x58] sm:$0xff] %v1746
      %v1763 = vld [vmem:[#allocation2 + $0x5] sm:$0xff]
      %v1764 = vld [vmem:[#allocation2 + $0xd] sm:$0xff]
      %v1765 = vld [vmem:[#allocation2 + $0x15] sm:$0xff]
      %v1766 = vld [vmem:[#allocation2 + $0x1d] sm:$0xff]
      %v1767 = vld [vmem:[#allocation2 + $0x25] sm:$0xff]
      %v1768 = vld [vmem:[#allocation2 + $0x2d] sm:$0xff]
      %v1769 = vld [vmem:[#allocation2 + $0x35] sm:$0xff]
      %v1770 = vld [vmem:[#allocation2 + $0x3d] sm:$0xff]
      %v1771 = vlaneseq
      %v1772 = vshrl.u32 %v1771, 7
      %v1773 = vsub.s32 0, %v1772
      %v1774 = vrot.slane %v1747, %v1773
      %v1775 = vmul.f32 %v1763, %v1774
      %v1776 = vmul.f32 %v1764, %v1774
      %v1777 = vmul.f32 %v1765, %v1774
      %v1778 = vmul.f32 %v1766, %v1774
      %v1779 = vmul.f32 %v1767, %v1774
      %v1780 = vmul.f32 %v1768, %v1774
      %v1781 = vmul.f32 %v1769, %v1774
      %v1782 = vmul.f32 %v1770, %v1774
      %v1783 = vld [vmem:[#allocation2 + $0x45] sm:$0xff]
      %v1784 = vlaneseq
      %v1785 = vshrl.u32 %v1784, 7
      %v1786 = vsub.s32 7, %v1785
      %v1787 = vrot.slane %v1747, %v1786
      %v1788 = vmul.f32 %v1764, %v1787
      %v1789 = vmul.f32 %v1765, %v1787
      %v1790 = vmul.f32 %v1766, %v1787
      %v1791 = vmul.f32 %v1767, %v1787
      %v1792 = vmul.f32 %v1768, %v1787
      %v1793 = vmul.f32 %v1769, %v1787
      %v1794 = vmul.f32 %v1770, %v1787
      %v1795 = vmul.f32 %v1783, %v1787
      %v1796 = vadd.f32 %v1775, %v1788
      %v1797 = vadd.f32 %v1776, %v1789
      %v1798 = vadd.f32 %v1777, %v1790
      %v1799 = vadd.f32 %v1778, %v1791
      %v1800 = vadd.f32 %v1779, %v1792
      %v1801 = vadd.f32 %v1780, %v1793
      %v1802 = vadd.f32 %v1781, %v1794
      %v1803 = vadd.f32 %v1782, %v1795
      %v1804 = vld [vmem:[#allocation2 + $0x4d] sm:$0xff]
      %v1805 = vlaneseq
      %v1806 = vshrl.u32 %v1805, 7
      %v1807 = vsub.s32 6, %v1806
      %v1808 = vrot.slane %v1748, %v1807
      %v1809 = vmul.f32 %v1765, %v1808
      %v1810 = vmul.f32 %v1766, %v1808
      %v1811 = vmul.f32 %v1767, %v1808
      %v1812 = vmul.f32 %v1768, %v1808
      %v1813 = vmul.f32 %v1769, %v1808
      %v1814 = vmul.f32 %v1770, %v1808
      %v1815 = vmul.f32 %v1783, %v1808
      %v1816 = vmul.f32 %v1804, %v1808
      %v1817 = vadd.f32 %v1796, %v1809
      %v1818 = vadd.f32 %v1797, %v1810
      %v1819 = vadd.f32 %v1798, %v1811
      %v1820 = vadd.f32 %v1799, %v1812
      %v1821 = vadd.f32 %v1800, %v1813
      %v1822 = vadd.f32 %v1801, %v1814
      %v1823 = vadd.f32 %v1802, %v1815
      %v1824 = vadd.f32 %v1803, %v1816
      %v1825 = vld [vmem:[#allocation2 + $0x55] sm:$0xff]
      %v1826 = vlaneseq
      %v1827 = vshrl.u32 %v1826, 7
      %v1828 = vsub.s32 5, %v1827
      %v1829 = vrot.slane %v1749, %v1828
      %v1830 = vmul.f32 %v1766, %v1829
      %v1831 = vmul.f32 %v1767, %v1829
      %v1832 = vmul.f32 %v1768, %v1829
      %v1833 = vmul.f32 %v1769, %v1829
      %v1834 = vmul.f32 %v1770, %v1829
      %v1835 = vmul.f32 %v1783, %v1829
      %v1836 = vmul.f32 %v1804, %v1829
      %v1837 = vmul.f32 %v1825, %v1829
      %v1838 = vadd.f32 %v1817, %v1830
      %v1839 = vadd.f32 %v1818, %v1831
      %v1840 = vadd.f32 %v1819, %v1832
      %v1841 = vadd.f32 %v1820, %v1833
      %v1842 = vadd.f32 %v1821, %v1834
      %v1843 = vadd.f32 %v1822, %v1835
      %v1844 = vadd.f32 %v1823, %v1836
      %v1845 = vadd.f32 %v1824, %v1837
      %v1846 = vld [vmem:[#allocation2 + $0x5d] sm:$0xff]
      %v1847 = vlaneseq
      %v1848 = vshrl.u32 %v1847, 7
      %v1849 = vsub.s32 4, %v1848
      %v1850 = vrot.slane %v1750, %v1849
      %v1851 = vmul.f32 %v1767, %v1850
      %v1852 = vmul.f32 %v1768, %v1850
      %v1853 = vmul.f32 %v1769, %v1850
      %v1854 = vmul.f32 %v1770, %v1850
      %v1855 = vmul.f32 %v1783, %v1850
      %v1856 = vmul.f32 %v1804, %v1850
      %v1857 = vmul.f32 %v1825, %v1850
      %v1858 = vmul.f32 %v1846, %v1850
      %v1859 = vadd.f32 %v1838, %v1851
      %v1860 = vadd.f32 %v1839, %v1852
      %v1861 = vadd.f32 %v1840, %v1853
      %v1862 = vadd.f32 %v1841, %v1854
      %v1863 = vadd.f32 %v1842, %v1855
      %v1864 = vadd.f32 %v1843, %v1856
      %v1865 = vadd.f32 %v1844, %v1857
      %v1866 = vadd.f32 %v1845, %v1858
      %v1867 = vld [vmem:[#allocation2 + $0x65] sm:$0xff]
      %v1868 = vlaneseq
      %v1869 = vshrl.u32 %v1868, 7
      %v1870 = vsub.s32 3, %v1869
      %v1871 = vrot.slane %v1751, %v1870
      %v1872 = vmul.f32 %v1768, %v1871
      %v1873 = vmul.f32 %v1769, %v1871
      %v1874 = vmul.f32 %v1770, %v1871
      %v1875 = vmul.f32 %v1783, %v1871
      %v1876 = vmul.f32 %v1804, %v1871
      %v1877 = vmul.f32 %v1825, %v1871
      %v1878 = vmul.f32 %v1846, %v1871
      %v1879 = vmul.f32 %v1867, %v1871
      %v1880 = vadd.f32 %v1859, %v1872
      %v1881 = vadd.f32 %v1860, %v1873
      %v1882 = vadd.f32 %v1861, %v1874
      %v1883 = vadd.f32 %v1862, %v1875
      %v1884 = vadd.f32 %v1863, %v1876
      %v1885 = vadd.f32 %v1864, %v1877
      %v1886 = vadd.f32 %v1865, %v1878
      %v1887 = vadd.f32 %v1866, %v1879
      %v1888 = vld [vmem:[#allocation2 + $0x6d] sm:$0xff]
      %v1889 = vlaneseq
      %v1890 = vshrl.u32 %v1889, 7
      %v1891 = vsub.s32 2, %v1890
      %v1892 = vrot.slane %v1752, %v1891
      %v1893 = vmul.f32 %v1769, %v1892
      %v1894 = vmul.f32 %v1770, %v1892
      %v1895 = vmul.f32 %v1783, %v1892
      %v1896 = vmul.f32 %v1804, %v1892
      %v1897 = vmul.f32 %v1825, %v1892
      %v1898 = vmul.f32 %v1846, %v1892
      %v1899 = vmul.f32 %v1867, %v1892
      %v1900 = vmul.f32 %v1888, %v1892
      %v1901 = vadd.f32 %v1880, %v1893
      %v1902 = vadd.f32 %v1881, %v1894
      %v1903 = vadd.f32 %v1882, %v1895
      %v1904 = vadd.f32 %v1883, %v1896
      %v1905 = vadd.f32 %v1884, %v1897
      %v1906 = vadd.f32 %v1885, %v1898
      %v1907 = vadd.f32 %v1886, %v1899
      %v1908 = vadd.f32 %v1887, %v1900
      %v1909 = vsel %vm1067, 1, 0
      %v1910 = vsel %vm1068, 1, 0
      %v1911 = vsel %vm1069, 1, 0
      %v1912 = vsel %vm1070, 1, 0
      %v1913 = vsel %vm1071, 1, 0
      %v1914 = vsel %vm1072, 1, 0
      %v1915 = vsel %vm1073, 1, 0
      %v1916 = vsel %vm1074, 1, 0
      %vm1917 = vcmp.eq.s32.totalorder %v1909, 1
      %vm1918 = vcmp.eq.s32.totalorder %v1910, 1
      %vm1919 = vcmp.eq.s32.totalorder %v1911, 1
      %vm1920 = vcmp.eq.s32.totalorder %v1912, 1
      %vm1921 = vcmp.eq.s32.totalorder %v1913, 1
      %vm1922 = vcmp.eq.s32.totalorder %v1914, 1
      %vm1923 = vcmp.eq.s32.totalorder %v1915, 1
      %vm1924 = vcmp.eq.s32.totalorder %v1916, 1
      %v1925 = vsel %vm1917, %v1901, 0.0
      %v1926 = vsel %vm1918, %v1902, 0.0
      %v1927 = vsel %vm1919, %v1903, 0.0
      %v1928 = vsel %vm1920, %v1904, 0.0
      %v1929 = vsel %vm1921, %v1905, 0.0
      %v1930 = vsel %vm1922, %v1906, 0.0
      %v1931 = vsel %vm1923, %v1907, 0.0
      %v1932 = vsel %vm1924, %v1908, 0.0
      %v1933 = vld [vmem:[#allocation2 + $0x6] sm:$0xff]
      %v1934 = vld [vmem:[#allocation2 + $0xe] sm:$0xff]
      %v1935 = vld [vmem:[#allocation2 + $0x16] sm:$0xff]
      %v1936 = vld [vmem:[#allocation2 + $0x1e] sm:$0xff]
      %v1937 = vld [vmem:[#allocation2 + $0x26] sm:$0xff]
      %v1938 = vld [vmem:[#allocation2 + $0x2e] sm:$0xff]
      %v1939 = vld [vmem:[#allocation2 + $0x36] sm:$0xff]
      %v1940 = vld [vmem:[#allocation2 + $0x3e] sm:$0xff]
      %v1941 = vlaneseq
      %v1942 = vshrl.u32 %v1941, 7
      %v1943 = vsub.s32 1, %v1942
      %v1944 = vrot.slane %v1747, %v1943
      %v1945 = vmul.f32 %v1933, %v1944
      %v1946 = vmul.f32 %v1934, %v1944
      %v1947 = vmul.f32 %v1935, %v1944
      %v1948 = vmul.f32 %v1936, %v1944
      %v1949 = vmul.f32 %v1937, %v1944
      %v1950 = vmul.f32 %v1938, %v1944
      %v1951 = vmul.f32 %v1939, %v1944
      %v1952 = vmul.f32 %v1940, %v1944
      %v1953 = vld [vmem:[#allocation2 + $0x46] sm:$0xff]
      %v1954 = vlaneseq
      %v1955 = vshrl.u32 %v1954, 7
      %v1956 = vsub.s32 0, %v1955
      %v1957 = vrot.slane %v1748, %v1956
      %v1958 = vmul.f32 %v1934, %v1957
      %v1959 = vmul.f32 %v1935, %v1957
      %v1960 = vmul.f32 %v1936, %v1957
      %v1961 = vmul.f32 %v1937, %v1957
      %v1962 = vmul.f32 %v1938, %v1957
      %v1963 = vmul.f32 %v1939, %v1957
      %v1964 = vmul.f32 %v1940, %v1957
      %v1965 = vmul.f32 %v1953, %v1957
      %v1966 = vadd.f32 %v1945, %v1958
      %v1967 = vadd.f32 %v1946, %v1959
      %v1968 = vadd.f32 %v1947, %v1960
      %v1969 = vadd.f32 %v1948, %v1961
      %v1970 = vadd.f32 %v1949, %v1962
      %v1971 = vadd.f32 %v1950, %v1963
      %v1972 = vadd.f32 %v1951, %v1964
      %v1973 = vadd.f32 %v1952, %v1965
      %v1974 = vld [vmem:[#allocation2 + $0x4e] sm:$0xff]
      %v1975 = vlaneseq
      %v1976 = vshrl.u32 %v1975, 7
      %v1977 = vsub.s32 7, %v1976
      %v1978 = vrot.slane %v1748, %v1977
      %v1979 = vmul.f32 %v1935, %v1978
      %v1980 = vmul.f32 %v1936, %v1978
      %v1981 = vmul.f32 %v1937, %v1978
      %v1982 = vmul.f32 %v1938, %v1978
      %v1983 = vmul.f32 %v1939, %v1978
      %v1984 = vmul.f32 %v1940, %v1978
      %v1985 = vmul.f32 %v1953, %v1978
      %v1986 = vmul.f32 %v1974, %v1978
      %v1987 = vadd.f32 %v1966, %v1979
      %v1988 = vadd.f32 %v1967, %v1980
      %v1989 = vadd.f32 %v1968, %v1981
      %v1990 = vadd.f32 %v1969, %v1982
      %v1991 = vadd.f32 %v1970, %v1983
      %v1992 = vadd.f32 %v1971, %v1984
      %v1993 = vadd.f32 %v1972, %v1985
      %v1994 = vadd.f32 %v1973, %v1986
      %v1995 = vld [vmem:[#allocation2 + $0x56] sm:$0xff]
      %v1996 = vlaneseq
      %v1997 = vshrl.u32 %v1996, 7
      %v1998 = vsub.s32 6, %v1997
      %v1999 = vrot.slane %v1749, %v1998
      %v2000 = vmul.f32 %v1936, %v1999
      %v2001 = vmul.f32 %v1937, %v1999
      %v2002 = vmul.f32 %v1938, %v1999
      %v2003 = vmul.f32 %v1939, %v1999
      %v2004 = vmul.f32 %v1940, %v1999
      %v2005 = vmul.f32 %v1953, %v1999
      %v2006 = vmul.f32 %v1974, %v1999
      %v2007 = vmul.f32 %v1995, %v1999
      %v2008 = vadd.f32 %v1987, %v2000
      %v2009 = vadd.f32 %v1988, %v2001
      %v2010 = vadd.f32 %v1989, %v2002
      %v2011 = vadd.f32 %v1990, %v2003
      %v2012 = vadd.f32 %v1991, %v2004
      %v2013 = vadd.f32 %v1992, %v2005
      %v2014 = vadd.f32 %v1993, %v2006
      %v2015 = vadd.f32 %v1994, %v2007
      %v2016 = vld [vmem:[#allocation2 + $0x5e] sm:$0xff]
      %v2017 = vlaneseq
      %v2018 = vshrl.u32 %v2017, 7
      %v2019 = vsub.s32 5, %v2018
      %v2020 = vrot.slane %v1750, %v2019
      %v2021 = vmul.f32 %v1937, %v2020
      %v2022 = vmul.f32 %v1938, %v2020
      %v2023 = vmul.f32 %v1939, %v2020
      %v2024 = vmul.f32 %v1940, %v2020
      %v2025 = vmul.f32 %v1953, %v2020
      %v2026 = vmul.f32 %v1974, %v2020
      %v2027 = vmul.f32 %v1995, %v2020
      %v2028 = vmul.f32 %v2016, %v2020
      %v2029 = vadd.f32 %v2008, %v2021
      %v2030 = vadd.f32 %v2009, %v2022
      %v2031 = vadd.f32 %v2010, %v2023
      %v2032 = vadd.f32 %v2011, %v2024
      %v2033 = vadd.f32 %v2012, %v2025
      %v2034 = vadd.f32 %v2013, %v2026
      %v2035 = vadd.f32 %v2014, %v2027
      %v2036 = vadd.f32 %v2015, %v2028
      %v2037 = vld [vmem:[#allocation2 + $0x66] sm:$0xff]
      %v2038 = vlaneseq
      %v2039 = vshrl.u32 %v2038, 7
      %v2040 = vsub.s32 4, %v2039
      %v2041 = vrot.slane %v1751, %v2040
      %v2042 = vmul.f32 %v1938, %v2041
      %v2043 = vmul.f32 %v1939, %v2041
      %v2044 = vmul.f32 %v1940, %v2041
      %v2045 = vmul.f32 %v1953, %v2041
      %v2046 = vmul.f32 %v1974, %v2041
      %v2047 = vmul.f32 %v1995, %v2041
      %v2048 = vmul.f32 %v2016, %v2041
      %v2049 = vmul.f32 %v2037, %v2041
      %v2050 = vadd.f32 %v2029, %v2042
      %v2051 = vadd.f32 %v2030, %v2043
      %v2052 = vadd.f32 %v2031, %v2044
      %v2053 = vadd.f32 %v2032, %v2045
      %v2054 = vadd.f32 %v2033, %v2046
      %v2055 = vadd.f32 %v2034, %v2047
      %v2056 = vadd.f32 %v2035, %v2048
      %v2057 = vadd.f32 %v2036, %v2049
      %v2058 = vld [vmem:[#allocation2 + $0x6e] sm:$0xff]
      %v2059 = vlaneseq
      %v2060 = vshrl.u32 %v2059, 7
      %v2061 = vsub.s32 3, %v2060
      %v2062 = vrot.slane %v1752, %v2061
      %v2063 = vmul.f32 %v1939, %v2062
      %v2064 = vmul.f32 %v1940, %v2062
      %v2065 = vmul.f32 %v1953, %v2062
      %v2066 = vmul.f32 %v1974, %v2062
      %v2067 = vmul.f32 %v1995, %v2062
      %v2068 = vmul.f32 %v2016, %v2062
      %v2069 = vmul.f32 %v2037, %v2062
      %v2070 = vmul.f32 %v2058, %v2062
      %v2071 = vadd.f32 %v2050, %v2063
      %v2072 = vadd.f32 %v2051, %v2064
      %v2073 = vadd.f32 %v2052, %v2065
      %v2074 = vadd.f32 %v2053, %v2066
      %v2075 = vadd.f32 %v2054, %v2067
      %v2076 = vadd.f32 %v2055, %v2068
      %v2077 = vadd.f32 %v2056, %v2069
      %v2078 = vadd.f32 %v2057, %v2070
      %v2079 = vsel %vm1099, 1, 0
      %v2080 = vsel %vm1100, 1, 0
      %v2081 = vsel %vm1101, 1, 0
      %v2082 = vsel %vm1102, 1, 0
      %v2083 = vsel %vm1103, 1, 0
      %v2084 = vsel %vm1104, 1, 0
      %v2085 = vsel %vm1105, 1, 0
      %v2086 = vsel %vm1106, 1, 0
      %vm2087 = vcmp.eq.s32.totalorder %v2079, 1
      %vm2088 = vcmp.eq.s32.totalorder %v2080, 1
      %vm2089 = vcmp.eq.s32.totalorder %v2081, 1
      %vm2090 = vcmp.eq.s32.totalorder %v2082, 1
      %vm2091 = vcmp.eq.s32.totalorder %v2083, 1
      %vm2092 = vcmp.eq.s32.totalorder %v2084, 1
      %vm2093 = vcmp.eq.s32.totalorder %v2085, 1
      %vm2094 = vcmp.eq.s32.totalorder %v2086, 1
      %v2095 = vsel %vm2087, %v2071, 0.0
      %v2096 = vsel %vm2088, %v2072, 0.0
      %v2097 = vsel %vm2089, %v2073, 0.0
      %v2098 = vsel %vm2090, %v2074, 0.0
      %v2099 = vsel %vm2091, %v2075, 0.0
      %v2100 = vsel %vm2092, %v2076, 0.0
      %v2101 = vsel %vm2093, %v2077, 0.0
      %v2102 = vsel %vm2094, %v2078, 0.0
      %v2103 = vadd.f32 %v1925, %v2095
      %v2104 = vadd.f32 %v1926, %v2096
      %v2105 = vadd.f32 %v1927, %v2097
      %v2106 = vadd.f32 %v1928, %v2098
      %v2107 = vadd.f32 %v1929, %v2099
      %v2108 = vadd.f32 %v1930, %v2100
      %v2109 = vadd.f32 %v1931, %v2101
      %v2110 = vadd.f32 %v1932, %v2102
      %v2111 = vld [vmem:[#allocation2 + $0x7] sm:$0xff]
      %v2112 = vld [vmem:[#allocation2 + $0xf] sm:$0xff]
      %v2113 = vld [vmem:[#allocation2 + $0x17] sm:$0xff]
      %v2114 = vld [vmem:[#allocation2 + $0x1f] sm:$0xff]
      %v2115 = vld [vmem:[#allocation2 + $0x27] sm:$0xff]
      %v2116 = vld [vmem:[#allocation2 + $0x2f] sm:$0xff]
      %v2117 = vld [vmem:[#allocation2 + $0x37] sm:$0xff]
      %v2118 = vld [vmem:[#allocation2 + $0x3f] sm:$0xff]
      %v2119 = vlaneseq
      %v2120 = vshrl.u32 %v2119, 7
      %v2121 = vsub.s32 2, %v2120
      %v2122 = vrot.slane %v1747, %v2121
      %v2123 = vmul.f32 %v2111, %v2122
      %v2124 = vmul.f32 %v2112, %v2122
      %v2125 = vmul.f32 %v2113, %v2122
      %v2126 = vmul.f32 %v2114, %v2122
      %v2127 = vmul.f32 %v2115, %v2122
      %v2128 = vmul.f32 %v2116, %v2122
      %v2129 = vmul.f32 %v2117, %v2122
      %v2130 = vmul.f32 %v2118, %v2122
      %v2131 = vld [vmem:[#allocation2 + $0x47] sm:$0xff]
      %v2132 = vlaneseq
      %v2133 = vshrl.u32 %v2132, 7
      %v2134 = vsub.s32 1, %v2133
      %v2135 = vrot.slane %v1748, %v2134
      %v2136 = vmul.f32 %v2112, %v2135
      %v2137 = vmul.f32 %v2113, %v2135
      %v2138 = vmul.f32 %v2114, %v2135
      %v2139 = vmul.f32 %v2115, %v2135
      %v2140 = vmul.f32 %v2116, %v2135
      %v2141 = vmul.f32 %v2117, %v2135
      %v2142 = vmul.f32 %v2118, %v2135
      %v2143 = vmul.f32 %v2131, %v2135
      %v2144 = vadd.f32 %v2123, %v2136
      %v2145 = vadd.f32 %v2124, %v2137
      %v2146 = vadd.f32 %v2125, %v2138
      %v2147 = vadd.f32 %v2126, %v2139
      %v2148 = vadd.f32 %v2127, %v2140
      %v2149 = vadd.f32 %v2128, %v2141
      %v2150 = vadd.f32 %v2129, %v2142
      %v2151 = vadd.f32 %v2130, %v2143
      %v2152 = vld [vmem:[#allocation2 + $0x4f] sm:$0xff]
      %v2153 = vlaneseq
      %v2154 = vshrl.u32 %v2153, 7
      %v2155 = vsub.s32 0, %v2154
      %v2156 = vrot.slane %v1749, %v2155
      %v2157 = vmul.f32 %v2113, %v2156
      %v2158 = vmul.f32 %v2114, %v2156
      %v2159 = vmul.f32 %v2115, %v2156
      %v2160 = vmul.f32 %v2116, %v2156
      %v2161 = vmul.f32 %v2117, %v2156
      %v2162 = vmul.f32 %v2118, %v2156
      %v2163 = vmul.f32 %v2131, %v2156
      %v2164 = vmul.f32 %v2152, %v2156
      %v2165 = vadd.f32 %v2144, %v2157
      %v2166 = vadd.f32 %v2145, %v2158
      %v2167 = vadd.f32 %v2146, %v2159
      %v2168 = vadd.f32 %v2147, %v2160
      %v2169 = vadd.f32 %v2148, %v2161
      %v2170 = vadd.f32 %v2149, %v2162
      %v2171 = vadd.f32 %v2150, %v2163
      %v2172 = vadd.f32 %v2151, %v2164
      %v2173 = vld [vmem:[#allocation2 + $0x57] sm:$0xff]
      %v2174 = vlaneseq
      %v2175 = vshrl.u32 %v2174, 7
      %v2176 = vsub.s32 7, %v2175
      %v2177 = vrot.slane %v1749, %v2176
      %v2178 = vmul.f32 %v2114, %v2177
      %v2179 = vmul.f32 %v2115, %v2177
      %v2180 = vmul.f32 %v2116, %v2177
      %v2181 = vmul.f32 %v2117, %v2177
      %v2182 = vmul.f32 %v2118, %v2177
      %v2183 = vmul.f32 %v2131, %v2177
      %v2184 = vmul.f32 %v2152, %v2177
      %v2185 = vmul.f32 %v2173, %v2177
      %v2186 = vadd.f32 %v2165, %v2178
      %v2187 = vadd.f32 %v2166, %v2179
      %v2188 = vadd.f32 %v2167, %v2180
      %v2189 = vadd.f32 %v2168, %v2181
      %v2190 = vadd.f32 %v2169, %v2182
      %v2191 = vadd.f32 %v2170, %v2183
      %v2192 = vadd.f32 %v2171, %v2184
      %v2193 = vadd.f32 %v2172, %v2185
      %v2194 = vld [vmem:[#allocation2 + $0x5f] sm:$0xff]
      %v2195 = vlaneseq
      %v2196 = vshrl.u32 %v2195, 7
      %v2197 = vsub.s32 6, %v2196
      %v2198 = vrot.slane %v1750, %v2197
      %v2199 = vmul.f32 %v2115, %v2198
      %v2200 = vmul.f32 %v2116, %v2198
      %v2201 = vmul.f32 %v2117, %v2198
      %v2202 = vmul.f32 %v2118, %v2198
      %v2203 = vmul.f32 %v2131, %v2198
      %v2204 = vmul.f32 %v2152, %v2198
      %v2205 = vmul.f32 %v2173, %v2198
      %v2206 = vmul.f32 %v2194, %v2198
      %v2207 = vadd.f32 %v2186, %v2199
      %v2208 = vadd.f32 %v2187, %v2200
      %v2209 = vadd.f32 %v2188, %v2201
      %v2210 = vadd.f32 %v2189, %v2202
      %v2211 = vadd.f32 %v2190, %v2203
      %v2212 = vadd.f32 %v2191, %v2204
      %v2213 = vadd.f32 %v2192, %v2205
      %v2214 = vadd.f32 %v2193, %v2206
      %v2215 = vld [vmem:[#allocation2 + $0x67] sm:$0xff]
      %v2216 = vlaneseq
      %v2217 = vshrl.u32 %v2216, 7
      %v2218 = vsub.s32 5, %v2217
      %v2219 = vrot.slane %v1751, %v2218
      %v2220 = vmul.f32 %v2116, %v2219
      %v2221 = vmul.f32 %v2117, %v2219
      %v2222 = vmul.f32 %v2118, %v2219
      %v2223 = vmul.f32 %v2131, %v2219
      %v2224 = vmul.f32 %v2152, %v2219
      %v2225 = vmul.f32 %v2173, %v2219
      %v2226 = vmul.f32 %v2194, %v2219
      %v2227 = vmul.f32 %v2215, %v2219
      %v2228 = vadd.f32 %v2207, %v2220
      %v2229 = vadd.f32 %v2208, %v2221
      %v2230 = vadd.f32 %v2209, %v2222
      %v2231 = vadd.f32 %v2210, %v2223
      %v2232 = vadd.f32 %v2211, %v2224
      %v2233 = vadd.f32 %v2212, %v2225
      %v2234 = vadd.f32 %v2213, %v2226
      %v2235 = vadd.f32 %v2214, %v2227
      %v2236 = vld [vmem:[#allocation2 + $0x6f] sm:$0xff]
      %v2237 = vlaneseq
      %v2238 = vshrl.u32 %v2237, 7
      %v2239 = vsub.s32 4, %v2238
      %v2240 = vrot.slane %v1752, %v2239
      %v2241 = vmul.f32 %v2117, %v2240
      %v2242 = vmul.f32 %v2118, %v2240
      %v2243 = vmul.f32 %v2131, %v2240
      %v2244 = vmul.f32 %v2152, %v2240
      %v2245 = vmul.f32 %v2173, %v2240
      %v2246 = vmul.f32 %v2194, %v2240
      %v2247 = vmul.f32 %v2215, %v2240
      %v2248 = vmul.f32 %v2236, %v2240
      %v2249 = vadd.f32 %v2228, %v2241
      %v2250 = vadd.f32 %v2229, %v2242
      %v2251 = vadd.f32 %v2230, %v2243
      %v2252 = vadd.f32 %v2231, %v2244
      %v2253 = vadd.f32 %v2232, %v2245
      %v2254 = vadd.f32 %v2233, %v2246
      %v2255 = vadd.f32 %v2234, %v2247
      %v2256 = vadd.f32 %v2235, %v2248
      %v2257 = vsel %vm1131, 1, 0
      %v2258 = vsel %vm1132, 1, 0
      %v2259 = vsel %vm1133, 1, 0
      %v2260 = vsel %vm1134, 1, 0
      %v2261 = vsel %vm1135, 1, 0
      %v2262 = vsel %vm1136, 1, 0
      %v2263 = vsel %vm1137, 1, 0
      %v2264 = vsel %vm1138, 1, 0
      %vm2265 = vcmp.eq.s32.totalorder %v2257, 1
      %vm2266 = vcmp.eq.s32.totalorder %v2258, 1
      %vm2267 = vcmp.eq.s32.totalorder %v2259, 1
      %vm2268 = vcmp.eq.s32.totalorder %v2260, 1
      %vm2269 = vcmp.eq.s32.totalorder %v2261, 1
      %vm2270 = vcmp.eq.s32.totalorder %v2262, 1
      %vm2271 = vcmp.eq.s32.totalorder %v2263, 1
      %vm2272 = vcmp.eq.s32.totalorder %v2264, 1
      %v2273 = vsel %vm2265, %v2249, 0.0
      %v2274 = vsel %vm2266, %v2250, 0.0
      %v2275 = vsel %vm2267, %v2251, 0.0
      %v2276 = vsel %vm2268, %v2252, 0.0
      %v2277 = vsel %vm2269, %v2253, 0.0
      %v2278 = vsel %vm2270, %v2254, 0.0
      %v2279 = vsel %vm2271, %v2255, 0.0
      %v2280 = vsel %vm2272, %v2256, 0.0
      %v2281 = vadd.f32 %v2103, %v2273
      %v2282 = vadd.f32 %v2104, %v2274
      %v2283 = vadd.f32 %v2105, %v2275
      %v2284 = vadd.f32 %v2106, %v2276
      %v2285 = vadd.f32 %v2107, %v2277
      %v2286 = vadd.f32 %v2108, %v2278
      %v2287 = vadd.f32 %v2109, %v2279
      %v2288 = vadd.f32 %v2110, %v2280
      %v2289 = vld [vmem:[#allocation2 + $0x8] sm:$0xff]
      %v2290 = vld [vmem:[#allocation2 + $0x10] sm:$0xff]
      %v2291 = vld [vmem:[#allocation2 + $0x18] sm:$0xff]
      %v2292 = vld [vmem:[#allocation2 + $0x20] sm:$0xff]
      %v2293 = vld [vmem:[#allocation2 + $0x28] sm:$0xff]
      %v2294 = vld [vmem:[#allocation2 + $0x30] sm:$0xff]
      %v2295 = vld [vmem:[#allocation2 + $0x38] sm:$0xff]
      %v2296 = vld [vmem:[#allocation2 + $0x40] sm:$0xff]
      %v2297 = vlaneseq
      %v2298 = vshrl.u32 %v2297, 7
      %v2299 = vsub.s32 3, %v2298
      %v2300 = vrot.slane %v1747, %v2299
      %v2301 = vmul.f32 %v2289, %v2300
      %v2302 = vmul.f32 %v2290, %v2300
      %v2303 = vmul.f32 %v2291, %v2300
      %v2304 = vmul.f32 %v2292, %v2300
      %v2305 = vmul.f32 %v2293, %v2300
      %v2306 = vmul.f32 %v2294, %v2300
      %v2307 = vmul.f32 %v2295, %v2300
      %v2308 = vmul.f32 %v2296, %v2300
      %v2309 = vld [vmem:[#allocation2 + $0x48] sm:$0xff]
      %v2310 = vlaneseq
      %v2311 = vshrl.u32 %v2310, 7
      %v2312 = vsub.s32 2, %v2311
      %v2313 = vrot.slane %v1748, %v2312
      %v2314 = vmul.f32 %v2290, %v2313
      %v2315 = vmul.f32 %v2291, %v2313
      %v2316 = vmul.f32 %v2292, %v2313
      %v2317 = vmul.f32 %v2293, %v2313
      %v2318 = vmul.f32 %v2294, %v2313
      %v2319 = vmul.f32 %v2295, %v2313
      %v2320 = vmul.f32 %v2296, %v2313
      %v2321 = vmul.f32 %v2309, %v2313
      %v2322 = vadd.f32 %v2301, %v2314
      %v2323 = vadd.f32 %v2302, %v2315
      %v2324 = vadd.f32 %v2303, %v2316
      %v2325 = vadd.f32 %v2304, %v2317
      %v2326 = vadd.f32 %v2305, %v2318
      %v2327 = vadd.f32 %v2306, %v2319
      %v2328 = vadd.f32 %v2307, %v2320
      %v2329 = vadd.f32 %v2308, %v2321
      %v2330 = vld [vmem:[#allocation2 + $0x50] sm:$0xff]
      %v2331 = vlaneseq
      %v2332 = vshrl.u32 %v2331, 7
      %v2333 = vsub.s32 1, %v2332
      %v2334 = vrot.slane %v1749, %v2333
      %v2335 = vmul.f32 %v2291, %v2334
      %v2336 = vmul.f32 %v2292, %v2334
      %v2337 = vmul.f32 %v2293, %v2334
      %v2338 = vmul.f32 %v2294, %v2334
      %v2339 = vmul.f32 %v2295, %v2334
      %v2340 = vmul.f32 %v2296, %v2334
      %v2341 = vmul.f32 %v2309, %v2334
      %v2342 = vmul.f32 %v2330, %v2334
      %v2343 = vadd.f32 %v2322, %v2335
      %v2344 = vadd.f32 %v2323, %v2336
      %v2345 = vadd.f32 %v2324, %v2337
      %v2346 = vadd.f32 %v2325, %v2338
      %v2347 = vadd.f32 %v2326, %v2339
      %v2348 = vadd.f32 %v2327, %v2340
      %v2349 = vadd.f32 %v2328, %v2341
      %v2350 = vadd.f32 %v2329, %v2342
      %v2351 = vld [vmem:[#allocation2 + $0x58] sm:$0xff]
      %v2352 = vlaneseq
      %v2353 = vshrl.u32 %v2352, 7
      %v2354 = vsub.s32 0, %v2353
      %v2355 = vrot.slane %v1750, %v2354
      %v2356 = vmul.f32 %v2292, %v2355
      %v2357 = vmul.f32 %v2293, %v2355
      %v2358 = vmul.f32 %v2294, %v2355
      %v2359 = vmul.f32 %v2295, %v2355
      %v2360 = vmul.f32 %v2296, %v2355
      %v2361 = vmul.f32 %v2309, %v2355
      %v2362 = vmul.f32 %v2330, %v2355
      %v2363 = vmul.f32 %v2351, %v2355
      %v2364 = vadd.f32 %v2343, %v2356
      %v2365 = vadd.f32 %v2344, %v2357
      %v2366 = vadd.f32 %v2345, %v2358
      %v2367 = vadd.f32 %v2346, %v2359
      %v2368 = vadd.f32 %v2347, %v2360
      %v2369 = vadd.f32 %v2348, %v2361
      %v2370 = vadd.f32 %v2349, %v2362
      %v2371 = vadd.f32 %v2350, %v2363
      %v2372 = vld [vmem:[#allocation2 + $0x60] sm:$0xff]
      %v2373 = vlaneseq
      %v2374 = vshrl.u32 %v2373, 7
      %v2375 = vsub.s32 7, %v2374
      %v2376 = vrot.slane %v1750, %v2375
      %v2377 = vmul.f32 %v2293, %v2376
      %v2378 = vmul.f32 %v2294, %v2376
      %v2379 = vmul.f32 %v2295, %v2376
      %v2380 = vmul.f32 %v2296, %v2376
      %v2381 = vmul.f32 %v2309, %v2376
      %v2382 = vmul.f32 %v2330, %v2376
      %v2383 = vmul.f32 %v2351, %v2376
      %v2384 = vmul.f32 %v2372, %v2376
      %v2385 = vadd.f32 %v2364, %v2377
      %v2386 = vadd.f32 %v2365, %v2378
      %v2387 = vadd.f32 %v2366, %v2379
      %v2388 = vadd.f32 %v2367, %v2380
      %v2389 = vadd.f32 %v2368, %v2381
      %v2390 = vadd.f32 %v2369, %v2382
      %v2391 = vadd.f32 %v2370, %v2383
      %v2392 = vadd.f32 %v2371, %v2384
      %v2393 = vld [vmem:[#allocation2 + $0x68] sm:$0xff]
      %v2394 = vlaneseq
      %v2395 = vshrl.u32 %v2394, 7
      %v2396 = vsub.s32 6, %v2395
      %v2397 = vrot.slane %v1751, %v2396
      %v2398 = vmul.f32 %v2294, %v2397
      %v2399 = vmul.f32 %v2295, %v2397
      %v2400 = vmul.f32 %v2296, %v2397
      %v2401 = vmul.f32 %v2309, %v2397
      %v2402 = vmul.f32 %v2330, %v2397
      %v2403 = vmul.f32 %v2351, %v2397
      %v2404 = vmul.f32 %v2372, %v2397
      %v2405 = vmul.f32 %v2393, %v2397
      %v2406 = vadd.f32 %v2385, %v2398
      %v2407 = vadd.f32 %v2386, %v2399
      %v2408 = vadd.f32 %v2387, %v2400
      %v2409 = vadd.f32 %v2388, %v2401
      %v2410 = vadd.f32 %v2389, %v2402
      %v2411 = vadd.f32 %v2390, %v2403
      %v2412 = vadd.f32 %v2391, %v2404
      %v2413 = vadd.f32 %v2392, %v2405
      %v2414 = vld [vmem:[#allocation2 + $0x70] sm:$0xff]
      %v2415 = vlaneseq
      %v2416 = vshrl.u32 %v2415, 7
      %v2417 = vsub.s32 5, %v2416
      %v2418 = vrot.slane %v1752, %v2417
      %v2419 = vmul.f32 %v2295, %v2418
      %v2420 = vmul.f32 %v2296, %v2418
      %v2421 = vmul.f32 %v2309, %v2418
      %v2422 = vmul.f32 %v2330, %v2418
      %v2423 = vmul.f32 %v2351, %v2418
      %v2424 = vmul.f32 %v2372, %v2418
      %v2425 = vmul.f32 %v2393, %v2418
      %v2426 = vmul.f32 %v2414, %v2418
      %v2427 = vadd.f32 %v2406, %v2419
      %v2428 = vadd.f32 %v2407, %v2420
      %v2429 = vadd.f32 %v2408, %v2421
      %v2430 = vadd.f32 %v2409, %v2422
      %v2431 = vadd.f32 %v2410, %v2423
      %v2432 = vadd.f32 %v2411, %v2424
      %v2433 = vadd.f32 %v2412, %v2425
      %v2434 = vadd.f32 %v2413, %v2426
      %v2435 = vadd.f32 %v2281, %v2427
      %v2436 = vadd.f32 %v2282, %v2428
      %v2437 = vadd.f32 %v2283, %v2429
      %v2438 = vadd.f32 %v2284, %v2430
      %v2439 = vadd.f32 %v2285, %v2431
      %v2440 = vadd.f32 %v2286, %v2432
      %v2441 = vadd.f32 %v2287, %v2433
      %v2442 = vadd.f32 %v2288, %v2434
      %v2443 = vld [vmem:[#allocation2 + $0x9] sm:$0xff]
      %v2444 = vld [vmem:[#allocation2 + $0x11] sm:$0xff]
      %v2445 = vld [vmem:[#allocation2 + $0x19] sm:$0xff]
      %v2446 = vld [vmem:[#allocation2 + $0x21] sm:$0xff]
      %v2447 = vld [vmem:[#allocation2 + $0x29] sm:$0xff]
      %v2448 = vld [vmem:[#allocation2 + $0x31] sm:$0xff]
      %v2449 = vld [vmem:[#allocation2 + $0x39] sm:$0xff]
      %v2450 = vld [vmem:[#allocation2 + $0x41] sm:$0xff]
      %v2451 = vlaneseq
      %v2452 = vshrl.u32 %v2451, 7
      %v2453 = vsub.s32 4, %v2452
      %v2454 = vrot.slane %v1747, %v2453
      %v2455 = vmul.f32 %v2443, %v2454
      %v2456 = vmul.f32 %v2444, %v2454
      %v2457 = vmul.f32 %v2445, %v2454
      %v2458 = vmul.f32 %v2446, %v2454
      %v2459 = vmul.f32 %v2447, %v2454
      %v2460 = vmul.f32 %v2448, %v2454
      %v2461 = vmul.f32 %v2449, %v2454
      %v2462 = vmul.f32 %v2450, %v2454
      %v2463 = vld [vmem:[#allocation2 + $0x49] sm:$0xff]
      %v2464 = vlaneseq
      %v2465 = vshrl.u32 %v2464, 7
      %v2466 = vsub.s32 3, %v2465
      %v2467 = vrot.slane %v1748, %v2466
      %v2468 = vmul.f32 %v2444, %v2467
      %v2469 = vmul.f32 %v2445, %v2467
      %v2470 = vmul.f32 %v2446, %v2467
      %v2471 = vmul.f32 %v2447, %v2467
      %v2472 = vmul.f32 %v2448, %v2467
      %v2473 = vmul.f32 %v2449, %v2467
      %v2474 = vmul.f32 %v2450, %v2467
      %v2475 = vmul.f32 %v2463, %v2467
      %v2476 = vadd.f32 %v2455, %v2468
      %v2477 = vadd.f32 %v2456, %v2469
      %v2478 = vadd.f32 %v2457, %v2470
      %v2479 = vadd.f32 %v2458, %v2471
      %v2480 = vadd.f32 %v2459, %v2472
      %v2481 = vadd.f32 %v2460, %v2473
      %v2482 = vadd.f32 %v2461, %v2474
      %v2483 = vadd.f32 %v2462, %v2475
      %v2484 = vld [vmem:[#allocation2 + $0x51] sm:$0xff]
      %v2485 = vlaneseq
      %v2486 = vshrl.u32 %v2485, 7
      %v2487 = vsub.s32 2, %v2486
      %v2488 = vrot.slane %v1749, %v2487
      %v2489 = vmul.f32 %v2445, %v2488
      %v2490 = vmul.f32 %v2446, %v2488
      %v2491 = vmul.f32 %v2447, %v2488
      %v2492 = vmul.f32 %v2448, %v2488
      %v2493 = vmul.f32 %v2449, %v2488
      %v2494 = vmul.f32 %v2450, %v2488
      %v2495 = vmul.f32 %v2463, %v2488
      %v2496 = vmul.f32 %v2484, %v2488
      %v2497 = vadd.f32 %v2476, %v2489
      %v2498 = vadd.f32 %v2477, %v2490
      %v2499 = vadd.f32 %v2478, %v2491
      %v2500 = vadd.f32 %v2479, %v2492
      %v2501 = vadd.f32 %v2480, %v2493
      %v2502 = vadd.f32 %v2481, %v2494
      %v2503 = vadd.f32 %v2482, %v2495
      %v2504 = vadd.f32 %v2483, %v2496
      %v2505 = vld [vmem:[#allocation2 + $0x59] sm:$0xff]
      %v2506 = vlaneseq
      %v2507 = vshrl.u32 %v2506, 7
      %v2508 = vsub.s32 1, %v2507
      %v2509 = vrot.slane %v1750, %v2508
      %v2510 = vmul.f32 %v2446, %v2509
      %v2511 = vmul.f32 %v2447, %v2509
      %v2512 = vmul.f32 %v2448, %v2509
      %v2513 = vmul.f32 %v2449, %v2509
      %v2514 = vmul.f32 %v2450, %v2509
      %v2515 = vmul.f32 %v2463, %v2509
      %v2516 = vmul.f32 %v2484, %v2509
      %v2517 = vmul.f32 %v2505, %v2509
      %v2518 = vadd.f32 %v2497, %v2510
      %v2519 = vadd.f32 %v2498, %v2511
      %v2520 = vadd.f32 %v2499, %v2512
      %v2521 = vadd.f32 %v2500, %v2513
      %v2522 = vadd.f32 %v2501, %v2514
      %v2523 = vadd.f32 %v2502, %v2515
      %v2524 = vadd.f32 %v2503, %v2516
      %v2525 = vadd.f32 %v2504, %v2517
      %v2526 = vld [vmem:[#allocation2 + $0x61] sm:$0xff]
      %v2527 = vlaneseq
      %v2528 = vshrl.u32 %v2527, 7
      %v2529 = vsub.s32 0, %v2528
      %v2530 = vrot.slane %v1751, %v2529
      %v2531 = vmul.f32 %v2447, %v2530
      %v2532 = vmul.f32 %v2448, %v2530
      %v2533 = vmul.f32 %v2449, %v2530
      %v2534 = vmul.f32 %v2450, %v2530
      %v2535 = vmul.f32 %v2463, %v2530
      %v2536 = vmul.f32 %v2484, %v2530
      %v2537 = vmul.f32 %v2505, %v2530
      %v2538 = vmul.f32 %v2526, %v2530
      %v2539 = vadd.f32 %v2518, %v2531
      %v2540 = vadd.f32 %v2519, %v2532
      %v2541 = vadd.f32 %v2520, %v2533
      %v2542 = vadd.f32 %v2521, %v2534
      %v2543 = vadd.f32 %v2522, %v2535
      %v2544 = vadd.f32 %v2523, %v2536
      %v2545 = vadd.f32 %v2524, %v2537
      %v2546 = vadd.f32 %v2525, %v2538
      %v2547 = vld [vmem:[#allocation2 + $0x69] sm:$0xff]
      %v2548 = vlaneseq
      %v2549 = vshrl.u32 %v2548, 7
      %v2550 = vsub.s32 7, %v2549
      %v2551 = vrot.slane %v1751, %v2550
      %v2552 = vmul.f32 %v2448, %v2551
      %v2553 = vmul.f32 %v2449, %v2551
      %v2554 = vmul.f32 %v2450, %v2551
      %v2555 = vmul.f32 %v2463, %v2551
      %v2556 = vmul.f32 %v2484, %v2551
      %v2557 = vmul.f32 %v2505, %v2551
      %v2558 = vmul.f32 %v2526, %v2551
      %v2559 = vmul.f32 %v2547, %v2551
      %v2560 = vadd.f32 %v2539, %v2552
      %v2561 = vadd.f32 %v2540, %v2553
      %v2562 = vadd.f32 %v2541, %v2554
      %v2563 = vadd.f32 %v2542, %v2555
      %v2564 = vadd.f32 %v2543, %v2556
      %v2565 = vadd.f32 %v2544, %v2557
      %v2566 = vadd.f32 %v2545, %v2558
      %v2567 = vadd.f32 %v2546, %v2559
      %v2568 = vld [vmem:[#allocation2 + $0x71] sm:$0xff]
      %v2569 = vlaneseq
      %v2570 = vshrl.u32 %v2569, 7
      %v2571 = vsub.s32 6, %v2570
      %v2572 = vrot.slane %v1752, %v2571
      %v2573 = vmul.f32 %v2449, %v2572
      %v2574 = vmul.f32 %v2450, %v2572
      %v2575 = vmul.f32 %v2463, %v2572
      %v2576 = vmul.f32 %v2484, %v2572
      %v2577 = vmul.f32 %v2505, %v2572
      %v2578 = vmul.f32 %v2526, %v2572
      %v2579 = vmul.f32 %v2547, %v2572
      %v2580 = vmul.f32 %v2568, %v2572
      %v2581 = vadd.f32 %v2560, %v2573
      %v2582 = vadd.f32 %v2561, %v2574
      %v2583 = vadd.f32 %v2562, %v2575
      %v2584 = vadd.f32 %v2563, %v2576
      %v2585 = vadd.f32 %v2564, %v2577
      %v2586 = vadd.f32 %v2565, %v2578
      %v2587 = vadd.f32 %v2566, %v2579
      %v2588 = vadd.f32 %v2567, %v2580
      %v2589 = vsel %vm1163, 1, 0
      %v2590 = vsel %vm1164, 1, 0
      %v2591 = vsel %vm1165, 1, 0
      %v2592 = vsel %vm1166, 1, 0
      %v2593 = vsel %vm1167, 1, 0
      %v2594 = vsel %vm1168, 1, 0
      %v2595 = vsel %vm1169, 1, 0
      %v2596 = vsel %vm1170, 1, 0
      %vm2597 = vcmp.eq.s32.totalorder %v2589, 1
      %vm2598 = vcmp.eq.s32.totalorder %v2590, 1
      %vm2599 = vcmp.eq.s32.totalorder %v2591, 1
      %vm2600 = vcmp.eq.s32.totalorder %v2592, 1
      %vm2601 = vcmp.eq.s32.totalorder %v2593, 1
      %vm2602 = vcmp.eq.s32.totalorder %v2594, 1
      %vm2603 = vcmp.eq.s32.totalorder %v2595, 1
      %vm2604 = vcmp.eq.s32.totalorder %v2596, 1
      %v2605 = vsel %vm2597, %v2581, 0.0
      %v2606 = vsel %vm2598, %v2582, 0.0
      %v2607 = vsel %vm2599, %v2583, 0.0
      %v2608 = vsel %vm2600, %v2584, 0.0
      %v2609 = vsel %vm2601, %v2585, 0.0
      %v2610 = vsel %vm2602, %v2586, 0.0
      %v2611 = vsel %vm2603, %v2587, 0.0
      %v2612 = vsel %vm2604, %v2588, 0.0
      %v2613 = vadd.f32 %v2435, %v2605
      %v2614 = vadd.f32 %v2436, %v2606
      %v2615 = vadd.f32 %v2437, %v2607
      %v2616 = vadd.f32 %v2438, %v2608
      %v2617 = vadd.f32 %v2439, %v2609
      %v2618 = vadd.f32 %v2440, %v2610
      %v2619 = vadd.f32 %v2441, %v2611
      %v2620 = vadd.f32 %v2442, %v2612
      %v2621 = vld [vmem:[#allocation2 + $0xa] sm:$0xff]
      %v2622 = vld [vmem:[#allocation2 + $0x12] sm:$0xff]
      %v2623 = vld [vmem:[#allocation2 + $0x1a] sm:$0xff]
      %v2624 = vld [vmem:[#allocation2 + $0x22] sm:$0xff]
      %v2625 = vld [vmem:[#allocation2 + $0x2a] sm:$0xff]
      %v2626 = vld [vmem:[#allocation2 + $0x32] sm:$0xff]
      %v2627 = vld [vmem:[#allocation2 + $0x3a] sm:$0xff]
      %v2628 = vld [vmem:[#allocation2 + $0x42] sm:$0xff]
      %v2629 = vlaneseq
      %v2630 = vshrl.u32 %v2629, 7
      %v2631 = vsub.s32 5, %v2630
      %v2632 = vrot.slane %v1747, %v2631
      %v2633 = vmul.f32 %v2621, %v2632
      %v2634 = vmul.f32 %v2622, %v2632
      %v2635 = vmul.f32 %v2623, %v2632
      %v2636 = vmul.f32 %v2624, %v2632
      %v2637 = vmul.f32 %v2625, %v2632
      %v2638 = vmul.f32 %v2626, %v2632
      %v2639 = vmul.f32 %v2627, %v2632
      %v2640 = vmul.f32 %v2628, %v2632
      %v2641 = vld [vmem:[#allocation2 + $0x4a] sm:$0xff]
      %v2642 = vlaneseq
      %v2643 = vshrl.u32 %v2642, 7
      %v2644 = vsub.s32 4, %v2643
      %v2645 = vrot.slane %v1748, %v2644
      %v2646 = vmul.f32 %v2622, %v2645
      %v2647 = vmul.f32 %v2623, %v2645
      %v2648 = vmul.f32 %v2624, %v2645
      %v2649 = vmul.f32 %v2625, %v2645
      %v2650 = vmul.f32 %v2626, %v2645
      %v2651 = vmul.f32 %v2627, %v2645
      %v2652 = vmul.f32 %v2628, %v2645
      %v2653 = vmul.f32 %v2641, %v2645
      %v2654 = vadd.f32 %v2633, %v2646
      %v2655 = vadd.f32 %v2634, %v2647
      %v2656 = vadd.f32 %v2635, %v2648
      %v2657 = vadd.f32 %v2636, %v2649
      %v2658 = vadd.f32 %v2637, %v2650
      %v2659 = vadd.f32 %v2638, %v2651
      %v2660 = vadd.f32 %v2639, %v2652
      %v2661 = vadd.f32 %v2640, %v2653
      %v2662 = vld [vmem:[#allocation2 + $0x52] sm:$0xff]
      %v2663 = vlaneseq
      %v2664 = vshrl.u32 %v2663, 7
      %v2665 = vsub.s32 3, %v2664
      %v2666 = vrot.slane %v1749, %v2665
      %v2667 = vmul.f32 %v2623, %v2666
      %v2668 = vmul.f32 %v2624, %v2666
      %v2669 = vmul.f32 %v2625, %v2666
      %v2670 = vmul.f32 %v2626, %v2666
      %v2671 = vmul.f32 %v2627, %v2666
      %v2672 = vmul.f32 %v2628, %v2666
      %v2673 = vmul.f32 %v2641, %v2666
      %v2674 = vmul.f32 %v2662, %v2666
      %v2675 = vadd.f32 %v2654, %v2667
      %v2676 = vadd.f32 %v2655, %v2668
      %v2677 = vadd.f32 %v2656, %v2669
      %v2678 = vadd.f32 %v2657, %v2670
      %v2679 = vadd.f32 %v2658, %v2671
      %v2680 = vadd.f32 %v2659, %v2672
      %v2681 = vadd.f32 %v2660, %v2673
      %v2682 = vadd.f32 %v2661, %v2674
      %v2683 = vld [vmem:[#allocation2 + $0x5a] sm:$0xff]
      %v2684 = vlaneseq
      %v2685 = vshrl.u32 %v2684, 7
      %v2686 = vsub.s32 2, %v2685
      %v2687 = vrot.slane %v1750, %v2686
      %v2688 = vmul.f32 %v2624, %v2687
      %v2689 = vmul.f32 %v2625, %v2687
      %v2690 = vmul.f32 %v2626, %v2687
      %v2691 = vmul.f32 %v2627, %v2687
      %v2692 = vmul.f32 %v2628, %v2687
      %v2693 = vmul.f32 %v2641, %v2687
      %v2694 = vmul.f32 %v2662, %v2687
      %v2695 = vmul.f32 %v2683, %v2687
      %v2696 = vadd.f32 %v2675, %v2688
      %v2697 = vadd.f32 %v2676, %v2689
      %v2698 = vadd.f32 %v2677, %v2690
      %v2699 = vadd.f32 %v2678, %v2691
      %v2700 = vadd.f32 %v2679, %v2692
      %v2701 = vadd.f32 %v2680, %v2693
      %v2702 = vadd.f32 %v2681, %v2694
      %v2703 = vadd.f32 %v2682, %v2695
      %v2704 = vld [vmem:[#allocation2 + $0x62] sm:$0xff]
      %v2705 = vlaneseq
      %v2706 = vshrl.u32 %v2705, 7
      %v2707 = vsub.s32 1, %v2706
      %v2708 = vrot.slane %v1751, %v2707
      %v2709 = vmul.f32 %v2625, %v2708
      %v2710 = vmul.f32 %v2626, %v2708
      %v2711 = vmul.f32 %v2627, %v2708
      %v2712 = vmul.f32 %v2628, %v2708
      %v2713 = vmul.f32 %v2641, %v2708
      %v2714 = vmul.f32 %v2662, %v2708
      %v2715 = vmul.f32 %v2683, %v2708
      %v2716 = vmul.f32 %v2704, %v2708
      %v2717 = vadd.f32 %v2696, %v2709
      %v2718 = vadd.f32 %v2697, %v2710
      %v2719 = vadd.f32 %v2698, %v2711
      %v2720 = vadd.f32 %v2699, %v2712
      %v2721 = vadd.f32 %v2700, %v2713
      %v2722 = vadd.f32 %v2701, %v2714
      %v2723 = vadd.f32 %v2702, %v2715
      %v2724 = vadd.f32 %v2703, %v2716
      %v2725 = vld [vmem:[#allocation2 + $0x6a] sm:$0xff]
      %v2726 = vlaneseq
      %v2727 = vshrl.u32 %v2726, 7
      %v2728 = vsub.s32 0, %v2727
      %v2729 = vrot.slane %v1752, %v2728
      %v2730 = vmul.f32 %v2626, %v2729
      %v2731 = vmul.f32 %v2627, %v2729
      %v2732 = vmul.f32 %v2628, %v2729
      %v2733 = vmul.f32 %v2641, %v2729
      %v2734 = vmul.f32 %v2662, %v2729
      %v2735 = vmul.f32 %v2683, %v2729
      %v2736 = vmul.f32 %v2704, %v2729
      %v2737 = vmul.f32 %v2725, %v2729
      %v2738 = vadd.f32 %v2717, %v2730
      %v2739 = vadd.f32 %v2718, %v2731
      %v2740 = vadd.f32 %v2719, %v2732
      %v2741 = vadd.f32 %v2720, %v2733
      %v2742 = vadd.f32 %v2721, %v2734
      %v2743 = vadd.f32 %v2722, %v2735
      %v2744 = vadd.f32 %v2723, %v2736
      %v2745 = vadd.f32 %v2724, %v2737
      %v2746 = vld [vmem:[#allocation2 + $0x72] sm:$0xff]
      %v2747 = vlaneseq
      %v2748 = vshrl.u32 %v2747, 7
      %v2749 = vsub.s32 7, %v2748
      %v2750 = vrot.slane %v1752, %v2749
      %v2751 = vmul.f32 %v2627, %v2750
      %v2752 = vmul.f32 %v2628, %v2750
      %v2753 = vmul.f32 %v2641, %v2750
      %v2754 = vmul.f32 %v2662, %v2750
      %v2755 = vmul.f32 %v2683, %v2750
      %v2756 = vmul.f32 %v2704, %v2750
      %v2757 = vmul.f32 %v2725, %v2750
      %v2758 = vmul.f32 %v2746, %v2750
      %v2759 = vadd.f32 %v2738, %v2751
      %v2760 = vadd.f32 %v2739, %v2752
      %v2761 = vadd.f32 %v2740, %v2753
      %v2762 = vadd.f32 %v2741, %v2754
      %v2763 = vadd.f32 %v2742, %v2755
      %v2764 = vadd.f32 %v2743, %v2756
      %v2765 = vadd.f32 %v2744, %v2757
      %v2766 = vadd.f32 %v2745, %v2758
      %v2767 = vsel %vm1195, 1, 0
      %v2768 = vsel %vm1196, 1, 0
      %v2769 = vsel %vm1197, 1, 0
      %v2770 = vsel %vm1198, 1, 0
      %v2771 = vsel %vm1199, 1, 0
      %v2772 = vsel %vm1200, 1, 0
      %v2773 = vsel %vm1201, 1, 0
      %v2774 = vsel %vm1202, 1, 0
      %vm2775 = vcmp.eq.s32.totalorder %v2767, 1
      %vm2776 = vcmp.eq.s32.totalorder %v2768, 1
      %vm2777 = vcmp.eq.s32.totalorder %v2769, 1
      %vm2778 = vcmp.eq.s32.totalorder %v2770, 1
      %vm2779 = vcmp.eq.s32.totalorder %v2771, 1
      %vm2780 = vcmp.eq.s32.totalorder %v2772, 1
      %vm2781 = vcmp.eq.s32.totalorder %v2773, 1
      %vm2782 = vcmp.eq.s32.totalorder %v2774, 1
      %v2783 = vsel %vm2775, %v2759, 0.0
      %v2784 = vsel %vm2776, %v2760, 0.0
      %v2785 = vsel %vm2777, %v2761, 0.0
      %v2786 = vsel %vm2778, %v2762, 0.0
      %v2787 = vsel %vm2779, %v2763, 0.0
      %v2788 = vsel %vm2780, %v2764, 0.0
      %v2789 = vsel %vm2781, %v2765, 0.0
      %v2790 = vsel %vm2782, %v2766, 0.0
      %v2791 = vadd.f32 %v2613, %v2783
      %v2792 = vadd.f32 %v2614, %v2784
      %v2793 = vadd.f32 %v2615, %v2785
      %v2794 = vadd.f32 %v2616, %v2786
      %v2795 = vadd.f32 %v2617, %v2787
      %v2796 = vadd.f32 %v2618, %v2788
      %v2797 = vadd.f32 %v2619, %v2789
      %v2798 = vadd.f32 %v2620, %v2790
      %v2799 = vld [vmem:[#allocation2 + $0xb] sm:$0xff]
      %v2800 = vld [vmem:[#allocation2 + $0x13] sm:$0xff]
      %v2801 = vld [vmem:[#allocation2 + $0x1b] sm:$0xff]
      %v2802 = vld [vmem:[#allocation2 + $0x23] sm:$0xff]
      %v2803 = vld [vmem:[#allocation2 + $0x2b] sm:$0xff]
      %v2804 = vld [vmem:[#allocation2 + $0x33] sm:$0xff]
      %v2805 = vld [vmem:[#allocation2 + $0x3b] sm:$0xff]
      %v2806 = vld [vmem:[#allocation2 + $0x43] sm:$0xff]
      %v2807 = vlaneseq
      %v2808 = vshrl.u32 %v2807, 7
      %v2809 = vsub.s32 6, %v2808
      %v2810 = vrot.slane %v1747, %v2809
      %v2811 = vmul.f32 %v2799, %v2810
      %v2812 = vmul.f32 %v2800, %v2810
      %v2813 = vmul.f32 %v2801, %v2810
      %v2814 = vmul.f32 %v2802, %v2810
      %v2815 = vmul.f32 %v2803, %v2810
      %v2816 = vmul.f32 %v2804, %v2810
      %v2817 = vmul.f32 %v2805, %v2810
      %v2818 = vmul.f32 %v2806, %v2810
      %v2819 = vld [vmem:[#allocation2 + $0x4b] sm:$0xff]
      %v2820 = vlaneseq
      %v2821 = vshrl.u32 %v2820, 7
      %v2822 = vsub.s32 5, %v2821
      %v2823 = vrot.slane %v1748, %v2822
      %v2824 = vmul.f32 %v2800, %v2823
      %v2825 = vmul.f32 %v2801, %v2823
      %v2826 = vmul.f32 %v2802, %v2823
      %v2827 = vmul.f32 %v2803, %v2823
      %v2828 = vmul.f32 %v2804, %v2823
      %v2829 = vmul.f32 %v2805, %v2823
      %v2830 = vmul.f32 %v2806, %v2823
      %v2831 = vmul.f32 %v2819, %v2823
      %v2832 = vadd.f32 %v2811, %v2824
      %v2833 = vadd.f32 %v2812, %v2825
      %v2834 = vadd.f32 %v2813, %v2826
      %v2835 = vadd.f32 %v2814, %v2827
      %v2836 = vadd.f32 %v2815, %v2828
      %v2837 = vadd.f32 %v2816, %v2829
      %v2838 = vadd.f32 %v2817, %v2830
      %v2839 = vadd.f32 %v2818, %v2831
      %v2840 = vld [vmem:[#allocation2 + $0x53] sm:$0xff]
      %v2841 = vlaneseq
      %v2842 = vshrl.u32 %v2841, 7
      %v2843 = vsub.s32 4, %v2842
      %v2844 = vrot.slane %v1749, %v2843
      %v2845 = vmul.f32 %v2801, %v2844
      %v2846 = vmul.f32 %v2802, %v2844
      %v2847 = vmul.f32 %v2803, %v2844
      %v2848 = vmul.f32 %v2804, %v2844
      %v2849 = vmul.f32 %v2805, %v2844
      %v2850 = vmul.f32 %v2806, %v2844
      %v2851 = vmul.f32 %v2819, %v2844
      %v2852 = vmul.f32 %v2840, %v2844
      %v2853 = vadd.f32 %v2832, %v2845
      %v2854 = vadd.f32 %v2833, %v2846
      %v2855 = vadd.f32 %v2834, %v2847
      %v2856 = vadd.f32 %v2835, %v2848
      %v2857 = vadd.f32 %v2836, %v2849
      %v2858 = vadd.f32 %v2837, %v2850
      %v2859 = vadd.f32 %v2838, %v2851
      %v2860 = vadd.f32 %v2839, %v2852
      %v2861 = vld [vmem:[#allocation2 + $0x5b] sm:$0xff]
      %v2862 = vlaneseq
      %v2863 = vshrl.u32 %v2862, 7
      %v2864 = vsub.s32 3, %v2863
      %v2865 = vrot.slane %v1750, %v2864
      %v2866 = vmul.f32 %v2802, %v2865
      %v2867 = vmul.f32 %v2803, %v2865
      %v2868 = vmul.f32 %v2804, %v2865
      %v2869 = vmul.f32 %v2805, %v2865
      %v2870 = vmul.f32 %v2806, %v2865
      %v2871 = vmul.f32 %v2819, %v2865
      %v2872 = vmul.f32 %v2840, %v2865
      %v2873 = vmul.f32 %v2861, %v2865
      %v2874 = vadd.f32 %v2853, %v2866
      %v2875 = vadd.f32 %v2854, %v2867
      %v2876 = vadd.f32 %v2855, %v2868
      %v2877 = vadd.f32 %v2856, %v2869
      %v2878 = vadd.f32 %v2857, %v2870
      %v2879 = vadd.f32 %v2858, %v2871
      %v2880 = vadd.f32 %v2859, %v2872
      %v2881 = vadd.f32 %v2860, %v2873
      %v2882 = vld [vmem:[#allocation2 + $0x63] sm:$0xff]
      %v2883 = vlaneseq
      %v2884 = vshrl.u32 %v2883, 7
      %v2885 = vsub.s32 2, %v2884
      %v2886 = vrot.slane %v1751, %v2885
      %v2887 = vmul.f32 %v2803, %v2886
      %v2888 = vmul.f32 %v2804, %v2886
      %v2889 = vmul.f32 %v2805, %v2886
      %v2890 = vmul.f32 %v2806, %v2886
      %v2891 = vmul.f32 %v2819, %v2886
      %v2892 = vmul.f32 %v2840, %v2886
      %v2893 = vmul.f32 %v2861, %v2886
      %v2894 = vmul.f32 %v2882, %v2886
      %v2895 = vadd.f32 %v2874, %v2887
      %v2896 = vadd.f32 %v2875, %v2888
      %v2897 = vadd.f32 %v2876, %v2889
      %v2898 = vadd.f32 %v2877, %v2890
      %v2899 = vadd.f32 %v2878, %v2891
      %v2900 = vadd.f32 %v2879, %v2892
      %v2901 = vadd.f32 %v2880, %v2893
      %v2902 = vadd.f32 %v2881, %v2894
      %v2903 = vld [vmem:[#allocation2 + $0x6b] sm:$0xff]
      %v2904 = vlaneseq
      %v2905 = vshrl.u32 %v2904, 7
      %v2906 = vsub.s32 1, %v2905
      %v2907 = vrot.slane %v1752, %v2906
      %v2908 = vmul.f32 %v2804, %v2907
      %v2909 = vmul.f32 %v2805, %v2907
      %v2910 = vmul.f32 %v2806, %v2907
      %v2911 = vmul.f32 %v2819, %v2907
      %v2912 = vmul.f32 %v2840, %v2907
      %v2913 = vmul.f32 %v2861, %v2907
      %v2914 = vmul.f32 %v2882, %v2907
      %v2915 = vmul.f32 %v2903, %v2907
      %v2916 = vadd.f32 %v2895, %v2908
      %v2917 = vadd.f32 %v2896, %v2909
      %v2918 = vadd.f32 %v2897, %v2910
      %v2919 = vadd.f32 %v2898, %v2911
      %v2920 = vadd.f32 %v2899, %v2912
      %v2921 = vadd.f32 %v2900, %v2913
      %v2922 = vadd.f32 %v2901, %v2914
      %v2923 = vadd.f32 %v2902, %v2915
      %v2924 = vld [vmem:[#allocation2 + $0x73] sm:$0xff]
      %v2925 = vlaneseq
      %v2926 = vshrl.u32 %v2925, 7
      %v2927 = vsub.s32 0, %v2926
      %v2928 = vrot.slane %v1753, %v2927
      %v2929 = vmul.f32 %v2805, %v2928
      %v2930 = vmul.f32 %v2806, %v2928
      %v2931 = vmul.f32 %v2819, %v2928
      %v2932 = vmul.f32 %v2840, %v2928
      %v2933 = vmul.f32 %v2861, %v2928
      %v2934 = vmul.f32 %v2882, %v2928
      %v2935 = vmul.f32 %v2903, %v2928
      %v2936 = vmul.f32 %v2924, %v2928
      %v2937 = vadd.f32 %v2916, %v2929
      %v2938 = vadd.f32 %v2917, %v2930
      %v2939 = vadd.f32 %v2918, %v2931
      %v2940 = vadd.f32 %v2919, %v2932
      %v2941 = vadd.f32 %v2920, %v2933
      %v2942 = vadd.f32 %v2921, %v2934
      %v2943 = vadd.f32 %v2922, %v2935
      %v2944 = vadd.f32 %v2923, %v2936
      %v2945 = vsel %vm1227, 1, 0
      %v2946 = vsel %vm1228, 1, 0
      %v2947 = vsel %vm1229, 1, 0
      %v2948 = vsel %vm1230, 1, 0
      %v2949 = vsel %vm1231, 1, 0
      %v2950 = vsel %vm1232, 1, 0
      %v2951 = vsel %vm1233, 1, 0
      %v2952 = vsel %vm1234, 1, 0
      %vm2953 = vcmp.eq.s32.totalorder %v2945, 1
      %vm2954 = vcmp.eq.s32.totalorder %v2946, 1
      %vm2955 = vcmp.eq.s32.totalorder %v2947, 1
      %vm2956 = vcmp.eq.s32.totalorder %v2948, 1
      %vm2957 = vcmp.eq.s32.totalorder %v2949, 1
      %vm2958 = vcmp.eq.s32.totalorder %v2950, 1
      %vm2959 = vcmp.eq.s32.totalorder %v2951, 1
      %vm2960 = vcmp.eq.s32.totalorder %v2952, 1
      %v2961 = vsel %vm2953, %v2937, 0.0
      %v2962 = vsel %vm2954, %v2938, 0.0
      %v2963 = vsel %vm2955, %v2939, 0.0
      %v2964 = vsel %vm2956, %v2940, 0.0
      %v2965 = vsel %vm2957, %v2941, 0.0
      %v2966 = vsel %vm2958, %v2942, 0.0
      %v2967 = vsel %vm2959, %v2943, 0.0
      %v2968 = vsel %vm2960, %v2944, 0.0
      %v2969 = vadd.f32 %v2791, %v2961
      %v2970 = vadd.f32 %v2792, %v2962
      %v2971 = vadd.f32 %v2793, %v2963
      %v2972 = vadd.f32 %v2794, %v2964
      %v2973 = vadd.f32 %v2795, %v2965
      %v2974 = vadd.f32 %v2796, %v2966
      %v2975 = vadd.f32 %v2797, %v2967
      %v2976 = vadd.f32 %v2798, %v2968
      %v2978 = vlaneseq
      %v2979 = vshrl.u32 %v2978, 7
      %v2980 = vsub.s32 0, %v2979
      %v2981 = vrot.slane %v1754, %v2980
      %v2983 = vadd.f32 %v2969, %v2981
      %v2984 = vadd.f32 %v2970, %v2981
      %v2985 = vadd.f32 %v2971, %v2981
      %v2986 = vadd.f32 %v2972, %v2981
      %v2987 = vadd.f32 %v2973, %v2981
      %v2988 = vadd.f32 %v2974, %v2981
      %v2989 = vadd.f32 %v2975, %v2981
      %v2990 = vadd.f32 %v2976, %v2981
      %v2991 = vmul.f32 %v2983, %v1487
      %v2992 = vmul.f32 %v2984, %v1493
      %v2993 = vmul.f32 %v2985, %v1499
      %v2994 = vmul.f32 %v2986, %v1505
      %v2995 = vmul.f32 %v2987, %v1511
      %v2996 = vmul.f32 %v2988, %v1517
      %v2997 = vmul.f32 %v2989, %v1523
      %v2998 = vmul.f32 %v2990, %v1529
      %v2999 = vld [vmem:[%s861] sm:$0xff]
      %v3000 = vld [vmem:[%s861 + $0x8] sm:$0xff]
      %v3001 = vld [vmem:[%s861 + $0x10] sm:$0xff]
      %v3002 = vld [vmem:[%s861 + $0x18] sm:$0xff]
      %v3003 = vld [vmem:[%s861 + $0x20] sm:$0xff]
      %v3004 = vld [vmem:[%s861 + $0x28] sm:$0xff]
      %v3005 = vld [vmem:[%s861 + $0x30] sm:$0xff]
      %v3006 = vld [vmem:[%s861 + $0x38] sm:$0xff]
      %v3007 = vld [vmem:[%s861 + $0x40] sm:$0xff]
      %v3008 = vld [vmem:[%s861 + $0x48] sm:$0xff]
      %v3009 = vld [vmem:[%s861 + $0x50] sm:$0xff]
      %v3010 = vld [vmem:[%s861 + $0x58] sm:$0xff]
      %v3011 = vld [vmem:[%s861 + $0x60] sm:$0xff]
      %v3012 = vld [vmem:[%s861 + $0x68] sm:$0xff]
      %v3013 = vld [vmem:[%s861 + $0x70] sm:$0xff]
      %v3014 = vld [vmem:[%s861 + $0x78] sm:$0xff]
      %v3015 = vld [vmem:[%s864] sm:$0x1]
      %v3017 = vlaneseq
      %v3018 = vshrl.u32 %v3017, 7
      %v3019 = vsub.s32 0, %v3018
      %v3020 = vrot.slane %v3015, %v3019
      %3022 = vmatprep.subr.mxu0 0.0
      %3023 = vmatpush1.msra.mxu0 %v2999
      %3024 = vmatprep.subr.mxu0 0.0
      %3025 = vmatpush1.msra.mxu0 %v3000
      %3026 = vmatprep.subr.mxu0 0.0
      %3027 = vmatpush1.msra.mxu0 %v3001
      %3028 = vmatprep.subr.mxu0 0.0
      %3029 = vmatpush1.msra.mxu0 %v3002
      %3030 = vmatprep.subr.mxu0 0.0
      %3031 = vmatpush1.msra.mxu0 %v3003
      %3032 = vmatprep.subr.mxu0 0.0
      %3033 = vmatpush1.msra.mxu0 %v3004
      %3034 = vmatprep.subr.mxu0 0.0
      %3035 = vmatpush1.msra.mxu0 %v3005
      %3036 = vmatprep.subr.mxu0 0.0
      %3037 = vmatpush1.msra.mxu0 %v3006
      %3038 = vmatprep.subr.mxu0 0.0
      %3039 = vmatpush1.msra.mxu0 %v3007
      %3040 = vmatprep.subr.mxu0 0.0
      %3041 = vmatpush1.msra.mxu0 %v3008
      %3042 = vmatprep.subr.mxu0 0.0
      %3043 = vmatpush1.msra.mxu0 %v3009
      %3044 = vmatprep.subr.mxu0 0.0
      %3045 = vmatpush1.msra.mxu0 %v3010
      %3046 = vmatprep.subr.mxu0 0.0
      %3047 = vmatpush1.msra.mxu0 %v3011
      %3048 = vmatprep.subr.mxu0 0.0
      %3049 = vmatpush1.msra.mxu0 %v3012
      %3050 = vmatprep.subr.mxu0 0.0
      %3051 = vmatpush1.msra.mxu0 %v3013
      %3052 = vmatprep.subr.mxu0 0.0
      %3053 = vmatpush1.msra.mxu0 %v3014
      %3054 = vmatprep.subr.mxu0 0.0
      %3055 = vmatpush1.msra.mxu0 0.0
      %3056 = vmatprep.subr.mxu0 0.0
      %3057 = vmatpush1.msra.mxu0 0.0
      %3058 = vmatprep.subr.mxu0 0.0
      %3059 = vmatpush1.msra.mxu0 0.0
      %3060 = vmatprep.subr.mxu0 0.0
      %3061 = vmatpush1.msra.mxu0 0.0
      %3062 = vmatprep.subr.mxu0 0.0
      %3063 = vmatpush1.msra.mxu0 0.0
      %3064 = vmatprep.subr.mxu0 0.0
      %3065 = vmatpush1.msra.mxu0 0.0
      %3066 = vmatprep.subr.mxu0 0.0
      %3067 = vmatpush1.msra.mxu0 0.0
      %3068 = vmatprep.subr.mxu0 0.0
      %3069 = vmatpush1.msra.mxu0 0.0
      %3070 = vmatprep.subr.mxu0 0.0
      %3071 = vmatpush1.msra.mxu0 0.0
      %3072 = vmatprep.subr.mxu0 0.0
      %3073 = vmatpush1.msra.mxu0 0.0
      %3074 = vmatprep.subr.mxu0 0.0
      %3075 = vmatpush1.msra.mxu0 0.0
      %3076 = vmatprep.subr.mxu0 0.0
      %3077 = vmatpush1.msra.mxu0 0.0
      %3078 = vmatprep.subr.mxu0 0.0
      %3079 = vmatpush1.msra.mxu0 0.0
      %3080 = vmatprep.subr.mxu0 0.0
      %3081 = vmatpush1.msra.mxu0 0.0
      %3082 = vmatprep.subr.mxu0 0.0
      %3083 = vmatpush1.msra.mxu0 0.0
      %3084 = vmatprep.subr.mxu0 0.0
      %3085 = vmatpush1.msra.mxu0 0.0
      %3086 = vmatprep.mubr.f32.mxu0 0.0
      %3087 = vmatmul.mubr.f32.gmra.mrb[0].mxu0 %v2991
      %v3088 = vpop.f32.mrb[0].mxu0
      %v3089 = vadd.f32 %v3020, %v3088
      %v3090 = vpop.f32.mrb[0].mxu0
      %3091 = vmatprep.mubr.f32.mxu0 0.0
      %3092 = vmatmul.mubr.f32.gmra.mrb[0].mxu0 %v2992
      %v3093 = vpop.f32.mrb[0].mxu0
      %v3094 = vadd.f32 %v3020, %v3093
      %v3095 = vpop.f32.mrb[0].mxu0
      %3096 = vmatprep.mubr.f32.mxu0 0.0
      %3097 = vmatmul.mubr.f32.gmra.mrb[0].mxu0 %v2993
      %v3098 = vpop.f32.mrb[0].mxu0
      %v3099 = vadd.f32 %v3020, %v3098
      %v3100 = vpop.f32.mrb[0].mxu0
      %3101 = vmatprep.mubr.f32.mxu0 0.0
      %3102 = vmatmul.mubr.f32.gmra.mrb[0].mxu0 %v2994
      %v3103 = vpop.f32.mrb[0].mxu0
      %v3104 = vadd.f32 %v3020, %v3103
      %v3105 = vpop.f32.mrb[0].mxu0
      %3106 = vmatprep.mubr.f32.mxu0 0.0
      %3107 = vmatmul.mubr.f32.gmra.mrb[0].mxu0 %v2995
      %v3108 = vpop.f32.mrb[0].mxu0
      %v3109 = vadd.f32 %v3020, %v3108
      %v3110 = vpop.f32.mrb[0].mxu0
      %3111 = vmatprep.mubr.f32.mxu0 0.0
      %3112 = vmatmul.mubr.f32.gmra.mrb[0].mxu0 %v2996
      %v3113 = vpop.f32.mrb[0].mxu0
      %v3114 = vadd.f32 %v3020, %v3113
      %v3115 = vpop.f32.mrb[0].mxu0
      %3116 = vmatprep.mubr.f32.mxu0 0.0
      %3117 = vmatmul.mubr.f32.gmra.mrb[0].mxu0 %v2997
      %v3118 = vpop.f32.mrb[0].mxu0
      %v3119 = vadd.f32 %v3020, %v3118
      %v3120 = vpop.f32.mrb[0].mxu0
      %3121 = vmatprep.mubr.f32.mxu0 0.0
      %3122 = vmatmul.mubr.f32.gmra.mrb[0].mxu0 %v2998
      %v3123 = vpop.f32.mrb[0].mxu0
      %v3124 = vadd.f32 %v3020, %v3123
      %v3125 = vpop.f32.mrb[0].mxu0
      %3126 = vdwg.mxu0
      %v3127 = vld [vmem:[%s867] sm:$0x1]
      %v3129 = vlaneseq
      %v3130 = vshrl.u32 %v3129, 7
      %v3131 = vsub.s32 0, %v3130
      %v3132 = vrot.slane %v3127, %v3131
      %v3134 = vmul.f32 %v3132, %v3089
      %v3135 = vmul.f32 %v3132, %v3094
      %v3136 = vmul.f32 %v3132, %v3099
      %v3137 = vmul.f32 %v3132, %v3104
      %v3138 = vmul.f32 %v3132, %v3109
      %v3139 = vmul.f32 %v3132, %v3114
      %v3140 = vmul.f32 %v3132, %v3119
      %v3141 = vmul.f32 %v3132, %v3124
      %v3142 = vadd.f32 %v1240, %v3134
      %v3143 = vadd.f32 %v1241, %v3135
      %v3144 = vadd.f32 %v1242, %v3136
      %v3145 = vadd.f32 %v1243, %v3137
      %v3146 = vadd.f32 %v1244, %v3138
      %v3147 = vadd.f32 %v1245, %v3139
      %v3148 = vadd.f32 %v1246, %v3140
      %v3149 = vadd.f32 %v1247, %v3141
      %v3150 = vld [vmem:[%s870] sm:$0x1]
      %v3151 = vld [vmem:[%s873] sm:$0x1]
      %3152 = vadd.xlane.f32.xlu0 %v3142
      %v3153 = vpop.xlane.xlu0 %3152
      %3154 = vadd.xlane.f32.xlu0 %v3143
      %v3155 = vpop.xlane.xlu0 %3154
      %3156 = vadd.xlane.f32.xlu0 %v3144
      %v3157 = vpop.xlane.xlu0 %3156
      %3158 = vadd.xlane.f32.xlu0 %v3145
      %v3159 = vpop.xlane.xlu0 %3158
      %3160 = vadd.xlane.f32.xlu0 %v3146
      %v3161 = vpop.xlane.xlu0 %3160
      %3162 = vadd.xlane.f32.xlu0 %v3147
      %v3163 = vpop.xlane.xlu0 %3162
      %3164 = vadd.xlane.f32.xlu0 %v3148
      %v3165 = vpop.xlane.xlu0 %3164
      %3166 = vadd.xlane.f32.xlu0 %v3149
      %v3167 = vpop.xlane.xlu0 %3166
      %v3168 = vmul.f32 %v3153, 0.0625
      %v3169 = vmul.f32 %v3155, 0.0625
      %v3170 = vmul.f32 %v3157, 0.0625
      %v3171 = vmul.f32 %v3159, 0.0625
      %v3172 = vmul.f32 %v3161, 0.0625
      %v3173 = vmul.f32 %v3163, 0.0625
      %v3174 = vmul.f32 %v3165, 0.0625
      %v3175 = vmul.f32 %v3167, 0.0625
      %v3176 = vsub.f32 %v3142, %v3168
      %v3177 = vsub.f32 %v3143, %v3169
      %v3178 = vsub.f32 %v3144, %v3170
      %v3179 = vsub.f32 %v3145, %v3171
      %v3180 = vsub.f32 %v3146, %v3172
      %v3181 = vsub.f32 %v3147, %v3173
      %v3182 = vsub.f32 %v3148, %v3174
      %v3183 = vsub.f32 %v3149, %v3175
      %v3184 = vmul.f32 %v3176, %v1239
      %v3185 = vmul.f32 %v3177, %v1239
      %v3186 = vmul.f32 %v3178, %v1239
      %v3187 = vmul.f32 %v3179, %v1239
      %v3188 = vmul.f32 %v3180, %v1239
      %v3189 = vmul.f32 %v3181, %v1239
      %v3190 = vmul.f32 %v3182, %v1239
      %v3191 = vmul.f32 %v3183, %v1239
      %v3192 = vmul.f32 %v3184, %v3184
      %v3193 = vmul.f32 %v3185, %v3185
      %v3194 = vmul.f32 %v3186, %v3186
      %v3195 = vmul.f32 %v3187, %v3187
      %v3196 = vmul.f32 %v3188, %v3188
      %v3197 = vmul.f32 %v3189, %v3189
      %v3198 = vmul.f32 %v3190, %v3190
      %v3199 = vmul.f32 %v3191, %v3191
      %3200 = vadd.xlane.f32.xlu0 %v3192
      %v3201 = vpop.xlane.xlu0 %3200
      %3202 = vadd.xlane.f32.xlu0 %v3193
      %v3203 = vpop.xlane.xlu0 %3202
      %3204 = vadd.xlane.f32.xlu0 %v3194
      %v3205 = vpop.xlane.xlu0 %3204
      %3206 = vadd.xlane.f32.xlu0 %v3195
      %v3207 = vpop.xlane.xlu0 %3206
      %3208 = vadd.xlane.f32.xlu0 %v3196
      %v3209 = vpop.xlane.xlu0 %3208
      %3210 = vadd.xlane.f32.xlu0 %v3197
      %v3211 = vpop.xlane.xlu0 %3210
      %3212 = vadd.xlane.f32.xlu0 %v3198
      %v3213 = vpop.xlane.xlu0 %3212
      %3214 = vadd.xlane.f32.xlu0 %v3199
      %v3215 = vpop.xlane.xlu0 %3214
      %v3216 = vmul.f32 %v3201, 0.0625
      %v3217 = vmul.f32 %v3203, 0.0625
      %v3218 = vmul.f32 %v3205, 0.0625
      %v3219 = vmul.f32 %v3207, 0.0625
      %v3220 = vmul.f32 %v3209, 0.0625
      %v3221 = vmul.f32 %v3211, 0.0625
      %v3222 = vmul.f32 %v3213, 0.0625
      %v3223 = vmul.f32 %v3215, 0.0625
      %v3224 = vadd.f32 %v3216, 1e-06
      %v3225 = vadd.f32 %v3217, 1e-06
      %v3226 = vadd.f32 %v3218, 1e-06
      %v3227 = vadd.f32 %v3219, 1e-06
      %v3228 = vadd.f32 %v3220, 1e-06
      %v3229 = vadd.f32 %v3221, 1e-06
      %v3230 = vadd.f32 %v3222, 1e-06
      %v3231 = vadd.f32 %v3223, 1e-06
      %v3232 = vrsqrt.pop %v3224
      %v3233 = vrsqrt.pop %v3225
      %v3234 = vrsqrt.pop %v3226
      %v3235 = vrsqrt.pop %v3227
      %v3236 = vrsqrt.pop %v3228
      %v3237 = vrsqrt.pop %v3229
      %v3238 = vrsqrt.pop %v3230
      %v3239 = vrsqrt.pop %v3231
      %v3240 = vmul.f32 %v3184, %v3232
      %v3241 = vmul.f32 %v3185, %v3233
      %v3242 = vmul.f32 %v3186, %v3234
      %v3243 = vmul.f32 %v3187, %v3235
      %v3244 = vmul.f32 %v3188, %v3236
      %v3245 = vmul.f32 %v3189, %v3237
      %v3246 = vmul.f32 %v3190, %v3238
      %v3247 = vmul.f32 %v3191, %v3239
      %v3249 = vlaneseq
      %v3250 = vshrl.u32 %v3249, 7
      %v3251 = vsub.s32 0, %v3250
      %v3252 = vrot.slane %v3150, %v3251
      %v3254 = vmul.f32 %v3240, %v3252
      %v3255 = vmul.f32 %v3241, %v3252
      %v3256 = vmul.f32 %v3242, %v3252
      %v3257 = vmul.f32 %v3243, %v3252
      %v3258 = vmul.f32 %v3244, %v3252
      %v3259 = vmul.f32 %v3245, %v3252
      %v3260 = vmul.f32 %v3246, %v3252
      %v3261 = vmul.f32 %v3247, %v3252
      %v3263 = vlaneseq
      %v3264 = vshrl.u32 %v3263, 7
      %v3265 = vsub.s32 0, %v3264
      %v3266 = vrot.slane %v3151, %v3265
      %v3268 = vadd.f32 %v3254, %v3266
      %v3269 = vadd.f32 %v3255, %v3266
      %v3270 = vadd.f32 %v3256, %v3266
      %v3271 = vadd.f32 %v3257, %v3266
      %v3272 = vadd.f32 %v3258, %v3266
      %v3273 = vadd.f32 %v3259, %v3266
      %v3274 = vadd.f32 %v3260, %v3266
      %v3275 = vadd.f32 %v3261, %v3266
      %v3276 = vld [vmem:[%s878] sm:$0xff]
      %v3277 = vld [vmem:[%s878 + $0x8] sm:$0xff]
      %v3278 = vld [vmem:[%s878 + $0x10] sm:$0xff]
      %v3279 = vld [vmem:[%s878 + $0x18] sm:$0xff]
      %v3280 = vld [vmem:[%s878 + $0x20] sm:$0xff]
      %v3281 = vld [vmem:[%s878 + $0x28] sm:$0xff]
      %v3282 = vld [vmem:[%s878 + $0x30] sm:$0xff]
      %v3283 = vld [vmem:[%s878 + $0x38] sm:$0xff]
      %v3284 = vld [vmem:[%s878 + $0x40] sm:$0xff]
      %v3285 = vld [vmem:[%s878 + $0x48] sm:$0xff]
      %v3286 = vld [vmem:[%s878 + $0x50] sm:$0xff]
      %v3287 = vld [vmem:[%s878 + $0x58] sm:$0xff]
      %v3288 = vld [vmem:[%s878 + $0x60] sm:$0xff]
      %v3289 = vld [vmem:[%s878 + $0x68] sm:$0xff]
      %v3290 = vld [vmem:[%s878 + $0x70] sm:$0xff]
      %v3291 = vld [vmem:[%s878 + $0x78] sm:$0xff]
      %v3292 = vld [vmem:[%s881] sm:$0x1]
      %v3294 = vlaneseq
      %v3295 = vshrl.u32 %v3294, 7
      %v3296 = vsub.s32 0, %v3295
      %v3297 = vrot.slane %v3292, %v3296
      %3299 = vmatprep.subr.mxu0 0.0
      %3300 = vmatpush1.msra.mxu0 %v3276
      %3301 = vmatprep.subr.mxu0 0.0
      %3302 = vmatpush1.msra.mxu0 %v3277
      %3303 = vmatprep.subr.mxu0 0.0
      %3304 = vmatpush1.msra.mxu0 %v3278
      %3305 = vmatprep.subr.mxu0 0.0
      %3306 = vmatpush1.msra.mxu0 %v3279
      %3307 = vmatprep.subr.mxu0 0.0
      %3308 = vmatpush1.msra.mxu0 %v3280
      %3309 = vmatprep.subr.mxu0 0.0
      %3310 = vmatpush1.msra.mxu0 %v3281
      %3311 = vmatprep.subr.mxu0 0.0
      %3312 = vmatpush1.msra.mxu0 %v3282
      %3313 = vmatprep.subr.mxu0 0.0
      %3314 = vmatpush1.msra.mxu0 %v3283
      %3315 = vmatprep.subr.mxu0 0.0
      %3316 = vmatpush1.msra.mxu0 %v3284
      %3317 = vmatprep.subr.mxu0 0.0
      %3318 = vmatpush1.msra.mxu0 %v3285
      %3319 = vmatprep.subr.mxu0 0.0
      %3320 = vmatpush1.msra.mxu0 %v3286
      %3321 = vmatprep.subr.mxu0 0.0
      %3322 = vmatpush1.msra.mxu0 %v3287
      %3323 = vmatprep.subr.mxu0 0.0
      %3324 = vmatpush1.msra.mxu0 %v3288
      %3325 = vmatprep.subr.mxu0 0.0
      %3326 = vmatpush1.msra.mxu0 %v3289
      %3327 = vmatprep.subr.mxu0 0.0
      %3328 = vmatpush1.msra.mxu0 %v3290
      %3329 = vmatprep.subr.mxu0 0.0
      %3330 = vmatpush1.msra.mxu0 %v3291
      %3331 = vmatprep.subr.mxu0 0.0
      %3332 = vmatpush1.msra.mxu0 0.0
      %3333 = vmatprep.subr.mxu0 0.0
      %3334 = vmatpush1.msra.mxu0 0.0
      %3335 = vmatprep.subr.mxu0 0.0
      %3336 = vmatpush1.msra.mxu0 0.0
      %3337 = vmatprep.subr.mxu0 0.0
      %3338 = vmatpush1.msra.mxu0 0.0
      %3339 = vmatprep.subr.mxu0 0.0
      %3340 = vmatpush1.msra.mxu0 0.0
      %3341 = vmatprep.subr.mxu0 0.0
      %3342 = vmatpush1.msra.mxu0 0.0
      %3343 = vmatprep.subr.mxu0 0.0
      %3344 = vmatpush1.msra.mxu0 0.0
      %3345 = vmatprep.subr.mxu0 0.0
      %3346 = vmatpush1.msra.mxu0 0.0
      %3347 = vmatprep.subr.mxu0 0.0
      %3348 = vmatpush1.msra.mxu0 0.0
      %3349 = vmatprep.subr.mxu0 0.0
      %3350 = vmatpush1.msra.mxu0 0.0
      %3351 = vmatprep.subr.mxu0 0.0
      %3352 = vmatpush1.msra.mxu0 0.0
      %3353 = vmatprep.subr.mxu0 0.0
      %3354 = vmatpush1.msra.mxu0 0.0
      %3355 = vmatprep.subr.mxu0 0.0
      %3356 = vmatpush1.msra.mxu0 0.0
      %3357 = vmatprep.subr.mxu0 0.0
      %3358 = vmatpush1.msra.mxu0 0.0
      %3359 = vmatprep.subr.mxu0 0.0
      %3360 = vmatpush1.msra.mxu0 0.0
      %3361 = vmatprep.subr.mxu0 0.0
      %3362 = vmatpush1.msra.mxu0 0.0
      %3363 = vmatprep.mubr.f32.mxu0 0.0
      %3364 = vmatmul.mubr.f32.gmra.mrb[0].mxu0 %v3268
      %v3365 = vpop.f32.mrb[0].mxu0
      %v3366 = vadd.f32 %v3297, %v3365
      %v3367 = vpop.f32.mrb[0].mxu0
      %3368 = vmatprep.mubr.f32.mxu0 0.0
      %3369 = vmatmul.mubr.f32.gmra.mrb[0].mxu0 %v3269
      %v3370 = vpop.f32.mrb[0].mxu0
      %v3371 = vadd.f32 %v3297, %v3370
      %v3372 = vpop.f32.mrb[0].mxu0
      %3373 = vmatprep.mubr.f32.mxu0 0.0
      %3374 = vmatmul.mubr.f32.gmra.mrb[0].mxu0 %v3270
      %v3375 = vpop.f32.mrb[0].mxu0
      %v3376 = vadd.f32 %v3297, %v3375
      %v3377 = vpop.f32.mrb[0].mxu0
      %3378 = vmatprep.mubr.f32.mxu0 0.0
      %3379 = vmatmul.mubr.f32.gmra.mrb[0].mxu0 %v3271
      %v3380 = vpop.f32.mrb[0].mxu0
      %v3381 = vadd.f32 %v3297, %v3380
      %v3382 = vpop.f32.mrb[0].mxu0
      %3383 = vmatprep.mubr.f32.mxu0 0.0
      %3384 = vmatmul.mubr.f32.gmra.mrb[0].mxu0 %v3272
      %v3385 = vpop.f32.mrb[0].mxu0
      %v3386 = vadd.f32 %v3297, %v3385
      %v3387 = vpop.f32.mrb[0].mxu0
      %3388 = vmatprep.mubr.f32.mxu0 0.0
      %3389 = vmatmul.mubr.f32.gmra.mrb[0].mxu0 %v3273
      %v3390 = vpop.f32.mrb[0].mxu0
      %v3391 = vadd.f32 %v3297, %v3390
      %v3392 = vpop.f32.mrb[0].mxu0
      %3393 = vmatprep.mubr.f32.mxu0 0.0
      %3394 = vmatmul.mubr.f32.gmra.mrb[0].mxu0 %v3274
      %v3395 = vpop.f32.mrb[0].mxu0
      %v3396 = vadd.f32 %v3297, %v3395
      %v3397 = vpop.f32.mrb[0].mxu0
      %3398 = vmatprep.mubr.f32.mxu0 0.0
      %3399 = vmatmul.mubr.f32.gmra.mrb[0].mxu0 %v3275
      %v3400 = vpop.f32.mrb[0].mxu0
      %v3401 = vadd.f32 %v3297, %v3400
      %v3402 = vpop.f32.mrb[0].mxu0
      %3403 = vdwg.mxu0
      %v3404 = vmul.f32 %v3366, 0.5
      %v3405 = vmul.f32 %v3371, 0.5
      %v3406 = vmul.f32 %v3376, 0.5
      %v3407 = vmul.f32 %v3381, 0.5
      %v3408 = vmul.f32 %v3386, 0.5
      %v3409 = vmul.f32 %v3391, 0.5
      %v3410 = vmul.f32 %v3396, 0.5
      %v3411 = vmul.f32 %v3401, 0.5
      %v3412 = vmul.f32 %v3366, 0.70710677
      %v3413 = vmul.f32 %v3371, 0.70710677
      %v3414 = vmul.f32 %v3376, 0.70710677
      %v3415 = vmul.f32 %v3381, 0.70710677
      %v3416 = vmul.f32 %v3386, 0.70710677
      %v3417 = vmul.f32 %v3391, 0.70710677
      %v3418 = vmul.f32 %v3396, 0.70710677
      %v3419 = vmul.f32 %v3401, 0.70710677
      %v3420 = vand.u32 2147483647, %v3412
      %v3421 = vand.u32 2147483647, %v3413
      %v3422 = vand.u32 2147483647, %v3414
      %v3423 = vand.u32 2147483647, %v3415
      %v3424 = vand.u32 2147483647, %v3416
      %v3425 = vand.u32 2147483647, %v3417
      %v3426 = vand.u32 2147483647, %v3418
      %v3427 = vand.u32 2147483647, %v3419
      %v3428 = vmul.f32 %v3420, 0.3275911
      %v3429 = vmul.f32 %v3421, 0.3275911
      %v3430 = vmul.f32 %v3422, 0.3275911
      %v3431 = vmul.f32 %v3423, 0.3275911
      %v3432 = vmul.f32 %v3424, 0.3275911
      %v3433 = vmul.f32 %v3425, 0.3275911
      %v3434 = vmul.f32 %v3426, 0.3275911
      %v3435 = vmul.f32 %v3427, 0.3275911
      %v3436 = vadd.f32 %v3428, 1.0
      %v3437 = vadd.f32 %v3429, 1.0
      %v3438 = vadd.f32 %v3430, 1.0
      %v3439 = vadd.f32 %v3431, 1.0
      %v3440 = vadd.f32 %v3432, 1.0
      %v3441 = vadd.f32 %v3433, 1.0
      %v3442 = vadd.f32 %v3434, 1.0
      %v3443 = vadd.f32 %v3435, 1.0
      %v3444 = vrcp.pop %v3436
      %v3445 = vmul.f32 1.0, %v3444
      %v3446 = vrcp.pop %v3437
      %v3447 = vmul.f32 1.0, %v3446
      %v3448 = vrcp.pop %v3438
      %v3449 = vmul.f32 1.0, %v3448
      %v3450 = vrcp.pop %v3439
      %v3451 = vmul.f32 1.0, %v3450
      %v3452 = vrcp.pop %v3440
      %v3453 = vmul.f32 1.0, %v3452
      %v3454 = vrcp.pop %v3441
      %v3455 = vmul.f32 1.0, %v3454
      %v3456 = vrcp.pop %v3442
      %v3457 = vmul.f32 1.0, %v3456
      %v3458 = vrcp.pop %v3443
      %v3459 = vmul.f32 1.0, %v3458
      %v3460 = vmul.f32 %v3445, 1.0614054
      %v3461 = vmul.f32 %v3447, 1.0614054
      %v3462 = vmul.f32 %v3449, 1.0614054
      %v3463 = vmul.f32 %v3451, 1.0614054
      %v3464 = vmul.f32 %v3453, 1.0614054
      %v3465 = vmul.f32 %v3455, 1.0614054
      %v3466 = vmul.f32 %v3457, 1.0614054
      %v3467 = vmul.f32 %v3459, 1.0614054
      %v3468 = vadd.f32 %v3460, -1.4531521
      %v3469 = vadd.f32 %v3461, -1.4531521
      %v3470 = vadd.f32 %v3462, -1.4531521
      %v3471 = vadd.f32 %v3463, -1.4531521
      %v3472 = vadd.f32 %v3464, -1.4531521
      %v3473 = vadd.f32 %v3465, -1.4531521
      %v3474 = vadd.f32 %v3466, -1.4531521
      %v3475 = vadd.f32 %v3467, -1.4531521
      %v3476 = vmul.f32 %v3468, %v3445
      %v3477 = vmul.f32 %v3469, %v3447
      %v3478 = vmul.f32 %v3470, %v3449
      %v3479 = vmul.f32 %v3471, %v3451
      %v3480 = vmul.f32 %v3472, %v3453
      %v3481 = vmul.f32 %v3473, %v3455
      %v3482 = vmul.f32 %v3474, %v3457
      %v3483 = vmul.f32 %v3475, %v3459
      %v3484 = vadd.f32 %v3476, 1.4214138
      %v3485 = vadd.f32 %v3477, 1.4214138
      %v3486 = vadd.f32 %v3478, 1.4214138
      %v3487 = vadd.f32 %v3479, 1.4214138
      %v3488 = vadd.f32 %v3480, 1.4214138
      %v3489 = vadd.f32 %v3481, 1.4214138
      %v3490 = vadd.f32 %v3482, 1.4214138
      %v3491 = vadd.f32 %v3483, 1.4214138
      %v3492 = vmul.f32 %v3484, %v3445
      %v3493 = vmul.f32 %v3485, %v3447
      %v3494 = vmul.f32 %v3486, %v3449
      %v3495 = vmul.f32 %v3487, %v3451
      %v3496 = vmul.f32 %v3488, %v3453
      %v3497 = vmul.f32 %v3489, %v3455
      %v3498 = vmul.f32 %v3490, %v3457
      %v3499 = vmul.f32 %v3491, %v3459
      %v3500 = vadd.f32 %v3492, -0.28449672
      %v3501 = vadd.f32 %v3493, -0.28449672
      %v3502 = vadd.f32 %v3494, -0.28449672
      %v3503 = vadd.f32 %v3495, -0.28449672
      %v3504 = vadd.f32 %v3496, -0.28449672
      %v3505 = vadd.f32 %v3497, -0.28449672
      %v3506 = vadd.f32 %v3498, -0.28449672
      %v3507 = vadd.f32 %v3499, -0.28449672
      %v3508 = vmul.f32 %v3500, %v3445
      %v3509 = vmul.f32 %v3501, %v3447
      %v3510 = vmul.f32 %v3502, %v3449
      %v3511 = vmul.f32 %v3503, %v3451
      %v3512 = vmul.f32 %v3504, %v3453
      %v3513 = vmul.f32 %v3505, %v3455
      %v3514 = vmul.f32 %v3506, %v3457
      %v3515 = vmul.f32 %v3507, %v3459
      %v3516 = vadd.f32 %v3508, 0.2548296
      %v3517 = vadd.f32 %v3509, 0.2548296
      %v3518 = vadd.f32 %v3510, 0.2548296
      %v3519 = vadd.f32 %v3511, 0.2548296
      %v3520 = vadd.f32 %v3512, 0.2548296
      %v3521 = vadd.f32 %v3513, 0.2548296
      %v3522 = vadd.f32 %v3514, 0.2548296
      %v3523 = vadd.f32 %v3515, 0.2548296
      %v3524 = vmul.f32 %v3516, %v3445
      %v3525 = vmul.f32 %v3517, %v3447
      %v3526 = vmul.f32 %v3518, %v3449
      %v3527 = vmul.f32 %v3519, %v3451
      %v3528 = vmul.f32 %v3520, %v3453
      %v3529 = vmul.f32 %v3521, %v3455
      %v3530 = vmul.f32 %v3522, %v3457
      %v3531 = vmul.f32 %v3523, %v3459
      %v3532 = vmul.f32 %v3420, %v3420
      %v3533 = vmul.f32 %v3421, %v3421
      %v3534 = vmul.f32 %v3422, %v3422
      %v3535 = vmul.f32 %v3423, %v3423
      %v3536 = vmul.f32 %v3424, %v3424
      %v3537 = vmul.f32 %v3425, %v3425
      %v3538 = vmul.f32 %v3426, %v3426
      %v3539 = vmul.f32 %v3427, %v3427
      %v3540 = vsub.f32 0.0, %v3532
      %v3541 = vsub.f32 0.0, %v3533
      %v3542 = vsub.f32 0.0, %v3534
      %v3543 = vsub.f32 0.0, %v3535
      %v3544 = vsub.f32 0.0, %v3536
      %v3545 = vsub.f32 0.0, %v3537
      %v3546 = vsub.f32 0.0, %v3538
      %v3547 = vsub.f32 0.0, %v3539
      %v3548 = vmul.f32 %v3540, 1.442695
      %v3549 = vpow.pop %v3548
      %v3550 = vmul.f32 %v3541, 1.442695
      %v3551 = vpow.pop %v3550
      %v3552 = vmul.f32 %v3542, 1.442695
      %v3553 = vpow.pop %v3552
      %v3554 = vmul.f32 %v3543, 1.442695
      %v3555 = vpow.pop %v3554
      %v3556 = vmul.f32 %v3544, 1.442695
      %v3557 = vpow.pop %v3556
      %v3558 = vmul.f32 %v3545, 1.442695
      %v3559 = vpow.pop %v3558
      %v3560 = vmul.f32 %v3546, 1.442695
      %v3561 = vpow.pop %v3560
      %v3562 = vmul.f32 %v3547, 1.442695
      %v3563 = vpow.pop %v3562
      %v3564 = vmul.f32 %v3524, %v3549
      %v3565 = vmul.f32 %v3525, %v3551
      %v3566 = vmul.f32 %v3526, %v3553
      %v3567 = vmul.f32 %v3527, %v3555
      %v3568 = vmul.f32 %v3528, %v3557
      %v3569 = vmul.f32 %v3529, %v3559
      %v3570 = vmul.f32 %v3530, %v3561
      %v3571 = vmul.f32 %v3531, %v3563
      %v3572 = vsub.f32 1.0, %v3564
      %v3573 = vsub.f32 1.0, %v3565
      %v3574 = vsub.f32 1.0, %v3566
      %v3575 = vsub.f32 1.0, %v3567
      %v3576 = vsub.f32 1.0, %v3568
      %v3577 = vsub.f32 1.0, %v3569
      %v3578 = vsub.f32 1.0, %v3570
      %v3579 = vsub.f32 1.0, %v3571
      %vm3580 = vcmp.ge.f32.partialorder %v3412, 0.0
      %vm3581 = vcmp.ge.f32.partialorder %v3413, 0.0
      %vm3582 = vcmp.ge.f32.partialorder %v3414, 0.0
      %vm3583 = vcmp.ge.f32.partialorder %v3415, 0.0
      %vm3584 = vcmp.ge.f32.partialorder %v3416, 0.0
      %vm3585 = vcmp.ge.f32.partialorder %v3417, 0.0
      %vm3586 = vcmp.ge.f32.partialorder %v3418, 0.0
      %vm3587 = vcmp.ge.f32.partialorder %v3419, 0.0
      %v3588 = vsub.f32 0.0, %v3572
      %v3589 = vsub.f32 0.0, %v3573
      %v3590 = vsub.f32 0.0, %v3574
      %v3591 = vsub.f32 0.0, %v3575
      %v3592 = vsub.f32 0.0, %v3576
      %v3593 = vsub.f32 0.0, %v3577
      %v3594 = vsub.f32 0.0, %v3578
      %v3595 = vsub.f32 0.0, %v3579
      %v3596 = vsel %vm3580, %v3572, %v3588
      %v3597 = vsel %vm3581, %v3573, %v3589
      %v3598 = vsel %vm3582, %v3574, %v3590
      %v3599 = vsel %vm3583, %v3575, %v3591
      %v3600 = vsel %vm3584, %v3576, %v3592
      %v3601 = vsel %vm3585, %v3577, %v3593
      %v3602 = vsel %vm3586, %v3578, %v3594
      %v3603 = vsel %vm3587, %v3579, %v3595
      %v3604 = vadd.f32 %v3596, 1.0
      %v3605 = vadd.f32 %v3597, 1.0
      %v3606 = vadd.f32 %v3598, 1.0
      %v3607 = vadd.f32 %v3599, 1.0
      %v3608 = vadd.f32 %v3600, 1.0
      %v3609 = vadd.f32 %v3601, 1.0
      %v3610 = vadd.f32 %v3602, 1.0
      %v3611 = vadd.f32 %v3603, 1.0
      %v3612 = vmul.f32 %v3404, %v3604
      %v3613 = vmul.f32 %v3405, %v3605
      %v3614 = vmul.f32 %v3406, %v3606
      %v3615 = vmul.f32 %v3407, %v3607
      %v3616 = vmul.f32 %v3408, %v3608
      %v3617 = vmul.f32 %v3409, %v3609
      %v3618 = vmul.f32 %v3410, %v3610
      %v3619 = vmul.f32 %v3411, %v3611
      %v3620 = vld [vmem:[%s886] sm:$0xff]
      %v3621 = vld [vmem:[%s886 + $0x8] sm:$0x1]
      %v3622 = vld [vmem:[%s889] sm:$0x1]
      %3623 = vst [vmem:[#allocation3 + $0x10] sm:$0xff] %v3612
      %3624 = vst [vmem:[#allocation3 + $0x18] sm:$0xff] %v3613
      %3625 = vst [vmem:[#allocation3 + $0x20] sm:$0xff] %v3614
      %3626 = vst [vmem:[#allocation3 + $0x28] sm:$0xff] %v3615
      %3627 = vst [vmem:[#allocation3 + $0x30] sm:$0xff] %v3616
      %3628 = vst [vmem:[#allocation3 + $0x38] sm:$0xff] %v3617
      %3629 = vst [vmem:[#allocation3 + $0x40] sm:$0xff] %v3618
      %3630 = vst [vmem:[#allocation3 + $0x48] sm:$0xff] %v3619
      %v3631 = vld [vmem:[#allocation3 + $0x7] sm:$0xff]
      %v3632 = vld [vmem:[#allocation3 + $0xf] sm:$0xff]
      %v3633 = vld [vmem:[#allocation3 + $0x17] sm:$0xff]
      %v3634 = vld [vmem:[#allocation3 + $0x1f] sm:$0xff]
      %v3635 = vld [vmem:[#allocation3 + $0x27] sm:$0xff]
      %v3636 = vld [vmem:[#allocation3 + $0x2f] sm:$0xff]
      %v3637 = vld [vmem:[#allocation3 + $0x37] sm:$0xff]
      %v3638 = vld [vmem:[#allocation3 + $0x3f] sm:$0xff]
      %v3639 = vlaneseq
      %v3640 = vshrl.u32 %v3639, 7
      %v3641 = vsub.s32 0, %v3640
      %v3642 = vrot.slane %v3620, %v3641
      %v3643 = vmul.f32 %v3631, %v3642
      %v3644 = vmul.f32 %v3632, %v3642
      %v3645 = vmul.f32 %v3633, %v3642
      %v3646 = vmul.f32 %v3634, %v3642
      %v3647 = vmul.f32 %v3635, %v3642
      %v3648 = vmul.f32 %v3636, %v3642
      %v3649 = vmul.f32 %v3637, %v3642
      %v3650 = vmul.f32 %v3638, %v3642
      %v3651 = vld [vmem:[#allocation3 + $0x47] sm:$0xff]
      %v3652 = vlaneseq
      %v3653 = vshrl.u32 %v3652, 7
      %v3654 = vsub.s32 3, %v3653
      %v3655 = vrot.slane %v3620, %v3654
      %v3656 = vmul.f32 %v3632, %v3655
      %v3657 = vmul.f32 %v3633, %v3655
      %v3658 = vmul.f32 %v3634, %v3655
      %v3659 = vmul.f32 %v3635, %v3655
      %v3660 = vmul.f32 %v3636, %v3655
      %v3661 = vmul.f32 %v3637, %v3655
      %v3662 = vmul.f32 %v3638, %v3655
      %v3663 = vmul.f32 %v3651, %v3655
      %v3664 = vadd.f32 %v3643, %v3656
      %v3665 = vadd.f32 %v3644, %v3657
      %v3666 = vadd.f32 %v3645, %v3658
      %v3667 = vadd.f32 %v3646, %v3659
      %v3668 = vadd.f32 %v3647, %v3660
      %v3669 = vadd.f32 %v3648, %v3661
      %v3670 = vadd.f32 %v3649, %v3662
      %v3671 = vadd.f32 %v3650, %v3663
      %v3672 = vld [vmem:[#allocation3 + $0x4f] sm:$0xff]
      %v3673 = vlaneseq
      %v3674 = vshrl.u32 %v3673, 7
      %v3675 = vsub.s32 6, %v3674
      %v3676 = vrot.slane %v3620, %v3675
      %v3677 = vmul.f32 %v3633, %v3676
      %v3678 = vmul.f32 %v3634, %v3676
      %v3679 = vmul.f32 %v3635, %v3676
      %v3680 = vmul.f32 %v3636, %v3676
      %v3681 = vmul.f32 %v3637, %v3676
      %v3682 = vmul.f32 %v3638, %v3676
      %v3683 = vmul.f32 %v3651, %v3676
      %v3684 = vmul.f32 %v3672, %v3676
      %v3685 = vadd.f32 %v3664, %v3677
      %v3686 = vadd.f32 %v3665, %v3678
      %v3687 = vadd.f32 %v3666, %v3679
      %v3688 = vadd.f32 %v3667, %v3680
      %v3689 = vadd.f32 %v3668, %v3681
      %v3690 = vadd.f32 %v3669, %v3682
      %v3691 = vadd.f32 %v3670, %v3683
      %v3692 = vadd.f32 %v3671, %v3684
      %v3693 = vsel %vm2265, %v3685, 0.0
      %v3694 = vsel %vm2266, %v3686, 0.0
      %v3695 = vsel %vm2267, %v3687, 0.0
      %v3696 = vsel %vm2268, %v3688, 0.0
      %v3697 = vsel %vm2269, %v3689, 0.0
      %v3698 = vsel %vm2270, %v3690, 0.0
      %v3699 = vsel %vm2271, %v3691, 0.0
      %v3700 = vsel %vm2272, %v3692, 0.0
      %v3701 = vld [vmem:[#allocation3 + $0x8] sm:$0xff]
      %v3702 = vld [vmem:[#allocation3 + $0x10] sm:$0xff]
      %v3703 = vld [vmem:[#allocation3 + $0x18] sm:$0xff]
      %v3704 = vld [vmem:[#allocation3 + $0x20] sm:$0xff]
      %v3705 = vld [vmem:[#allocation3 + $0x28] sm:$0xff]
      %v3706 = vld [vmem:[#allocation3 + $0x30] sm:$0xff]
      %v3707 = vld [vmem:[#allocation3 + $0x38] sm:$0xff]
      %v3708 = vld [vmem:[#allocation3 + $0x40] sm:$0xff]
      %v3709 = vlaneseq
      %v3710 = vshrl.u32 %v3709, 7
      %v3711 = vsub.s32 1, %v3710
      %v3712 = vrot.slane %v3620, %v3711
      %v3713 = vmul.f32 %v3701, %v3712
      %v3714 = vmul.f32 %v3702, %v3712
      %v3715 = vmul.f32 %v3703, %v3712
      %v3716 = vmul.f32 %v3704, %v3712
      %v3717 = vmul.f32 %v3705, %v3712
      %v3718 = vmul.f32 %v3706, %v3712
      %v3719 = vmul.f32 %v3707, %v3712
      %v3720 = vmul.f32 %v3708, %v3712
      %v3721 = vld [vmem:[#allocation3 + $0x48] sm:$0xff]
      %v3722 = vlaneseq
      %v3723 = vshrl.u32 %v3722, 7
      %v3724 = vsub.s32 4, %v3723
      %v3725 = vrot.slane %v3620, %v3724
      %v3726 = vmul.f32 %v3702, %v3725
      %v3727 = vmul.f32 %v3703, %v3725
      %v3728 = vmul.f32 %v3704, %v3725
      %v3729 = vmul.f32 %v3705, %v3725
      %v3730 = vmul.f32 %v3706, %v3725
      %v3731 = vmul.f32 %v3707, %v3725
      %v3732 = vmul.f32 %v3708, %v3725
      %v3733 = vmul.f32 %v3721, %v3725
      %v3734 = vadd.f32 %v3713, %v3726
      %v3735 = vadd.f32 %v3714, %v3727
      %v3736 = vadd.f32 %v3715, %v3728
      %v3737 = vadd.f32 %v3716, %v3729
      %v3738 = vadd.f32 %v3717, %v3730
      %v3739 = vadd.f32 %v3718, %v3731
      %v3740 = vadd.f32 %v3719, %v3732
      %v3741 = vadd.f32 %v3720, %v3733
      %v3742 = vld [vmem:[#allocation3 + $0x50] sm:$0xff]
      %v3743 = vlaneseq
      %v3744 = vshrl.u32 %v3743, 7
      %v3745 = vsub.s32 7, %v3744
      %v3746 = vrot.slane %v3620, %v3745
      %v3747 = vmul.f32 %v3703, %v3746
      %v3748 = vmul.f32 %v3704, %v3746
      %v3749 = vmul.f32 %v3705, %v3746
      %v3750 = vmul.f32 %v3706, %v3746
      %v3751 = vmul.f32 %v3707, %v3746
      %v3752 = vmul.f32 %v3708, %v3746
      %v3753 = vmul.f32 %v3721, %v3746
      %v3754 = vmul.f32 %v3742, %v3746
      %v3755 = vadd.f32 %v3734, %v3747
      %v3756 = vadd.f32 %v3735, %v3748
      %v3757 = vadd.f32 %v3736, %v3749
      %v3758 = vadd.f32 %v3737, %v3750
      %v3759 = vadd.f32 %v3738, %v3751
      %v3760 = vadd.f32 %v3739, %v3752
      %v3761 = vadd.f32 %v3740, %v3753
      %v3762 = vadd.f32 %v3741, %v3754
      %v3763 = vadd.f32 %v3693, %v3755
      %v3764 = vadd.f32 %v3694, %v3756
      %v3765 = vadd.f32 %v3695, %v3757
      %v3766 = vadd.f32 %v3696, %v3758
      %v3767 = vadd.f32 %v3697, %v3759
      %v3768 = vadd.f32 %v3698, %v3760
      %v3769 = vadd.f32 %v3699, %v3761
      %v3770 = vadd.f32 %v3700, %v3762
      %v3771 = vld [vmem:[#allocation3 + $0x9] sm:$0xff]
      %v3772 = vld [vmem:[#allocation3 + $0x11] sm:$0xff]
      %v3773 = vld [vmem:[#allocation3 + $0x19] sm:$0xff]
      %v3774 = vld [vmem:[#allocation3 + $0x21] sm:$0xff]
      %v3775 = vld [vmem:[#allocation3 + $0x29] sm:$0xff]
      %v3776 = vld [vmem:[#allocation3 + $0x31] sm:$0xff]
      %v3777 = vld [vmem:[#allocation3 + $0x39] sm:$0xff]
      %v3778 = vld [vmem:[#allocation3 + $0x41] sm:$0xff]
      %v3779 = vlaneseq
      %v3780 = vshrl.u32 %v3779, 7
      %v3781 = vsub.s32 2, %v3780
      %v3782 = vrot.slane %v3620, %v3781
      %v3783 = vmul.f32 %v3771, %v3782
      %v3784 = vmul.f32 %v3772, %v3782
      %v3785 = vmul.f32 %v3773, %v3782
      %v3786 = vmul.f32 %v3774, %v3782
      %v3787 = vmul.f32 %v3775, %v3782
      %v3788 = vmul.f32 %v3776, %v3782
      %v3789 = vmul.f32 %v3777, %v3782
      %v3790 = vmul.f32 %v3778, %v3782
      %v3791 = vld [vmem:[#allocation3 + $0x49] sm:$0xff]
      %v3792 = vlaneseq
      %v3793 = vshrl.u32 %v3792, 7
      %v3794 = vsub.s32 5, %v3793
      %v3795 = vrot.slane %v3620, %v3794
      %v3796 = vmul.f32 %v3772, %v3795
      %v3797 = vmul.f32 %v3773, %v3795
      %v3798 = vmul.f32 %v3774, %v3795
      %v3799 = vmul.f32 %v3775, %v3795
      %v3800 = vmul.f32 %v3776, %v3795
      %v3801 = vmul.f32 %v3777, %v3795
      %v3802 = vmul.f32 %v3778, %v3795
      %v3803 = vmul.f32 %v3791, %v3795
      %v3804 = vadd.f32 %v3783, %v3796
      %v3805 = vadd.f32 %v3784, %v3797
      %v3806 = vadd.f32 %v3785, %v3798
      %v3807 = vadd.f32 %v3786, %v3799
      %v3808 = vadd.f32 %v3787, %v3800
      %v3809 = vadd.f32 %v3788, %v3801
      %v3810 = vadd.f32 %v3789, %v3802
      %v3811 = vadd.f32 %v3790, %v3803
      %v3812 = vld [vmem:[#allocation3 + $0x51] sm:$0xff]
      %v3813 = vlaneseq
      %v3814 = vshrl.u32 %v3813, 7
      %v3815 = vsub.s32 0, %v3814
      %v3816 = vrot.slane %v3621, %v3815
      %v3817 = vmul.f32 %v3773, %v3816
      %v3818 = vmul.f32 %v3774, %v3816
      %v3819 = vmul.f32 %v3775, %v3816
      %v3820 = vmul.f32 %v3776, %v3816
      %v3821 = vmul.f32 %v3777, %v3816
      %v3822 = vmul.f32 %v3778, %v3816
      %v3823 = vmul.f32 %v3791, %v3816
      %v3824 = vmul.f32 %v3812, %v3816
      %v3825 = vadd.f32 %v3804, %v3817
      %v3826 = vadd.f32 %v3805, %v3818
      %v3827 = vadd.f32 %v3806, %v3819
      %v3828 = vadd.f32 %v3807, %v3820
      %v3829 = vadd.f32 %v3808, %v3821
      %v3830 = vadd.f32 %v3809, %v3822
      %v3831 = vadd.f32 %v3810, %v3823
      %v3832 = vadd.f32 %v3811, %v3824
      %v3833 = vsel %vm2597, %v3825, 0.0
      %v3834 = vsel %vm2598, %v3826, 0.0
      %v3835 = vsel %vm2599, %v3827, 0.0
      %v3836 = vsel %vm2600, %v3828, 0.0
      %v3837 = vsel %vm2601, %v3829, 0.0
      %v3838 = vsel %vm2602, %v3830, 0.0
      %v3839 = vsel %vm2603, %v3831, 0.0
      %v3840 = vsel %vm2604, %v3832, 0.0
      %v3841 = vadd.f32 %v3763, %v3833
      %v3842 = vadd.f32 %v3764, %v3834
      %v3843 = vadd.f32 %v3765, %v3835
      %v3844 = vadd.f32 %v3766, %v3836
      %v3845 = vadd.f32 %v3767, %v3837
      %v3846 = vadd.f32 %v3768, %v3838
      %v3847 = vadd.f32 %v3769, %v3839
      %v3848 = vadd.f32 %v3770, %v3840
      %v3850 = vlaneseq
      %v3851 = vshrl.u32 %v3850, 7
      %v3852 = vsub.s32 0, %v3851
      %v3853 = vrot.slane %v3622, %v3852
      %v3855 = vadd.f32 %v3841, %v3853
      %v3856 = vadd.f32 %v3842, %v3853
      %v3857 = vadd.f32 %v3843, %v3853
      %v3858 = vadd.f32 %v3844, %v3853
      %v3859 = vadd.f32 %v3845, %v3853
      %v3860 = vadd.f32 %v3846, %v3853
      %v3861 = vadd.f32 %v3847, %v3853
      %v3862 = vadd.f32 %v3848, %v3853
      %v3863 = vmul.f32 %v3855, 0.5
      %v3864 = vmul.f32 %v3856, 0.5
      %v3865 = vmul.f32 %v3857, 0.5
      %v3866 = vmul.f32 %v3858, 0.5
      %v3867 = vmul.f32 %v3859, 0.5
      %v3868 = vmul.f32 %v3860, 0.5
      %v3869 = vmul.f32 %v3861, 0.5
      %v3870 = vmul.f32 %v3862, 0.5
      %v3871 = vmul.f32 %v3855, 0.70710677
      %v3872 = vmul.f32 %v3856, 0.70710677
      %v3873 = vmul.f32 %v3857, 0.70710677
      %v3874 = vmul.f32 %v3858, 0.70710677
      %v3875 = vmul.f32 %v3859, 0.70710677
      %v3876 = vmul.f32 %v3860, 0.70710677
      %v3877 = vmul.f32 %v3861, 0.70710677
      %v3878 = vmul.f32 %v3862, 0.70710677
      %v3879 = vand.u32 2147483647, %v3871
      %v3880 = vand.u32 2147483647, %v3872
      %v3881 = vand.u32 2147483647, %v3873
      %v3882 = vand.u32 2147483647, %v3874
      %v3883 = vand.u32 2147483647, %v3875
      %v3884 = vand.u32 2147483647, %v3876
      %v3885 = vand.u32 2147483647, %v3877
      %v3886 = vand.u32 2147483647, %v3878
      %v3887 = vmul.f32 %v3879, 0.3275911
      %v3888 = vmul.f32 %v3880, 0.3275911
      %v3889 = vmul.f32 %v3881, 0.3275911
      %v3890 = vmul.f32 %v3882, 0.3275911
      %v3891 = vmul.f32 %v3883, 0.3275911
      %v3892 = vmul.f32 %v3884, 0.3275911
      %v3893 = vmul.f32 %v3885, 0.3275911
      %v3894 = vmul.f32 %v3886, 0.3275911
      %v3895 = vadd.f32 %v3887, 1.0
      %v3896 = vadd.f32 %v3888, 1.0
      %v3897 = vadd.f32 %v3889, 1.0
      %v3898 = vadd.f32 %v3890, 1.0
      %v3899 = vadd.f32 %v3891, 1.0
      %v3900 = vadd.f32 %v3892, 1.0
      %v3901 = vadd.f32 %v3893, 1.0
      %v3902 = vadd.f32 %v3894, 1.0
      %v3903 = vrcp.pop %v3895
      %v3904 = vmul.f32 1.0, %v3903
      %v3905 = vrcp.pop %v3896
      %v3906 = vmul.f32 1.0, %v3905
      %v3907 = vrcp.pop %v3897
      %v3908 = vmul.f32 1.0, %v3907
      %v3909 = vrcp.pop %v3898
      %v3910 = vmul.f32 1.0, %v3909
      %v3911 = vrcp.pop %v3899
      %v3912 = vmul.f32 1.0, %v3911
      %v3913 = vrcp.pop %v3900
      %v3914 = vmul.f32 1.0, %v3913
      %v3915 = vrcp.pop %v3901
      %v3916 = vmul.f32 1.0, %v3915
      %v3917 = vrcp.pop %v3902
      %v3918 = vmul.f32 1.0, %v3917
      %v3919 = vmul.f32 %v3904, 1.0614054
      %v3920 = vmul.f32 %v3906, 1.0614054
      %v3921 = vmul.f32 %v3908, 1.0614054
      %v3922 = vmul.f32 %v3910, 1.0614054
      %v3923 = vmul.f32 %v3912, 1.0614054
      %v3924 = vmul.f32 %v3914, 1.0614054
      %v3925 = vmul.f32 %v3916, 1.0614054
      %v3926 = vmul.f32 %v3918, 1.0614054
      %v3927 = vadd.f32 %v3919, -1.4531521
      %v3928 = vadd.f32 %v3920, -1.4531521
      %v3929 = vadd.f32 %v3921, -1.4531521
      %v3930 = vadd.f32 %v3922, -1.4531521
      %v3931 = vadd.f32 %v3923, -1.4531521
      %v3932 = vadd.f32 %v3924, -1.4531521
      %v3933 = vadd.f32 %v3925, -1.4531521
      %v3934 = vadd.f32 %v3926, -1.4531521
      %v3935 = vmul.f32 %v3927, %v3904
      %v3936 = vmul.f32 %v3928, %v3906
      %v3937 = vmul.f32 %v3929, %v3908
      %v3938 = vmul.f32 %v3930, %v3910
      %v3939 = vmul.f32 %v3931, %v3912
      %v3940 = vmul.f32 %v3932, %v3914
      %v3941 = vmul.f32 %v3933, %v3916
      %v3942 = vmul.f32 %v3934, %v3918
      %v3943 = vadd.f32 %v3935, 1.4214138
      %v3944 = vadd.f32 %v3936, 1.4214138
      %v3945 = vadd.f32 %v3937, 1.4214138
      %v3946 = vadd.f32 %v3938, 1.4214138
      %v3947 = vadd.f32 %v3939, 1.4214138
      %v3948 = vadd.f32 %v3940, 1.4214138
      %v3949 = vadd.f32 %v3941, 1.4214138
      %v3950 = vadd.f32 %v3942, 1.4214138
      %v3951 = vmul.f32 %v3943, %v3904
      %v3952 = vmul.f32 %v3944, %v3906
      %v3953 = vmul.f32 %v3945, %v3908
      %v3954 = vmul.f32 %v3946, %v3910
      %v3955 = vmul.f32 %v3947, %v3912
      %v3956 = vmul.f32 %v3948, %v3914
      %v3957 = vmul.f32 %v3949, %v3916
      %v3958 = vmul.f32 %v3950, %v3918
      %v3959 = vadd.f32 %v3951, -0.28449672
      %v3960 = vadd.f32 %v3952, -0.28449672
      %v3961 = vadd.f32 %v3953, -0.28449672
      %v3962 = vadd.f32 %v3954, -0.28449672
      %v3963 = vadd.f32 %v3955, -0.28449672
      %v3964 = vadd.f32 %v3956, -0.28449672
      %v3965 = vadd.f32 %v3957, -0.28449672
      %v3966 = vadd.f32 %v3958, -0.28449672
      %v3967 = vmul.f32 %v3959, %v3904
      %v3968 = vmul.f32 %v3960, %v3906
      %v3969 = vmul.f32 %v3961, %v3908
      %v3970 = vmul.f32 %v3962, %v3910
      %v3971 = vmul.f32 %v3963, %v3912
      %v3972 = vmul.f32 %v3964, %v3914
      %v3973 = vmul.f32 %v3965, %v3916
      %v3974 = vmul.f32 %v3966, %v3918
      %v3975 = vadd.f32 %v3967, 0.2548296
      %v3976 = vadd.f32 %v3968, 0.2548296
      %v3977 = vadd.f32 %v3969, 0.2548296
      %v3978 = vadd.f32 %v3970, 0.2548296
      %v3979 = vadd.f32 %v3971, 0.2548296
      %v3980 = vadd.f32 %v3972, 0.2548296
      %v3981 = vadd.f32 %v3973, 0.2548296
      %v3982 = vadd.f32 %v3974, 0.2548296
      %v3983 = vmul.f32 %v3975, %v3904
      %v3984 = vmul.f32 %v3976, %v3906
      %v3985 = vmul.f32 %v3977, %v3908
      %v3986 = vmul.f32 %v3978, %v3910
      %v3987 = vmul.f32 %v3979, %v3912
      %v3988 = vmul.f32 %v3980, %v3914
      %v3989 = vmul.f32 %v3981, %v3916
      %v3990 = vmul.f32 %v3982, %v3918
      %v3991 = vmul.f32 %v3879, %v3879
      %v3992 = vmul.f32 %v3880, %v3880
      %v3993 = vmul.f32 %v3881, %v3881
      %v3994 = vmul.f32 %v3882, %v3882
      %v3995 = vmul.f32 %v3883, %v3883
      %v3996 = vmul.f32 %v3884, %v3884
      %v3997 = vmul.f32 %v3885, %v3885
      %v3998 = vmul.f32 %v3886, %v3886
      %v3999 = vsub.f32 0.0, %v3991
      %v4000 = vsub.f32 0.0, %v3992
      %v4001 = vsub.f32 0.0, %v3993
      %v4002 = vsub.f32 0.0, %v3994
      %v4003 = vsub.f32 0.0, %v3995
      %v4004 = vsub.f32 0.0, %v3996
      %v4005 = vsub.f32 0.0, %v3997
      %v4006 = vsub.f32 0.0, %v3998
      %v4007 = vmul.f32 %v3999, 1.442695
      %v4008 = vpow.pop %v4007
      %v4009 = vmul.f32 %v4000, 1.442695
      %v4010 = vpow.pop %v4009
      %v4011 = vmul.f32 %v4001, 1.442695
      %v4012 = vpow.pop %v4011
      %v4013 = vmul.f32 %v4002, 1.442695
      %v4014 = vpow.pop %v4013
      %v4015 = vmul.f32 %v4003, 1.442695
      %v4016 = vpow.pop %v4015
      %v4017 = vmul.f32 %v4004, 1.442695
      %v4018 = vpow.pop %v4017
      %v4019 = vmul.f32 %v4005, 1.442695
      %v4020 = vpow.pop %v4019
      %v4021 = vmul.f32 %v4006, 1.442695
      %v4022 = vpow.pop %v4021
      %v4023 = vmul.f32 %v3983, %v4008
      %v4024 = vmul.f32 %v3984, %v4010
      %v4025 = vmul.f32 %v3985, %v4012
      %v4026 = vmul.f32 %v3986, %v4014
      %v4027 = vmul.f32 %v3987, %v4016
      %v4028 = vmul.f32 %v3988, %v4018
      %v4029 = vmul.f32 %v3989, %v4020
      %v4030 = vmul.f32 %v3990, %v4022
      %v4031 = vsub.f32 1.0, %v4023
      %v4032 = vsub.f32 1.0, %v4024
      %v4033 = vsub.f32 1.0, %v4025
      %v4034 = vsub.f32 1.0, %v4026
      %v4035 = vsub.f32 1.0, %v4027
      %v4036 = vsub.f32 1.0, %v4028
      %v4037 = vsub.f32 1.0, %v4029
      %v4038 = vsub.f32 1.0, %v4030
      %vm4039 = vcmp.ge.f32.partialorder %v3871, 0.0
      %vm4040 = vcmp.ge.f32.partialorder %v3872, 0.0
      %vm4041 = vcmp.ge.f32.partialorder %v3873, 0.0
      %vm4042 = vcmp.ge.f32.partialorder %v3874, 0.0
      %vm4043 = vcmp.ge.f32.partialorder %v3875, 0.0
      %vm4044 = vcmp.ge.f32.partialorder %v3876, 0.0
      %vm4045 = vcmp.ge.f32.partialorder %v3877, 0.0
      %vm4046 = vcmp.ge.f32.partialorder %v3878, 0.0
      %v4047 = vsub.f32 0.0, %v4031
      %v4048 = vsub.f32 0.0, %v4032
      %v4049 = vsub.f32 0.0, %v4033
      %v4050 = vsub.f32 0.0, %v4034
      %v4051 = vsub.f32 0.0, %v4035
      %v4052 = vsub.f32 0.0, %v4036
      %v4053 = vsub.f32 0.0, %v4037
      %v4054 = vsub.f32 0.0, %v4038
      %v4055 = vsel %vm4039, %v4031, %v4047
      %v4056 = vsel %vm4040, %v4032, %v4048
      %v4057 = vsel %vm4041, %v4033, %v4049
      %v4058 = vsel %vm4042, %v4034, %v4050
      %v4059 = vsel %vm4043, %v4035, %v4051
      %v4060 = vsel %vm4044, %v4036, %v4052
      %v4061 = vsel %vm4045, %v4037, %v4053
      %v4062 = vsel %vm4046, %v4038, %v4054
      %v4063 = vadd.f32 %v4055, 1.0
      %v4064 = vadd.f32 %v4056, 1.0
      %v4065 = vadd.f32 %v4057, 1.0
      %v4066 = vadd.f32 %v4058, 1.0
      %v4067 = vadd.f32 %v4059, 1.0
      %v4068 = vadd.f32 %v4060, 1.0
      %v4069 = vadd.f32 %v4061, 1.0
      %v4070 = vadd.f32 %v4062, 1.0
      %v4071 = vmul.f32 %v3863, %v4063
      %v4072 = vmul.f32 %v3864, %v4064
      %v4073 = vmul.f32 %v3865, %v4065
      %v4074 = vmul.f32 %v3866, %v4066
      %v4075 = vmul.f32 %v3867, %v4067
      %v4076 = vmul.f32 %v3868, %v4068
      %v4077 = vmul.f32 %v3869, %v4069
      %v4078 = vmul.f32 %v3870, %v4070
      %v4079 = vadd.f32 %v3612, %v4071
      %v4080 = vadd.f32 %v3613, %v4072
      %v4081 = vadd.f32 %v3614, %v4073
      %v4082 = vadd.f32 %v3615, %v4074
      %v4083 = vadd.f32 %v3616, %v4075
      %v4084 = vadd.f32 %v3617, %v4076
      %v4085 = vadd.f32 %v3618, %v4077
      %v4086 = vadd.f32 %v3619, %v4078
      %v4087 = vld [vmem:[%s894] sm:$0xff]
      %v4088 = vld [vmem:[%s894 + $0x8] sm:$0xff]
      %v4089 = vld [vmem:[%s894 + $0x10] sm:$0xff]
      %v4090 = vld [vmem:[%s894 + $0x18] sm:$0xff]
      %v4091 = vld [vmem:[%s894 + $0x20] sm:$0xff]
      %v4092 = vld [vmem:[%s894 + $0x28] sm:$0xff]
      %v4093 = vld [vmem:[%s894 + $0x30] sm:$0xff]
      %v4094 = vld [vmem:[%s894 + $0x38] sm:$0xff]
      %v4095 = vld [vmem:[%s894 + $0x40] sm:$0xff]
      %v4096 = vld [vmem:[%s894 + $0x48] sm:$0xff]
      %v4097 = vld [vmem:[%s894 + $0x50] sm:$0xff]
      %v4098 = vld [vmem:[%s894 + $0x58] sm:$0xff]
      %v4099 = vld [vmem:[%s894 + $0x60] sm:$0xff]
      %v4100 = vld [vmem:[%s894 + $0x68] sm:$0xff]
      %v4101 = vld [vmem:[%s894 + $0x70] sm:$0xff]
      %v4102 = vld [vmem:[%s894 + $0x78] sm:$0xff]
      %v4103 = vld [vmem:[%s897] sm:$0x1]
      %v4105 = vlaneseq
      %v4106 = vshrl.u32 %v4105, 7
      %v4107 = vsub.s32 0, %v4106
      %v4108 = vrot.slane %v4103, %v4107
      %4110 = vmatprep.subr.mxu0 0.0
      %4111 = vmatpush1.msra.mxu0 %v4087
      %4112 = vmatprep.subr.mxu0 0.0
      %4113 = vmatpush1.msra.mxu0 %v4088
      %4114 = vmatprep.subr.mxu0 0.0
      %4115 = vmatpush1.msra.mxu0 %v4089
      %4116 = vmatprep.subr.mxu0 0.0
      %4117 = vmatpush1.msra.mxu0 %v4090
      %4118 = vmatprep.subr.mxu0 0.0
      %4119 = vmatpush1.msra.mxu0 %v4091
      %4120 = vmatprep.subr.mxu0 0.0
      %4121 = vmatpush1.msra.mxu0 %v4092
      %4122 = vmatprep.subr.mxu0 0.0
      %4123 = vmatpush1.msra.mxu0 %v4093
      %4124 = vmatprep.subr.mxu0 0.0
      %4125 = vmatpush1.msra.mxu0 %v4094
      %4126 = vmatprep.subr.mxu0 0.0
      %4127 = vmatpush1.msra.mxu0 %v4095
      %4128 = vmatprep.subr.mxu0 0.0
      %4129 = vmatpush1.msra.mxu0 %v4096
      %4130 = vmatprep.subr.mxu0 0.0
      %4131 = vmatpush1.msra.mxu0 %v4097
      %4132 = vmatprep.subr.mxu0 0.0
      %4133 = vmatpush1.msra.mxu0 %v4098
      %4134 = vmatprep.subr.mxu0 0.0
      %4135 = vmatpush1.msra.mxu0 %v4099
      %4136 = vmatprep.subr.mxu0 0.0
      %4137 = vmatpush1.msra.mxu0 %v4100
      %4138 = vmatprep.subr.mxu0 0.0
      %4139 = vmatpush1.msra.mxu0 %v4101
      %4140 = vmatprep.subr.mxu0 0.0
      %4141 = vmatpush1.msra.mxu0 %v4102
      %4142 = vmatprep.subr.mxu0 0.0
      %4143 = vmatpush1.msra.mxu0 0.0
      %4144 = vmatprep.subr.mxu0 0.0
      %4145 = vmatpush1.msra.mxu0 0.0
      %4146 = vmatprep.subr.mxu0 0.0
      %4147 = vmatpush1.msra.mxu0 0.0
      %4148 = vmatprep.subr.mxu0 0.0
      %4149 = vmatpush1.msra.mxu0 0.0
      %4150 = vmatprep.subr.mxu0 0.0
      %4151 = vmatpush1.msra.mxu0 0.0
      %4152 = vmatprep.subr.mxu0 0.0
      %4153 = vmatpush1.msra.mxu0 0.0
      %4154 = vmatprep.subr.mxu0 0.0
      %4155 = vmatpush1.msra.mxu0 0.0
      %4156 = vmatprep.subr.mxu0 0.0
      %4157 = vmatpush1.msra.mxu0 0.0
      %4158 = vmatprep.subr.mxu0 0.0
      %4159 = vmatpush1.msra.mxu0 0.0
      %4160 = vmatprep.subr.mxu0 0.0
      %4161 = vmatpush1.msra.mxu0 0.0
      %4162 = vmatprep.subr.mxu0 0.0
      %4163 = vmatpush1.msra.mxu0 0.0
      %4164 = vmatprep.subr.mxu0 0.0
      %4165 = vmatpush1.msra.mxu0 0.0
      %4166 = vmatprep.subr.mxu0 0.0
      %4167 = vmatpush1.msra.mxu0 0.0
      %4168 = vmatprep.subr.mxu0 0.0
      %4169 = vmatpush1.msra.mxu0 0.0
      %4170 = vmatprep.subr.mxu0 0.0
      %4171 = vmatpush1.msra.mxu0 0.0
      %4172 = vmatprep.subr.mxu0 0.0
      %4173 = vmatpush1.msra.mxu0 0.0
      %4174 = vmatprep.mubr.f32.mxu0 0.0
      %4175 = vmatmul.mubr.f32.gmra.mrb[0].mxu0 %v4079
      %v4176 = vpop.f32.mrb[0].mxu0
      %v4177 = vadd.f32 %v4108, %v4176
      %v4178 = vpop.f32.mrb[0].mxu0
      %4179 = vmatprep.mubr.f32.mxu0 0.0
      %4180 = vmatmul.mubr.f32.gmra.mrb[0].mxu0 %v4080
      %v4181 = vpop.f32.mrb[0].mxu0
      %v4182 = vadd.f32 %v4108, %v4181
      %v4183 = vpop.f32.mrb[0].mxu0
      %4184 = vmatprep.mubr.f32.mxu0 0.0
      %4185 = vmatmul.mubr.f32.gmra.mrb[0].mxu0 %v4081
      %v4186 = vpop.f32.mrb[0].mxu0
      %v4187 = vadd.f32 %v4108, %v4186
      %v4188 = vpop.f32.mrb[0].mxu0
      %4189 = vmatprep.mubr.f32.mxu0 0.0
      %4190 = vmatmul.mubr.f32.gmra.mrb[0].mxu0 %v4082
      %v4191 = vpop.f32.mrb[0].mxu0
      %v4192 = vadd.f32 %v4108, %v4191
      %v4193 = vpop.f32.mrb[0].mxu0
      %4194 = vmatprep.mubr.f32.mxu0 0.0
      %4195 = vmatmul.mubr.f32.gmra.mrb[0].mxu0 %v4083
      %v4196 = vpop.f32.mrb[0].mxu0
      %v4197 = vadd.f32 %v4108, %v4196
      %v4198 = vpop.f32.mrb[0].mxu0
      %4199 = vmatprep.mubr.f32.mxu0 0.0
      %4200 = vmatmul.mubr.f32.gmra.mrb[0].mxu0 %v4084
      %v4201 = vpop.f32.mrb[0].mxu0
      %v4202 = vadd.f32 %v4108, %v4201
      %v4203 = vpop.f32.mrb[0].mxu0
      %4204 = vmatprep.mubr.f32.mxu0 0.0
      %4205 = vmatmul.mubr.f32.gmra.mrb[0].mxu0 %v4085
      %v4206 = vpop.f32.mrb[0].mxu0
      %v4207 = vadd.f32 %v4108, %v4206
      %v4208 = vpop.f32.mrb[0].mxu0
      %4209 = vmatprep.mubr.f32.mxu0 0.0
      %4210 = vmatmul.mubr.f32.gmra.mrb[0].mxu0 %v4086
      %v4211 = vpop.f32.mrb[0].mxu0
      %v4212 = vadd.f32 %v4108, %v4211
      %v4213 = vpop.f32.mrb[0].mxu0
      %4214 = vdwg.mxu0
      %v4215 = vld [vmem:[%s900] sm:$0x1]
      %v4217 = vlaneseq
      %v4218 = vshrl.u32 %v4217, 7
      %v4219 = vsub.s32 0, %v4218
      %v4220 = vrot.slane %v4215, %v4219
      %v4222 = vmul.f32 %v4220, %v4177
      %v4223 = vmul.f32 %v4220, %v4182
      %v4224 = vmul.f32 %v4220, %v4187
      %v4225 = vmul.f32 %v4220, %v4192
      %v4226 = vmul.f32 %v4220, %v4197
      %v4227 = vmul.f32 %v4220, %v4202
      %v4228 = vmul.f32 %v4220, %v4207
      %v4229 = vmul.f32 %v4220, %v4212
      %v4230 = vadd.f32 %v3142, %v4222
      %v4231 = vadd.f32 %v3143, %v4223
      %v4232 = vadd.f32 %v3144, %v4224
      %v4233 = vadd.f32 %v3145, %v4225
      %v4234 = vadd.f32 %v3146, %v4226
      %v4235 = vadd.f32 %v3147, %v4227
      %v4236 = vadd.f32 %v3148, %v4228
      %v4237 = vadd.f32 %v3149, %v4229
      %4238 = vst [vmem:[%s905] sm:$0xff] %v4230
      %4239 = vst [vmem:[%s905 + $0x8] sm:$0xff] %v4231
      %4240 = vst [vmem:[%s905 + $0x10] sm:$0xff] %v4232
      %4241 = vst [vmem:[%s905 + $0x18] sm:$0xff] %v4233
      %4242 = vst [vmem:[%s905 + $0x20] sm:$0xff] %v4234
      %4243 = vst [vmem:[%s905 + $0x28] sm:$0xff] %v4235
      %4244 = vst [vmem:[%s905 + $0x30] sm:$0xff] %v4236
      %4245 = vst [vmem:[%s905 + $0x38] sm:$0xff] %v4237
      %p4246 = scmp.lt.s32.totalorder %s34, 1
      %s4247 = scalar_select %p4246, %s34, 1
      %s4248 = smul.addr %s4247, 8
      %s4249 = smul.addr %s4248, 8
      %s4250 = scalar_lea.vmem %s19, %s4249
      // Predicated region
      $region101: #{stage_forward.3} parent=95 // pred_check
        %p4251 = pneg %p554
      $region102: #{stage_forward.3} parent=95 // pred_check_branch
        %4253 = sbr.rel (%p4251) target = $region104
      $region103: #{stage_forward.3} parent=95 // pred_region
        _
      $region104: #{stage_forward.3} parent=95 // pred_fallthru
        _
    $region96: #{stage_forward.3} parent=5 // pred_fallthru
      _
    %p4254 = scmp.le.s32.totalorder 2, %s25
    // Predicated region
    $region105: #{stage_forward.3} parent=5 // pred_check
      %p4255 = pneg %p4254
    $region106: #{stage_forward.3} parent=5 // pred_check_branch
      %4257 = sbr.rel (%p4255) target = $region108
    $region107: #{stage_forward.3} parent=5 // pred_region
      %s4258 = ssub.s32 %s25, 2
      // Predicated region
      $region109: #{stage_forward.3} parent=107 // pred_check
        %p4259 = pneg %p560
      $region110: #{stage_forward.3} parent=107 // pred_check_branch
        %4261 = sbr.rel (%p4259) target = $region112
      $region111: #{stage_forward.3} parent=107 // pred_region
        %p4262 = scmp.lt.s32.totalorder %s36, 1
        %s4263 = scalar_select %p4262, %s36, 1
        %s4264 = smul.addr %s4263, 8
        %s4265 = smul.addr %s4264, 8
        %s4266 = scalar_lea.vmem %s19, %s4265
      $region112: #{stage_forward.3} parent=107 // pred_fallthru
        _
    $region108: #{stage_forward.3} parent=5 // pred_fallthru
      _
  $region6: #{stage_forward.3} parent=0 // loop_footer
    %s29 = sadd.s32 1, %s25
  $region7: #{stage_forward.3} parent=0 // loop_footer_branch
    %24 = sbr.rel target = $region3
  $region8: #{stage_forward.3} parent=0 // loop_exit
    _

</llo_original>
